<compile_context>
chip_gen: v7x
topology: tpu7x:2x2x1
jax: 0.10.0
libtpu: 0.0.40
codegen_flags: <defaults>
</compile_context>

<pallas_src>
import jax
import jax.numpy as jnp
from jax import lax
from jax.experimental import pallas as pl
from jax.experimental.pallas import tpu as pltpu


_PMAX = 3  # max conv padding over all stages (7x7 -> pad 3)


def _round_up(v, m):
    return ((v + m - 1) // m) * m


def _chunk_plan(k, CP):
    """Group the k kernel rows (dy) into chunks of <=128 im2col rows each."""
    taps_per_chunk = max(1, 128 // CP)
    dy_per_chunk = max(1, taps_per_chunk // k)
    plan = []
    dy0 = 0
    while dy0 < k:
        plan.append((dy0, min(k, dy0 + dy_per_chunk)))
        dy0 += dy_per_chunk
    return plan


def _make_dcn_kernel(CP, H, W):
    P = _PMAX
    Hp, Wp = H + 2 * P, W + 2 * P
    L = Hp * Wp                      # flattened padded image length
    Lpad = _round_up(L, 128)         # lane-dense width (unmasked tiles)
    F = _round_up(P * Wp + P, 128)   # flat halo, rounded so stores are aligned
    Lext = 2 * F + Lpad              # extended flat buffer length
    chunk_plans = {k: _chunk_plan(k, CP) for k in (7, 5, 3)}

    def prelu(v, a):
        return jnp.where(v > 0, v, a * v)

    def sigmoid(v):
        return 1.0 / (1.0 + jnp.exp(-v))

    def dcn_kernel(x_ref, mask_ref, w1_ref, w2_ref, w3_ref,
                   a3_ref, a4_ref, a5_ref, a6_ref,
                   hr_ref, lf_ref,
                   ph0, ph1, pq0, pq1, bext_ref):
        ph_bufs = (ph0, ph1)     # bf16-rounded "hi" patch chunks (ping-pong)
        pq_bufs = (pq0, pq1)     # f32 residual "lo" patch chunks (ping-pong)

        x_ext = x_ref[0]                 # (CP, Lext) zero-padded flat layout
        mask = mask_ref[...]             # (1, Lpad): 1.0 on interior pixels
        a3 = a3_ref[0]
        a4 = a4_ref[0]
        a5 = a5_ref[0]
        a6 = a6_ref[0]

        # Only the halo strips of the staging buffer must be zero; the interior
        # [F, F+Lpad) is fully overwritten (and ring-masked) each stage.  Done
        # every grid step: scratch is uninitialized and per-TensorCore.
        bext_ref[:, 0:F] = jnp.zeros((CP, F), jnp.float32)
        bext_ref[:, F + Lpad:Lext] = jnp.zeros((CP, Lext - F - Lpad),
                                               jnp.float32)

        def stage(b_ext, w_ref, k, aA, aB):
            # bf16_3x-style split of the stage input.  The dots below run at
            # DEFAULT (single bf16 pass) MXU precision; splitting both the
            # image and the weights into hi/lo recovers ~f32 accuracy with
            # only 2 bf16 RHS streams per stage.
            p = k // 2
            b_hi = b_ext.astype(jnp.bfloat16).astype(jnp.float32)
            b_lo = b_ext - b_hi
            y = jnp.zeros((2 * CP, Lpad), jnp.float32)
            for ci, (dy0, dy1) in enumerate(chunk_plans[k]):
                ph = ph_bufs[ci % 2]
                pq = pq_bufs[ci % 2]
                rows = (dy1 - dy0) * k * CP
                # Build this K-chunk of the shared im2col patch (both branch
                # convs reuse it; the smaller branch kernel was zero-embedded).
                for dy in range(dy0, dy1):
                    for dx in range(k):
                        t = (dy - dy0) * k + dx
                        s = F + (dy - p) * Wp + (dx - p)
                        ph[t * CP:(t + 1) * CP, :] = b_hi[:, s:s + Lpad]
                        pq[t * CP:(t + 1) * CP, :] = b_lo[:, s:s + Lpad]
                col0 = dy0 * k * CP
                w_blk = w_ref[:, col0:col0 + rows]        # (4CP, rows)
                out_hi = jnp.dot(w_blk, ph[0:rows, :],
                                 preferred_element_type=jnp.float32)
                out_lo = jnp.dot(w_blk[0:2 * CP, :], pq[0:rows, :],
                                 preferred_element_type=jnp.float32)
                # W_hi.P_hi + W_lo.P_hi + W_hi.P_lo   (lo*lo dropped)
                y = y + out_hi[0:2 * CP] + out_hi[2 * CP:4 * CP] + out_lo
            yA = y[0:CP]
            yB = y[CP:2 * CP]
            return sigmoid(jnp.abs(prelu(yA, aA) - prelu(yB, aB)))  # (CP,Lpad)

        # Stage 1: conv1 (5x5 -> embedded 7x7, relu3) vs conv2 (7x7, relu4).
        e1 = stage(x_ext, w1_ref, 7, a3, a4)
        bext_ref[:, F:F + Lpad] = e1 * mask        # re-zero padding ring/tail
        # Stage 2: conv3 (3x3 -> embedded 5x5, relu3) vs conv4 (5x5, relu4).
        e2 = stage(bext_ref[...], w2_ref, 5, a3, a4)
        bext_ref[:, F:F + Lpad] = e2 * mask
        # Stage 3: conv5 (1x1 -> embedded 3x3, relu5) vs conv6 (3x3, relu6).
        e3 = stage(bext_ref[...], w3_ref, 3, a5, a6)

        hr_ref[0] = e3                              # edge3 (padded-flat layout)
        lf_ref[0] = x_ext[:, F:F + Lpad] - e3       # x - edge3

    return dcn_kernel


def dcn_forward(x, params):
    """Fused Pallas DCN forward.  x: (N, C, H, W) f32.  Returns (hr_2, lf_2)."""
    N, C, H, W = x.shape
    P = _PMAX
    CP = _round_up(C, 8)            # channels padded to a full sublane tile
    Hp, Wp = H + 2 * P, W + 2 * P
    L = Hp * Wp
    Lpad = _round_up(L, 128)
    F = _round_up(P * Wp + P, 128)
    Lext = 2 * F + Lpad

    # One small pad/reshape of the input into the flat padded+haloed layout.
    xp = jnp.pad(x, ((0, 0), (0, CP - C), (P, P), (P, P))).reshape(N, CP, L)
    x_ext = jnp.pad(xp, ((0, 0), (0, 0), (F, Lext - F - L)))

    mask = jnp.zeros((Hp, Wp), jnp.float32).at[P:P + H, P:P + W].set(1.0)
    mask = jnp.pad(mask.reshape(1, L), ((0, 0), (0, Lpad - L)))

    def pack_pair(wa, wb, k_big):
        """Two OIHW conv weights -> one (4*CP, CP*k_big^2) matmul weight.
        Rows [0:CP]=A_hi, [CP:2CP]=B_hi, [2CP:3CP]=A_lo, [3CP:4CP]=B_lo;
        columns are tap-major / input-channel-minor, matching the im2col rows.
        Padded output rows AND padded input-channel columns stay all-zero
        (this keeps the 0.5-valued padded rows of edge1/edge2 harmless)."""
        def embed(w):
            k = w.shape[-1]
            d = (k_big - k) // 2
            w = jnp.pad(w, ((0, 0), (0, 0), (d, d), (d, d)))   # embed spatially
            w = jnp.transpose(w, (0, 2, 3, 1))                 # (O, kb, kb, I)
            w = jnp.pad(w, ((0, CP - C), (0, 0), (0, 0), (0, CP - C)))
            return w.reshape(CP, k_big * k_big * CP)
        w_cat = jnp.concatenate([embed(wa), embed(wb)], axis=0)     # (2CP, K)
        w_hi = w_cat.astype(jnp.bfloat16).astype(jnp.float32)
        w_lo = w_cat - w_hi
        return jnp.concatenate([w_hi, w_lo], axis=0)                # (4CP, K)

    wmats = [pack_pair(params["w1"], params["w2"], 7),
             pack_pair(params["w3"], params["w4"], 5),
             pack_pair(params["w5"], params["w6"], 3)]
    alphas = [params["a3"], params["a4"], params["a5"], params["a6"]]

    max_rows = max((dy1 - dy0) * k * CP
                   for k in (7, 5, 3) for (dy0, dy1) in _chunk_plan(k, CP))

    smem = pl.BlockSpec(memory_space=pltpu.MemorySpace.SMEM)
    in_specs = [pl.BlockSpec((1, CP, Lext), lambda b: (b, 0, 0)),
                pl.BlockSpec((1, Lpad), lambda b: (0, 0))]
    in_specs += [pl.BlockSpec(wm.shape, lambda b: (0, 0)) for wm in wmats]
    in_specs += [smem] * 4

    out_specs = (pl.BlockSpec((1, CP, Lpad), lambda b: (b, 0, 0)),
                 pl.BlockSpec((1, CP, Lpad), lambda b: (b, 0, 0)))
    out_shape = (jax.ShapeDtypeStruct((N, CP, Lpad), jnp.float32),
                 jax.ShapeDtypeStruct((N, CP, Lpad), jnp.float32))

    kernel = _make_dcn_kernel(CP, H, W)

    hr_pad, lf_pad = pl.pallas_call(
        kernel,
        grid=(N,),                  # >=2 parallel blocks keeps both v7x TCs busy
        in_specs=in_specs,
        out_specs=out_specs,
        out_shape=out_shape,
        scratch_shapes=[pltpu.VMEM((max_rows, Lpad), jnp.float32),   # patch hi 0
                        pltpu.VMEM((max_rows, Lpad), jnp.float32),   # patch hi 1
                        pltpu.VMEM((max_rows, Lpad), jnp.float32),   # patch lo 0
                        pltpu.VMEM((max_rows, Lpad), jnp.float32),   # patch lo 1
                        pltpu.VMEM((CP, Lext), jnp.float32)],        # staged edges
        compiler_params=pltpu.CompilerParams(
            dimension_semantics=("parallel",)),
    )(x_ext, mask, *wmats, *alphas)

    def crop(o):
        return o[:, :C, :L].reshape(N, C, Hp, Wp)[:, :, P:P + H, P:P + W]

    return crop(hr_pad), crop(lf_pad)


def dcn_reference(x, params):
    """Pure-JAX reference of the PyTorch forward (for verification)."""
    def conv(v, w, pad):
        return lax.conv_general_dilated(
            v, w, window_strides=(1, 1), padding=((pad, pad), (pad, pad)),
            dimension_numbers=("NCHW", "OIHW", "NCHW"),
            precision=lax.Precision.HIGHEST)

    def prelu(v, a):
        return jnp.where(v > 0, v, a * v)

    sig = jax.nn.sigmoid
    y1 = prelu(conv(x, params["w1"], 2), params["a3"])
    y2 = prelu(conv(x, params["w2"], 3), params["a4"])
    edge1 = sig(jnp.abs(y2 - y1))
    y1 = prelu(conv(edge1, params["w3"], 1), params["a3"])
    y2 = prelu(conv(edge1, params["w4"], 2), params["a4"])
    edge2 = sig(jnp.abs(y1 - y2))
    y1 = prelu(conv(edge2, params["w5"], 0), params["a5"])
    y2 = prelu(conv(edge2, params["w6"], 1), params["a6"])
    edge3 = sig(jnp.abs(y1 - y2))
    return edge3, x - edge3


if __name__ == "__main__":
    key = jax.random.PRNGKey(0)
    N, C, H, W = 2, 4, 16, 16
    keys = jax.random.split(key, 7)
    x = jax.random.normal(keys[0], (N, C, H, W), jnp.float32)

    def init_w(k, ksize):
        fan_in = C * ksize * ksize
        return (jax.random.normal(k, (C, C, ksize, ksize), jnp.float32)
                / jnp.sqrt(jnp.float32(fan_in)))

    params = {
        "w1": init_w(keys[1], 5),
        "w2": init_w(keys[2], 7),
        "w3": init_w(keys[3], 3),
        "w4": init_w(keys[4], 5),
        "w5": init_w(keys[5], 1),
        "w6": init_w(keys[6], 3),
        # nn.PReLU() default: a single parameter initialized to 0.25
        "a3": jnp.array([0.25], jnp.float32),
        "a4": jnp.array([0.25], jnp.float32),
        "a5": jnp.array([0.25], jnp.float32),
        "a6": jnp.array([0.25], jnp.float32),
    }

    hr, lf = jax.jit(dcn_forward)(x, params)
    jax.block_until_ready((hr, lf))

    hr_ref, lf_ref = dcn_reference(x, params)
    assert hr.shape == (N, C, H, W) and lf.shape == (N, C, H, W)
    assert jnp.allclose(hr, hr_ref, atol=1e-3, rtol=1e-3), "hr_2 mismatch"
    assert jnp.allclose(lf, lf_ref, atol=1e-3, rtol=1e-3), "lf_2 mismatch"
    print("KERNEL_OK")
</pallas_src>

<mosaic_0001>
module attributes {stable_mosaic.version = 11 : i64} {
  func.func @dcn_kernel(%arg0: i32, %arg1: memref<1x8x768xf32, #tpu.memory_space<vmem>>, %arg2: memref<1x512xf32, #tpu.memory_space<vmem>>, %arg3: memref<32x392xf32, #tpu.memory_space<vmem>>, %arg4: memref<32x200xf32, #tpu.memory_space<vmem>>, %arg5: memref<32x72xf32, #tpu.memory_space<vmem>>, %arg6: memref<1xf32, #tpu.memory_space<smem>>, %arg7: memref<1xf32, #tpu.memory_space<smem>>, %arg8: memref<1xf32, #tpu.memory_space<smem>>, %arg9: memref<1xf32, #tpu.memory_space<smem>>, %arg10: memref<1x8x512xf32, #tpu.memory_space<vmem>>, %arg11: memref<1x8x512xf32, #tpu.memory_space<vmem>>, %arg12: memref<120x512xf32, #tpu.memory_space<vmem>>, %arg13: memref<120x512xf32, #tpu.memory_space<vmem>>, %arg14: memref<120x512xf32, #tpu.memory_space<vmem>>, %arg15: memref<120x512xf32, #tpu.memory_space<vmem>>, %arg16: memref<8x768xf32, #tpu.memory_space<vmem>>) attributes {dimension_semantics = [#tpu.dimension_semantics<parallel>], iteration_bounds = array<i64: 2>, scalar_prefetch = 0 : i64, scratch_operands = 5 : i64, tpu.core_type = #tpu.core_type<tc>, window_params = [{transform_indices = @transform_0, window_bounds = array<i64: 1, 8, 768>}, {pipeline_mode = #tpu.pipeline_mode<synchronous>, transform_indices = @transform_1, window_bounds = array<i64: 1, 512>}, {pipeline_mode = #tpu.pipeline_mode<synchronous>, transform_indices = @transform_2, window_bounds = array<i64: 32, 392>}, {pipeline_mode = #tpu.pipeline_mode<synchronous>, transform_indices = @transform_3, window_bounds = array<i64: 32, 200>}, {pipeline_mode = #tpu.pipeline_mode<synchronous>, transform_indices = @transform_4, window_bounds = array<i64: 32, 72>}, {transform_indices = @transform_5, window_bounds = array<i64: 1>}, {transform_indices = @transform_6, window_bounds = array<i64: 1>}, {transform_indices = @transform_7, window_bounds = array<i64: 1>}, {transform_indices = @transform_8, window_bounds = array<i64: 1>}, {transform_indices = @transform_9, window_bounds = array<i64: 1, 8, 512>}, {transform_indices = @transform_10, window_bounds = array<i64: 1, 8, 512>}]} {
    %c0 = arith.constant 0 : index
    %c0_0 = arith.constant 0 : index
    %c0_1 = arith.constant 0 : index
    %0 = vector.load %arg1[%c0, %c0_0, %c0_1] : memref<1x8x768xf32, #tpu.memory_space<vmem>>, vector<1x8x768xf32>
    %1 = vector.shape_cast %0 : vector<1x8x768xf32> to vector<8x768xf32>
    %c0_2 = arith.constant 0 : index
    %c0_3 = arith.constant 0 : index
    %2 = vector.load %arg2[%c0_2, %c0_3] : memref<1x512xf32, #tpu.memory_space<vmem>>, vector<1x512xf32>
    %c0_4 = arith.constant 0 : index
    %3 = memref.load %arg6[%c0_4] : memref<1xf32, #tpu.memory_space<smem>>
    %c0_5 = arith.constant 0 : index
    %4 = memref.load %arg7[%c0_5] : memref<1xf32, #tpu.memory_space<smem>>
    %c0_6 = arith.constant 0 : index
    %5 = memref.load %arg8[%c0_6] : memref<1xf32, #tpu.memory_space<smem>>
    %c0_7 = arith.constant 0 : index
    %6 = memref.load %arg9[%c0_7] : memref<1xf32, #tpu.memory_space<smem>>
    %cst = arith.constant 0.000000e+00 : f32
    %7 = vector.broadcast %cst : f32 to vector<8x128xf32>
    %c0_8 = arith.constant 0 : index
    %c0_9 = arith.constant 0 : index
    %8 = vector.load %arg16[%c0_8, %c0_9] : memref<8x768xf32, #tpu.memory_space<vmem>>, vector<8x128xf32>
    tpu.vector_store %arg16[%c0_8, %c0_9], %7 {strides = array<i32>} : memref<8x768xf32, #tpu.memory_space<vmem>>, vector<8x128xf32>,
    %cst_10 = arith.constant 0.000000e+00 : f32
    %9 = vector.broadcast %cst_10 : f32 to vector<8x128xf32>
    %c0_11 = arith.constant 0 : index
    %c640 = arith.constant 640 : index
    %10 = vector.load %arg16[%c0_11, %c640] : memref<8x768xf32, #tpu.memory_space<vmem>>, vector<8x128xf32>
    tpu.vector_store %arg16[%c0_11, %c640], %9 {strides = array<i32>} : memref<8x768xf32, #tpu.memory_space<vmem>>, vector<8x128xf32>,
    %11 = arith.truncf %1 : vector<8x768xf32> to vector<8x768xbf16>
    %12 = arith.extf %11 : vector<8x768xbf16> to vector<8x768xf32>
    %13 = arith.subf %1, %12 : vector<8x768xf32>
    %cst_12 = arith.constant 0.000000e+00 : f32
    %14 = vector.broadcast %cst_12 : f32 to vector<16x512xf32>
    %15 = vector.extract_strided_slice %12 {offsets = [0, 59], sizes = [8, 512], strides = [1, 1]} : vector<8x768xf32> to vector<8x512xf32>
    %c0_13 = arith.constant 0 : index
    %c0_14 = arith.constant 0 : index
    %16 = vector.load %arg12[%c0_13, %c0_14] : memref<120x512xf32, #tpu.memory_space<vmem>>, vector<8x512xf32>
    tpu.vector_store %arg12[%c0_13, %c0_14], %15 {strides = array<i32>} : memref<120x512xf32, #tpu.memory_space<vmem>>, vector<8x512xf32>,
    %17 = vector.extract_strided_slice %13 {offsets = [0, 59], sizes = [8, 512], strides = [1, 1]} : vector<8x768xf32> to vector<8x512xf32>
    %c0_15 = arith.constant 0 : index
    %c0_16 = arith.constant 0 : index
    %18 = vector.load %arg14[%c0_15, %c0_16] : memref<120x512xf32, #tpu.memory_space<vmem>>, vector<8x512xf32>
    tpu.vector_store %arg14[%c0_15, %c0_16], %17 {strides = array<i32>} : memref<120x512xf32, #tpu.memory_space<vmem>>, vector<8x512xf32>,
    %19 = vector.extract_strided_slice %12 {offsets = [0, 60], sizes = [8, 512], strides = [1, 1]} : vector<8x768xf32> to vector<8x512xf32>
    %c8 = arith.constant 8 : index
    %c0_17 = arith.constant 0 : index
    %20 = vector.load %arg12[%c8, %c0_17] : memref<120x512xf32, #tpu.memory_space<vmem>>, vector<8x512xf32>
    tpu.vector_store %arg12[%c8, %c0_17], %19 {strides = array<i32>} : memref<120x512xf32, #tpu.memory_space<vmem>>, vector<8x512xf32>,
    %21 = vector.extract_strided_slice %13 {offsets = [0, 60], sizes = [8, 512], strides = [1, 1]} : vector<8x768xf32> to vector<8x512xf32>
    %c8_18 = arith.constant 8 : index
    %c0_19 = arith.constant 0 : index
    %22 = vector.load %arg14[%c8_18, %c0_19] : memref<120x512xf32, #tpu.memory_space<vmem>>, vector<8x512xf32>
    tpu.vector_store %arg14[%c8_18, %c0_19], %21 {strides = array<i32>} : memref<120x512xf32, #tpu.memory_space<vmem>>, vector<8x512xf32>,
    %23 = vector.extract_strided_slice %12 {offsets = [0, 61], sizes = [8, 512], strides = [1, 1]} : vector<8x768xf32> to vector<8x512xf32>
    %c16 = arith.constant 16 : index
    %c0_20 = arith.constant 0 : index
    %24 = vector.load %arg12[%c16, %c0_20] : memref<120x512xf32, #tpu.memory_space<vmem>>, vector<8x512xf32>
    tpu.vector_store %arg12[%c16, %c0_20], %23 {strides = array<i32>} : memref<120x512xf32, #tpu.memory_space<vmem>>, vector<8x512xf32>,
    %25 = vector.extract_strided_slice %13 {offsets = [0, 61], sizes = [8, 512], strides = [1, 1]} : vector<8x768xf32> to vector<8x512xf32>
    %c16_21 = arith.constant 16 : index
    %c0_22 = arith.constant 0 : index
    %26 = vector.load %arg14[%c16_21, %c0_22] : memref<120x512xf32, #tpu.memory_space<vmem>>, vector<8x512xf32>
    tpu.vector_store %arg14[%c16_21, %c0_22], %25 {strides = array<i32>} : memref<120x512xf32, #tpu.memory_space<vmem>>, vector<8x512xf32>,
    %27 = vector.extract_strided_slice %12 {offsets = [0, 62], sizes = [8, 512], strides = [1, 1]} : vector<8x768xf32> to vector<8x512xf32>
    %c24 = arith.constant 24 : index
    %c0_23 = arith.constant 0 : index
    %28 = vector.load %arg12[%c24, %c0_23] : memref<120x512xf32, #tpu.memory_space<vmem>>, vector<8x512xf32>
    tpu.vector_store %arg12[%c24, %c0_23], %27 {strides = array<i32>} : memref<120x512xf32, #tpu.memory_space<vmem>>, vector<8x512xf32>,
    %29 = vector.extract_strided_slice %13 {offsets = [0, 62], sizes = [8, 512], strides = [1, 1]} : vector<8x768xf32> to vector<8x512xf32>
    %c24_24 = arith.constant 24 : index
    %c0_25 = arith.constant 0 : index
    %30 = vector.load %arg14[%c24_24, %c0_25] : memref<120x512xf32, #tpu.memory_space<vmem>>, vector<8x512xf32>
    tpu.vector_store %arg14[%c24_24, %c0_25], %29 {strides = array<i32>} : memref<120x512xf32, #tpu.memory_space<vmem>>, vector<8x512xf32>,
    %31 = vector.extract_strided_slice %12 {offsets = [0, 63], sizes = [8, 512], strides = [1, 1]} : vector<8x768xf32> to vector<8x512xf32>
    %c32 = arith.constant 32 : index
    %c0_26 = arith.constant 0 : index
    %32 = vector.load %arg12[%c32, %c0_26] : memref<120x512xf32, #tpu.memory_space<vmem>>, vector<8x512xf32>
    tpu.vector_store %arg12[%c32, %c0_26], %31 {strides = array<i32>} : memref<120x512xf32, #tpu.memory_space<vmem>>, vector<8x512xf32>,
    %33 = vector.extract_strided_slice %13 {offsets = [0, 63], sizes = [8, 512], strides = [1, 1]} : vector<8x768xf32> to vector<8x512xf32>
    %c32_27 = arith.constant 32 : index
    %c0_28 = arith.constant 0 : index
    %34 = vector.load %arg14[%c32_27, %c0_28] : memref<120x512xf32, #tpu.memory_space<vmem>>, vector<8x512xf32>
    tpu.vector_store %arg14[%c32_27, %c0_28], %33 {strides = array<i32>} : memref<120x512xf32, #tpu.memory_space<vmem>>, vector<8x512xf32>,
    %35 = vector.extract_strided_slice %12 {offsets = [0, 64], sizes = [8, 512], strides = [1, 1]} : vector<8x768xf32> to vector<8x512xf32>
    %c40 = arith.constant 40 : index
    %c0_29 = arith.constant 0 : index
    %36 = vector.load %arg12[%c40, %c0_29] : memref<120x512xf32, #tpu.memory_space<vmem>>, vector<8x512xf32>
    tpu.vector_store %arg12[%c40, %c0_29], %35 {strides = array<i32>} : memref<120x512xf32, #tpu.memory_space<vmem>>, vector<8x512xf32>,
    %37 = vector.extract_strided_slice %13 {offsets = [0, 64], sizes = [8, 512], strides = [1, 1]} : vector<8x768xf32> to vector<8x512xf32>
    %c40_30 = arith.constant 40 : index
    %c0_31 = arith.constant 0 : index
    %38 = vector.load %arg14[%c40_30, %c0_31] : memref<120x512xf32, #tpu.memory_space<vmem>>, vector<8x512xf32>
    tpu.vector_store %arg14[%c40_30, %c0_31], %37 {strides = array<i32>} : memref<120x512xf32, #tpu.memory_space<vmem>>, vector<8x512xf32>,
    %39 = vector.extract_strided_slice %12 {offsets = [0, 65], sizes = [8, 512], strides = [1, 1]} : vector<8x768xf32> to vector<8x512xf32>
    %c48 = arith.constant 48 : index
    %c0_32 = arith.constant 0 : index
    %40 = vector.load %arg12[%c48, %c0_32] : memref<120x512xf32, #tpu.memory_space<vmem>>, vector<8x512xf32>
    tpu.vector_store %arg12[%c48, %c0_32], %39 {strides = array<i32>} : memref<120x512xf32, #tpu.memory_space<vmem>>, vector<8x512xf32>,
    %41 = vector.extract_strided_slice %13 {offsets = [0, 65], sizes = [8, 512], strides = [1, 1]} : vector<8x768xf32> to vector<8x512xf32>
    %c48_33 = arith.constant 48 : index
    %c0_34 = arith.constant 0 : index
    %42 = vector.load %arg14[%c48_33, %c0_34] : memref<120x512xf32, #tpu.memory_space<vmem>>, vector<8x512xf32>
    tpu.vector_store %arg14[%c48_33, %c0_34], %41 {strides = array<i32>} : memref<120x512xf32, #tpu.memory_space<vmem>>, vector<8x512xf32>,
    %43 = vector.extract_strided_slice %12 {offsets = [0, 81], sizes = [8, 512], strides = [1, 1]} : vector<8x768xf32> to vector<8x512xf32>
    %c56 = arith.constant 56 : index
    %c0_35 = arith.constant 0 : index
    %44 = vector.load %arg12[%c56, %c0_35] : memref<120x512xf32, #tpu.memory_space<vmem>>, vector<8x512xf32>
    tpu.vector_store %arg12[%c56, %c0_35], %43 {strides = array<i32>} : memref<120x512xf32, #tpu.memory_space<vmem>>, vector<8x512xf32>,
    %45 = vector.extract_strided_slice %13 {offsets = [0, 81], sizes = [8, 512], strides = [1, 1]} : vector<8x768xf32> to vector<8x512xf32>
    %c56_36 = arith.constant 56 : index
    %c0_37 = arith.constant 0 : index
    %46 = vector.load %arg14[%c56_36, %c0_37] : memref<120x512xf32, #tpu.memory_space<vmem>>, vector<8x512xf32>
    tpu.vector_store %arg14[%c56_36, %c0_37], %45 {strides = array<i32>} : memref<120x512xf32, #tpu.memory_space<vmem>>, vector<8x512xf32>,
    %47 = vector.extract_strided_slice %12 {offsets = [0, 82], sizes = [8, 512], strides = [1, 1]} : vector<8x768xf32> to vector<8x512xf32>
    %c64 = arith.constant 64 : index
    %c0_38 = arith.constant 0 : index
    %48 = vector.load %arg12[%c64, %c0_38] : memref<120x512xf32, #tpu.memory_space<vmem>>, vector<8x512xf32>
    tpu.vector_store %arg12[%c64, %c0_38], %47 {strides = array<i32>} : memref<120x512xf32, #tpu.memory_space<vmem>>, vector<8x512xf32>,
    %49 = vector.extract_strided_slice %13 {offsets = [0, 82], sizes = [8, 512], strides = [1, 1]} : vector<8x768xf32> to vector<8x512xf32>
    %c64_39 = arith.constant 64 : index
    %c0_40 = arith.constant 0 : index
    %50 = vector.load %arg14[%c64_39, %c0_40] : memref<120x512xf32, #tpu.memory_space<vmem>>, vector<8x512xf32>
    tpu.vector_store %arg14[%c64_39, %c0_40], %49 {strides = array<i32>} : memref<120x512xf32, #tpu.memory_space<vmem>>, vector<8x512xf32>,
    %51 = vector.extract_strided_slice %12 {offsets = [0, 83], sizes = [8, 512], strides = [1, 1]} : vector<8x768xf32> to vector<8x512xf32>
    %c72 = arith.constant 72 : index
    %c0_41 = arith.constant 0 : index
    %52 = vector.load %arg12[%c72, %c0_41] : memref<120x512xf32, #tpu.memory_space<vmem>>, vector<8x512xf32>
    tpu.vector_store %arg12[%c72, %c0_41], %51 {strides = array<i32>} : memref<120x512xf32, #tpu.memory_space<vmem>>, vector<8x512xf32>,
    %53 = vector.extract_strided_slice %13 {offsets = [0, 83], sizes = [8, 512], strides = [1, 1]} : vector<8x768xf32> to vector<8x512xf32>
    %c72_42 = arith.constant 72 : index
    %c0_43 = arith.constant 0 : index
    %54 = vector.load %arg14[%c72_42, %c0_43] : memref<120x512xf32, #tpu.memory_space<vmem>>, vector<8x512xf32>
    tpu.vector_store %arg14[%c72_42, %c0_43], %53 {strides = array<i32>} : memref<120x512xf32, #tpu.memory_space<vmem>>, vector<8x512xf32>,
    %55 = vector.extract_strided_slice %12 {offsets = [0, 84], sizes = [8, 512], strides = [1, 1]} : vector<8x768xf32> to vector<8x512xf32>
    %c80 = arith.constant 80 : index
    %c0_44 = arith.constant 0 : index
    %56 = vector.load %arg12[%c80, %c0_44] : memref<120x512xf32, #tpu.memory_space<vmem>>, vector<8x512xf32>
    tpu.vector_store %arg12[%c80, %c0_44], %55 {strides = array<i32>} : memref<120x512xf32, #tpu.memory_space<vmem>>, vector<8x512xf32>,
    %57 = vector.extract_strided_slice %13 {offsets = [0, 84], sizes = [8, 512], strides = [1, 1]} : vector<8x768xf32> to vector<8x512xf32>
    %c80_45 = arith.constant 80 : index
    %c0_46 = arith.constant 0 : index
    %58 = vector.load %arg14[%c80_45, %c0_46] : memref<120x512xf32, #tpu.memory_space<vmem>>, vector<8x512xf32>
    tpu.vector_store %arg14[%c80_45, %c0_46], %57 {strides = array<i32>} : memref<120x512xf32, #tpu.memory_space<vmem>>, vector<8x512xf32>,
    %59 = vector.extract_strided_slice %12 {offsets = [0, 85], sizes = [8, 512], strides = [1, 1]} : vector<8x768xf32> to vector<8x512xf32>
    %c88 = arith.constant 88 : index
    %c0_47 = arith.constant 0 : index
    %60 = vector.load %arg12[%c88, %c0_47] : memref<120x512xf32, #tpu.memory_space<vmem>>, vector<8x512xf32>
    tpu.vector_store %arg12[%c88, %c0_47], %59 {strides = array<i32>} : memref<120x512xf32, #tpu.memory_space<vmem>>, vector<8x512xf32>,
    %61 = vector.extract_strided_slice %13 {offsets = [0, 85], sizes = [8, 512], strides = [1, 1]} : vector<8x768xf32> to vector<8x512xf32>
    %c88_48 = arith.constant 88 : index
    %c0_49 = arith.constant 0 : index
    %62 = vector.load %arg14[%c88_48, %c0_49] : memref<120x512xf32, #tpu.memory_space<vmem>>, vector<8x512xf32>
    tpu.vector_store %arg14[%c88_48, %c0_49], %61 {strides = array<i32>} : memref<120x512xf32, #tpu.memory_space<vmem>>, vector<8x512xf32>,
    %63 = vector.extract_strided_slice %12 {offsets = [0, 86], sizes = [8, 512], strides = [1, 1]} : vector<8x768xf32> to vector<8x512xf32>
    %c96 = arith.constant 96 : index
    %c0_50 = arith.constant 0 : index
    %64 = vector.load %arg12[%c96, %c0_50] : memref<120x512xf32, #tpu.memory_space<vmem>>, vector<8x512xf32>
    tpu.vector_store %arg12[%c96, %c0_50], %63 {strides = array<i32>} : memref<120x512xf32, #tpu.memory_space<vmem>>, vector<8x512xf32>,
    %65 = vector.extract_strided_slice %13 {offsets = [0, 86], sizes = [8, 512], strides = [1, 1]} : vector<8x768xf32> to vector<8x512xf32>
    %c96_51 = arith.constant 96 : index
    %c0_52 = arith.constant 0 : index
    %66 = vector.load %arg14[%c96_51, %c0_52] : memref<120x512xf32, #tpu.memory_space<vmem>>, vector<8x512xf32>
    tpu.vector_store %arg14[%c96_51, %c0_52], %65 {strides = array<i32>} : memref<120x512xf32, #tpu.memory_space<vmem>>, vector<8x512xf32>,
    %67 = vector.extract_strided_slice %12 {offsets = [0, 87], sizes = [8, 512], strides = [1, 1]} : vector<8x768xf32> to vector<8x512xf32>
    %c104 = arith.constant 104 : index
    %c0_53 = arith.constant 0 : index
    %68 = vector.load %arg12[%c104, %c0_53] : memref<120x512xf32, #tpu.memory_space<vmem>>, vector<8x512xf32>
    tpu.vector_store %arg12[%c104, %c0_53], %67 {strides = array<i32>} : memref<120x512xf32, #tpu.memory_space<vmem>>, vector<8x512xf32>,
    %69 = vector.extract_strided_slice %13 {offsets = [0, 87], sizes = [8, 512], strides = [1, 1]} : vector<8x768xf32> to vector<8x512xf32>
    %c104_54 = arith.constant 104 : index
    %c0_55 = arith.constant 0 : index
    %70 = vector.load %arg14[%c104_54, %c0_55] : memref<120x512xf32, #tpu.memory_space<vmem>>, vector<8x512xf32>
    tpu.vector_store %arg14[%c104_54, %c0_55], %69 {strides = array<i32>} : memref<120x512xf32, #tpu.memory_space<vmem>>, vector<8x512xf32>,
    %c0_56 = arith.constant 0 : index
    %c0_57 = arith.constant 0 : index
    %71 = vector.load %arg3[%c0_56, %c0_57] : memref<32x392xf32, #tpu.memory_space<vmem>>, vector<32x112xf32>
    %c0_58 = arith.constant 0 : index
    %c0_59 = arith.constant 0 : index
    %72 = vector.load %arg12[%c0_58, %c0_59] : memref<120x512xf32, #tpu.memory_space<vmem>>, vector<112x512xf32>
    %cst_60 = arith.constant dense<0.000000e+00> : vector<32x512xf32>
    %73 = tpu.matmul %71, %72, %cst_60 {dimension_numbers = #tpu.dot_dimension_numbers<[1], [0], [0], [1], [0, 0, 1, 1], [], []>} : vector<32x112xf32>, vector<112x512xf32>, vector<32x512xf32> -> vector<32x512xf32>
    %74 = vector.extract_strided_slice %71 {offsets = [0, 0], sizes = [16, 112], strides = [1, 1]} : vector<32x112xf32> to vector<16x112xf32>
    %c0_61 = arith.constant 0 : index
    %c0_62 = arith.constant 0 : index
    %75 = vector.load %arg14[%c0_61, %c0_62] : memref<120x512xf32, #tpu.memory_space<vmem>>, vector<112x512xf32>
    %cst_63 = arith.constant dense<0.000000e+00> : vector<16x512xf32>
    %76 = tpu.matmul %74, %75, %cst_63 {dimension_numbers = #tpu.dot_dimension_numbers<[1], [0], [0], [1], [0, 0, 1, 1], [], []>} : vector<16x112xf32>, vector<112x512xf32>, vector<16x512xf32> -> vector<16x512xf32>
    %77 = vector.extract_strided_slice %73 {offsets = [0, 0], sizes = [16, 512], strides = [1, 1]} : vector<32x512xf32> to vector<16x512xf32>
    %78 = arith.addf %14, %77 : vector<16x512xf32>
    %79 = vector.extract_strided_slice %73 {offsets = [16, 0], sizes = [16, 512], strides = [1, 1]} : vector<32x512xf32> to vector<16x512xf32>
    %80 = arith.addf %78, %79 : vector<16x512xf32>
    %81 = arith.addf %80, %76 : vector<16x512xf32>
    %82 = vector.extract_strided_slice %12 {offsets = [0, 103], sizes = [8, 512], strides = [1, 1]} : vector<8x768xf32> to vector<8x512xf32>
    %c0_64 = arith.constant 0 : index
    %c0_65 = arith.constant 0 : index
    %83 = vector.load %arg13[%c0_64, %c0_65] : memref<120x512xf32, #tpu.memory_space<vmem>>, vector<8x512xf32>
    tpu.vector_store %arg13[%c0_64, %c0_65], %82 {strides = array<i32>} : memref<120x512xf32, #tpu.memory_space<vmem>>, vector<8x512xf32>,
    %84 = vector.extract_strided_slice %13 {offsets = [0, 103], sizes = [8, 512], strides = [1, 1]} : vector<8x768xf32> to vector<8x512xf32>
    %c0_66 = arith.constant 0 : index
    %c0_67 = arith.constant 0 : index
    %85 = vector.load %arg15[%c0_66, %c0_67] : memref<120x512xf32, #tpu.memory_space<vmem>>, vector<8x512xf32>
    tpu.vector_store %arg15[%c0_66, %c0_67], %84 {strides = array<i32>} : memref<120x512xf32, #tpu.memory_space<vmem>>, vector<8x512xf32>,
    %86 = vector.extract_strided_slice %12 {offsets = [0, 104], sizes = [8, 512], strides = [1, 1]} : vector<8x768xf32> to vector<8x512xf32>
    %c8_68 = arith.constant 8 : index
    %c0_69 = arith.constant 0 : index
    %87 = vector.load %arg13[%c8_68, %c0_69] : memref<120x512xf32, #tpu.memory_space<vmem>>, vector<8x512xf32>
    tpu.vector_store %arg13[%c8_68, %c0_69], %86 {strides = array<i32>} : memref<120x512xf32, #tpu.memory_space<vmem>>, vector<8x512xf32>,
    %88 = vector.extract_strided_slice %13 {offsets = [0, 104], sizes = [8, 512], strides = [1, 1]} : vector<8x768xf32> to vector<8x512xf32>
    %c8_70 = arith.constant 8 : index
    %c0_71 = arith.constant 0 : index
    %89 = vector.load %arg15[%c8_70, %c0_71] : memref<120x512xf32, #tpu.memory_space<vmem>>, vector<8x512xf32>
    tpu.vector_store %arg15[%c8_70, %c0_71], %88 {strides = array<i32>} : memref<120x512xf32, #tpu.memory_space<vmem>>, vector<8x512xf32>,
    %90 = vector.extract_strided_slice %12 {offsets = [0, 105], sizes = [8, 512], strides = [1, 1]} : vector<8x768xf32> to vector<8x512xf32>
    %c16_72 = arith.constant 16 : index
    %c0_73 = arith.constant 0 : index
    %91 = vector.load %arg13[%c16_72, %c0_73] : memref<120x512xf32, #tpu.memory_space<vmem>>, vector<8x512xf32>
    tpu.vector_store %arg13[%c16_72, %c0_73], %90 {strides = array<i32>} : memref<120x512xf32, #tpu.memory_space<vmem>>, vector<8x512xf32>,
    %92 = vector.extract_strided_slice %13 {offsets = [0, 105], sizes = [8, 512], strides = [1, 1]} : vector<8x768xf32> to vector<8x512xf32>
    %c16_74 = arith.constant 16 : index
    %c0_75 = arith.constant 0 : index
    %93 = vector.load %arg15[%c16_74, %c0_75] : memref<120x512xf32, #tpu.memory_space<vmem>>, vector<8x512xf32>
    tpu.vector_store %arg15[%c16_74, %c0_75], %92 {strides = array<i32>} : memref<120x512xf32, #tpu.memory_space<vmem>>, vector<8x512xf32>,
    %94 = vector.extract_strided_slice %12 {offsets = [0, 106], sizes = [8, 512], strides = [1, 1]} : vector<8x768xf32> to vector<8x512xf32>
    %c24_76 = arith.constant 24 : index
    %c0_77 = arith.constant 0 : index
    %95 = vector.load %arg13[%c24_76, %c0_77] : memref<120x512xf32, #tpu.memory_space<vmem>>, vector<8x512xf32>
    tpu.vector_store %arg13[%c24_76, %c0_77], %94 {strides = array<i32>} : memref<120x512xf32, #tpu.memory_space<vmem>>, vector<8x512xf32>,
    %96 = vector.extract_strided_slice %13 {offsets = [0, 106], sizes = [8, 512], strides = [1, 1]} : vector<8x768xf32> to vector<8x512xf32>
    %c24_78 = arith.constant 24 : index
    %c0_79 = arith.constant 0 : index
    %97 = vector.load %arg15[%c24_78, %c0_79] : memref<120x512xf32, #tpu.memory_space<vmem>>, vector<8x512xf32>
    tpu.vector_store %arg15[%c24_78, %c0_79], %96 {strides = array<i32>} : memref<120x512xf32, #tpu.memory_space<vmem>>, vector<8x512xf32>,
    %98 = vector.extract_strided_slice %12 {offsets = [0, 107], sizes = [8, 512], strides = [1, 1]} : vector<8x768xf32> to vector<8x512xf32>
    %c32_80 = arith.constant 32 : index
    %c0_81 = arith.constant 0 : index
    %99 = vector.load %arg13[%c32_80, %c0_81] : memref<120x512xf32, #tpu.memory_space<vmem>>, vector<8x512xf32>
    tpu.vector_store %arg13[%c32_80, %c0_81], %98 {strides = array<i32>} : memref<120x512xf32, #tpu.memory_space<vmem>>, vector<8x512xf32>,
    %100 = vector.extract_strided_slice %13 {offsets = [0, 107], sizes = [8, 512], strides = [1, 1]} : vector<8x768xf32> to vector<8x512xf32>
    %c32_82 = arith.constant 32 : index
    %c0_83 = arith.constant 0 : index
    %101 = vector.load %arg15[%c32_82, %c0_83] : memref<120x512xf32, #tpu.memory_space<vmem>>, vector<8x512xf32>
    tpu.vector_store %arg15[%c32_82, %c0_83], %100 {strides = array<i32>} : memref<120x512xf32, #tpu.memory_space<vmem>>, vector<8x512xf32>,
    %102 = vector.extract_strided_slice %12 {offsets = [0, 108], sizes = [8, 512], strides = [1, 1]} : vector<8x768xf32> to vector<8x512xf32>
    %c40_84 = arith.constant 40 : index
    %c0_85 = arith.constant 0 : index
    %103 = vector.load %arg13[%c40_84, %c0_85] : memref<120x512xf32, #tpu.memory_space<vmem>>, vector<8x512xf32>
    tpu.vector_store %arg13[%c40_84, %c0_85], %102 {strides = array<i32>} : memref<120x512xf32, #tpu.memory_space<vmem>>, vector<8x512xf32>,
    %104 = vector.extract_strided_slice %13 {offsets = [0, 108], sizes = [8, 512], strides = [1, 1]} : vector<8x768xf32> to vector<8x512xf32>
    %c40_86 = arith.constant 40 : index
    %c0_87 = arith.constant 0 : index
    %105 = vector.load %arg15[%c40_86, %c0_87] : memref<120x512xf32, #tpu.memory_space<vmem>>, vector<8x512xf32>
    tpu.vector_store %arg15[%c40_86, %c0_87], %104 {strides = array<i32>} : memref<120x512xf32, #tpu.memory_space<vmem>>, vector<8x512xf32>,
    %106 = vector.extract_strided_slice %12 {offsets = [0, 109], sizes = [8, 512], strides = [1, 1]} : vector<8x768xf32> to vector<8x512xf32>
    %c48_88 = arith.constant 48 : index
    %c0_89 = arith.constant 0 : index
    %107 = vector.load %arg13[%c48_88, %c0_89] : memref<120x512xf32, #tpu.memory_space<vmem>>, vector<8x512xf32>
    tpu.vector_store %arg13[%c48_88, %c0_89], %106 {strides = array<i32>} : memref<120x512xf32, #tpu.memory_space<vmem>>, vector<8x512xf32>,
    %108 = vector.extract_strided_slice %13 {offsets = [0, 109], sizes = [8, 512], strides = [1, 1]} : vector<8x768xf32> to vector<8x512xf32>
    %c48_90 = arith.constant 48 : index
    %c0_91 = arith.constant 0 : index
    %109 = vector.load %arg15[%c48_90, %c0_91] : memref<120x512xf32, #tpu.memory_space<vmem>>, vector<8x512xf32>
    tpu.vector_store %arg15[%c48_90, %c0_91], %108 {strides = array<i32>} : memref<120x512xf32, #tpu.memory_space<vmem>>, vector<8x512xf32>,
    %110 = vector.extract_strided_slice %12 {offsets = [0, 125], sizes = [8, 512], strides = [1, 1]} : vector<8x768xf32> to vector<8x512xf32>
    %c56_92 = arith.constant 56 : index
    %c0_93 = arith.constant 0 : index
    %111 = vector.load %arg13[%c56_92, %c0_93] : memref<120x512xf32, #tpu.memory_space<vmem>>, vector<8x512xf32>
    tpu.vector_store %arg13[%c56_92, %c0_93], %110 {strides = array<i32>} : memref<120x512xf32, #tpu.memory_space<vmem>>, vector<8x512xf32>,
    %112 = vector.extract_strided_slice %13 {offsets = [0, 125], sizes = [8, 512], strides = [1, 1]} : vector<8x768xf32> to vector<8x512xf32>
    %c56_94 = arith.constant 56 : index
    %c0_95 = arith.constant 0 : index
    %113 = vector.load %arg15[%c56_94, %c0_95] : memref<120x512xf32, #tpu.memory_space<vmem>>, vector<8x512xf32>
    tpu.vector_store %arg15[%c56_94, %c0_95], %112 {strides = array<i32>} : memref<120x512xf32, #tpu.memory_space<vmem>>, vector<8x512xf32>,
    %114 = vector.extract_strided_slice %12 {offsets = [0, 126], sizes = [8, 512], strides = [1, 1]} : vector<8x768xf32> to vector<8x512xf32>
    %c64_96 = arith.constant 64 : index
    %c0_97 = arith.constant 0 : index
    %115 = vector.load %arg13[%c64_96, %c0_97] : memref<120x512xf32, #tpu.memory_space<vmem>>, vector<8x512xf32>
    tpu.vector_store %arg13[%c64_96, %c0_97], %114 {strides = array<i32>} : memref<120x512xf32, #tpu.memory_space<vmem>>, vector<8x512xf32>,
    %116 = vector.extract_strided_slice %13 {offsets = [0, 126], sizes = [8, 512], strides = [1, 1]} : vector<8x768xf32> to vector<8x512xf32>
    %c64_98 = arith.constant 64 : index
    %c0_99 = arith.constant 0 : index
    %117 = vector.load %arg15[%c64_98, %c0_99] : memref<120x512xf32, #tpu.memory_space<vmem>>, vector<8x512xf32>
    tpu.vector_store %arg15[%c64_98, %c0_99], %116 {strides = array<i32>} : memref<120x512xf32, #tpu.memory_space<vmem>>, vector<8x512xf32>,
    %118 = vector.extract_strided_slice %12 {offsets = [0, 127], sizes = [8, 512], strides = [1, 1]} : vector<8x768xf32> to vector<8x512xf32>
    %c72_100 = arith.constant 72 : index
    %c0_101 = arith.constant 0 : index
    %119 = vector.load %arg13[%c72_100, %c0_101] : memref<120x512xf32, #tpu.memory_space<vmem>>, vector<8x512xf32>
    tpu.vector_store %arg13[%c72_100, %c0_101], %118 {strides = array<i32>} : memref<120x512xf32, #tpu.memory_space<vmem>>, vector<8x512xf32>,
    %120 = vector.extract_strided_slice %13 {offsets = [0, 127], sizes = [8, 512], strides = [1, 1]} : vector<8x768xf32> to vector<8x512xf32>
    %c72_102 = arith.constant 72 : index
    %c0_103 = arith.constant 0 : index
    %121 = vector.load %arg15[%c72_102, %c0_103] : memref<120x512xf32, #tpu.memory_space<vmem>>, vector<8x512xf32>
    tpu.vector_store %arg15[%c72_102, %c0_103], %120 {strides = array<i32>} : memref<120x512xf32, #tpu.memory_space<vmem>>, vector<8x512xf32>,
    %122 = vector.extract_strided_slice %12 {offsets = [0, 128], sizes = [8, 512], strides = [1, 1]} : vector<8x768xf32> to vector<8x512xf32>
    %c80_104 = arith.constant 80 : index
    %c0_105 = arith.constant 0 : index
    %123 = vector.load %arg13[%c80_104, %c0_105] : memref<120x512xf32, #tpu.memory_space<vmem>>, vector<8x512xf32>
    tpu.vector_store %arg13[%c80_104, %c0_105], %122 {strides = array<i32>} : memref<120x512xf32, #tpu.memory_space<vmem>>, vector<8x512xf32>,
    %124 = vector.extract_strided_slice %13 {offsets = [0, 128], sizes = [8, 512], strides = [1, 1]} : vector<8x768xf32> to vector<8x512xf32>
    %c80_106 = arith.constant 80 : index
    %c0_107 = arith.constant 0 : index
    %125 = vector.load %arg15[%c80_106, %c0_107] : memref<120x512xf32, #tpu.memory_space<vmem>>, vector<8x512xf32>
    tpu.vector_store %arg15[%c80_106, %c0_107], %124 {strides = array<i32>} : memref<120x512xf32, #tpu.memory_space<vmem>>, vector<8x512xf32>,
    %126 = vector.extract_strided_slice %12 {offsets = [0, 129], sizes = [8, 512], strides = [1, 1]} : vector<8x768xf32> to vector<8x512xf32>
    %c88_108 = arith.constant 88 : index
    %c0_109 = arith.constant 0 : index
    %127 = vector.load %arg13[%c88_108, %c0_109] : memref<120x512xf32, #tpu.memory_space<vmem>>, vector<8x512xf32>
    tpu.vector_store %arg13[%c88_108, %c0_109], %126 {strides = array<i32>} : memref<120x512xf32, #tpu.memory_space<vmem>>, vector<8x512xf32>,
    %128 = vector.extract_strided_slice %13 {offsets = [0, 129], sizes = [8, 512], strides = [1, 1]} : vector<8x768xf32> to vector<8x512xf32>
    %c88_110 = arith.constant 88 : index
    %c0_111 = arith.constant 0 : index
    %129 = vector.load %arg15[%c88_110, %c0_111] : memref<120x512xf32, #tpu.memory_space<vmem>>, vector<8x512xf32>
    tpu.vector_store %arg15[%c88_110, %c0_111], %128 {strides = array<i32>} : memref<120x512xf32, #tpu.memory_space<vmem>>, vector<8x512xf32>,
    %130 = vector.extract_strided_slice %12 {offsets = [0, 130], sizes = [8, 512], strides = [1, 1]} : vector<8x768xf32> to vector<8x512xf32>
    %c96_112 = arith.constant 96 : index
    %c0_113 = arith.constant 0 : index
    %131 = vector.load %arg13[%c96_112, %c0_113] : memref<120x512xf32, #tpu.memory_space<vmem>>, vector<8x512xf32>
    tpu.vector_store %arg13[%c96_112, %c0_113], %130 {strides = array<i32>} : memref<120x512xf32, #tpu.memory_space<vmem>>, vector<8x512xf32>,
    %132 = vector.extract_strided_slice %13 {offsets = [0, 130], sizes = [8, 512], strides = [1, 1]} : vector<8x768xf32> to vector<8x512xf32>
    %c96_114 = arith.constant 96 : index
    %c0_115 = arith.constant 0 : index
    %133 = vector.load %arg15[%c96_114, %c0_115] : memref<120x512xf32, #tpu.memory_space<vmem>>, vector<8x512xf32>
    tpu.vector_store %arg15[%c96_114, %c0_115], %132 {strides = array<i32>} : memref<120x512xf32, #tpu.memory_space<vmem>>, vector<8x512xf32>,
    %134 = vector.extract_strided_slice %12 {offsets = [0, 131], sizes = [8, 512], strides = [1, 1]} : vector<8x768xf32> to vector<8x512xf32>
    %c104_116 = arith.constant 104 : index
    %c0_117 = arith.constant 0 : index
    %135 = vector.load %arg13[%c104_116, %c0_117] : memref<120x512xf32, #tpu.memory_space<vmem>>, vector<8x512xf32>
    tpu.vector_store %arg13[%c104_116, %c0_117], %134 {strides = array<i32>} : memref<120x512xf32, #tpu.memory_space<vmem>>, vector<8x512xf32>,
    %136 = vector.extract_strided_slice %13 {offsets = [0, 131], sizes = [8, 512], strides = [1, 1]} : vector<8x768xf32> to vector<8x512xf32>
    %c104_118 = arith.constant 104 : index
    %c0_119 = arith.constant 0 : index
    %137 = vector.load %arg15[%c104_118, %c0_119] : memref<120x512xf32, #tpu.memory_space<vmem>>, vector<8x512xf32>
    tpu.vector_store %arg15[%c104_118, %c0_119], %136 {strides = array<i32>} : memref<120x512xf32, #tpu.memory_space<vmem>>, vector<8x512xf32>,
    %c0_120 = arith.constant 0 : index
    %c112 = arith.constant 112 : index
    %138 = vector.load %arg3[%c0_120, %c112] : memref<32x392xf32, #tpu.memory_space<vmem>>, vector<32x112xf32>
    %c0_121 = arith.constant 0 : index
    %c0_122 = arith.constant 0 : index
    %139 = vector.load %arg13[%c0_121, %c0_122] : memref<120x512xf32, #tpu.memory_space<vmem>>, vector<112x512xf32>
    %cst_123 = arith.constant dense<0.000000e+00> : vector<32x512xf32>
    %140 = tpu.matmul %138, %139, %cst_123 {dimension_numbers = #tpu.dot_dimension_numbers<[1], [0], [0], [1], [0, 0, 1, 1], [], []>} : vector<32x112xf32>, vector<112x512xf32>, vector<32x512xf32> -> vector<32x512xf32>
    %141 = vector.extract_strided_slice %138 {offsets = [0, 0], sizes = [16, 112], strides = [1, 1]} : vector<32x112xf32> to vector<16x112xf32>
    %c0_124 = arith.constant 0 : index
    %c0_125 = arith.constant 0 : index
    %142 = vector.load %arg15[%c0_124, %c0_125] : memref<120x512xf32, #tpu.memory_space<vmem>>, vector<112x512xf32>
    %cst_126 = arith.constant dense<0.000000e+00> : vector<16x512xf32>
    %143 = tpu.matmul %141, %142, %cst_126 {dimension_numbers = #tpu.dot_dimension_numbers<[1], [0], [0], [1], [0, 0, 1, 1], [], []>} : vector<16x112xf32>, vector<112x512xf32>, vector<16x512xf32> -> vector<16x512xf32>
    %144 = vector.extract_strided_slice %140 {offsets = [0, 0], sizes = [16, 512], strides = [1, 1]} : vector<32x512xf32> to vector<16x512xf32>
    %145 = arith.addf %81, %144 : vector<16x512xf32>
    %146 = vector.extract_strided_slice %140 {offsets = [16, 0], sizes = [16, 512], strides = [1, 1]} : vector<32x512xf32> to vector<16x512xf32>
    %147 = arith.addf %145, %146 : vector<16x512xf32>
    %148 = arith.addf %147, %143 : vector<16x512xf32>
    %149 = vector.extract_strided_slice %12 {offsets = [0, 147], sizes = [8, 512], strides = [1, 1]} : vector<8x768xf32> to vector<8x512xf32>
    %c0_127 = arith.constant 0 : index
    %c0_128 = arith.constant 0 : index
    %150 = vector.load %arg12[%c0_127, %c0_128] : memref<120x512xf32, #tpu.memory_space<vmem>>, vector<8x512xf32>
    tpu.vector_store %arg12[%c0_127, %c0_128], %149 {strides = array<i32>} : memref<120x512xf32, #tpu.memory_space<vmem>>, vector<8x512xf32>,
    %151 = vector.extract_strided_slice %13 {offsets = [0, 147], sizes = [8, 512], strides = [1, 1]} : vector<8x768xf32> to vector<8x512xf32>
    %c0_129 = arith.constant 0 : index
    %c0_130 = arith.constant 0 : index
    %152 = vector.load %arg14[%c0_129, %c0_130] : memref<120x512xf32, #tpu.memory_space<vmem>>, vector<8x512xf32>
    tpu.vector_store %arg14[%c0_129, %c0_130], %151 {strides = array<i32>} : memref<120x512xf32, #tpu.memory_space<vmem>>, vector<8x512xf32>,
    %153 = vector.extract_strided_slice %12 {offsets = [0, 148], sizes = [8, 512], strides = [1, 1]} : vector<8x768xf32> to vector<8x512xf32>
    %c8_131 = arith.constant 8 : index
    %c0_132 = arith.constant 0 : index
    %154 = vector.load %arg12[%c8_131, %c0_132] : memref<120x512xf32, #tpu.memory_space<vmem>>, vector<8x512xf32>
    tpu.vector_store %arg12[%c8_131, %c0_132], %153 {strides = array<i32>} : memref<120x512xf32, #tpu.memory_space<vmem>>, vector<8x512xf32>,
    %155 = vector.extract_strided_slice %13 {offsets = [0, 148], sizes = [8, 512], strides = [1, 1]} : vector<8x768xf32> to vector<8x512xf32>
    %c8_133 = arith.constant 8 : index
    %c0_134 = arith.constant 0 : index
    %156 = vector.load %arg14[%c8_133, %c0_134] : memref<120x512xf32, #tpu.memory_space<vmem>>, vector<8x512xf32>
    tpu.vector_store %arg14[%c8_133, %c0_134], %155 {strides = array<i32>} : memref<120x512xf32, #tpu.memory_space<vmem>>, vector<8x512xf32>,
    %157 = vector.extract_strided_slice %12 {offsets = [0, 149], sizes = [8, 512], strides = [1, 1]} : vector<8x768xf32> to vector<8x512xf32>
    %c16_135 = arith.constant 16 : index
    %c0_136 = arith.constant 0 : index
    %158 = vector.load %arg12[%c16_135, %c0_136] : memref<120x512xf32, #tpu.memory_space<vmem>>, vector<8x512xf32>
    tpu.vector_store %arg12[%c16_135, %c0_136], %157 {strides = array<i32>} : memref<120x512xf32, #tpu.memory_space<vmem>>, vector<8x512xf32>,
    %159 = vector.extract_strided_slice %13 {offsets = [0, 149], sizes = [8, 512], strides = [1, 1]} : vector<8x768xf32> to vector<8x512xf32>
    %c16_137 = arith.constant 16 : index
    %c0_138 = arith.constant 0 : index
    %160 = vector.load %arg14[%c16_137, %c0_138] : memref<120x512xf32, #tpu.memory_space<vmem>>, vector<8x512xf32>
    tpu.vector_store %arg14[%c16_137, %c0_138], %159 {strides = array<i32>} : memref<120x512xf32, #tpu.memory_space<vmem>>, vector<8x512xf32>,
    %161 = vector.extract_strided_slice %12 {offsets = [0, 150], sizes = [8, 512], strides = [1, 1]} : vector<8x768xf32> to vector<8x512xf32>
    %c24_139 = arith.constant 24 : index
    %c0_140 = arith.constant 0 : index
    %162 = vector.load %arg12[%c24_139, %c0_140] : memref<120x512xf32, #tpu.memory_space<vmem>>, vector<8x512xf32>
    tpu.vector_store %arg12[%c24_139, %c0_140], %161 {strides = array<i32>} : memref<120x512xf32, #tpu.memory_space<vmem>>, vector<8x512xf32>,
    %163 = vector.extract_strided_slice %13 {offsets = [0, 150], sizes = [8, 512], strides = [1, 1]} : vector<8x768xf32> to vector<8x512xf32>
    %c24_141 = arith.constant 24 : index
    %c0_142 = arith.constant 0 : index
    %164 = vector.load %arg14[%c24_141, %c0_142] : memref<120x512xf32, #tpu.memory_space<vmem>>, vector<8x512xf32>
    tpu.vector_store %arg14[%c24_141, %c0_142], %163 {strides = array<i32>} : memref<120x512xf32, #tpu.memory_space<vmem>>, vector<8x512xf32>,
    %165 = vector.extract_strided_slice %12 {offsets = [0, 151], sizes = [8, 512], strides = [1, 1]} : vector<8x768xf32> to vector<8x512xf32>
    %c32_143 = arith.constant 32 : index
    %c0_144 = arith.constant 0 : index
    %166 = vector.load %arg12[%c32_143, %c0_144] : memref<120x512xf32, #tpu.memory_space<vmem>>, vector<8x512xf32>
    tpu.vector_store %arg12[%c32_143, %c0_144], %165 {strides = array<i32>} : memref<120x512xf32, #tpu.memory_space<vmem>>, vector<8x512xf32>,
    %167 = vector.extract_strided_slice %13 {offsets = [0, 151], sizes = [8, 512], strides = [1, 1]} : vector<8x768xf32> to vector<8x512xf32>
    %c32_145 = arith.constant 32 : index
    %c0_146 = arith.constant 0 : index
    %168 = vector.load %arg14[%c32_145, %c0_146] : memref<120x512xf32, #tpu.memory_space<vmem>>, vector<8x512xf32>
    tpu.vector_store %arg14[%c32_145, %c0_146], %167 {strides = array<i32>} : memref<120x512xf32, #tpu.memory_space<vmem>>, vector<8x512xf32>,
    %169 = vector.extract_strided_slice %12 {offsets = [0, 152], sizes = [8, 512], strides = [1, 1]} : vector<8x768xf32> to vector<8x512xf32>
    %c40_147 = arith.constant 40 : index
    %c0_148 = arith.constant 0 : index
    %170 = vector.load %arg12[%c40_147, %c0_148] : memref<120x512xf32, #tpu.memory_space<vmem>>, vector<8x512xf32>
    tpu.vector_store %arg12[%c40_147, %c0_148], %169 {strides = array<i32>} : memref<120x512xf32, #tpu.memory_space<vmem>>, vector<8x512xf32>,
    %171 = vector.extract_strided_slice %13 {offsets = [0, 152], sizes = [8, 512], strides = [1, 1]} : vector<8x768xf32> to vector<8x512xf32>
    %c40_149 = arith.constant 40 : index
    %c0_150 = arith.constant 0 : index
    %172 = vector.load %arg14[%c40_149, %c0_150] : memref<120x512xf32, #tpu.memory_space<vmem>>, vector<8x512xf32>
    tpu.vector_store %arg14[%c40_149, %c0_150], %171 {strides = array<i32>} : memref<120x512xf32, #tpu.memory_space<vmem>>, vector<8x512xf32>,
    %173 = vector.extract_strided_slice %12 {offsets = [0, 153], sizes = [8, 512], strides = [1, 1]} : vector<8x768xf32> to vector<8x512xf32>
    %c48_151 = arith.constant 48 : index
    %c0_152 = arith.constant 0 : index
    %174 = vector.load %arg12[%c48_151, %c0_152] : memref<120x512xf32, #tpu.memory_space<vmem>>, vector<8x512xf32>
    tpu.vector_store %arg12[%c48_151, %c0_152], %173 {strides = array<i32>} : memref<120x512xf32, #tpu.memory_space<vmem>>, vector<8x512xf32>,
    %175 = vector.extract_strided_slice %13 {offsets = [0, 153], sizes = [8, 512], strides = [1, 1]} : vector<8x768xf32> to vector<8x512xf32>
    %c48_153 = arith.constant 48 : index
    %c0_154 = arith.constant 0 : index
    %176 = vector.load %arg14[%c48_153, %c0_154] : memref<120x512xf32, #tpu.memory_space<vmem>>, vector<8x512xf32>
    tpu.vector_store %arg14[%c48_153, %c0_154], %175 {strides = array<i32>} : memref<120x512xf32, #tpu.memory_space<vmem>>, vector<8x512xf32>,
    %177 = vector.extract_strided_slice %12 {offsets = [0, 169], sizes = [8, 512], strides = [1, 1]} : vector<8x768xf32> to vector<8x512xf32>
    %c56_155 = arith.constant 56 : index
    %c0_156 = arith.constant 0 : index
    %178 = vector.load %arg12[%c56_155, %c0_156] : memref<120x512xf32, #tpu.memory_space<vmem>>, vector<8x512xf32>
    tpu.vector_store %arg12[%c56_155, %c0_156], %177 {strides = array<i32>} : memref<120x512xf32, #tpu.memory_space<vmem>>, vector<8x512xf32>,
    %179 = vector.extract_strided_slice %13 {offsets = [0, 169], sizes = [8, 512], strides = [1, 1]} : vector<8x768xf32> to vector<8x512xf32>
    %c56_157 = arith.constant 56 : index
    %c0_158 = arith.constant 0 : index
    %180 = vector.load %arg14[%c56_157, %c0_158] : memref<120x512xf32, #tpu.memory_space<vmem>>, vector<8x512xf32>
    tpu.vector_store %arg14[%c56_157, %c0_158], %179 {strides = array<i32>} : memref<120x512xf32, #tpu.memory_space<vmem>>, vector<8x512xf32>,
    %181 = vector.extract_strided_slice %12 {offsets = [0, 170], sizes = [8, 512], strides = [1, 1]} : vector<8x768xf32> to vector<8x512xf32>
    %c64_159 = arith.constant 64 : index
    %c0_160 = arith.constant 0 : index
    %182 = vector.load %arg12[%c64_159, %c0_160] : memref<120x512xf32, #tpu.memory_space<vmem>>, vector<8x512xf32>
    tpu.vector_store %arg12[%c64_159, %c0_160], %181 {strides = array<i32>} : memref<120x512xf32, #tpu.memory_space<vmem>>, vector<8x512xf32>,
    %183 = vector.extract_strided_slice %13 {offsets = [0, 170], sizes = [8, 512], strides = [1, 1]} : vector<8x768xf32> to vector<8x512xf32>
    %c64_161 = arith.constant 64 : index
    %c0_162 = arith.constant 0 : index
    %184 = vector.load %arg14[%c64_161, %c0_162] : memref<120x512xf32, #tpu.memory_space<vmem>>, vector<8x512xf32>
    tpu.vector_store %arg14[%c64_161, %c0_162], %183 {strides = array<i32>} : memref<120x512xf32, #tpu.memory_space<vmem>>, vector<8x512xf32>,
    %185 = vector.extract_strided_slice %12 {offsets = [0, 171], sizes = [8, 512], strides = [1, 1]} : vector<8x768xf32> to vector<8x512xf32>
    %c72_163 = arith.constant 72 : index
    %c0_164 = arith.constant 0 : index
    %186 = vector.load %arg12[%c72_163, %c0_164] : memref<120x512xf32, #tpu.memory_space<vmem>>, vector<8x512xf32>
    tpu.vector_store %arg12[%c72_163, %c0_164], %185 {strides = array<i32>} : memref<120x512xf32, #tpu.memory_space<vmem>>, vector<8x512xf32>,
    %187 = vector.extract_strided_slice %13 {offsets = [0, 171], sizes = [8, 512], strides = [1, 1]} : vector<8x768xf32> to vector<8x512xf32>
    %c72_165 = arith.constant 72 : index
    %c0_166 = arith.constant 0 : index
    %188 = vector.load %arg14[%c72_165, %c0_166] : memref<120x512xf32, #tpu.memory_space<vmem>>, vector<8x512xf32>
    tpu.vector_store %arg14[%c72_165, %c0_166], %187 {strides = array<i32>} : memref<120x512xf32, #tpu.memory_space<vmem>>, vector<8x512xf32>,
    %189 = vector.extract_strided_slice %12 {offsets = [0, 172], sizes = [8, 512], strides = [1, 1]} : vector<8x768xf32> to vector<8x512xf32>
    %c80_167 = arith.constant 80 : index
    %c0_168 = arith.constant 0 : index
    %190 = vector.load %arg12[%c80_167, %c0_168] : memref<120x512xf32, #tpu.memory_space<vmem>>, vector<8x512xf32>
    tpu.vector_store %arg12[%c80_167, %c0_168], %189 {strides = array<i32>} : memref<120x512xf32, #tpu.memory_space<vmem>>, vector<8x512xf32>,
    %191 = vector.extract_strided_slice %13 {offsets = [0, 172], sizes = [8, 512], strides = [1, 1]} : vector<8x768xf32> to vector<8x512xf32>
    %c80_169 = arith.constant 80 : index
    %c0_170 = arith.constant 0 : index
    %192 = vector.load %arg14[%c80_169, %c0_170] : memref<120x512xf32, #tpu.memory_space<vmem>>, vector<8x512xf32>
    tpu.vector_store %arg14[%c80_169, %c0_170], %191 {strides = array<i32>} : memref<120x512xf32, #tpu.memory_space<vmem>>, vector<8x512xf32>,
    %193 = vector.extract_strided_slice %12 {offsets = [0, 173], sizes = [8, 512], strides = [1, 1]} : vector<8x768xf32> to vector<8x512xf32>
    %c88_171 = arith.constant 88 : index
    %c0_172 = arith.constant 0 : index
    %194 = vector.load %arg12[%c88_171, %c0_172] : memref<120x512xf32, #tpu.memory_space<vmem>>, vector<8x512xf32>
    tpu.vector_store %arg12[%c88_171, %c0_172], %193 {strides = array<i32>} : memref<120x512xf32, #tpu.memory_space<vmem>>, vector<8x512xf32>,
    %195 = vector.extract_strided_slice %13 {offsets = [0, 173], sizes = [8, 512], strides = [1, 1]} : vector<8x768xf32> to vector<8x512xf32>
    %c88_173 = arith.constant 88 : index
    %c0_174 = arith.constant 0 : index
    %196 = vector.load %arg14[%c88_173, %c0_174] : memref<120x512xf32, #tpu.memory_space<vmem>>, vector<8x512xf32>
    tpu.vector_store %arg14[%c88_173, %c0_174], %195 {strides = array<i32>} : memref<120x512xf32, #tpu.memory_space<vmem>>, vector<8x512xf32>,
    %197 = vector.extract_strided_slice %12 {offsets = [0, 174], sizes = [8, 512], strides = [1, 1]} : vector<8x768xf32> to vector<8x512xf32>
    %c96_175 = arith.constant 96 : index
    %c0_176 = arith.constant 0 : index
    %198 = vector.load %arg12[%c96_175, %c0_176] : memref<120x512xf32, #tpu.memory_space<vmem>>, vector<8x512xf32>
    tpu.vector_store %arg12[%c96_175, %c0_176], %197 {strides = array<i32>} : memref<120x512xf32, #tpu.memory_space<vmem>>, vector<8x512xf32>,
    %199 = vector.extract_strided_slice %13 {offsets = [0, 174], sizes = [8, 512], strides = [1, 1]} : vector<8x768xf32> to vector<8x512xf32>
    %c96_177 = arith.constant 96 : index
    %c0_178 = arith.constant 0 : index
    %200 = vector.load %arg14[%c96_177, %c0_178] : memref<120x512xf32, #tpu.memory_space<vmem>>, vector<8x512xf32>
    tpu.vector_store %arg14[%c96_177, %c0_178], %199 {strides = array<i32>} : memref<120x512xf32, #tpu.memory_space<vmem>>, vector<8x512xf32>,
    %201 = vector.extract_strided_slice %12 {offsets = [0, 175], sizes = [8, 512], strides = [1, 1]} : vector<8x768xf32> to vector<8x512xf32>
    %c104_179 = arith.constant 104 : index
    %c0_180 = arith.constant 0 : index
    %202 = vector.load %arg12[%c104_179, %c0_180] : memref<120x512xf32, #tpu.memory_space<vmem>>, vector<8x512xf32>
    tpu.vector_store %arg12[%c104_179, %c0_180], %201 {strides = array<i32>} : memref<120x512xf32, #tpu.memory_space<vmem>>, vector<8x512xf32>,
    %203 = vector.extract_strided_slice %13 {offsets = [0, 175], sizes = [8, 512], strides = [1, 1]} : vector<8x768xf32> to vector<8x512xf32>
    %c104_181 = arith.constant 104 : index
    %c0_182 = arith.constant 0 : index
    %204 = vector.load %arg14[%c104_181, %c0_182] : memref<120x512xf32, #tpu.memory_space<vmem>>, vector<8x512xf32>
    tpu.vector_store %arg14[%c104_181, %c0_182], %203 {strides = array<i32>} : memref<120x512xf32, #tpu.memory_space<vmem>>, vector<8x512xf32>,
    %c0_183 = arith.constant 0 : index
    %c224 = arith.constant 224 : index
    %205 = vector.load %arg3[%c0_183, %c224] : memref<32x392xf32, #tpu.memory_space<vmem>>, vector<32x112xf32>
    %c0_184 = arith.constant 0 : index
    %c0_185 = arith.constant 0 : index
    %206 = vector.load %arg12[%c0_184, %c0_185] : memref<120x512xf32, #tpu.memory_space<vmem>>, vector<112x512xf32>
    %cst_186 = arith.constant dense<0.000000e+00> : vector<32x512xf32>
    %207 = tpu.matmul %205, %206, %cst_186 {dimension_numbers = #tpu.dot_dimension_numbers<[1], [0], [0], [1], [0, 0, 1, 1], [], []>} : vector<32x112xf32>, vector<112x512xf32>, vector<32x512xf32> -> vector<32x512xf32>
    %208 = vector.extract_strided_slice %205 {offsets = [0, 0], sizes = [16, 112], strides = [1, 1]} : vector<32x112xf32> to vector<16x112xf32>
    %c0_187 = arith.constant 0 : index
    %c0_188 = arith.constant 0 : index
    %209 = vector.load %arg14[%c0_187, %c0_188] : memref<120x512xf32, #tpu.memory_space<vmem>>, vector<112x512xf32>
    %cst_189 = arith.constant dense<0.000000e+00> : vector<16x512xf32>
    %210 = tpu.matmul %208, %209, %cst_189 {dimension_numbers = #tpu.dot_dimension_numbers<[1], [0], [0], [1], [0, 0, 1, 1], [], []>} : vector<16x112xf32>, vector<112x512xf32>, vector<16x512xf32> -> vector<16x512xf32>
    %211 = vector.extract_strided_slice %207 {offsets = [0, 0], sizes = [16, 512], strides = [1, 1]} : vector<32x512xf32> to vector<16x512xf32>
    %212 = arith.addf %148, %211 : vector<16x512xf32>
    %213 = vector.extract_strided_slice %207 {offsets = [16, 0], sizes = [16, 512], strides = [1, 1]} : vector<32x512xf32> to vector<16x512xf32>
    %214 = arith.addf %212, %213 : vector<16x512xf32>
    %215 = arith.addf %214, %210 : vector<16x512xf32>
    %216 = vector.extract_strided_slice %12 {offsets = [0, 191], sizes = [8, 512], strides = [1, 1]} : vector<8x768xf32> to vector<8x512xf32>
    %c0_190 = arith.constant 0 : index
    %c0_191 = arith.constant 0 : index
    %217 = vector.load %arg13[%c0_190, %c0_191] : memref<120x512xf32, #tpu.memory_space<vmem>>, vector<8x512xf32>
    tpu.vector_store %arg13[%c0_190, %c0_191], %216 {strides = array<i32>} : memref<120x512xf32, #tpu.memory_space<vmem>>, vector<8x512xf32>,
    %218 = vector.extract_strided_slice %13 {offsets = [0, 191], sizes = [8, 512], strides = [1, 1]} : vector<8x768xf32> to vector<8x512xf32>
    %c0_192 = arith.constant 0 : index
    %c0_193 = arith.constant 0 : index
    %219 = vector.load %arg15[%c0_192, %c0_193] : memref<120x512xf32, #tpu.memory_space<vmem>>, vector<8x512xf32>
    tpu.vector_store %arg15[%c0_192, %c0_193], %218 {strides = array<i32>} : memref<120x512xf32, #tpu.memory_space<vmem>>, vector<8x512xf32>,
    %220 = vector.extract_strided_slice %12 {offsets = [0, 192], sizes = [8, 512], strides = [1, 1]} : vector<8x768xf32> to vector<8x512xf32>
    %c8_194 = arith.constant 8 : index
    %c0_195 = arith.constant 0 : index
    %221 = vector.load %arg13[%c8_194, %c0_195] : memref<120x512xf32, #tpu.memory_space<vmem>>, vector<8x512xf32>
    tpu.vector_store %arg13[%c8_194, %c0_195], %220 {strides = array<i32>} : memref<120x512xf32, #tpu.memory_space<vmem>>, vector<8x512xf32>,
    %222 = vector.extract_strided_slice %13 {offsets = [0, 192], sizes = [8, 512], strides = [1, 1]} : vector<8x768xf32> to vector<8x512xf32>
    %c8_196 = arith.constant 8 : index
    %c0_197 = arith.constant 0 : index
    %223 = vector.load %arg15[%c8_196, %c0_197] : memref<120x512xf32, #tpu.memory_space<vmem>>, vector<8x512xf32>
    tpu.vector_store %arg15[%c8_196, %c0_197], %222 {strides = array<i32>} : memref<120x512xf32, #tpu.memory_space<vmem>>, vector<8x512xf32>,
    %224 = vector.extract_strided_slice %12 {offsets = [0, 193], sizes = [8, 512], strides = [1, 1]} : vector<8x768xf32> to vector<8x512xf32>
    %c16_198 = arith.constant 16 : index
    %c0_199 = arith.constant 0 : index
    %225 = vector.load %arg13[%c16_198, %c0_199] : memref<120x512xf32, #tpu.memory_space<vmem>>, vector<8x512xf32>
    tpu.vector_store %arg13[%c16_198, %c0_199], %224 {strides = array<i32>} : memref<120x512xf32, #tpu.memory_space<vmem>>, vector<8x512xf32>,
    %226 = vector.extract_strided_slice %13 {offsets = [0, 193], sizes = [8, 512], strides = [1, 1]} : vector<8x768xf32> to vector<8x512xf32>
    %c16_200 = arith.constant 16 : index
    %c0_201 = arith.constant 0 : index
    %227 = vector.load %arg15[%c16_200, %c0_201] : memref<120x512xf32, #tpu.memory_space<vmem>>, vector<8x512xf32>
    tpu.vector_store %arg15[%c16_200, %c0_201], %226 {strides = array<i32>} : memref<120x512xf32, #tpu.memory_space<vmem>>, vector<8x512xf32>,
    %228 = vector.extract_strided_slice %12 {offsets = [0, 194], sizes = [8, 512], strides = [1, 1]} : vector<8x768xf32> to vector<8x512xf32>
    %c24_202 = arith.constant 24 : index
    %c0_203 = arith.constant 0 : index
    %229 = vector.load %arg13[%c24_202, %c0_203] : memref<120x512xf32, #tpu.memory_space<vmem>>, vector<8x512xf32>
    tpu.vector_store %arg13[%c24_202, %c0_203], %228 {strides = array<i32>} : memref<120x512xf32, #tpu.memory_space<vmem>>, vector<8x512xf32>,
    %230 = vector.extract_strided_slice %13 {offsets = [0, 194], sizes = [8, 512], strides = [1, 1]} : vector<8x768xf32> to vector<8x512xf32>
    %c24_204 = arith.constant 24 : index
    %c0_205 = arith.constant 0 : index
    %231 = vector.load %arg15[%c24_204, %c0_205] : memref<120x512xf32, #tpu.memory_space<vmem>>, vector<8x512xf32>
    tpu.vector_store %arg15[%c24_204, %c0_205], %230 {strides = array<i32>} : memref<120x512xf32, #tpu.memory_space<vmem>>, vector<8x512xf32>,
    %232 = vector.extract_strided_slice %12 {offsets = [0, 195], sizes = [8, 512], strides = [1, 1]} : vector<8x768xf32> to vector<8x512xf32>
    %c32_206 = arith.constant 32 : index
    %c0_207 = arith.constant 0 : index
    %233 = vector.load %arg13[%c32_206, %c0_207] : memref<120x512xf32, #tpu.memory_space<vmem>>, vector<8x512xf32>
    tpu.vector_store %arg13[%c32_206, %c0_207], %232 {strides = array<i32>} : memref<120x512xf32, #tpu.memory_space<vmem>>, vector<8x512xf32>,
    %234 = vector.extract_strided_slice %13 {offsets = [0, 195], sizes = [8, 512], strides = [1, 1]} : vector<8x768xf32> to vector<8x512xf32>
    %c32_208 = arith.constant 32 : index
    %c0_209 = arith.constant 0 : index
    %235 = vector.load %arg15[%c32_208, %c0_209] : memref<120x512xf32, #tpu.memory_space<vmem>>, vector<8x512xf32>
    tpu.vector_store %arg15[%c32_208, %c0_209], %234 {strides = array<i32>} : memref<120x512xf32, #tpu.memory_space<vmem>>, vector<8x512xf32>,
    %236 = vector.extract_strided_slice %12 {offsets = [0, 196], sizes = [8, 512], strides = [1, 1]} : vector<8x768xf32> to vector<8x512xf32>
    %c40_210 = arith.constant 40 : index
    %c0_211 = arith.constant 0 : index
    %237 = vector.load %arg13[%c40_210, %c0_211] : memref<120x512xf32, #tpu.memory_space<vmem>>, vector<8x512xf32>
    tpu.vector_store %arg13[%c40_210, %c0_211], %236 {strides = array<i32>} : memref<120x512xf32, #tpu.memory_space<vmem>>, vector<8x512xf32>,
    %238 = vector.extract_strided_slice %13 {offsets = [0, 196], sizes = [8, 512], strides = [1, 1]} : vector<8x768xf32> to vector<8x512xf32>
    %c40_212 = arith.constant 40 : index
    %c0_213 = arith.constant 0 : index
    %239 = vector.load %arg15[%c40_212, %c0_213] : memref<120x512xf32, #tpu.memory_space<vmem>>, vector<8x512xf32>
    tpu.vector_store %arg15[%c40_212, %c0_213], %238 {strides = array<i32>} : memref<120x512xf32, #tpu.memory_space<vmem>>, vector<8x512xf32>,
    %240 = vector.extract_strided_slice %12 {offsets = [0, 197], sizes = [8, 512], strides = [1, 1]} : vector<8x768xf32> to vector<8x512xf32>
    %c48_214 = arith.constant 48 : index
    %c0_215 = arith.constant 0 : index
    %241 = vector.load %arg13[%c48_214, %c0_215] : memref<120x512xf32, #tpu.memory_space<vmem>>, vector<8x512xf32>
    tpu.vector_store %arg13[%c48_214, %c0_215], %240 {strides = array<i32>} : memref<120x512xf32, #tpu.memory_space<vmem>>, vector<8x512xf32>,
    %242 = vector.extract_strided_slice %13 {offsets = [0, 197], sizes = [8, 512], strides = [1, 1]} : vector<8x768xf32> to vector<8x512xf32>
    %c48_216 = arith.constant 48 : index
    %c0_217 = arith.constant 0 : index
    %243 = vector.load %arg15[%c48_216, %c0_217] : memref<120x512xf32, #tpu.memory_space<vmem>>, vector<8x512xf32>
    tpu.vector_store %arg15[%c48_216, %c0_217], %242 {strides = array<i32>} : memref<120x512xf32, #tpu.memory_space<vmem>>, vector<8x512xf32>,
    %c0_218 = arith.constant 0 : index
    %c336 = arith.constant 336 : index
    %244 = vector.load %arg3[%c0_218, %c336] : memref<32x392xf32, #tpu.memory_space<vmem>>, vector<32x56xf32>
    %c0_219 = arith.constant 0 : index
    %c0_220 = arith.constant 0 : index
    %245 = vector.load %arg13[%c0_219, %c0_220] : memref<120x512xf32, #tpu.memory_space<vmem>>, vector<56x512xf32>
    %cst_221 = arith.constant dense<0.000000e+00> : vector<32x512xf32>
    %246 = tpu.matmul %244, %245, %cst_221 {dimension_numbers = #tpu.dot_dimension_numbers<[1], [0], [0], [1], [0, 0, 1, 1], [], []>} : vector<32x56xf32>, vector<56x512xf32>, vector<32x512xf32> -> vector<32x512xf32>
    %247 = vector.extract_strided_slice %244 {offsets = [0, 0], sizes = [16, 56], strides = [1, 1]} : vector<32x56xf32> to vector<16x56xf32>
    %c0_222 = arith.constant 0 : index
    %c0_223 = arith.constant 0 : index
    %248 = vector.load %arg15[%c0_222, %c0_223] : memref<120x512xf32, #tpu.memory_space<vmem>>, vector<56x512xf32>
    %cst_224 = arith.constant dense<0.000000e+00> : vector<16x512xf32>
    %249 = tpu.matmul %247, %248, %cst_224 {dimension_numbers = #tpu.dot_dimension_numbers<[1], [0], [0], [1], [0, 0, 1, 1], [], []>} : vector<16x56xf32>, vector<56x512xf32>, vector<16x512xf32> -> vector<16x512xf32>
    %250 = vector.extract_strided_slice %246 {offsets = [0, 0], sizes = [16, 512], strides = [1, 1]} : vector<32x512xf32> to vector<16x512xf32>
    %251 = arith.addf %215, %250 : vector<16x512xf32>
    %252 = vector.extract_strided_slice %246 {offsets = [16, 0], sizes = [16, 512], strides = [1, 1]} : vector<32x512xf32> to vector<16x512xf32>
    %253 = arith.addf %251, %252 : vector<16x512xf32>
    %254 = arith.addf %253, %249 : vector<16x512xf32>
    %255 = vector.extract_strided_slice %254 {offsets = [0, 0], sizes = [8, 512], strides = [1, 1]} : vector<16x512xf32> to vector<8x512xf32>
    %256 = vector.extract_strided_slice %254 {offsets = [8, 0], sizes = [8, 512], strides = [1, 1]} : vector<16x512xf32> to vector<8x512xf32>
    %cst_225 = arith.constant 0.000000e+00 : f32
    %257 = vector.broadcast %cst_225 : f32 to vector<8x512xf32>
    %258 = arith.cmpf ogt, %255, %257 : vector<8x512xf32>
    %259 = vector.broadcast %3 : f32 to vector<8x512xf32>
    %260 = arith.mulf %259, %255 : vector<8x512xf32>
    %261 = arith.select %258, %255, %260 : vector<8x512xi1>, vector<8x512xf32>
    %cst_226 = arith.constant 0.000000e+00 : f32
    %262 = vector.broadcast %cst_226 : f32 to vector<8x512xf32>
    %263 = arith.cmpf ogt, %256, %262 : vector<8x512xf32>
    %264 = vector.broadcast %4 : f32 to vector<8x512xf32>
    %265 = arith.mulf %264, %256 : vector<8x512xf32>
    %266 = arith.select %263, %256, %265 : vector<8x512xi1>, vector<8x512xf32>
    %267 = arith.subf %261, %266 : vector<8x512xf32>
    %268 = math.absf %267 : vector<8x512xf32>
    %cst_227 = arith.constant 0.000000e+00 : f32
    %269 = vector.broadcast %cst_227 : f32 to vector<8x512xf32>
    %270 = arith.subf %269, %268 : vector<8x512xf32>
    %271 = math.exp %270 : vector<8x512xf32>
    %cst_228 = arith.constant 1.000000e+00 : f32
    %272 = vector.broadcast %cst_228 : f32 to vector<8x512xf32>
    %273 = arith.addf %272, %271 : vector<8x512xf32>
    %cst_229 = arith.constant 1.000000e+00 : f32
    %274 = vector.broadcast %cst_229 : f32 to vector<8x512xf32>
    %275 = arith.divf %274, %273 : vector<8x512xf32>
    %276 = vector.broadcast %2 : vector<1x512xf32> to vector<8x512xf32>
    %277 = arith.mulf %275, %276 : vector<8x512xf32>
    %c0_230 = arith.constant 0 : index
    %c128 = arith.constant 128 : index
    %278 = vector.load %arg16[%c0_230, %c128] : memref<8x768xf32, #tpu.memory_space<vmem>>, vector<8x512xf32>
    tpu.vector_store %arg16[%c0_230, %c128], %277 {strides = array<i32>} : memref<8x768xf32, #tpu.memory_space<vmem>>, vector<8x512xf32>,
    %c0_231 = arith.constant 0 : index
    %c0_232 = arith.constant 0 : index
    %279 = vector.load %arg16[%c0_231, %c0_232] : memref<8x768xf32, #tpu.memory_space<vmem>>, vector<8x768xf32>
    %280 = arith.truncf %279 : vector<8x768xf32> to vector<8x768xbf16>
    %281 = arith.extf %280 : vector<8x768xbf16> to vector<8x768xf32>
    %282 = arith.subf %279, %281 : vector<8x768xf32>
    %cst_233 = arith.constant 0.000000e+00 : f32
    %283 = vector.broadcast %cst_233 : f32 to vector<16x512xf32>
    %284 = vector.extract_strided_slice %281 {offsets = [0, 82], sizes = [8, 512], strides = [1, 1]} : vector<8x768xf32> to vector<8x512xf32>
    %c0_234 = arith.constant 0 : index
    %c0_235 = arith.constant 0 : index
    %285 = vector.load %arg12[%c0_234, %c0_235] : memref<120x512xf32, #tpu.memory_space<vmem>>, vector<8x512xf32>
    tpu.vector_store %arg12[%c0_234, %c0_235], %284 {strides = array<i32>} : memref<120x512xf32, #tpu.memory_space<vmem>>, vector<8x512xf32>,
    %286 = vector.extract_strided_slice %282 {offsets = [0, 82], sizes = [8, 512], strides = [1, 1]} : vector<8x768xf32> to vector<8x512xf32>
    %c0_236 = arith.constant 0 : index
    %c0_237 = arith.constant 0 : index
    %287 = vector.load %arg14[%c0_236, %c0_237] : memref<120x512xf32, #tpu.memory_space<vmem>>, vector<8x512xf32>
    tpu.vector_store %arg14[%c0_236, %c0_237], %286 {strides = array<i32>} : memref<120x512xf32, #tpu.memory_space<vmem>>, vector<8x512xf32>,
    %288 = vector.extract_strided_slice %281 {offsets = [0, 83], sizes = [8, 512], strides = [1, 1]} : vector<8x768xf32> to vector<8x512xf32>
    %c8_238 = arith.constant 8 : index
    %c0_239 = arith.constant 0 : index
    %289 = vector.load %arg12[%c8_238, %c0_239] : memref<120x512xf32, #tpu.memory_space<vmem>>, vector<8x512xf32>
    tpu.vector_store %arg12[%c8_238, %c0_239], %288 {strides = array<i32>} : memref<120x512xf32, #tpu.memory_space<vmem>>, vector<8x512xf32>,
    %290 = vector.extract_strided_slice %282 {offsets = [0, 83], sizes = [8, 512], strides = [1, 1]} : vector<8x768xf32> to vector<8x512xf32>
    %c8_240 = arith.constant 8 : index
    %c0_241 = arith.constant 0 : index
    %291 = vector.load %arg14[%c8_240, %c0_241] : memref<120x512xf32, #tpu.memory_space<vmem>>, vector<8x512xf32>
    tpu.vector_store %arg14[%c8_240, %c0_241], %290 {strides = array<i32>} : memref<120x512xf32, #tpu.memory_space<vmem>>, vector<8x512xf32>,
    %292 = vector.extract_strided_slice %281 {offsets = [0, 84], sizes = [8, 512], strides = [1, 1]} : vector<8x768xf32> to vector<8x512xf32>
    %c16_242 = arith.constant 16 : index
    %c0_243 = arith.constant 0 : index
    %293 = vector.load %arg12[%c16_242, %c0_243] : memref<120x512xf32, #tpu.memory_space<vmem>>, vector<8x512xf32>
    tpu.vector_store %arg12[%c16_242, %c0_243], %292 {strides = array<i32>} : memref<120x512xf32, #tpu.memory_space<vmem>>, vector<8x512xf32>,
    %294 = vector.extract_strided_slice %282 {offsets = [0, 84], sizes = [8, 512], strides = [1, 1]} : vector<8x768xf32> to vector<8x512xf32>
    %c16_244 = arith.constant 16 : index
    %c0_245 = arith.constant 0 : index
    %295 = vector.load %arg14[%c16_244, %c0_245] : memref<120x512xf32, #tpu.memory_space<vmem>>, vector<8x512xf32>
    tpu.vector_store %arg14[%c16_244, %c0_245], %294 {strides = array<i32>} : memref<120x512xf32, #tpu.memory_space<vmem>>, vector<8x512xf32>,
    %296 = vector.extract_strided_slice %281 {offsets = [0, 85], sizes = [8, 512], strides = [1, 1]} : vector<8x768xf32> to vector<8x512xf32>
    %c24_246 = arith.constant 24 : index
    %c0_247 = arith.constant 0 : index
    %297 = vector.load %arg12[%c24_246, %c0_247] : memref<120x512xf32, #tpu.memory_space<vmem>>, vector<8x512xf32>
    tpu.vector_store %arg12[%c24_246, %c0_247], %296 {strides = array<i32>} : memref<120x512xf32, #tpu.memory_space<vmem>>, vector<8x512xf32>,
    %298 = vector.extract_strided_slice %282 {offsets = [0, 85], sizes = [8, 512], strides = [1, 1]} : vector<8x768xf32> to vector<8x512xf32>
    %c24_248 = arith.constant 24 : index
    %c0_249 = arith.constant 0 : index
    %299 = vector.load %arg14[%c24_248, %c0_249] : memref<120x512xf32, #tpu.memory_space<vmem>>, vector<8x512xf32>
    tpu.vector_store %arg14[%c24_248, %c0_249], %298 {strides = array<i32>} : memref<120x512xf32, #tpu.memory_space<vmem>>, vector<8x512xf32>,
    %300 = vector.extract_strided_slice %281 {offsets = [0, 86], sizes = [8, 512], strides = [1, 1]} : vector<8x768xf32> to vector<8x512xf32>
    %c32_250 = arith.constant 32 : index
    %c0_251 = arith.constant 0 : index
    %301 = vector.load %arg12[%c32_250, %c0_251] : memref<120x512xf32, #tpu.memory_space<vmem>>, vector<8x512xf32>
    tpu.vector_store %arg12[%c32_250, %c0_251], %300 {strides = array<i32>} : memref<120x512xf32, #tpu.memory_space<vmem>>, vector<8x512xf32>,
    %302 = vector.extract_strided_slice %282 {offsets = [0, 86], sizes = [8, 512], strides = [1, 1]} : vector<8x768xf32> to vector<8x512xf32>
    %c32_252 = arith.constant 32 : index
    %c0_253 = arith.constant 0 : index
    %303 = vector.load %arg14[%c32_252, %c0_253] : memref<120x512xf32, #tpu.memory_space<vmem>>, vector<8x512xf32>
    tpu.vector_store %arg14[%c32_252, %c0_253], %302 {strides = array<i32>} : memref<120x512xf32, #tpu.memory_space<vmem>>, vector<8x512xf32>,
    %304 = vector.extract_strided_slice %281 {offsets = [0, 104], sizes = [8, 512], strides = [1, 1]} : vector<8x768xf32> to vector<8x512xf32>
    %c40_254 = arith.constant 40 : index
    %c0_255 = arith.constant 0 : index
    %305 = vector.load %arg12[%c40_254, %c0_255] : memref<120x512xf32, #tpu.memory_space<vmem>>, vector<8x512xf32>
    tpu.vector_store %arg12[%c40_254, %c0_255], %304 {strides = array<i32>} : memref<120x512xf32, #tpu.memory_space<vmem>>, vector<8x512xf32>,
    %306 = vector.extract_strided_slice %282 {offsets = [0, 104], sizes = [8, 512], strides = [1, 1]} : vector<8x768xf32> to vector<8x512xf32>
    %c40_256 = arith.constant 40 : index
    %c0_257 = arith.constant 0 : index
    %307 = vector.load %arg14[%c40_256, %c0_257] : memref<120x512xf32, #tpu.memory_space<vmem>>, vector<8x512xf32>
    tpu.vector_store %arg14[%c40_256, %c0_257], %306 {strides = array<i32>} : memref<120x512xf32, #tpu.memory_space<vmem>>, vector<8x512xf32>,
    %308 = vector.extract_strided_slice %281 {offsets = [0, 105], sizes = [8, 512], strides = [1, 1]} : vector<8x768xf32> to vector<8x512xf32>
    %c48_258 = arith.constant 48 : index
    %c0_259 = arith.constant 0 : index
    %309 = vector.load %arg12[%c48_258, %c0_259] : memref<120x512xf32, #tpu.memory_space<vmem>>, vector<8x512xf32>
    tpu.vector_store %arg12[%c48_258, %c0_259], %308 {strides = array<i32>} : memref<120x512xf32, #tpu.memory_space<vmem>>, vector<8x512xf32>,
    %310 = vector.extract_strided_slice %282 {offsets = [0, 105], sizes = [8, 512], strides = [1, 1]} : vector<8x768xf32> to vector<8x512xf32>
    %c48_260 = arith.constant 48 : index
    %c0_261 = arith.constant 0 : index
    %311 = vector.load %arg14[%c48_260, %c0_261] : memref<120x512xf32, #tpu.memory_space<vmem>>, vector<8x512xf32>
    tpu.vector_store %arg14[%c48_260, %c0_261], %310 {strides = array<i32>} : memref<120x512xf32, #tpu.memory_space<vmem>>, vector<8x512xf32>,
    %312 = vector.extract_strided_slice %281 {offsets = [0, 106], sizes = [8, 512], strides = [1, 1]} : vector<8x768xf32> to vector<8x512xf32>
    %c56_262 = arith.constant 56 : index
    %c0_263 = arith.constant 0 : index
    %313 = vector.load %arg12[%c56_262, %c0_263] : memref<120x512xf32, #tpu.memory_space<vmem>>, vector<8x512xf32>
    tpu.vector_store %arg12[%c56_262, %c0_263], %312 {strides = array<i32>} : memref<120x512xf32, #tpu.memory_space<vmem>>, vector<8x512xf32>,
    %314 = vector.extract_strided_slice %282 {offsets = [0, 106], sizes = [8, 512], strides = [1, 1]} : vector<8x768xf32> to vector<8x512xf32>
    %c56_264 = arith.constant 56 : index
    %c0_265 = arith.constant 0 : index
    %315 = vector.load %arg14[%c56_264, %c0_265] : memref<120x512xf32, #tpu.memory_space<vmem>>, vector<8x512xf32>
    tpu.vector_store %arg14[%c56_264, %c0_265], %314 {strides = array<i32>} : memref<120x512xf32, #tpu.memory_space<vmem>>, vector<8x512xf32>,
    %316 = vector.extract_strided_slice %281 {offsets = [0, 107], sizes = [8, 512], strides = [1, 1]} : vector<8x768xf32> to vector<8x512xf32>
    %c64_266 = arith.constant 64 : index
    %c0_267 = arith.constant 0 : index
    %317 = vector.load %arg12[%c64_266, %c0_267] : memref<120x512xf32, #tpu.memory_space<vmem>>, vector<8x512xf32>
    tpu.vector_store %arg12[%c64_266, %c0_267], %316 {strides = array<i32>} : memref<120x512xf32, #tpu.memory_space<vmem>>, vector<8x512xf32>,
    %318 = vector.extract_strided_slice %282 {offsets = [0, 107], sizes = [8, 512], strides = [1, 1]} : vector<8x768xf32> to vector<8x512xf32>
    %c64_268 = arith.constant 64 : index
    %c0_269 = arith.constant 0 : index
    %319 = vector.load %arg14[%c64_268, %c0_269] : memref<120x512xf32, #tpu.memory_space<vmem>>, vector<8x512xf32>
    tpu.vector_store %arg14[%c64_268, %c0_269], %318 {strides = array<i32>} : memref<120x512xf32, #tpu.memory_space<vmem>>, vector<8x512xf32>,
    %320 = vector.extract_strided_slice %281 {offsets = [0, 108], sizes = [8, 512], strides = [1, 1]} : vector<8x768xf32> to vector<8x512xf32>
    %c72_270 = arith.constant 72 : index
    %c0_271 = arith.constant 0 : index
    %321 = vector.load %arg12[%c72_270, %c0_271] : memref<120x512xf32, #tpu.memory_space<vmem>>, vector<8x512xf32>
    tpu.vector_store %arg12[%c72_270, %c0_271], %320 {strides = array<i32>} : memref<120x512xf32, #tpu.memory_space<vmem>>, vector<8x512xf32>,
    %322 = vector.extract_strided_slice %282 {offsets = [0, 108], sizes = [8, 512], strides = [1, 1]} : vector<8x768xf32> to vector<8x512xf32>
    %c72_272 = arith.constant 72 : index
    %c0_273 = arith.constant 0 : index
    %323 = vector.load %arg14[%c72_272, %c0_273] : memref<120x512xf32, #tpu.memory_space<vmem>>, vector<8x512xf32>
    tpu.vector_store %arg14[%c72_272, %c0_273], %322 {strides = array<i32>} : memref<120x512xf32, #tpu.memory_space<vmem>>, vector<8x512xf32>,
    %324 = vector.extract_strided_slice %281 {offsets = [0, 126], sizes = [8, 512], strides = [1, 1]} : vector<8x768xf32> to vector<8x512xf32>
    %c80_274 = arith.constant 80 : index
    %c0_275 = arith.constant 0 : index
    %325 = vector.load %arg12[%c80_274, %c0_275] : memref<120x512xf32, #tpu.memory_space<vmem>>, vector<8x512xf32>
    tpu.vector_store %arg12[%c80_274, %c0_275], %324 {strides = array<i32>} : memref<120x512xf32, #tpu.memory_space<vmem>>, vector<8x512xf32>,
    %326 = vector.extract_strided_slice %282 {offsets = [0, 126], sizes = [8, 512], strides = [1, 1]} : vector<8x768xf32> to vector<8x512xf32>
    %c80_276 = arith.constant 80 : index
    %c0_277 = arith.constant 0 : index
    %327 = vector.load %arg14[%c80_276, %c0_277] : memref<120x512xf32, #tpu.memory_space<vmem>>, vector<8x512xf32>
    tpu.vector_store %arg14[%c80_276, %c0_277], %326 {strides = array<i32>} : memref<120x512xf32, #tpu.memory_space<vmem>>, vector<8x512xf32>,
    %328 = vector.extract_strided_slice %281 {offsets = [0, 127], sizes = [8, 512], strides = [1, 1]} : vector<8x768xf32> to vector<8x512xf32>
    %c88_278 = arith.constant 88 : index
    %c0_279 = arith.constant 0 : index
    %329 = vector.load %arg12[%c88_278, %c0_279] : memref<120x512xf32, #tpu.memory_space<vmem>>, vector<8x512xf32>
    tpu.vector_store %arg12[%c88_278, %c0_279], %328 {strides = array<i32>} : memref<120x512xf32, #tpu.memory_space<vmem>>, vector<8x512xf32>,
    %330 = vector.extract_strided_slice %282 {offsets = [0, 127], sizes = [8, 512], strides = [1, 1]} : vector<8x768xf32> to vector<8x512xf32>
    %c88_280 = arith.constant 88 : index
    %c0_281 = arith.constant 0 : index
    %331 = vector.load %arg14[%c88_280, %c0_281] : memref<120x512xf32, #tpu.memory_space<vmem>>, vector<8x512xf32>
    tpu.vector_store %arg14[%c88_280, %c0_281], %330 {strides = array<i32>} : memref<120x512xf32, #tpu.memory_space<vmem>>, vector<8x512xf32>,
    %332 = vector.extract_strided_slice %281 {offsets = [0, 128], sizes = [8, 512], strides = [1, 1]} : vector<8x768xf32> to vector<8x512xf32>
    %c96_282 = arith.constant 96 : index
    %c0_283 = arith.constant 0 : index
    %333 = vector.load %arg12[%c96_282, %c0_283] : memref<120x512xf32, #tpu.memory_space<vmem>>, vector<8x512xf32>
    tpu.vector_store %arg12[%c96_282, %c0_283], %332 {strides = array<i32>} : memref<120x512xf32, #tpu.memory_space<vmem>>, vector<8x512xf32>,
    %334 = vector.extract_strided_slice %282 {offsets = [0, 128], sizes = [8, 512], strides = [1, 1]} : vector<8x768xf32> to vector<8x512xf32>
    %c96_284 = arith.constant 96 : index
    %c0_285 = arith.constant 0 : index
    %335 = vector.load %arg14[%c96_284, %c0_285] : memref<120x512xf32, #tpu.memory_space<vmem>>, vector<8x512xf32>
    tpu.vector_store %arg14[%c96_284, %c0_285], %334 {strides = array<i32>} : memref<120x512xf32, #tpu.memory_space<vmem>>, vector<8x512xf32>,
    %336 = vector.extract_strided_slice %281 {offsets = [0, 129], sizes = [8, 512], strides = [1, 1]} : vector<8x768xf32> to vector<8x512xf32>
    %c104_286 = arith.constant 104 : index
    %c0_287 = arith.constant 0 : index
    %337 = vector.load %arg12[%c104_286, %c0_287] : memref<120x512xf32, #tpu.memory_space<vmem>>, vector<8x512xf32>
    tpu.vector_store %arg12[%c104_286, %c0_287], %336 {strides = array<i32>} : memref<120x512xf32, #tpu.memory_space<vmem>>, vector<8x512xf32>,
    %338 = vector.extract_strided_slice %282 {offsets = [0, 129], sizes = [8, 512], strides = [1, 1]} : vector<8x768xf32> to vector<8x512xf32>
    %c104_288 = arith.constant 104 : index
    %c0_289 = arith.constant 0 : index
    %339 = vector.load %arg14[%c104_288, %c0_289] : memref<120x512xf32, #tpu.memory_space<vmem>>, vector<8x512xf32>
    tpu.vector_store %arg14[%c104_288, %c0_289], %338 {strides = array<i32>} : memref<120x512xf32, #tpu.memory_space<vmem>>, vector<8x512xf32>,
    %340 = vector.extract_strided_slice %281 {offsets = [0, 130], sizes = [8, 512], strides = [1, 1]} : vector<8x768xf32> to vector<8x512xf32>
    %c112_290 = arith.constant 112 : index
    %c0_291 = arith.constant 0 : index
    %341 = vector.load %arg12[%c112_290, %c0_291] : memref<120x512xf32, #tpu.memory_space<vmem>>, vector<8x512xf32>
    tpu.vector_store %arg12[%c112_290, %c0_291], %340 {strides = array<i32>} : memref<120x512xf32, #tpu.memory_space<vmem>>, vector<8x512xf32>,
    %342 = vector.extract_strided_slice %282 {offsets = [0, 130], sizes = [8, 512], strides = [1, 1]} : vector<8x768xf32> to vector<8x512xf32>
    %c112_292 = arith.constant 112 : index
    %c0_293 = arith.constant 0 : index
    %343 = vector.load %arg14[%c112_292, %c0_293] : memref<120x512xf32, #tpu.memory_space<vmem>>, vector<8x512xf32>
    tpu.vector_store %arg14[%c112_292, %c0_293], %342 {strides = array<i32>} : memref<120x512xf32, #tpu.memory_space<vmem>>, vector<8x512xf32>,
    %c0_294 = arith.constant 0 : index
    %c0_295 = arith.constant 0 : index
    %344 = vector.load %arg4[%c0_294, %c0_295] : memref<32x200xf32, #tpu.memory_space<vmem>>, vector<32x120xf32>
    %c0_296 = arith.constant 0 : index
    %c0_297 = arith.constant 0 : index
    %345 = vector.load %arg12[%c0_296, %c0_297] : memref<120x512xf32, #tpu.memory_space<vmem>>, vector<120x512xf32>
    %cst_298 = arith.constant dense<0.000000e+00> : vector<32x512xf32>
    %346 = tpu.matmul %344, %345, %cst_298 {dimension_numbers = #tpu.dot_dimension_numbers<[1], [0], [0], [1], [0, 0, 1, 1], [], []>} : vector<32x120xf32>, vector<120x512xf32>, vector<32x512xf32> -> vector<32x512xf32>
    %347 = vector.extract_strided_slice %344 {offsets = [0, 0], sizes = [16, 120], strides = [1, 1]} : vector<32x120xf32> to vector<16x120xf32>
    %c0_299 = arith.constant 0 : index
    %c0_300 = arith.constant 0 : index
    %348 = vector.load %arg14[%c0_299, %c0_300] : memref<120x512xf32, #tpu.memory_space<vmem>>, vector<120x512xf32>
    %cst_301 = arith.constant dense<0.000000e+00> : vector<16x512xf32>
    %349 = tpu.matmul %347, %348, %cst_301 {dimension_numbers = #tpu.dot_dimension_numbers<[1], [0], [0], [1], [0, 0, 1, 1], [], []>} : vector<16x120xf32>, vector<120x512xf32>, vector<16x512xf32> -> vector<16x512xf32>
    %350 = vector.extract_strided_slice %346 {offsets = [0, 0], sizes = [16, 512], strides = [1, 1]} : vector<32x512xf32> to vector<16x512xf32>
    %351 = arith.addf %283, %350 : vector<16x512xf32>
    %352 = vector.extract_strided_slice %346 {offsets = [16, 0], sizes = [16, 512], strides = [1, 1]} : vector<32x512xf32> to vector<16x512xf32>
    %353 = arith.addf %351, %352 : vector<16x512xf32>
    %354 = arith.addf %353, %349 : vector<16x512xf32>
    %355 = vector.extract_strided_slice %281 {offsets = [0, 148], sizes = [8, 512], strides = [1, 1]} : vector<8x768xf32> to vector<8x512xf32>
    %c0_302 = arith.constant 0 : index
    %c0_303 = arith.constant 0 : index
    %356 = vector.load %arg13[%c0_302, %c0_303] : memref<120x512xf32, #tpu.memory_space<vmem>>, vector<8x512xf32>
    tpu.vector_store %arg13[%c0_302, %c0_303], %355 {strides = array<i32>} : memref<120x512xf32, #tpu.memory_space<vmem>>, vector<8x512xf32>,
    %357 = vector.extract_strided_slice %282 {offsets = [0, 148], sizes = [8, 512], strides = [1, 1]} : vector<8x768xf32> to vector<8x512xf32>
    %c0_304 = arith.constant 0 : index
    %c0_305 = arith.constant 0 : index
    %358 = vector.load %arg15[%c0_304, %c0_305] : memref<120x512xf32, #tpu.memory_space<vmem>>, vector<8x512xf32>
    tpu.vector_store %arg15[%c0_304, %c0_305], %357 {strides = array<i32>} : memref<120x512xf32, #tpu.memory_space<vmem>>, vector<8x512xf32>,
    %359 = vector.extract_strided_slice %281 {offsets = [0, 149], sizes = [8, 512], strides = [1, 1]} : vector<8x768xf32> to vector<8x512xf32>
    %c8_306 = arith.constant 8 : index
    %c0_307 = arith.constant 0 : index
    %360 = vector.load %arg13[%c8_306, %c0_307] : memref<120x512xf32, #tpu.memory_space<vmem>>, vector<8x512xf32>
    tpu.vector_store %arg13[%c8_306, %c0_307], %359 {strides = array<i32>} : memref<120x512xf32, #tpu.memory_space<vmem>>, vector<8x512xf32>,
    %361 = vector.extract_strided_slice %282 {offsets = [0, 149], sizes = [8, 512], strides = [1, 1]} : vector<8x768xf32> to vector<8x512xf32>
    %c8_308 = arith.constant 8 : index
    %c0_309 = arith.constant 0 : index
    %362 = vector.load %arg15[%c8_308, %c0_309] : memref<120x512xf32, #tpu.memory_space<vmem>>, vector<8x512xf32>
    tpu.vector_store %arg15[%c8_308, %c0_309], %361 {strides = array<i32>} : memref<120x512xf32, #tpu.memory_space<vmem>>, vector<8x512xf32>,
    %363 = vector.extract_strided_slice %281 {offsets = [0, 150], sizes = [8, 512], strides = [1, 1]} : vector<8x768xf32> to vector<8x512xf32>
    %c16_310 = arith.constant 16 : index
    %c0_311 = arith.constant 0 : index
    %364 = vector.load %arg13[%c16_310, %c0_311] : memref<120x512xf32, #tpu.memory_space<vmem>>, vector<8x512xf32>
    tpu.vector_store %arg13[%c16_310, %c0_311], %363 {strides = array<i32>} : memref<120x512xf32, #tpu.memory_space<vmem>>, vector<8x512xf32>,
    %365 = vector.extract_strided_slice %282 {offsets = [0, 150], sizes = [8, 512], strides = [1, 1]} : vector<8x768xf32> to vector<8x512xf32>
    %c16_312 = arith.constant 16 : index
    %c0_313 = arith.constant 0 : index
    %366 = vector.load %arg15[%c16_312, %c0_313] : memref<120x512xf32, #tpu.memory_space<vmem>>, vector<8x512xf32>
    tpu.vector_store %arg15[%c16_312, %c0_313], %365 {strides = array<i32>} : memref<120x512xf32, #tpu.memory_space<vmem>>, vector<8x512xf32>,
    %367 = vector.extract_strided_slice %281 {offsets = [0, 151], sizes = [8, 512], strides = [1, 1]} : vector<8x768xf32> to vector<8x512xf32>
    %c24_314 = arith.constant 24 : index
    %c0_315 = arith.constant 0 : index
    %368 = vector.load %arg13[%c24_314, %c0_315] : memref<120x512xf32, #tpu.memory_space<vmem>>, vector<8x512xf32>
    tpu.vector_store %arg13[%c24_314, %c0_315], %367 {strides = array<i32>} : memref<120x512xf32, #tpu.memory_space<vmem>>, vector<8x512xf32>,
    %369 = vector.extract_strided_slice %282 {offsets = [0, 151], sizes = [8, 512], strides = [1, 1]} : vector<8x768xf32> to vector<8x512xf32>
    %c24_316 = arith.constant 24 : index
    %c0_317 = arith.constant 0 : index
    %370 = vector.load %arg15[%c24_316, %c0_317] : memref<120x512xf32, #tpu.memory_space<vmem>>, vector<8x512xf32>
    tpu.vector_store %arg15[%c24_316, %c0_317], %369 {strides = array<i32>} : memref<120x512xf32, #tpu.memory_space<vmem>>, vector<8x512xf32>,
    %371 = vector.extract_strided_slice %281 {offsets = [0, 152], sizes = [8, 512], strides = [1, 1]} : vector<8x768xf32> to vector<8x512xf32>
    %c32_318 = arith.constant 32 : index
    %c0_319 = arith.constant 0 : index
    %372 = vector.load %arg13[%c32_318, %c0_319] : memref<120x512xf32, #tpu.memory_space<vmem>>, vector<8x512xf32>
    tpu.vector_store %arg13[%c32_318, %c0_319], %371 {strides = array<i32>} : memref<120x512xf32, #tpu.memory_space<vmem>>, vector<8x512xf32>,
    %373 = vector.extract_strided_slice %282 {offsets = [0, 152], sizes = [8, 512], strides = [1, 1]} : vector<8x768xf32> to vector<8x512xf32>
    %c32_320 = arith.constant 32 : index
    %c0_321 = arith.constant 0 : index
    %374 = vector.load %arg15[%c32_320, %c0_321] : memref<120x512xf32, #tpu.memory_space<vmem>>, vector<8x512xf32>
    tpu.vector_store %arg15[%c32_320, %c0_321], %373 {strides = array<i32>} : memref<120x512xf32, #tpu.memory_space<vmem>>, vector<8x512xf32>,
    %375 = vector.extract_strided_slice %281 {offsets = [0, 170], sizes = [8, 512], strides = [1, 1]} : vector<8x768xf32> to vector<8x512xf32>
    %c40_322 = arith.constant 40 : index
    %c0_323 = arith.constant 0 : index
    %376 = vector.load %arg13[%c40_322, %c0_323] : memref<120x512xf32, #tpu.memory_space<vmem>>, vector<8x512xf32>
    tpu.vector_store %arg13[%c40_322, %c0_323], %375 {strides = array<i32>} : memref<120x512xf32, #tpu.memory_space<vmem>>, vector<8x512xf32>,
    %377 = vector.extract_strided_slice %282 {offsets = [0, 170], sizes = [8, 512], strides = [1, 1]} : vector<8x768xf32> to vector<8x512xf32>
    %c40_324 = arith.constant 40 : index
    %c0_325 = arith.constant 0 : index
    %378 = vector.load %arg15[%c40_324, %c0_325] : memref<120x512xf32, #tpu.memory_space<vmem>>, vector<8x512xf32>
    tpu.vector_store %arg15[%c40_324, %c0_325], %377 {strides = array<i32>} : memref<120x512xf32, #tpu.memory_space<vmem>>, vector<8x512xf32>,
    %379 = vector.extract_strided_slice %281 {offsets = [0, 171], sizes = [8, 512], strides = [1, 1]} : vector<8x768xf32> to vector<8x512xf32>
    %c48_326 = arith.constant 48 : index
    %c0_327 = arith.constant 0 : index
    %380 = vector.load %arg13[%c48_326, %c0_327] : memref<120x512xf32, #tpu.memory_space<vmem>>, vector<8x512xf32>
    tpu.vector_store %arg13[%c48_326, %c0_327], %379 {strides = array<i32>} : memref<120x512xf32, #tpu.memory_space<vmem>>, vector<8x512xf32>,
    %381 = vector.extract_strided_slice %282 {offsets = [0, 171], sizes = [8, 512], strides = [1, 1]} : vector<8x768xf32> to vector<8x512xf32>
    %c48_328 = arith.constant 48 : index
    %c0_329 = arith.constant 0 : index
    %382 = vector.load %arg15[%c48_328, %c0_329] : memref<120x512xf32, #tpu.memory_space<vmem>>, vector<8x512xf32>
    tpu.vector_store %arg15[%c48_328, %c0_329], %381 {strides = array<i32>} : memref<120x512xf32, #tpu.memory_space<vmem>>, vector<8x512xf32>,
    %383 = vector.extract_strided_slice %281 {offsets = [0, 172], sizes = [8, 512], strides = [1, 1]} : vector<8x768xf32> to vector<8x512xf32>
    %c56_330 = arith.constant 56 : index
    %c0_331 = arith.constant 0 : index
    %384 = vector.load %arg13[%c56_330, %c0_331] : memref<120x512xf32, #tpu.memory_space<vmem>>, vector<8x512xf32>
    tpu.vector_store %arg13[%c56_330, %c0_331], %383 {strides = array<i32>} : memref<120x512xf32, #tpu.memory_space<vmem>>, vector<8x512xf32>,
    %385 = vector.extract_strided_slice %282 {offsets = [0, 172], sizes = [8, 512], strides = [1, 1]} : vector<8x768xf32> to vector<8x512xf32>
    %c56_332 = arith.constant 56 : index
    %c0_333 = arith.constant 0 : index
    %386 = vector.load %arg15[%c56_332, %c0_333] : memref<120x512xf32, #tpu.memory_space<vmem>>, vector<8x512xf32>
    tpu.vector_store %arg15[%c56_332, %c0_333], %385 {strides = array<i32>} : memref<120x512xf32, #tpu.memory_space<vmem>>, vector<8x512xf32>,
    %387 = vector.extract_strided_slice %281 {offsets = [0, 173], sizes = [8, 512], strides = [1, 1]} : vector<8x768xf32> to vector<8x512xf32>
    %c64_334 = arith.constant 64 : index
    %c0_335 = arith.constant 0 : index
    %388 = vector.load %arg13[%c64_334, %c0_335] : memref<120x512xf32, #tpu.memory_space<vmem>>, vector<8x512xf32>
    tpu.vector_store %arg13[%c64_334, %c0_335], %387 {strides = array<i32>} : memref<120x512xf32, #tpu.memory_space<vmem>>, vector<8x512xf32>,
    %389 = vector.extract_strided_slice %282 {offsets = [0, 173], sizes = [8, 512], strides = [1, 1]} : vector<8x768xf32> to vector<8x512xf32>
    %c64_336 = arith.constant 64 : index
    %c0_337 = arith.constant 0 : index
    %390 = vector.load %arg15[%c64_336, %c0_337] : memref<120x512xf32, #tpu.memory_space<vmem>>, vector<8x512xf32>
    tpu.vector_store %arg15[%c64_336, %c0_337], %389 {strides = array<i32>} : memref<120x512xf32, #tpu.memory_space<vmem>>, vector<8x512xf32>,
    %391 = vector.extract_strided_slice %281 {offsets = [0, 174], sizes = [8, 512], strides = [1, 1]} : vector<8x768xf32> to vector<8x512xf32>
    %c72_338 = arith.constant 72 : index
    %c0_339 = arith.constant 0 : index
    %392 = vector.load %arg13[%c72_338, %c0_339] : memref<120x512xf32, #tpu.memory_space<vmem>>, vector<8x512xf32>
    tpu.vector_store %arg13[%c72_338, %c0_339], %391 {strides = array<i32>} : memref<120x512xf32, #tpu.memory_space<vmem>>, vector<8x512xf32>,
    %393 = vector.extract_strided_slice %282 {offsets = [0, 174], sizes = [8, 512], strides = [1, 1]} : vector<8x768xf32> to vector<8x512xf32>
    %c72_340 = arith.constant 72 : index
    %c0_341 = arith.constant 0 : index
    %394 = vector.load %arg15[%c72_340, %c0_341] : memref<120x512xf32, #tpu.memory_space<vmem>>, vector<8x512xf32>
    tpu.vector_store %arg15[%c72_340, %c0_341], %393 {strides = array<i32>} : memref<120x512xf32, #tpu.memory_space<vmem>>, vector<8x512xf32>,
    %c0_342 = arith.constant 0 : index
    %c120 = arith.constant 120 : index
    %395 = vector.load %arg4[%c0_342, %c120] : memref<32x200xf32, #tpu.memory_space<vmem>>, vector<32x80xf32>
    %c0_343 = arith.constant 0 : index
    %c0_344 = arith.constant 0 : index
    %396 = vector.load %arg13[%c0_343, %c0_344] : memref<120x512xf32, #tpu.memory_space<vmem>>, vector<80x512xf32>
    %cst_345 = arith.constant dense<0.000000e+00> : vector<32x512xf32>
    %397 = tpu.matmul %395, %396, %cst_345 {dimension_numbers = #tpu.dot_dimension_numbers<[1], [0], [0], [1], [0, 0, 1, 1], [], []>} : vector<32x80xf32>, vector<80x512xf32>, vector<32x512xf32> -> vector<32x512xf32>
    %398 = vector.extract_strided_slice %395 {offsets = [0, 0], sizes = [16, 80], strides = [1, 1]} : vector<32x80xf32> to vector<16x80xf32>
    %c0_346 = arith.constant 0 : index
    %c0_347 = arith.constant 0 : index
    %399 = vector.load %arg15[%c0_346, %c0_347] : memref<120x512xf32, #tpu.memory_space<vmem>>, vector<80x512xf32>
    %cst_348 = arith.constant dense<0.000000e+00> : vector<16x512xf32>
    %400 = tpu.matmul %398, %399, %cst_348 {dimension_numbers = #tpu.dot_dimension_numbers<[1], [0], [0], [1], [0, 0, 1, 1], [], []>} : vector<16x80xf32>, vector<80x512xf32>, vector<16x512xf32> -> vector<16x512xf32>
    %401 = vector.extract_strided_slice %397 {offsets = [0, 0], sizes = [16, 512], strides = [1, 1]} : vector<32x512xf32> to vector<16x512xf32>
    %402 = arith.addf %354, %401 : vector<16x512xf32>
    %403 = vector.extract_strided_slice %397 {offsets = [16, 0], sizes = [16, 512], strides = [1, 1]} : vector<32x512xf32> to vector<16x512xf32>
    %404 = arith.addf %402, %403 : vector<16x512xf32>
    %405 = arith.addf %404, %400 : vector<16x512xf32>
    %406 = vector.extract_strided_slice %405 {offsets = [0, 0], sizes = [8, 512], strides = [1, 1]} : vector<16x512xf32> to vector<8x512xf32>
    %407 = vector.extract_strided_slice %405 {offsets = [8, 0], sizes = [8, 512], strides = [1, 1]} : vector<16x512xf32> to vector<8x512xf32>
    %cst_349 = arith.constant 0.000000e+00 : f32
    %408 = vector.broadcast %cst_349 : f32 to vector<8x512xf32>
    %409 = arith.cmpf ogt, %406, %408 : vector<8x512xf32>
    %410 = vector.broadcast %3 : f32 to vector<8x512xf32>
    %411 = arith.mulf %410, %406 : vector<8x512xf32>
    %412 = arith.select %409, %406, %411 : vector<8x512xi1>, vector<8x512xf32>
    %cst_350 = arith.constant 0.000000e+00 : f32
    %413 = vector.broadcast %cst_350 : f32 to vector<8x512xf32>
    %414 = arith.cmpf ogt, %407, %413 : vector<8x512xf32>
    %415 = vector.broadcast %4 : f32 to vector<8x512xf32>
    %416 = arith.mulf %415, %407 : vector<8x512xf32>
    %417 = arith.select %414, %407, %416 : vector<8x512xi1>, vector<8x512xf32>
    %418 = arith.subf %412, %417 : vector<8x512xf32>
    %419 = math.absf %418 : vector<8x512xf32>
    %cst_351 = arith.constant 0.000000e+00 : f32
    %420 = vector.broadcast %cst_351 : f32 to vector<8x512xf32>
    %421 = arith.subf %420, %419 : vector<8x512xf32>
    %422 = math.exp %421 : vector<8x512xf32>
    %cst_352 = arith.constant 1.000000e+00 : f32
    %423 = vector.broadcast %cst_352 : f32 to vector<8x512xf32>
    %424 = arith.addf %423, %422 : vector<8x512xf32>
    %cst_353 = arith.constant 1.000000e+00 : f32
    %425 = vector.broadcast %cst_353 : f32 to vector<8x512xf32>
    %426 = arith.divf %425, %424 : vector<8x512xf32>
    %427 = vector.broadcast %2 : vector<1x512xf32> to vector<8x512xf32>
    %428 = arith.mulf %426, %427 : vector<8x512xf32>
    %c0_354 = arith.constant 0 : index
    %c128_355 = arith.constant 128 : index
    %429 = vector.load %arg16[%c0_354, %c128_355] : memref<8x768xf32, #tpu.memory_space<vmem>>, vector<8x512xf32>
    tpu.vector_store %arg16[%c0_354, %c128_355], %428 {strides = array<i32>} : memref<8x768xf32, #tpu.memory_space<vmem>>, vector<8x512xf32>,
    %c0_356 = arith.constant 0 : index
    %c0_357 = arith.constant 0 : index
    %430 = vector.load %arg16[%c0_356, %c0_357] : memref<8x768xf32, #tpu.memory_space<vmem>>, vector<8x768xf32>
    %431 = arith.truncf %430 : vector<8x768xf32> to vector<8x768xbf16>
    %432 = arith.extf %431 : vector<8x768xbf16> to vector<8x768xf32>
    %433 = arith.subf %430, %432 : vector<8x768xf32>
    %cst_358 = arith.constant 0.000000e+00 : f32
    %434 = vector.broadcast %cst_358 : f32 to vector<16x512xf32>
    %435 = vector.extract_strided_slice %432 {offsets = [0, 105], sizes = [8, 512], strides = [1, 1]} : vector<8x768xf32> to vector<8x512xf32>
    %c0_359 = arith.constant 0 : index
    %c0_360 = arith.constant 0 : index
    %436 = vector.load %arg12[%c0_359, %c0_360] : memref<120x512xf32, #tpu.memory_space<vmem>>, vector<8x512xf32>
    tpu.vector_store %arg12[%c0_359, %c0_360], %435 {strides = array<i32>} : memref<120x512xf32, #tpu.memory_space<vmem>>, vector<8x512xf32>,
    %437 = vector.extract_strided_slice %433 {offsets = [0, 105], sizes = [8, 512], strides = [1, 1]} : vector<8x768xf32> to vector<8x512xf32>
    %c0_361 = arith.constant 0 : index
    %c0_362 = arith.constant 0 : index
    %438 = vector.load %arg14[%c0_361, %c0_362] : memref<120x512xf32, #tpu.memory_space<vmem>>, vector<8x512xf32>
    tpu.vector_store %arg14[%c0_361, %c0_362], %437 {strides = array<i32>} : memref<120x512xf32, #tpu.memory_space<vmem>>, vector<8x512xf32>,
    %439 = vector.extract_strided_slice %432 {offsets = [0, 106], sizes = [8, 512], strides = [1, 1]} : vector<8x768xf32> to vector<8x512xf32>
    %c8_363 = arith.constant 8 : index
    %c0_364 = arith.constant 0 : index
    %440 = vector.load %arg12[%c8_363, %c0_364] : memref<120x512xf32, #tpu.memory_space<vmem>>, vector<8x512xf32>
    tpu.vector_store %arg12[%c8_363, %c0_364], %439 {strides = array<i32>} : memref<120x512xf32, #tpu.memory_space<vmem>>, vector<8x512xf32>,
    %441 = vector.extract_strided_slice %433 {offsets = [0, 106], sizes = [8, 512], strides = [1, 1]} : vector<8x768xf32> to vector<8x512xf32>
    %c8_365 = arith.constant 8 : index
    %c0_366 = arith.constant 0 : index
    %442 = vector.load %arg14[%c8_365, %c0_366] : memref<120x512xf32, #tpu.memory_space<vmem>>, vector<8x512xf32>
    tpu.vector_store %arg14[%c8_365, %c0_366], %441 {strides = array<i32>} : memref<120x512xf32, #tpu.memory_space<vmem>>, vector<8x512xf32>,
    %443 = vector.extract_strided_slice %432 {offsets = [0, 107], sizes = [8, 512], strides = [1, 1]} : vector<8x768xf32> to vector<8x512xf32>
    %c16_367 = arith.constant 16 : index
    %c0_368 = arith.constant 0 : index
    %444 = vector.load %arg12[%c16_367, %c0_368] : memref<120x512xf32, #tpu.memory_space<vmem>>, vector<8x512xf32>
    tpu.vector_store %arg12[%c16_367, %c0_368], %443 {strides = array<i32>} : memref<120x512xf32, #tpu.memory_space<vmem>>, vector<8x512xf32>,
    %445 = vector.extract_strided_slice %433 {offsets = [0, 107], sizes = [8, 512], strides = [1, 1]} : vector<8x768xf32> to vector<8x512xf32>
    %c16_369 = arith.constant 16 : index
    %c0_370 = arith.constant 0 : index
    %446 = vector.load %arg14[%c16_369, %c0_370] : memref<120x512xf32, #tpu.memory_space<vmem>>, vector<8x512xf32>
    tpu.vector_store %arg14[%c16_369, %c0_370], %445 {strides = array<i32>} : memref<120x512xf32, #tpu.memory_space<vmem>>, vector<8x512xf32>,
    %447 = vector.extract_strided_slice %432 {offsets = [0, 127], sizes = [8, 512], strides = [1, 1]} : vector<8x768xf32> to vector<8x512xf32>
    %c24_371 = arith.constant 24 : index
    %c0_372 = arith.constant 0 : index
    %448 = vector.load %arg12[%c24_371, %c0_372] : memref<120x512xf32, #tpu.memory_space<vmem>>, vector<8x512xf32>
    tpu.vector_store %arg12[%c24_371, %c0_372], %447 {strides = array<i32>} : memref<120x512xf32, #tpu.memory_space<vmem>>, vector<8x512xf32>,
    %449 = vector.extract_strided_slice %433 {offsets = [0, 127], sizes = [8, 512], strides = [1, 1]} : vector<8x768xf32> to vector<8x512xf32>
    %c24_373 = arith.constant 24 : index
    %c0_374 = arith.constant 0 : index
    %450 = vector.load %arg14[%c24_373, %c0_374] : memref<120x512xf32, #tpu.memory_space<vmem>>, vector<8x512xf32>
    tpu.vector_store %arg14[%c24_373, %c0_374], %449 {strides = array<i32>} : memref<120x512xf32, #tpu.memory_space<vmem>>, vector<8x512xf32>,
    %451 = vector.extract_strided_slice %432 {offsets = [0, 128], sizes = [8, 512], strides = [1, 1]} : vector<8x768xf32> to vector<8x512xf32>
    %c32_375 = arith.constant 32 : index
    %c0_376 = arith.constant 0 : index
    %452 = vector.load %arg12[%c32_375, %c0_376] : memref<120x512xf32, #tpu.memory_space<vmem>>, vector<8x512xf32>
    tpu.vector_store %arg12[%c32_375, %c0_376], %451 {strides = array<i32>} : memref<120x512xf32, #tpu.memory_space<vmem>>, vector<8x512xf32>,
    %453 = vector.extract_strided_slice %433 {offsets = [0, 128], sizes = [8, 512], strides = [1, 1]} : vector<8x768xf32> to vector<8x512xf32>
    %c32_377 = arith.constant 32 : index
    %c0_378 = arith.constant 0 : index
    %454 = vector.load %arg14[%c32_377, %c0_378] : memref<120x512xf32, #tpu.memory_space<vmem>>, vector<8x512xf32>
    tpu.vector_store %arg14[%c32_377, %c0_378], %453 {strides = array<i32>} : memref<120x512xf32, #tpu.memory_space<vmem>>, vector<8x512xf32>,
    %455 = vector.extract_strided_slice %432 {offsets = [0, 129], sizes = [8, 512], strides = [1, 1]} : vector<8x768xf32> to vector<8x512xf32>
    %c40_379 = arith.constant 40 : index
    %c0_380 = arith.constant 0 : index
    %456 = vector.load %arg12[%c40_379, %c0_380] : memref<120x512xf32, #tpu.memory_space<vmem>>, vector<8x512xf32>
    tpu.vector_store %arg12[%c40_379, %c0_380], %455 {strides = array<i32>} : memref<120x512xf32, #tpu.memory_space<vmem>>, vector<8x512xf32>,
    %457 = vector.extract_strided_slice %433 {offsets = [0, 129], sizes = [8, 512], strides = [1, 1]} : vector<8x768xf32> to vector<8x512xf32>
    %c40_381 = arith.constant 40 : index
    %c0_382 = arith.constant 0 : index
    %458 = vector.load %arg14[%c40_381, %c0_382] : memref<120x512xf32, #tpu.memory_space<vmem>>, vector<8x512xf32>
    tpu.vector_store %arg14[%c40_381, %c0_382], %457 {strides = array<i32>} : memref<120x512xf32, #tpu.memory_space<vmem>>, vector<8x512xf32>,
    %459 = vector.extract_strided_slice %432 {offsets = [0, 149], sizes = [8, 512], strides = [1, 1]} : vector<8x768xf32> to vector<8x512xf32>
    %c48_383 = arith.constant 48 : index
    %c0_384 = arith.constant 0 : index
    %460 = vector.load %arg12[%c48_383, %c0_384] : memref<120x512xf32, #tpu.memory_space<vmem>>, vector<8x512xf32>
    tpu.vector_store %arg12[%c48_383, %c0_384], %459 {strides = array<i32>} : memref<120x512xf32, #tpu.memory_space<vmem>>, vector<8x512xf32>,
    %461 = vector.extract_strided_slice %433 {offsets = [0, 149], sizes = [8, 512], strides = [1, 1]} : vector<8x768xf32> to vector<8x512xf32>
    %c48_385 = arith.constant 48 : index
    %c0_386 = arith.constant 0 : index
    %462 = vector.load %arg14[%c48_385, %c0_386] : memref<120x512xf32, #tpu.memory_space<vmem>>, vector<8x512xf32>
    tpu.vector_store %arg14[%c48_385, %c0_386], %461 {strides = array<i32>} : memref<120x512xf32, #tpu.memory_space<vmem>>, vector<8x512xf32>,
    %463 = vector.extract_strided_slice %432 {offsets = [0, 150], sizes = [8, 512], strides = [1, 1]} : vector<8x768xf32> to vector<8x512xf32>
    %c56_387 = arith.constant 56 : index
    %c0_388 = arith.constant 0 : index
    %464 = vector.load %arg12[%c56_387, %c0_388] : memref<120x512xf32, #tpu.memory_space<vmem>>, vector<8x512xf32>
    tpu.vector_store %arg12[%c56_387, %c0_388], %463 {strides = array<i32>} : memref<120x512xf32, #tpu.memory_space<vmem>>, vector<8x512xf32>,
    %465 = vector.extract_strided_slice %433 {offsets = [0, 150], sizes = [8, 512], strides = [1, 1]} : vector<8x768xf32> to vector<8x512xf32>
    %c56_389 = arith.constant 56 : index
    %c0_390 = arith.constant 0 : index
    %466 = vector.load %arg14[%c56_389, %c0_390] : memref<120x512xf32, #tpu.memory_space<vmem>>, vector<8x512xf32>
    tpu.vector_store %arg14[%c56_389, %c0_390], %465 {strides = array<i32>} : memref<120x512xf32, #tpu.memory_space<vmem>>, vector<8x512xf32>,
    %467 = vector.extract_strided_slice %432 {offsets = [0, 151], sizes = [8, 512], strides = [1, 1]} : vector<8x768xf32> to vector<8x512xf32>
    %c64_391 = arith.constant 64 : index
    %c0_392 = arith.constant 0 : index
    %468 = vector.load %arg12[%c64_391, %c0_392] : memref<120x512xf32, #tpu.memory_space<vmem>>, vector<8x512xf32>
    tpu.vector_store %arg12[%c64_391, %c0_392], %467 {strides = array<i32>} : memref<120x512xf32, #tpu.memory_space<vmem>>, vector<8x512xf32>,
    %469 = vector.extract_strided_slice %433 {offsets = [0, 151], sizes = [8, 512], strides = [1, 1]} : vector<8x768xf32> to vector<8x512xf32>
    %c64_393 = arith.constant 64 : index
    %c0_394 = arith.constant 0 : index
    %470 = vector.load %arg14[%c64_393, %c0_394] : memref<120x512xf32, #tpu.memory_space<vmem>>, vector<8x512xf32>
    tpu.vector_store %arg14[%c64_393, %c0_394], %469 {strides = array<i32>} : memref<120x512xf32, #tpu.memory_space<vmem>>, vector<8x512xf32>,
    %c0_395 = arith.constant 0 : index
    %c0_396 = arith.constant 0 : index
    %471 = vector.load %arg5[%c0_395, %c0_396] : memref<32x72xf32, #tpu.memory_space<vmem>>, vector<32x72xf32>
    %c0_397 = arith.constant 0 : index
    %c0_398 = arith.constant 0 : index
    %472 = vector.load %arg12[%c0_397, %c0_398] : memref<120x512xf32, #tpu.memory_space<vmem>>, vector<72x512xf32>
    %cst_399 = arith.constant dense<0.000000e+00> : vector<32x512xf32>
    %473 = tpu.matmul %471, %472, %cst_399 {dimension_numbers = #tpu.dot_dimension_numbers<[1], [0], [0], [1], [0, 0, 1, 1], [], []>} : vector<32x72xf32>, vector<72x512xf32>, vector<32x512xf32> -> vector<32x512xf32>
    %474 = vector.extract_strided_slice %471 {offsets = [0, 0], sizes = [16, 72], strides = [1, 1]} : vector<32x72xf32> to vector<16x72xf32>
    %c0_400 = arith.constant 0 : index
    %c0_401 = arith.constant 0 : index
    %475 = vector.load %arg14[%c0_400, %c0_401] : memref<120x512xf32, #tpu.memory_space<vmem>>, vector<72x512xf32>
    %cst_402 = arith.constant dense<0.000000e+00> : vector<16x512xf32>
    %476 = tpu.matmul %474, %475, %cst_402 {dimension_numbers = #tpu.dot_dimension_numbers<[1], [0], [0], [1], [0, 0, 1, 1], [], []>} : vector<16x72xf32>, vector<72x512xf32>, vector<16x512xf32> -> vector<16x512xf32>
    %477 = vector.extract_strided_slice %473 {offsets = [0, 0], sizes = [16, 512], strides = [1, 1]} : vector<32x512xf32> to vector<16x512xf32>
    %478 = arith.addf %434, %477 : vector<16x512xf32>
    %479 = vector.extract_strided_slice %473 {offsets = [16, 0], sizes = [16, 512], strides = [1, 1]} : vector<32x512xf32> to vector<16x512xf32>
    %480 = arith.addf %478, %479 : vector<16x512xf32>
    %481 = arith.addf %480, %476 : vector<16x512xf32>
    %482 = vector.extract_strided_slice %481 {offsets = [0, 0], sizes = [8, 512], strides = [1, 1]} : vector<16x512xf32> to vector<8x512xf32>
    %483 = vector.extract_strided_slice %481 {offsets = [8, 0], sizes = [8, 512], strides = [1, 1]} : vector<16x512xf32> to vector<8x512xf32>
    %cst_403 = arith.constant 0.000000e+00 : f32
    %484 = vector.broadcast %cst_403 : f32 to vector<8x512xf32>
    %485 = arith.cmpf ogt, %482, %484 : vector<8x512xf32>
    %486 = vector.broadcast %5 : f32 to vector<8x512xf32>
    %487 = arith.mulf %486, %482 : vector<8x512xf32>
    %488 = arith.select %485, %482, %487 : vector<8x512xi1>, vector<8x512xf32>
    %cst_404 = arith.constant 0.000000e+00 : f32
    %489 = vector.broadcast %cst_404 : f32 to vector<8x512xf32>
    %490 = arith.cmpf ogt, %483, %489 : vector<8x512xf32>
    %491 = vector.broadcast %6 : f32 to vector<8x512xf32>
    %492 = arith.mulf %491, %483 : vector<8x512xf32>
    %493 = arith.select %490, %483, %492 : vector<8x512xi1>, vector<8x512xf32>
    %494 = arith.subf %488, %493 : vector<8x512xf32>
    %495 = math.absf %494 : vector<8x512xf32>
    %cst_405 = arith.constant 0.000000e+00 : f32
    %496 = vector.broadcast %cst_405 : f32 to vector<8x512xf32>
    %497 = arith.subf %496, %495 : vector<8x512xf32>
    %498 = math.exp %497 : vector<8x512xf32>
    %cst_406 = arith.constant 1.000000e+00 : f32
    %499 = vector.broadcast %cst_406 : f32 to vector<8x512xf32>
    %500 = arith.addf %499, %498 : vector<8x512xf32>
    %cst_407 = arith.constant 1.000000e+00 : f32
    %501 = vector.broadcast %cst_407 : f32 to vector<8x512xf32>
    %502 = arith.divf %501, %500 : vector<8x512xf32>
    %c0_408 = arith.constant 0 : index
    %c0_409 = arith.constant 0 : index
    %c0_410 = arith.constant 0 : index
    %503 = vector.load %arg10[%c0_408, %c0_409, %c0_410] : memref<1x8x512xf32, #tpu.memory_space<vmem>>, vector<1x8x512xf32>
    %504 = vector.shape_cast %503 : vector<1x8x512xf32> to vector<8x512xf32>
    %505 = vector.shape_cast %502 : vector<8x512xf32> to vector<1x8x512xf32>
    tpu.vector_store %arg10[%c0_408, %c0_409, %c0_410], %505 {strides = array<i32>} : memref<1x8x512xf32, #tpu.memory_space<vmem>>, vector<1x8x512xf32>,
    %506 = vector.extract_strided_slice %1 {offsets = [0, 128], sizes = [8, 512], strides = [1, 1]} : vector<8x768xf32> to vector<8x512xf32>
    %507 = arith.subf %506, %502 : vector<8x512xf32>
    %c0_411 = arith.constant 0 : index
    %c0_412 = arith.constant 0 : index
    %c0_413 = arith.constant 0 : index
    %508 = vector.load %arg11[%c0_411, %c0_412, %c0_413] : memref<1x8x512xf32, #tpu.memory_space<vmem>>, vector<1x8x512xf32>
    %509 = vector.shape_cast %508 : vector<1x8x512xf32> to vector<8x512xf32>
    %510 = vector.shape_cast %507 : vector<8x512xf32> to vector<1x8x512xf32>
    tpu.vector_store %arg11[%c0_411, %c0_412, %c0_413], %510 {strides = array<i32>} : memref<1x8x512xf32, #tpu.memory_space<vmem>>, vector<1x8x512xf32>,
    return
  }
  func.func @transform_0(%arg0: i32) -> (i32, i32, i32) {
    %c0_i32 = arith.constant 0 : i32
    %c0_i32_0 = arith.constant 0 : i32
    %c0_i32_1 = arith.constant 0 : i32
    return %arg0, %c0_i32, %c0_i32_0 : i32, i32, i32
  }
  func.func @transform_1(%arg0: i32) -> (i32, i32) {
    %c0_i32 = arith.constant 0 : i32
    %c0_i32_0 = arith.constant 0 : i32
    %c0_i32_1 = arith.constant 0 : i32
    return %c0_i32, %c0_i32_0 : i32, i32
  }
  func.func @transform_2(%arg0: i32) -> (i32, i32) {
    %c0_i32 = arith.constant 0 : i32
    %c0_i32_0 = arith.constant 0 : i32
    %c0_i32_1 = arith.constant 0 : i32
    return %c0_i32, %c0_i32_0 : i32, i32
  }
  func.func @transform_3(%arg0: i32) -> (i32, i32) {
    %c0_i32 = arith.constant 0 : i32
    %c0_i32_0 = arith.constant 0 : i32
    %c0_i32_1 = arith.constant 0 : i32
    return %c0_i32, %c0_i32_0 : i32, i32
  }
  func.func @transform_4(%arg0: i32) -> (i32, i32) {
    %c0_i32 = arith.constant 0 : i32
    %c0_i32_0 = arith.constant 0 : i32
    %c0_i32_1 = arith.constant 0 : i32
    return %c0_i32, %c0_i32_0 : i32, i32
  }
  func.func @transform_5(%arg0: i32) -> i32 {
    %c0_i32 = arith.constant 0 : i32
    %c0_i32_0 = arith.constant 0 : i32
    return %c0_i32 : i32
  }
  func.func @transform_6(%arg0: i32) -> i32 {
    %c0_i32 = arith.constant 0 : i32
    %c0_i32_0 = arith.constant 0 : i32
    return %c0_i32 : i32
  }
  func.func @transform_7(%arg0: i32) -> i32 {
    %c0_i32 = arith.constant 0 : i32
    %c0_i32_0 = arith.constant 0 : i32
    return %c0_i32 : i32
  }
  func.func @transform_8(%arg0: i32) -> i32 {
    %c0_i32 = arith.constant 0 : i32
    %c0_i32_0 = arith.constant 0 : i32
    return %c0_i32 : i32
  }
  func.func @transform_9(%arg0: i32) -> (i32, i32, i32) {
    %c0_i32 = arith.constant 0 : i32
    %c0_i32_0 = arith.constant 0 : i32
    %c0_i32_1 = arith.constant 0 : i32
    return %arg0, %c0_i32, %c0_i32_0 : i32, i32, i32
  }
  func.func @transform_10(%arg0: i32) -> (i32, i32, i32) {
    %c0_i32 = arith.constant 0 : i32
    %c0_i32_0 = arith.constant 0 : i32
    %c0_i32_1 = arith.constant 0 : i32
    return %arg0, %c0_i32, %c0_i32_0 : i32, i32, i32
  }
}

</mosaic_0001>

<llo_original>
// kernel: dcn_forward.1
$region0: #{dcn_forward.1}
  #allocation0 [shape = 'u32[]', space=smem, size = 0x4, offset = 0x4, fixed_abs, tag = 'smem constant byte address 0x4 - core index']
  #allocation1 [shape = 'u32[144,128]{1,0:T(1,128)}', space=vmem, size = 0x12000, scoped, tag = 'internal scratch']
  #allocation2 [shape = 'f32[120,512]{1,0:T(8,128)}', space=vmem, size = 0x3c000, scoped, tag = 'scratch operand']
  #allocation3 [shape = 'f32[120,512]{1,0:T(8,128)}', space=vmem, size = 0x3c000, scoped, tag = 'scratch operand']
  #allocation4 [shape = 'f32[120,512]{1,0:T(8,128)}', space=vmem, size = 0x3c000, scoped, tag = 'scratch operand']
  #allocation5 [shape = 'f32[120,512]{1,0:T(8,128)}', space=vmem, size = 0x3c000, scoped, tag = 'scratch operand']
  #allocation6 [shape = 'f32[8,768]{1,0:T(8,128)}', space=vmem, size = 0x6000, scoped, tag = 'scratch operand']
  #allocation7 [shape = 'f32[1]{0:T(128)S(6)}', space=smem, size = 0x200, scoped, tag = 'scoped memory for dcn_forward.1']
  #allocation8 [shape = 'f32[1]{0:T(128)S(6)}', space=smem, size = 0x200, scoped, tag = 'scoped memory for dcn_forward.1']
  #allocation9 [shape = 'f32[1]{0:T(128)S(6)}', space=smem, size = 0x200, scoped, tag = 'scoped memory for dcn_forward.1']
  #allocation10 [shape = 'f32[1]{0:T(128)S(6)}', space=smem, size = 0x200, scoped, tag = 'scoped memory for dcn_forward.1']
  %s0 = inlined_call_operand.vmem [shape: f32[2,8,768], index: 0, kind: input, shape index: {}]
  %s1 = inlined_call_operand.vmem [shape: f32[1,512], index: 1, kind: input, shape index: {}]
  %s2 = inlined_call_operand.vmem [shape: f32[32,392], index: 2, kind: input, shape index: {}]
  %s3 = inlined_call_operand.vmem [shape: f32[32,200], index: 3, kind: input, shape index: {}]
  %s4 = inlined_call_operand.vmem [shape: f32[32,72], index: 4, kind: input, shape index: {}]
  %s5 = inlined_call_operand.<no memory space> [shape: f32[1], index: 5, kind: input, shape index: {}]
  %s6 = inlined_call_operand.<no memory space> [shape: f32[1], index: 6, kind: input, shape index: {}]
  %s7 = inlined_call_operand.<no memory space> [shape: f32[1], index: 7, kind: input, shape index: {}]
  %s8 = inlined_call_operand.<no memory space> [shape: f32[1], index: 8, kind: input, shape index: {}]
  %s9 = inlined_call_operand.vmem [shape: f32[2,8,512], index: 9, kind: output, shape index: {0}]
  %s10 = inlined_call_operand.vmem [shape: f32[2,8,512], index: 10, kind: output, shape index: {1}]
  %11 = xla_tuple %s9, %s10
  %s12 = sld [smem:[#allocation0]]
  $region77: #{dcn_forward.1} parent=0
    _
  %s14 = ssub.s32 1, %s12
  %s15 = scalar_select 0, %s14, %s12
  %16 = sst [smem:[#allocation7]] %s5
  %17 = sst [smem:[#allocation8]] %s6
  %18 = sst [smem:[#allocation9]] %s7
  %19 = sst [smem:[#allocation10]] %s8
  loop: start=0, step=1, limit=4
  $region2: #{dcn_forward.1} parent=0 // loop_pre_header
    _
  $region3: #{dcn_forward.1} parent=0 // loop_header
    %s21 = sphi 0, %s25
    %p22 = scmp.ge.s32.totalorder %s21, 4
    %s31 = sphi 0, %s33
    %s34 = sphi 0, %s31
    %s35 = sphi 0, %s34
    %s51 = sphi 0, %s35
    %s55 = sphi 0, %s55
    %s57 = sphi 0, %s55
    %s58 = sphi 0, %s57
    %s72 = sphi 0, %s58
    %s76 = sphi 0, %s76
    %s78 = sphi 0, %s76
    %s79 = sphi 0, %s78
    %s93 = sphi 0, %s79
    %s97 = sphi 0, %s97
    %s99 = sphi 0, %s97
    %s100 = sphi 0, %s99
    %s114 = sphi 0, %s100
    %s118 = sphi 0, %s118
    %s120 = sphi 0, %s118
    %s121 = sphi 0, %s120
    %s135 = sphi 0, %s121
    %s139 = sphi 0, %s139
    %s141 = sphi 0, %s139
    %s142 = sphi 0, %s141
    %s156 = sphi 0, %s142
    %s160 = sphi 0, %s160
    %s162 = sphi 0, %s160
    %s163 = sphi 0, %s162
    %s177 = sphi 0, %s163
    %s181 = sphi 0, %s181
    %s183 = sphi 0, %s181
    %s184 = sphi 0, %s183
    %s198 = sphi 0, %s184
    %s202 = sphi 0, %s202
    %s204 = sphi 0, %s202
    %s205 = sphi 0, %s204
    %s219 = sphi 0, %s205
    %s225 = sphi 0, %s227
    %s228 = sphi 0, %s225
    %s229 = sphi 0, %s228
    %s245 = sphi 0, %s229
    %s251 = sphi 0, %s253
    %s254 = sphi 0, %s251
    %s255 = sphi 0, %s254
    %s271 = sphi 0, %s255
  $region4: #{dcn_forward.1} parent=0 // loop_header_branch
    %24 = sbr.rel (%p22) target = $region8
  $region5: #{dcn_forward.1} parent=0 // loop_body
    %s26 = ssub.s32 %s21, 1
    %s27 = ssub.s32 %s21, 2
    %s28 = sadd.s32 %s21, 1
    %s29 = ssub.s32 %s21, %s28
    %p30 = scmp.eq.s32.totalorder %s29, 0
    %s32 = sadd.s32 %s31, 1
    %s33 = scalar_select %p30, %s31, %s32
    %p36 = pneg %p30
    %p37 = scmp.eq.s32.totalorder %s21, 1
    %p38 = por %p36, %p37
    %p39 = scmp.ne.s32.totalorder %s31, %s34
    %p40 = scmp.eq.s32.totalorder %s21, 0
    %p41 = por %p39, %p40
    %p42 = scmp.ne.s32.totalorder %s31, %s34
    %p43 = scmp.eq.s32.totalorder %s26, 1
    %p44 = por %p42, %p43
    %p45 = scmp.ne.s32.totalorder %s34, %s35
    %p46 = scmp.eq.s32.totalorder %s26, 0
    %p47 = por %p45, %p46
    %p48 = scmp.ne.s32.totalorder %s34, %s35
    %p49 = scmp.eq.s32.totalorder %s27, 1
    %p50 = por %p48, %p49
    %p52 = scmp.ne.s32.totalorder %s35, %s51
    %p53 = scmp.eq.s32.totalorder %s27, 0
    %p54 = por %p52, %p53
    %s56 = sadd.s32 %s55, 1
    %p59 = scmp.eq.s32.totalorder %s21, 1
    %p60 = scmp.ne.s32.totalorder %s55, %s57
    %p61 = scmp.eq.s32.totalorder %s21, 0
    %p62 = por %p60, %p61
    %p63 = scmp.ne.s32.totalorder %s55, %s57
    %p64 = scmp.eq.s32.totalorder %s26, 1
    %p65 = por %p63, %p64
    %p66 = scmp.ne.s32.totalorder %s57, %s58
    %p67 = scmp.eq.s32.totalorder %s26, 0
    %p68 = por %p66, %p67
    %p69 = scmp.ne.s32.totalorder %s57, %s58
    %p70 = scmp.eq.s32.totalorder %s27, 1
    %p71 = por %p69, %p70
    %p73 = scmp.ne.s32.totalorder %s58, %s72
    %p74 = scmp.eq.s32.totalorder %s27, 0
    %p75 = por %p73, %p74
    %s77 = sadd.s32 %s76, 1
    %p80 = scmp.eq.s32.totalorder %s21, 1
    %p81 = scmp.ne.s32.totalorder %s76, %s78
    %p82 = scmp.eq.s32.totalorder %s21, 0
    %p83 = por %p81, %p82
    %p84 = scmp.ne.s32.totalorder %s76, %s78
    %p85 = scmp.eq.s32.totalorder %s26, 1
    %p86 = por %p84, %p85
    %p87 = scmp.ne.s32.totalorder %s78, %s79
    %p88 = scmp.eq.s32.totalorder %s26, 0
    %p89 = por %p87, %p88
    %p90 = scmp.ne.s32.totalorder %s78, %s79
    %p91 = scmp.eq.s32.totalorder %s27, 1
    %p92 = por %p90, %p91
    %p94 = scmp.ne.s32.totalorder %s79, %s93
    %p95 = scmp.eq.s32.totalorder %s27, 0
    %p96 = por %p94, %p95
    %s98 = sadd.s32 %s97, 1
    %p101 = scmp.eq.s32.totalorder %s21, 1
    %p102 = scmp.ne.s32.totalorder %s97, %s99
    %p103 = scmp.eq.s32.totalorder %s21, 0
    %p104 = por %p102, %p103
    %p105 = scmp.ne.s32.totalorder %s97, %s99
    %p106 = scmp.eq.s32.totalorder %s26, 1
    %p107 = por %p105, %p106
    %p108 = scmp.ne.s32.totalorder %s99, %s100
    %p109 = scmp.eq.s32.totalorder %s26, 0
    %p110 = por %p108, %p109
    %p111 = scmp.ne.s32.totalorder %s99, %s100
    %p112 = scmp.eq.s32.totalorder %s27, 1
    %p113 = por %p111, %p112
    %p115 = scmp.ne.s32.totalorder %s100, %s114
    %p116 = scmp.eq.s32.totalorder %s27, 0
    %p117 = por %p115, %p116
    %s119 = sadd.s32 %s118, 1
    %p122 = scmp.eq.s32.totalorder %s21, 1
    %p123 = scmp.ne.s32.totalorder %s118, %s120
    %p124 = scmp.eq.s32.totalorder %s21, 0
    %p125 = por %p123, %p124
    %p126 = scmp.ne.s32.totalorder %s118, %s120
    %p127 = scmp.eq.s32.totalorder %s26, 1
    %p128 = por %p126, %p127
    %p129 = scmp.ne.s32.totalorder %s120, %s121
    %p130 = scmp.eq.s32.totalorder %s26, 0
    %p131 = por %p129, %p130
    %p132 = scmp.ne.s32.totalorder %s120, %s121
    %p133 = scmp.eq.s32.totalorder %s27, 1
    %p134 = por %p132, %p133
    %p136 = scmp.ne.s32.totalorder %s121, %s135
    %p137 = scmp.eq.s32.totalorder %s27, 0
    %p138 = por %p136, %p137
    %s140 = sadd.s32 %s139, 1
    %p143 = scmp.eq.s32.totalorder %s21, 1
    %p144 = scmp.ne.s32.totalorder %s139, %s141
    %p145 = scmp.eq.s32.totalorder %s21, 0
    %p146 = por %p144, %p145
    %p147 = scmp.ne.s32.totalorder %s139, %s141
    %p148 = scmp.eq.s32.totalorder %s26, 1
    %p149 = por %p147, %p148
    %p150 = scmp.ne.s32.totalorder %s141, %s142
    %p151 = scmp.eq.s32.totalorder %s26, 0
    %p152 = por %p150, %p151
    %p153 = scmp.ne.s32.totalorder %s141, %s142
    %p154 = scmp.eq.s32.totalorder %s27, 1
    %p155 = por %p153, %p154
    %p157 = scmp.ne.s32.totalorder %s142, %s156
    %p158 = scmp.eq.s32.totalorder %s27, 0
    %p159 = por %p157, %p158
    %s161 = sadd.s32 %s160, 1
    %p164 = scmp.eq.s32.totalorder %s21, 1
    %p165 = scmp.ne.s32.totalorder %s160, %s162
    %p166 = scmp.eq.s32.totalorder %s21, 0
    %p167 = por %p165, %p166
    %p168 = scmp.ne.s32.totalorder %s160, %s162
    %p169 = scmp.eq.s32.totalorder %s26, 1
    %p170 = por %p168, %p169
    %p171 = scmp.ne.s32.totalorder %s162, %s163
    %p172 = scmp.eq.s32.totalorder %s26, 0
    %p173 = por %p171, %p172
    %p174 = scmp.ne.s32.totalorder %s162, %s163
    %p175 = scmp.eq.s32.totalorder %s27, 1
    %p176 = por %p174, %p175
    %p178 = scmp.ne.s32.totalorder %s163, %s177
    %p179 = scmp.eq.s32.totalorder %s27, 0
    %p180 = por %p178, %p179
    %s182 = sadd.s32 %s181, 1
    %p185 = scmp.eq.s32.totalorder %s21, 1
    %p186 = scmp.ne.s32.totalorder %s181, %s183
    %p187 = scmp.eq.s32.totalorder %s21, 0
    %p188 = por %p186, %p187
    %p189 = scmp.ne.s32.totalorder %s181, %s183
    %p190 = scmp.eq.s32.totalorder %s26, 1
    %p191 = por %p189, %p190
    %p192 = scmp.ne.s32.totalorder %s183, %s184
    %p193 = scmp.eq.s32.totalorder %s26, 0
    %p194 = por %p192, %p193
    %p195 = scmp.ne.s32.totalorder %s183, %s184
    %p196 = scmp.eq.s32.totalorder %s27, 1
    %p197 = por %p195, %p196
    %p199 = scmp.ne.s32.totalorder %s184, %s198
    %p200 = scmp.eq.s32.totalorder %s27, 0
    %p201 = por %p199, %p200
    %s203 = sadd.s32 %s202, 1
    %p206 = scmp.eq.s32.totalorder %s21, 1
    %p207 = scmp.ne.s32.totalorder %s202, %s204
    %p208 = scmp.eq.s32.totalorder %s21, 0
    %p209 = por %p207, %p208
    %p210 = scmp.ne.s32.totalorder %s202, %s204
    %p211 = scmp.eq.s32.totalorder %s26, 1
    %p212 = por %p210, %p211
    %p213 = scmp.ne.s32.totalorder %s204, %s205
    %p214 = scmp.eq.s32.totalorder %s26, 0
    %p215 = por %p213, %p214
    %p216 = scmp.ne.s32.totalorder %s204, %s205
    %p217 = scmp.eq.s32.totalorder %s27, 1
    %p218 = por %p216, %p217
    %p220 = scmp.ne.s32.totalorder %s205, %s219
    %p221 = scmp.eq.s32.totalorder %s27, 0
    %p222 = por %p220, %p221
    %s223 = ssub.s32 %s21, %s28
    %p224 = scmp.eq.s32.totalorder %s223, 0
    %s226 = sadd.s32 %s225, 1
    %s227 = scalar_select %p224, %s225, %s226
    %p230 = pneg %p224
    %p231 = scmp.eq.s32.totalorder %s21, 1
    %p232 = por %p230, %p231
    %p233 = scmp.ne.s32.totalorder %s225, %s228
    %p234 = scmp.eq.s32.totalorder %s21, 0
    %p235 = por %p233, %p234
    %p236 = scmp.ne.s32.totalorder %s225, %s228
    %p237 = scmp.eq.s32.totalorder %s26, 1
    %p238 = por %p236, %p237
    %p239 = scmp.ne.s32.totalorder %s228, %s229
    %p240 = scmp.eq.s32.totalorder %s26, 0
    %p241 = por %p239, %p240
    %p242 = scmp.ne.s32.totalorder %s228, %s229
    %p243 = scmp.eq.s32.totalorder %s27, 1
    %p244 = por %p242, %p243
    %p246 = scmp.ne.s32.totalorder %s229, %s245
    %p247 = scmp.eq.s32.totalorder %s27, 0
    %p248 = por %p246, %p247
    %s249 = ssub.s32 %s21, %s28
    %p250 = scmp.eq.s32.totalorder %s249, 0
    %s252 = sadd.s32 %s251, 1
    %s253 = scalar_select %p250, %s251, %s252
    %p256 = pneg %p250
    %p257 = scmp.eq.s32.totalorder %s21, 1
    %p258 = por %p256, %p257
    %p259 = scmp.ne.s32.totalorder %s251, %s254
    %p260 = scmp.eq.s32.totalorder %s21, 0
    %p261 = por %p259, %p260
    %p262 = scmp.ne.s32.totalorder %s251, %s254
    %p263 = scmp.eq.s32.totalorder %s26, 1
    %p264 = por %p262, %p263
    %p265 = scmp.ne.s32.totalorder %s254, %s255
    %p266 = scmp.eq.s32.totalorder %s26, 0
    %p267 = por %p265, %p266
    %p268 = scmp.ne.s32.totalorder %s254, %s255
    %p269 = scmp.eq.s32.totalorder %s27, 1
    %p270 = por %p268, %p269
    %p272 = scmp.ne.s32.totalorder %s255, %s271
    %p273 = scmp.eq.s32.totalorder %s27, 0
    %p274 = por %p272, %p273
    %p275 = scmp.le.s32.totalorder 1, %s21
    %p276 = scmp.lt.s32.totalorder %s21, 3
    %p277 = pnand %p275, %p276
    %p278 = pneg %p277
    // Predicated region
    $region9: #{dcn_forward.1} parent=5 // pred_check
      _
    $region10: #{dcn_forward.1} parent=5 // pred_check_branch
      %280 = sbr.rel (%p277) target = $region12
    $region11: #{dcn_forward.1} parent=5 // pred_region
      %s281 = ssub.s32 %s21, 1
      // Predicated region
      $region13: #{dcn_forward.1} parent=11 // pred_check
        %p282 = pneg %p68
      $region14: #{dcn_forward.1} parent=11 // pred_check_branch
        %284 = sbr.rel (%p282) target = $region16
      $region15: #{dcn_forward.1} parent=11 // pred_region
        _
      $region16: #{dcn_forward.1} parent=11 // pred_fallthru
        _
      // Predicated region
      $region17: #{dcn_forward.1} parent=11 // pred_check
        %p285 = pneg %p89
      $region18: #{dcn_forward.1} parent=11 // pred_check_branch
        %287 = sbr.rel (%p285) target = $region20
      $region19: #{dcn_forward.1} parent=11 // pred_region
        _
      $region20: #{dcn_forward.1} parent=11 // pred_fallthru
        _
      // Predicated region
      $region21: #{dcn_forward.1} parent=11 // pred_check
        %p288 = pneg %p110
      $region22: #{dcn_forward.1} parent=11 // pred_check_branch
        %290 = sbr.rel (%p288) target = $region24
      $region23: #{dcn_forward.1} parent=11 // pred_region
        _
      $region24: #{dcn_forward.1} parent=11 // pred_fallthru
        _
      // Predicated region
      $region25: #{dcn_forward.1} parent=11 // pred_check
        %p291 = pneg %p131
      $region26: #{dcn_forward.1} parent=11 // pred_check_branch
        %293 = sbr.rel (%p291) target = $region28
      $region27: #{dcn_forward.1} parent=11 // pred_region
        _
      $region28: #{dcn_forward.1} parent=11 // pred_fallthru
        _
      // Predicated region
      $region29: #{dcn_forward.1} parent=11 // pred_check
        %p294 = pneg %p152
      $region30: #{dcn_forward.1} parent=11 // pred_check_branch
        %296 = sbr.rel (%p294) target = $region32
      $region31: #{dcn_forward.1} parent=11 // pred_region
        _
      $region32: #{dcn_forward.1} parent=11 // pred_fallthru
        _
      // Predicated region
      $region33: #{dcn_forward.1} parent=11 // pred_check
        %p297 = pneg %p173
      $region34: #{dcn_forward.1} parent=11 // pred_check_branch
        %299 = sbr.rel (%p297) target = $region36
      $region35: #{dcn_forward.1} parent=11 // pred_region
        _
      $region36: #{dcn_forward.1} parent=11 // pred_fallthru
        _
      // Predicated region
      $region37: #{dcn_forward.1} parent=11 // pred_check
        %p300 = pneg %p194
      $region38: #{dcn_forward.1} parent=11 // pred_check_branch
        %302 = sbr.rel (%p300) target = $region40
      $region39: #{dcn_forward.1} parent=11 // pred_region
        _
      $region40: #{dcn_forward.1} parent=11 // pred_fallthru
        _
      // Predicated region
      $region41: #{dcn_forward.1} parent=11 // pred_check
        %p303 = pneg %p215
      $region42: #{dcn_forward.1} parent=11 // pred_check_branch
        %305 = sbr.rel (%p303) target = $region44
      $region43: #{dcn_forward.1} parent=11 // pred_region
        _
      $region44: #{dcn_forward.1} parent=11 // pred_fallthru
        _
    $region12: #{dcn_forward.1} parent=5 // pred_fallthru
      _
    %p306 = scmp.lt.s32.totalorder %s21, 2
    // Predicated region
    $region45: #{dcn_forward.1} parent=5 // pred_check
      %p307 = pneg %p306
    $region46: #{dcn_forward.1} parent=5 // pred_check_branch
      %309 = sbr.rel (%p307) target = $region48
    $region47: #{dcn_forward.1} parent=5 // pred_region
      // Predicated region
      $region49: #{dcn_forward.1} parent=47 // pred_check
        %p310 = pneg %p41
      $region50: #{dcn_forward.1} parent=47 // pred_check_branch
        %312 = sbr.rel (%p310) target = $region52
      $region51: #{dcn_forward.1} parent=47 // pred_region
        %p313 = scmp.lt.s32.totalorder %s21, 1
        %s314 = scalar_select %p313, %s21, 1
        %s315 = smul.addr %s314, 6
        %s316 = smul.addr %s315, 8
        %s317 = scalar_lea.vmem %s0, %s316
      $region52: #{dcn_forward.1} parent=47 // pred_fallthru
        _
    $region48: #{dcn_forward.1} parent=5 // pred_fallthru
      _
    %p318 = scmp.le.s32.totalorder 1, %s21
    %p319 = scmp.lt.s32.totalorder %s21, 3
    %p320 = pnand %p318, %p319
    %p321 = pneg %p320
    // Predicated region
    $region53: #{dcn_forward.1} parent=5 // pred_check
      _
    $region54: #{dcn_forward.1} parent=5 // pred_check_branch
      %323 = sbr.rel (%p320) target = $region56
    $region55: #{dcn_forward.1} parent=5 // pred_region
      %s324 = ssub.s32 %s21, 1
      %p325 = scmp.lt.s32.totalorder %s26, 1
      %s326 = scalar_select %p325, %s26, 1
      %s327 = smul.addr %s326, 6
      %s328 = smul.addr %s327, 8
      %s329 = scalar_lea.vmem %s0, %s328
      %p330 = pneg %p47
      %p331 = pneg %p44
      %p332 = pneg %p68
      %p333 = pneg %p65
      %p334 = pneg %p89
      %p335 = pneg %p86
      %p336 = pneg %p110
      %p337 = pneg %p107
      %p338 = pneg %p131
      %p339 = pneg %p128
      %p340 = pneg %p152
      %p341 = pneg %p149
      %p342 = pneg %p173
      %p343 = pneg %p170
      %p344 = pneg %p194
      %p345 = pneg %p191
      %p346 = pneg %p215
      %p347 = pneg %p212
      %p348 = pneg %p241
      %p349 = pneg %p238
      %p350 = scmp.lt.s32.totalorder %s26, 1
      %s351 = scalar_select %p350, %s26, 1
      %s352 = smul.addr %s351, 4
      %s353 = smul.addr %s352, 8
      %s354 = scalar_lea.vmem %s9, %s353
      %p355 = pneg %p267
      %p356 = pneg %p264
      %p357 = scmp.lt.s32.totalorder %s26, 1
      %s358 = scalar_select %p357, %s26, 1
      %s359 = smul.addr %s358, 4
      %s360 = smul.addr %s359, 8
      %s361 = scalar_lea.vmem %s10, %s360
      %p362 = scmp.lt.s32.totalorder %s26, 1
      %s363 = scalar_select %p362, %s26, 1
      %s364 = smul.addr %s363, 6
      %s365 = smul.addr %s364, 8
      %s366 = scalar_lea.vmem %s0, %s365
      %p367 = scmp.lt.s32.totalorder %s26, 1
      %s368 = scalar_select %p367, %s26, 1
      %s369 = smul.addr %s368, 4
      %s370 = smul.addr %s369, 8
      %s371 = scalar_lea.vmem %s9, %s370
      %p372 = scmp.lt.s32.totalorder %s26, 1
      %s373 = scalar_select %p372, %s26, 1
      %s374 = smul.addr %s373, 4
      %s375 = smul.addr %s374, 8
      %s376 = scalar_lea.vmem %s10, %s375
      %v377 = vld [vmem:[%s366] sm:$0xff]
      %v378 = vld [vmem:[%s366 + $0x8] sm:$0xff]
      %v379 = vld [vmem:[%s366 + $0x10] sm:$0xff]
      %v380 = vld [vmem:[%s366 + $0x18] sm:$0xff]
      %v381 = vld [vmem:[%s366 + $0x20] sm:$0xff]
      %v382 = vld [vmem:[%s366 + $0x28] sm:$0xff]
      %v383 = vld [vmem:[%s1] sm:$0xf]
      %s384 = sld [smem:[#allocation7]]
      %s385 = sld [smem:[#allocation8]]
      %s386 = sld [smem:[#allocation9]]
      %s387 = sld [smem:[#allocation10]]
      %388 = vst [vmem:[#allocation6] sm:$0xff] 0.0
      %389 = vst [vmem:[#allocation6 + $0x28] sm:$0xff] 0.0
      %v390 = vpack.c.bf16 %v377, %v377
      %v391 = vpack.c.bf16 %v378, %v378
      %v392 = vpack.c.bf16 %v379, %v379
      %v393 = vpack.c.bf16 %v380, %v380
      %v394 = vpack.c.bf16 %v381, %v381
      %v395 = vpack.c.bf16 %v382, %v382
      %v396 = vunpack.c.l.bf16 %v390
      %v397 = vunpack.c.l.bf16 %v391
      %v398 = vunpack.c.l.bf16 %v392
      %v399 = vunpack.c.l.bf16 %v393
      %v400 = vunpack.c.l.bf16 %v394
      %v401 = vunpack.c.l.bf16 %v395
      %v402 = vsub.f32 %v377, %v396
      %v403 = vsub.f32 %v378, %v397
      %v404 = vsub.f32 %v379, %v398
      %v405 = vsub.f32 %v380, %v399
      %v406 = vsub.f32 %v381, %v400
      %v407 = vsub.f32 %v382, %v401
      %413 = vrot.lane.b32.xlu0 %v396, 69
      %v414 = vpop.permute.xlu0 %413
      %415 = vrot.lane.b32.xlu0 %v397, 69
      %v416 = vpop.permute.xlu0 %415
      %417 = vrot.lane.b32.xlu0 %v398, 69
      %v418 = vpop.permute.xlu0 %417
      %419 = vrot.lane.b32.xlu0 %v399, 69
      %v420 = vpop.permute.xlu0 %419
      %421 = vrot.lane.b32.xlu0 %v400, 69
      %v422 = vpop.permute.xlu0 %421
      %vm423 = vcmask 564224
      %v424 = vsel %vm423, %v414, %v416
      %v425 = vsel %vm423, %v416, %v418
      %v426 = vsel %vm423, %v418, %v420
      %v427 = vsel %vm423, %v420, %v422
      %432 = vst [vmem:[#allocation2] sm:$0xff] %v424
      %433 = vst [vmem:[#allocation2 + $0x8] sm:$0xff] %v425
      %434 = vst [vmem:[#allocation2 + $0x10] sm:$0xff] %v426
      %435 = vst [vmem:[#allocation2 + $0x18] sm:$0xff] %v427
      %441 = vrot.lane.b32.xlu0 %v402, 69
      %v442 = vpop.permute.xlu0 %441
      %443 = vrot.lane.b32.xlu0 %v403, 69
      %v444 = vpop.permute.xlu0 %443
      %445 = vrot.lane.b32.xlu0 %v404, 69
      %v446 = vpop.permute.xlu0 %445
      %447 = vrot.lane.b32.xlu0 %v405, 69
      %v448 = vpop.permute.xlu0 %447
      %449 = vrot.lane.b32.xlu0 %v406, 69
      %v450 = vpop.permute.xlu0 %449
      %v451 = vsel %vm423, %v442, %v444
      %v452 = vsel %vm423, %v444, %v446
      %v453 = vsel %vm423, %v446, %v448
      %v454 = vsel %vm423, %v448, %v450
      %459 = vst [vmem:[#allocation4] sm:$0xff] %v451
      %460 = vst [vmem:[#allocation4 + $0x8] sm:$0xff] %v452
      %461 = vst [vmem:[#allocation4 + $0x10] sm:$0xff] %v453
      %462 = vst [vmem:[#allocation4 + $0x18] sm:$0xff] %v454
      %463 = vrot.lane.b32.xlu0 %v396, 68
      %v464 = vpop.permute.xlu0 %463
      %465 = vrot.lane.b32.xlu0 %v397, 68
      %v466 = vpop.permute.xlu0 %465
      %467 = vrot.lane.b32.xlu0 %v398, 68
      %v468 = vpop.permute.xlu0 %467
      %469 = vrot.lane.b32.xlu0 %v399, 68
      %v470 = vpop.permute.xlu0 %469
      %471 = vrot.lane.b32.xlu0 %v400, 68
      %v472 = vpop.permute.xlu0 %471
      %vm473 = vcmask 556032
      %v474 = vsel %vm473, %v464, %v466
      %v475 = vsel %vm473, %v466, %v468
      %v476 = vsel %vm473, %v468, %v470
      %v477 = vsel %vm473, %v470, %v472
      %482 = vst [vmem:[#allocation2 + $0x20] sm:$0xff] %v474
      %483 = vst [vmem:[#allocation2 + $0x28] sm:$0xff] %v475
      %484 = vst [vmem:[#allocation2 + $0x30] sm:$0xff] %v476
      %485 = vst [vmem:[#allocation2 + $0x38] sm:$0xff] %v477
      %486 = vrot.lane.b32.xlu0 %v402, 68
      %v487 = vpop.permute.xlu0 %486
      %488 = vrot.lane.b32.xlu0 %v403, 68
      %v489 = vpop.permute.xlu0 %488
      %490 = vrot.lane.b32.xlu0 %v404, 68
      %v491 = vpop.permute.xlu0 %490
      %492 = vrot.lane.b32.xlu0 %v405, 68
      %v493 = vpop.permute.xlu0 %492
      %494 = vrot.lane.b32.xlu0 %v406, 68
      %v495 = vpop.permute.xlu0 %494
      %v496 = vsel %vm473, %v487, %v489
      %v497 = vsel %vm473, %v489, %v491
      %v498 = vsel %vm473, %v491, %v493
      %v499 = vsel %vm473, %v493, %v495
      %504 = vst [vmem:[#allocation4 + $0x20] sm:$0xff] %v496
      %505 = vst [vmem:[#allocation4 + $0x28] sm:$0xff] %v497
      %506 = vst [vmem:[#allocation4 + $0x30] sm:$0xff] %v498
      %507 = vst [vmem:[#allocation4 + $0x38] sm:$0xff] %v499
      %508 = vrot.lane.b32.xlu0 %v396, 67
      %v509 = vpop.permute.xlu0 %508
      %510 = vrot.lane.b32.xlu0 %v397, 67
      %v511 = vpop.permute.xlu0 %510
      %512 = vrot.lane.b32.xlu0 %v398, 67
      %v513 = vpop.permute.xlu0 %512
      %514 = vrot.lane.b32.xlu0 %v399, 67
      %v515 = vpop.permute.xlu0 %514
      %516 = vrot.lane.b32.xlu0 %v400, 67
      %v517 = vpop.permute.xlu0 %516
      %vm518 = vcmask 547840
      %v519 = vsel %vm518, %v509, %v511
      %v520 = vsel %vm518, %v511, %v513
      %v521 = vsel %vm518, %v513, %v515
      %v522 = vsel %vm518, %v515, %v517
      %527 = vst [vmem:[#allocation2 + $0x40] sm:$0xff] %v519
      %528 = vst [vmem:[#allocation2 + $0x48] sm:$0xff] %v520
      %529 = vst [vmem:[#allocation2 + $0x50] sm:$0xff] %v521
      %530 = vst [vmem:[#allocation2 + $0x58] sm:$0xff] %v522
      %531 = vrot.lane.b32.xlu0 %v402, 67
      %v532 = vpop.permute.xlu0 %531
      %533 = vrot.lane.b32.xlu0 %v403, 67
      %v534 = vpop.permute.xlu0 %533
      %535 = vrot.lane.b32.xlu0 %v404, 67
      %v536 = vpop.permute.xlu0 %535
      %537 = vrot.lane.b32.xlu0 %v405, 67
      %v538 = vpop.permute.xlu0 %537
      %539 = vrot.lane.b32.xlu0 %v406, 67
      %v540 = vpop.permute.xlu0 %539
      %v541 = vsel %vm518, %v532, %v534
      %v542 = vsel %vm518, %v534, %v536
      %v543 = vsel %vm518, %v536, %v538
      %v544 = vsel %vm518, %v538, %v540
      %549 = vst [vmem:[#allocation4 + $0x40] sm:$0xff] %v541
      %550 = vst [vmem:[#allocation4 + $0x48] sm:$0xff] %v542
      %551 = vst [vmem:[#allocation4 + $0x50] sm:$0xff] %v543
      %552 = vst [vmem:[#allocation4 + $0x58] sm:$0xff] %v544
      %553 = vrot.lane.b32.xlu0 %v396, 66
      %v554 = vpop.permute.xlu0 %553
      %555 = vrot.lane.b32.xlu0 %v397, 66
      %v556 = vpop.permute.xlu0 %555
      %557 = vrot.lane.b32.xlu0 %v398, 66
      %v558 = vpop.permute.xlu0 %557
      %559 = vrot.lane.b32.xlu0 %v399, 66
      %v560 = vpop.permute.xlu0 %559
      %561 = vrot.lane.b32.xlu0 %v400, 66
      %v562 = vpop.permute.xlu0 %561
      %vm563 = vcmask 539648
      %v564 = vsel %vm563, %v554, %v556
      %v565 = vsel %vm563, %v556, %v558
      %v566 = vsel %vm563, %v558, %v560
      %v567 = vsel %vm563, %v560, %v562
      %572 = vst [vmem:[#allocation2 + $0x60] sm:$0xff] %v564
      %573 = vst [vmem:[#allocation2 + $0x68] sm:$0xff] %v565
      %574 = vst [vmem:[#allocation2 + $0x70] sm:$0xff] %v566
      %575 = vst [vmem:[#allocation2 + $0x78] sm:$0xff] %v567
      %576 = vrot.lane.b32.xlu0 %v402, 66
      %v577 = vpop.permute.xlu0 %576
      %578 = vrot.lane.b32.xlu0 %v403, 66
      %v579 = vpop.permute.xlu0 %578
      %580 = vrot.lane.b32.xlu0 %v404, 66
      %v581 = vpop.permute.xlu0 %580
      %582 = vrot.lane.b32.xlu0 %v405, 66
      %v583 = vpop.permute.xlu0 %582
      %584 = vrot.lane.b32.xlu0 %v406, 66
      %v585 = vpop.permute.xlu0 %584
      %v586 = vsel %vm563, %v577, %v579
      %v587 = vsel %vm563, %v579, %v581
      %v588 = vsel %vm563, %v581, %v583
      %v589 = vsel %vm563, %v583, %v585
      %594 = vst [vmem:[#allocation4 + $0x60] sm:$0xff] %v586
      %595 = vst [vmem:[#allocation4 + $0x68] sm:$0xff] %v587
      %596 = vst [vmem:[#allocation4 + $0x70] sm:$0xff] %v588
      %597 = vst [vmem:[#allocation4 + $0x78] sm:$0xff] %v589
      %598 = vrot.lane.b32.xlu0 %v396, 65
      %v599 = vpop.permute.xlu0 %598
      %600 = vrot.lane.b32.xlu0 %v397, 65
      %v601 = vpop.permute.xlu0 %600
      %602 = vrot.lane.b32.xlu0 %v398, 65
      %v603 = vpop.permute.xlu0 %602
      %604 = vrot.lane.b32.xlu0 %v399, 65
      %v605 = vpop.permute.xlu0 %604
      %606 = vrot.lane.b32.xlu0 %v400, 65
      %v607 = vpop.permute.xlu0 %606
      %vm608 = vcmask 531456
      %v609 = vsel %vm608, %v599, %v601
      %v610 = vsel %vm608, %v601, %v603
      %v611 = vsel %vm608, %v603, %v605
      %v612 = vsel %vm608, %v605, %v607
      %617 = vst [vmem:[#allocation2 + $0x80] sm:$0xff] %v609
      %618 = vst [vmem:[#allocation2 + $0x88] sm:$0xff] %v610
      %619 = vst [vmem:[#allocation2 + $0x90] sm:$0xff] %v611
      %620 = vst [vmem:[#allocation2 + $0x98] sm:$0xff] %v612
      %621 = vrot.lane.b32.xlu0 %v402, 65
      %v622 = vpop.permute.xlu0 %621
      %623 = vrot.lane.b32.xlu0 %v403, 65
      %v624 = vpop.permute.xlu0 %623
      %625 = vrot.lane.b32.xlu0 %v404, 65
      %v626 = vpop.permute.xlu0 %625
      %627 = vrot.lane.b32.xlu0 %v405, 65
      %v628 = vpop.permute.xlu0 %627
      %629 = vrot.lane.b32.xlu0 %v406, 65
      %v630 = vpop.permute.xlu0 %629
      %v631 = vsel %vm608, %v622, %v624
      %v632 = vsel %vm608, %v624, %v626
      %v633 = vsel %vm608, %v626, %v628
      %v634 = vsel %vm608, %v628, %v630
      %639 = vst [vmem:[#allocation4 + $0x80] sm:$0xff] %v631
      %640 = vst [vmem:[#allocation4 + $0x88] sm:$0xff] %v632
      %641 = vst [vmem:[#allocation4 + $0x90] sm:$0xff] %v633
      %642 = vst [vmem:[#allocation4 + $0x98] sm:$0xff] %v634
      %643 = vrot.lane.b32.xlu0 %v396, 64
      %v644 = vpop.permute.xlu0 %643
      %645 = vrot.lane.b32.xlu0 %v397, 64
      %v646 = vpop.permute.xlu0 %645
      %647 = vrot.lane.b32.xlu0 %v398, 64
      %v648 = vpop.permute.xlu0 %647
      %649 = vrot.lane.b32.xlu0 %v399, 64
      %v650 = vpop.permute.xlu0 %649
      %651 = vrot.lane.b32.xlu0 %v400, 64
      %v652 = vpop.permute.xlu0 %651
      %vm653 = vcmask 523264
      %v654 = vsel %vm653, %v644, %v646
      %v655 = vsel %vm653, %v646, %v648
      %v656 = vsel %vm653, %v648, %v650
      %v657 = vsel %vm653, %v650, %v652
      %662 = vst [vmem:[#allocation2 + $0xa0] sm:$0xff] %v654
      %663 = vst [vmem:[#allocation2 + $0xa8] sm:$0xff] %v655
      %664 = vst [vmem:[#allocation2 + $0xb0] sm:$0xff] %v656
      %665 = vst [vmem:[#allocation2 + $0xb8] sm:$0xff] %v657
      %666 = vrot.lane.b32.xlu0 %v402, 64
      %v667 = vpop.permute.xlu0 %666
      %668 = vrot.lane.b32.xlu0 %v403, 64
      %v669 = vpop.permute.xlu0 %668
      %670 = vrot.lane.b32.xlu0 %v404, 64
      %v671 = vpop.permute.xlu0 %670
      %672 = vrot.lane.b32.xlu0 %v405, 64
      %v673 = vpop.permute.xlu0 %672
      %674 = vrot.lane.b32.xlu0 %v406, 64
      %v675 = vpop.permute.xlu0 %674
      %v676 = vsel %vm653, %v667, %v669
      %v677 = vsel %vm653, %v669, %v671
      %v678 = vsel %vm653, %v671, %v673
      %v679 = vsel %vm653, %v673, %v675
      %684 = vst [vmem:[#allocation4 + $0xa0] sm:$0xff] %v676
      %685 = vst [vmem:[#allocation4 + $0xa8] sm:$0xff] %v677
      %686 = vst [vmem:[#allocation4 + $0xb0] sm:$0xff] %v678
      %687 = vst [vmem:[#allocation4 + $0xb8] sm:$0xff] %v679
      %688 = vrot.lane.b32.xlu0 %v396, 63
      %v689 = vpop.permute.xlu0 %688
      %690 = vrot.lane.b32.xlu0 %v397, 63
      %v691 = vpop.permute.xlu0 %690
      %692 = vrot.lane.b32.xlu0 %v398, 63
      %v693 = vpop.permute.xlu0 %692
      %694 = vrot.lane.b32.xlu0 %v399, 63
      %v695 = vpop.permute.xlu0 %694
      %696 = vrot.lane.b32.xlu0 %v400, 63
      %v697 = vpop.permute.xlu0 %696
      %vm698 = vcmask 515072
      %v699 = vsel %vm698, %v689, %v691
      %v700 = vsel %vm698, %v691, %v693
      %v701 = vsel %vm698, %v693, %v695
      %v702 = vsel %vm698, %v695, %v697
      %707 = vst [vmem:[#allocation2 + $0xc0] sm:$0xff] %v699
      %708 = vst [vmem:[#allocation2 + $0xc8] sm:$0xff] %v700
      %709 = vst [vmem:[#allocation2 + $0xd0] sm:$0xff] %v701
      %710 = vst [vmem:[#allocation2 + $0xd8] sm:$0xff] %v702
      %711 = vrot.lane.b32.xlu0 %v402, 63
      %v712 = vpop.permute.xlu0 %711
      %713 = vrot.lane.b32.xlu0 %v403, 63
      %v714 = vpop.permute.xlu0 %713
      %715 = vrot.lane.b32.xlu0 %v404, 63
      %v716 = vpop.permute.xlu0 %715
      %717 = vrot.lane.b32.xlu0 %v405, 63
      %v718 = vpop.permute.xlu0 %717
      %719 = vrot.lane.b32.xlu0 %v406, 63
      %v720 = vpop.permute.xlu0 %719
      %v721 = vsel %vm698, %v712, %v714
      %v722 = vsel %vm698, %v714, %v716
      %v723 = vsel %vm698, %v716, %v718
      %v724 = vsel %vm698, %v718, %v720
      %729 = vst [vmem:[#allocation4 + $0xc0] sm:$0xff] %v721
      %730 = vst [vmem:[#allocation4 + $0xc8] sm:$0xff] %v722
      %731 = vst [vmem:[#allocation4 + $0xd0] sm:$0xff] %v723
      %732 = vst [vmem:[#allocation4 + $0xd8] sm:$0xff] %v724
      %733 = vrot.lane.b32.xlu0 %v396, 47
      %v734 = vpop.permute.xlu0 %733
      %735 = vrot.lane.b32.xlu0 %v397, 47
      %v736 = vpop.permute.xlu0 %735
      %737 = vrot.lane.b32.xlu0 %v398, 47
      %v738 = vpop.permute.xlu0 %737
      %739 = vrot.lane.b32.xlu0 %v399, 47
      %v740 = vpop.permute.xlu0 %739
      %741 = vrot.lane.b32.xlu0 %v400, 47
      %v742 = vpop.permute.xlu0 %741
      %vm743 = vcmask 384000
      %v744 = vsel %vm743, %v734, %v736
      %v745 = vsel %vm743, %v736, %v738
      %v746 = vsel %vm743, %v738, %v740
      %v747 = vsel %vm743, %v740, %v742
      %752 = vst [vmem:[#allocation2 + $0xe0] sm:$0xff] %v744
      %753 = vst [vmem:[#allocation2 + $0xe8] sm:$0xff] %v745
      %754 = vst [vmem:[#allocation2 + $0xf0] sm:$0xff] %v746
      %755 = vst [vmem:[#allocation2 + $0xf8] sm:$0xff] %v747
      %756 = vrot.lane.b32.xlu0 %v402, 47
      %v757 = vpop.permute.xlu0 %756
      %758 = vrot.lane.b32.xlu0 %v403, 47
      %v759 = vpop.permute.xlu0 %758
      %760 = vrot.lane.b32.xlu0 %v404, 47
      %v761 = vpop.permute.xlu0 %760
      %762 = vrot.lane.b32.xlu0 %v405, 47
      %v763 = vpop.permute.xlu0 %762
      %764 = vrot.lane.b32.xlu0 %v406, 47
      %v765 = vpop.permute.xlu0 %764
      %v766 = vsel %vm743, %v757, %v759
      %v767 = vsel %vm743, %v759, %v761
      %v768 = vsel %vm743, %v761, %v763
      %v769 = vsel %vm743, %v763, %v765
      %774 = vst [vmem:[#allocation4 + $0xe0] sm:$0xff] %v766
      %775 = vst [vmem:[#allocation4 + $0xe8] sm:$0xff] %v767
      %776 = vst [vmem:[#allocation4 + $0xf0] sm:$0xff] %v768
      %777 = vst [vmem:[#allocation4 + $0xf8] sm:$0xff] %v769
      %778 = vrot.lane.b32.xlu0 %v396, 46
      %v779 = vpop.permute.xlu0 %778
      %780 = vrot.lane.b32.xlu0 %v397, 46
      %v781 = vpop.permute.xlu0 %780
      %782 = vrot.lane.b32.xlu0 %v398, 46
      %v783 = vpop.permute.xlu0 %782
      %784 = vrot.lane.b32.xlu0 %v399, 46
      %v785 = vpop.permute.xlu0 %784
      %786 = vrot.lane.b32.xlu0 %v400, 46
      %v787 = vpop.permute.xlu0 %786
      %vm788 = vcmask 375808
      %v789 = vsel %vm788, %v779, %v781
      %v790 = vsel %vm788, %v781, %v783
      %v791 = vsel %vm788, %v783, %v785
      %v792 = vsel %vm788, %v785, %v787
      %797 = vst [vmem:[#allocation2 + $0x100] sm:$0xff] %v789
      %798 = vst [vmem:[#allocation2 + $0x108] sm:$0xff] %v790
      %799 = vst [vmem:[#allocation2 + $0x110] sm:$0xff] %v791
      %800 = vst [vmem:[#allocation2 + $0x118] sm:$0xff] %v792
      %801 = vrot.lane.b32.xlu0 %v402, 46
      %v802 = vpop.permute.xlu0 %801
      %803 = vrot.lane.b32.xlu0 %v403, 46
      %v804 = vpop.permute.xlu0 %803
      %805 = vrot.lane.b32.xlu0 %v404, 46
      %v806 = vpop.permute.xlu0 %805
      %807 = vrot.lane.b32.xlu0 %v405, 46
      %v808 = vpop.permute.xlu0 %807
      %809 = vrot.lane.b32.xlu0 %v406, 46
      %v810 = vpop.permute.xlu0 %809
      %v811 = vsel %vm788, %v802, %v804
      %v812 = vsel %vm788, %v804, %v806
      %v813 = vsel %vm788, %v806, %v808
      %v814 = vsel %vm788, %v808, %v810
      %819 = vst [vmem:[#allocation4 + $0x100] sm:$0xff] %v811
      %820 = vst [vmem:[#allocation4 + $0x108] sm:$0xff] %v812
      %821 = vst [vmem:[#allocation4 + $0x110] sm:$0xff] %v813
      %822 = vst [vmem:[#allocation4 + $0x118] sm:$0xff] %v814
      %823 = vrot.lane.b32.xlu0 %v396, 45
      %v824 = vpop.permute.xlu0 %823
      %825 = vrot.lane.b32.xlu0 %v397, 45
      %v826 = vpop.permute.xlu0 %825
      %827 = vrot.lane.b32.xlu0 %v398, 45
      %v828 = vpop.permute.xlu0 %827
      %829 = vrot.lane.b32.xlu0 %v399, 45
      %v830 = vpop.permute.xlu0 %829
      %831 = vrot.lane.b32.xlu0 %v400, 45
      %v832 = vpop.permute.xlu0 %831
      %vm833 = vcmask 367616
      %v834 = vsel %vm833, %v824, %v826
      %v835 = vsel %vm833, %v826, %v828
      %v836 = vsel %vm833, %v828, %v830
      %v837 = vsel %vm833, %v830, %v832
      %842 = vst [vmem:[#allocation2 + $0x120] sm:$0xff] %v834
      %843 = vst [vmem:[#allocation2 + $0x128] sm:$0xff] %v835
      %844 = vst [vmem:[#allocation2 + $0x130] sm:$0xff] %v836
      %845 = vst [vmem:[#allocation2 + $0x138] sm:$0xff] %v837
      %846 = vrot.lane.b32.xlu0 %v402, 45
      %v847 = vpop.permute.xlu0 %846
      %848 = vrot.lane.b32.xlu0 %v403, 45
      %v849 = vpop.permute.xlu0 %848
      %850 = vrot.lane.b32.xlu0 %v404, 45
      %v851 = vpop.permute.xlu0 %850
      %852 = vrot.lane.b32.xlu0 %v405, 45
      %v853 = vpop.permute.xlu0 %852
      %854 = vrot.lane.b32.xlu0 %v406, 45
      %v855 = vpop.permute.xlu0 %854
      %v856 = vsel %vm833, %v847, %v849
      %v857 = vsel %vm833, %v849, %v851
      %v858 = vsel %vm833, %v851, %v853
      %v859 = vsel %vm833, %v853, %v855
      %864 = vst [vmem:[#allocation4 + $0x120] sm:$0xff] %v856
      %865 = vst [vmem:[#allocation4 + $0x128] sm:$0xff] %v857
      %866 = vst [vmem:[#allocation4 + $0x130] sm:$0xff] %v858
      %867 = vst [vmem:[#allocation4 + $0x138] sm:$0xff] %v859
      %868 = vrot.lane.b32.xlu0 %v396, 44
      %v869 = vpop.permute.xlu0 %868
      %870 = vrot.lane.b32.xlu0 %v397, 44
      %v871 = vpop.permute.xlu0 %870
      %872 = vrot.lane.b32.xlu0 %v398, 44
      %v873 = vpop.permute.xlu0 %872
      %874 = vrot.lane.b32.xlu0 %v399, 44
      %v875 = vpop.permute.xlu0 %874
      %876 = vrot.lane.b32.xlu0 %v400, 44
      %v877 = vpop.permute.xlu0 %876
      %vm878 = vcmask 359424
      %v879 = vsel %vm878, %v869, %v871
      %v880 = vsel %vm878, %v871, %v873
      %v881 = vsel %vm878, %v873, %v875
      %v882 = vsel %vm878, %v875, %v877
      %887 = vst [vmem:[#allocation2 + $0x140] sm:$0xff] %v879
      %888 = vst [vmem:[#allocation2 + $0x148] sm:$0xff] %v880
      %889 = vst [vmem:[#allocation2 + $0x150] sm:$0xff] %v881
      %890 = vst [vmem:[#allocation2 + $0x158] sm:$0xff] %v882
      %891 = vrot.lane.b32.xlu0 %v402, 44
      %v892 = vpop.permute.xlu0 %891
      %893 = vrot.lane.b32.xlu0 %v403, 44
      %v894 = vpop.permute.xlu0 %893
      %895 = vrot.lane.b32.xlu0 %v404, 44
      %v896 = vpop.permute.xlu0 %895
      %897 = vrot.lane.b32.xlu0 %v405, 44
      %v898 = vpop.permute.xlu0 %897
      %899 = vrot.lane.b32.xlu0 %v406, 44
      %v900 = vpop.permute.xlu0 %899
      %v901 = vsel %vm878, %v892, %v894
      %v902 = vsel %vm878, %v894, %v896
      %v903 = vsel %vm878, %v896, %v898
      %v904 = vsel %vm878, %v898, %v900
      %909 = vst [vmem:[#allocation4 + $0x140] sm:$0xff] %v901
      %910 = vst [vmem:[#allocation4 + $0x148] sm:$0xff] %v902
      %911 = vst [vmem:[#allocation4 + $0x150] sm:$0xff] %v903
      %912 = vst [vmem:[#allocation4 + $0x158] sm:$0xff] %v904
      %913 = vrot.lane.b32.xlu0 %v396, 43
      %v914 = vpop.permute.xlu0 %913
      %915 = vrot.lane.b32.xlu0 %v397, 43
      %v916 = vpop.permute.xlu0 %915
      %917 = vrot.lane.b32.xlu0 %v398, 43
      %v918 = vpop.permute.xlu0 %917
      %919 = vrot.lane.b32.xlu0 %v399, 43
      %v920 = vpop.permute.xlu0 %919
      %921 = vrot.lane.b32.xlu0 %v400, 43
      %v922 = vpop.permute.xlu0 %921
      %vm923 = vcmask 351232
      %v924 = vsel %vm923, %v914, %v916
      %v925 = vsel %vm923, %v916, %v918
      %v926 = vsel %vm923, %v918, %v920
      %v927 = vsel %vm923, %v920, %v922
      %932 = vst [vmem:[#allocation2 + $0x160] sm:$0xff] %v924
      %933 = vst [vmem:[#allocation2 + $0x168] sm:$0xff] %v925
      %934 = vst [vmem:[#allocation2 + $0x170] sm:$0xff] %v926
      %935 = vst [vmem:[#allocation2 + $0x178] sm:$0xff] %v927
      %936 = vrot.lane.b32.xlu0 %v402, 43
      %v937 = vpop.permute.xlu0 %936
      %938 = vrot.lane.b32.xlu0 %v403, 43
      %v939 = vpop.permute.xlu0 %938
      %940 = vrot.lane.b32.xlu0 %v404, 43
      %v941 = vpop.permute.xlu0 %940
      %942 = vrot.lane.b32.xlu0 %v405, 43
      %v943 = vpop.permute.xlu0 %942
      %944 = vrot.lane.b32.xlu0 %v406, 43
      %v945 = vpop.permute.xlu0 %944
      %v946 = vsel %vm923, %v937, %v939
      %v947 = vsel %vm923, %v939, %v941
      %v948 = vsel %vm923, %v941, %v943
      %v949 = vsel %vm923, %v943, %v945
      %954 = vst [vmem:[#allocation4 + $0x160] sm:$0xff] %v946
      %955 = vst [vmem:[#allocation4 + $0x168] sm:$0xff] %v947
      %956 = vst [vmem:[#allocation4 + $0x170] sm:$0xff] %v948
      %957 = vst [vmem:[#allocation4 + $0x178] sm:$0xff] %v949
      %958 = vrot.lane.b32.xlu0 %v396, 42
      %v959 = vpop.permute.xlu0 %958
      %960 = vrot.lane.b32.xlu0 %v397, 42
      %v961 = vpop.permute.xlu0 %960
      %962 = vrot.lane.b32.xlu0 %v398, 42
      %v963 = vpop.permute.xlu0 %962
      %964 = vrot.lane.b32.xlu0 %v399, 42
      %v965 = vpop.permute.xlu0 %964
      %966 = vrot.lane.b32.xlu0 %v400, 42
      %v967 = vpop.permute.xlu0 %966
      %vm968 = vcmask 343040
      %v969 = vsel %vm968, %v959, %v961
      %v970 = vsel %vm968, %v961, %v963
      %v971 = vsel %vm968, %v963, %v965
      %v972 = vsel %vm968, %v965, %v967
      %977 = vst [vmem:[#allocation2 + $0x180] sm:$0xff] %v969
      %978 = vst [vmem:[#allocation2 + $0x188] sm:$0xff] %v970
      %979 = vst [vmem:[#allocation2 + $0x190] sm:$0xff] %v971
      %980 = vst [vmem:[#allocation2 + $0x198] sm:$0xff] %v972
      %981 = vrot.lane.b32.xlu0 %v402, 42
      %v982 = vpop.permute.xlu0 %981
      %983 = vrot.lane.b32.xlu0 %v403, 42
      %v984 = vpop.permute.xlu0 %983
      %985 = vrot.lane.b32.xlu0 %v404, 42
      %v986 = vpop.permute.xlu0 %985
      %987 = vrot.lane.b32.xlu0 %v405, 42
      %v988 = vpop.permute.xlu0 %987
      %989 = vrot.lane.b32.xlu0 %v406, 42
      %v990 = vpop.permute.xlu0 %989
      %v991 = vsel %vm968, %v982, %v984
      %v992 = vsel %vm968, %v984, %v986
      %v993 = vsel %vm968, %v986, %v988
      %v994 = vsel %vm968, %v988, %v990
      %999 = vst [vmem:[#allocation4 + $0x180] sm:$0xff] %v991
      %1000 = vst [vmem:[#allocation4 + $0x188] sm:$0xff] %v992
      %1001 = vst [vmem:[#allocation4 + $0x190] sm:$0xff] %v993
      %1002 = vst [vmem:[#allocation4 + $0x198] sm:$0xff] %v994
      %1003 = vrot.lane.b32.xlu0 %v396, 41
      %v1004 = vpop.permute.xlu0 %1003
      %1005 = vrot.lane.b32.xlu0 %v397, 41
      %v1006 = vpop.permute.xlu0 %1005
      %1007 = vrot.lane.b32.xlu0 %v398, 41
      %v1008 = vpop.permute.xlu0 %1007
      %1009 = vrot.lane.b32.xlu0 %v399, 41
      %v1010 = vpop.permute.xlu0 %1009
      %1011 = vrot.lane.b32.xlu0 %v400, 41
      %v1012 = vpop.permute.xlu0 %1011
      %vm1013 = vcmask 334848
      %v1014 = vsel %vm1013, %v1004, %v1006
      %v1015 = vsel %vm1013, %v1006, %v1008
      %v1016 = vsel %vm1013, %v1008, %v1010
      %v1017 = vsel %vm1013, %v1010, %v1012
      %1022 = vst [vmem:[#allocation2 + $0x1a0] sm:$0xff] %v1014
      %1023 = vst [vmem:[#allocation2 + $0x1a8] sm:$0xff] %v1015
      %1024 = vst [vmem:[#allocation2 + $0x1b0] sm:$0xff] %v1016
      %1025 = vst [vmem:[#allocation2 + $0x1b8] sm:$0xff] %v1017
      %1026 = vrot.lane.b32.xlu0 %v402, 41
      %v1027 = vpop.permute.xlu0 %1026
      %1028 = vrot.lane.b32.xlu0 %v403, 41
      %v1029 = vpop.permute.xlu0 %1028
      %1030 = vrot.lane.b32.xlu0 %v404, 41
      %v1031 = vpop.permute.xlu0 %1030
      %1032 = vrot.lane.b32.xlu0 %v405, 41
      %v1033 = vpop.permute.xlu0 %1032
      %1034 = vrot.lane.b32.xlu0 %v406, 41
      %v1035 = vpop.permute.xlu0 %1034
      %v1036 = vsel %vm1013, %v1027, %v1029
      %v1037 = vsel %vm1013, %v1029, %v1031
      %v1038 = vsel %vm1013, %v1031, %v1033
      %v1039 = vsel %vm1013, %v1033, %v1035
      %1044 = vst [vmem:[#allocation4 + $0x1a0] sm:$0xff] %v1036
      %1045 = vst [vmem:[#allocation4 + $0x1a8] sm:$0xff] %v1037
      %1046 = vst [vmem:[#allocation4 + $0x1b0] sm:$0xff] %v1038
      %1047 = vst [vmem:[#allocation4 + $0x1b8] sm:$0xff] %v1039
      %v1048 = vld [vmem:[%s2] sm:$0xff]
      %v1049 = vld [vmem:[%s2 + $0x20] sm:$0xff]
      %v1050 = vld [vmem:[%s2 + $0x40] sm:$0xff]
      %v1051 = vld [vmem:[%s2 + $0x60] sm:$0xff]
      %v1052 = vld [vmem:[#allocation2] sm:$0xff]
      %v1053 = vld [vmem:[#allocation2 + $0x8] sm:$0xff]
      %v1054 = vld [vmem:[#allocation2 + $0x10] sm:$0xff]
      %v1055 = vld [vmem:[#allocation2 + $0x18] sm:$0xff]
      %v1056 = vld [vmem:[#allocation2 + $0x20] sm:$0xff]
      %v1057 = vld [vmem:[#allocation2 + $0x28] sm:$0xff]
      %v1058 = vld [vmem:[#allocation2 + $0x30] sm:$0xff]
      %v1059 = vld [vmem:[#allocation2 + $0x38] sm:$0xff]
      %v1060 = vld [vmem:[#allocation2 + $0x40] sm:$0xff]
      %v1061 = vld [vmem:[#allocation2 + $0x48] sm:$0xff]
      %v1062 = vld [vmem:[#allocation2 + $0x50] sm:$0xff]
      %v1063 = vld [vmem:[#allocation2 + $0x58] sm:$0xff]
      %v1064 = vld [vmem:[#allocation2 + $0x60] sm:$0xff]
      %v1065 = vld [vmem:[#allocation2 + $0x68] sm:$0xff]
      %v1066 = vld [vmem:[#allocation2 + $0x70] sm:$0xff]
      %v1067 = vld [vmem:[#allocation2 + $0x78] sm:$0xff]
      %v1068 = vld [vmem:[#allocation2 + $0x80] sm:$0xff]
      %v1069 = vld [vmem:[#allocation2 + $0x88] sm:$0xff]
      %v1070 = vld [vmem:[#allocation2 + $0x90] sm:$0xff]
      %v1071 = vld [vmem:[#allocation2 + $0x98] sm:$0xff]
      %v1072 = vld [vmem:[#allocation2 + $0xa0] sm:$0xff]
      %v1073 = vld [vmem:[#allocation2 + $0xa8] sm:$0xff]
      %v1074 = vld [vmem:[#allocation2 + $0xb0] sm:$0xff]
      %v1075 = vld [vmem:[#allocation2 + $0xb8] sm:$0xff]
      %v1076 = vld [vmem:[#allocation2 + $0xc0] sm:$0xff]
      %v1077 = vld [vmem:[#allocation2 + $0xc8] sm:$0xff]
      %v1078 = vld [vmem:[#allocation2 + $0xd0] sm:$0xff]
      %v1079 = vld [vmem:[#allocation2 + $0xd8] sm:$0xff]
      %v1080 = vld [vmem:[#allocation2 + $0xe0] sm:$0xff]
      %v1081 = vld [vmem:[#allocation2 + $0xe8] sm:$0xff]
      %v1082 = vld [vmem:[#allocation2 + $0xf0] sm:$0xff]
      %v1083 = vld [vmem:[#allocation2 + $0xf8] sm:$0xff]
      %v1084 = vld [vmem:[#allocation2 + $0x100] sm:$0xff]
      %v1085 = vld [vmem:[#allocation2 + $0x108] sm:$0xff]
      %v1086 = vld [vmem:[#allocation2 + $0x110] sm:$0xff]
      %v1087 = vld [vmem:[#allocation2 + $0x118] sm:$0xff]
      %v1088 = vld [vmem:[#allocation2 + $0x120] sm:$0xff]
      %v1089 = vld [vmem:[#allocation2 + $0x128] sm:$0xff]
      %v1090 = vld [vmem:[#allocation2 + $0x130] sm:$0xff]
      %v1091 = vld [vmem:[#allocation2 + $0x138] sm:$0xff]
      %v1092 = vld [vmem:[#allocation2 + $0x140] sm:$0xff]
      %v1093 = vld [vmem:[#allocation2 + $0x148] sm:$0xff]
      %v1094 = vld [vmem:[#allocation2 + $0x150] sm:$0xff]
      %v1095 = vld [vmem:[#allocation2 + $0x158] sm:$0xff]
      %v1096 = vld [vmem:[#allocation2 + $0x160] sm:$0xff]
      %v1097 = vld [vmem:[#allocation2 + $0x168] sm:$0xff]
      %v1098 = vld [vmem:[#allocation2 + $0x170] sm:$0xff]
      %v1099 = vld [vmem:[#allocation2 + $0x178] sm:$0xff]
      %v1100 = vld [vmem:[#allocation2 + $0x180] sm:$0xff]
      %v1101 = vld [vmem:[#allocation2 + $0x188] sm:$0xff]
      %v1102 = vld [vmem:[#allocation2 + $0x190] sm:$0xff]
      %v1103 = vld [vmem:[#allocation2 + $0x198] sm:$0xff]
      %v1104 = vld [vmem:[#allocation2 + $0x1a0] sm:$0xff]
      %v1105 = vld [vmem:[#allocation2 + $0x1a8] sm:$0xff]
      %v1106 = vld [vmem:[#allocation2 + $0x1b0] sm:$0xff]
      %v1107 = vld [vmem:[#allocation2 + $0x1b8] sm:$0xff]
      %vm1108 = vcmask 916480
      %v1110 = vsel %vm1108, %v1048, 0
      %v1113 = vsel %vm1108, %v1049, 0
      %v1116 = vsel %vm1108, %v1050, 0
      %v1119 = vsel %vm1108, %v1051, 0
      %1121 = vmatprep.subr.mxu0 %v1053
      %1122 = vmatpush1.msra.mxu0 %v1052
      %1123 = vmatprep.subr.mxu0 %v1057
      %1124 = vmatpush1.msra.mxu0 %v1056
      %1125 = vmatprep.subr.mxu0 %v1061
      %1126 = vmatpush1.msra.mxu0 %v1060
      %1127 = vmatprep.subr.mxu0 %v1065
      %1128 = vmatpush1.msra.mxu0 %v1064
      %1129 = vmatprep.subr.mxu0 %v1069
      %1130 = vmatpush1.msra.mxu0 %v1068
      %1131 = vmatprep.subr.mxu0 %v1073
      %1132 = vmatpush1.msra.mxu0 %v1072
      %1133 = vmatprep.subr.mxu0 %v1077
      %1134 = vmatpush1.msra.mxu0 %v1076
      %1135 = vmatprep.subr.mxu0 %v1081
      %1136 = vmatpush1.msra.mxu0 %v1080
      %1137 = vmatprep.subr.mxu0 %v1085
      %1138 = vmatpush1.msra.mxu0 %v1084
      %1139 = vmatprep.subr.mxu0 %v1089
      %1140 = vmatpush1.msra.mxu0 %v1088
      %1141 = vmatprep.subr.mxu0 %v1093
      %1142 = vmatpush1.msra.mxu0 %v1092
      %1143 = vmatprep.subr.mxu0 %v1097
      %1144 = vmatpush1.msra.mxu0 %v1096
      %1145 = vmatprep.subr.mxu0 %v1101
      %1146 = vmatpush1.msra.mxu0 %v1100
      %1147 = vmatprep.subr.mxu0 %v1105
      %1148 = vmatpush1.msra.mxu0 %v1104
      %1149 = vmatprep.subr.mxu0 0.0
      %1150 = vmatpush1.msra.mxu0 0.0
      %1151 = vmatprep.subr.mxu0 0.0
      %1152 = vmatpush1.msra.mxu0 0.0
      %1153 = vmatprep.subr.mxu0 0.0
      %1154 = vmatpush1.msra.mxu0 0.0
      %1155 = vmatprep.subr.mxu0 0.0
      %1156 = vmatpush1.msra.mxu0 0.0
      %1157 = vmatprep.subr.mxu0 0.0
      %1158 = vmatpush1.msra.mxu0 0.0
      %1159 = vmatprep.subr.mxu0 0.0
      %1160 = vmatpush1.msra.mxu0 0.0
      %1161 = vmatprep.subr.mxu0 0.0
      %1162 = vmatpush1.msra.mxu0 0.0
      %1163 = vmatprep.subr.mxu0 0.0
      %1164 = vmatpush1.msra.mxu0 0.0
      %1165 = vmatprep.subr.mxu0 0.0
      %1166 = vmatpush1.msra.mxu0 0.0
      %1167 = vmatprep.subr.mxu0 0.0
      %1168 = vmatpush1.msra.mxu0 0.0
      %1169 = vmatprep.subr.mxu0 0.0
      %1170 = vmatpush1.msra.mxu0 0.0
      %1171 = vmatprep.subr.mxu0 0.0
      %1172 = vmatpush1.msra.mxu0 0.0
      %1173 = vmatprep.subr.mxu0 0.0
      %1174 = vmatpush1.msra.mxu0 0.0
      %1175 = vmatprep.subr.mxu0 0.0
      %1176 = vmatpush1.msra.mxu0 0.0
      %1177 = vmatprep.subr.mxu0 0.0
      %1178 = vmatpush1.msra.mxu0 0.0
      %1179 = vmatprep.subr.mxu0 0.0
      %1180 = vmatpush1.msra.mxu0 0.0
      %1181 = vmatprep.subr.mxu0 0.0
      %1182 = vmatpush1.msra.mxu0 0.0
      %1183 = vmatprep.subr.mxu0 0.0
      %1184 = vmatpush1.msra.mxu0 0.0
      %1185 = vmatprep.mubr.f32.mxu0 0.0
      %1186 = vmatmul.mubr.f32.gmra.mrb[0].mxu0 %v1110
      %v1187 = vpop.f32.mrb[0].mxu0
      %v1188 = vadd.f32 0.0, %v1187
      %v1189 = vpop.f32.mrb[0].mxu0
      %v1190 = vadd.f32 0.0, %v1189
      %1191 = vmatprep.mubr.f32.mxu0 0.0
      %1192 = vmatmul.mubr.f32.gmra.mrb[0].mxu0 %v1113
      %v1193 = vpop.f32.mrb[0].mxu0
      %v1194 = vadd.f32 0.0, %v1193
      %v1195 = vpop.f32.mrb[0].mxu0
      %v1196 = vadd.f32 0.0, %v1195
      %1197 = vmatprep.mubr.f32.mxu0 0.0
      %1198 = vmatmul.mubr.f32.gmra.mrb[0].mxu0 %v1116
      %v1199 = vpop.f32.mrb[0].mxu0
      %v1200 = vadd.f32 0.0, %v1199
      %v1201 = vpop.f32.mrb[0].mxu0
      %v1202 = vadd.f32 0.0, %v1201
      %1203 = vmatprep.mubr.f32.mxu0 0.0
      %1204 = vmatmul.mubr.f32.gmra.mrb[0].mxu0 %v1119
      %v1205 = vpop.f32.mrb[0].mxu0
      %v1206 = vadd.f32 0.0, %v1205
      %v1207 = vpop.f32.mrb[0].mxu0
      %v1208 = vadd.f32 0.0, %v1207
      %1209 = vdwg.mxu0
      %1210 = vmatprep.subr.mxu0 %v1055
      %1211 = vmatpush1.msra.mxu0 %v1054
      %1212 = vmatprep.subr.mxu0 %v1059
      %1213 = vmatpush1.msra.mxu0 %v1058
      %1214 = vmatprep.subr.mxu0 %v1063
      %1215 = vmatpush1.msra.mxu0 %v1062
      %1216 = vmatprep.subr.mxu0 %v1067
      %1217 = vmatpush1.msra.mxu0 %v1066
      %1218 = vmatprep.subr.mxu0 %v1071
      %1219 = vmatpush1.msra.mxu0 %v1070
      %1220 = vmatprep.subr.mxu0 %v1075
      %1221 = vmatpush1.msra.mxu0 %v1074
      %1222 = vmatprep.subr.mxu0 %v1079
      %1223 = vmatpush1.msra.mxu0 %v1078
      %1224 = vmatprep.subr.mxu0 %v1083
      %1225 = vmatpush1.msra.mxu0 %v1082
      %1226 = vmatprep.subr.mxu0 %v1087
      %1227 = vmatpush1.msra.mxu0 %v1086
      %1228 = vmatprep.subr.mxu0 %v1091
      %1229 = vmatpush1.msra.mxu0 %v1090
      %1230 = vmatprep.subr.mxu0 %v1095
      %1231 = vmatpush1.msra.mxu0 %v1094
      %1232 = vmatprep.subr.mxu0 %v1099
      %1233 = vmatpush1.msra.mxu0 %v1098
      %1234 = vmatprep.subr.mxu0 %v1103
      %1235 = vmatpush1.msra.mxu0 %v1102
      %1236 = vmatprep.subr.mxu0 %v1107
      %1237 = vmatpush1.msra.mxu0 %v1106
      %1238 = vmatprep.subr.mxu0 0.0
      %1239 = vmatpush1.msra.mxu0 0.0
      %1240 = vmatprep.subr.mxu0 0.0
      %1241 = vmatpush1.msra.mxu0 0.0
      %1242 = vmatprep.subr.mxu0 0.0
      %1243 = vmatpush1.msra.mxu0 0.0
      %1244 = vmatprep.subr.mxu0 0.0
      %1245 = vmatpush1.msra.mxu0 0.0
      %1246 = vmatprep.subr.mxu0 0.0
      %1247 = vmatpush1.msra.mxu0 0.0
      %1248 = vmatprep.subr.mxu0 0.0
      %1249 = vmatpush1.msra.mxu0 0.0
      %1250 = vmatprep.subr.mxu0 0.0
      %1251 = vmatpush1.msra.mxu0 0.0
      %1252 = vmatprep.subr.mxu0 0.0
      %1253 = vmatpush1.msra.mxu0 0.0
      %1254 = vmatprep.subr.mxu0 0.0
      %1255 = vmatpush1.msra.mxu0 0.0
      %1256 = vmatprep.subr.mxu0 0.0
      %1257 = vmatpush1.msra.mxu0 0.0
      %1258 = vmatprep.subr.mxu0 0.0
      %1259 = vmatpush1.msra.mxu0 0.0
      %1260 = vmatprep.subr.mxu0 0.0
      %1261 = vmatpush1.msra.mxu0 0.0
      %1262 = vmatprep.subr.mxu0 0.0
      %1263 = vmatpush1.msra.mxu0 0.0
      %1264 = vmatprep.subr.mxu0 0.0
      %1265 = vmatpush1.msra.mxu0 0.0
      %1266 = vmatprep.subr.mxu0 0.0
      %1267 = vmatpush1.msra.mxu0 0.0
      %1268 = vmatprep.subr.mxu0 0.0
      %1269 = vmatpush1.msra.mxu0 0.0
      %1270 = vmatprep.subr.mxu0 0.0
      %1271 = vmatpush1.msra.mxu0 0.0
      %1272 = vmatprep.subr.mxu0 0.0
      %1273 = vmatpush1.msra.mxu0 0.0
      %1274 = vmatprep.mubr.f32.mxu0 0.0
      %1275 = vmatmul.mubr.f32.gmra.mrb[0].mxu0 %v1110
      %v1276 = vpop.f32.mrb[0].mxu0
      %v1277 = vadd.f32 0.0, %v1276
      %v1278 = vpop.f32.mrb[0].mxu0
      %v1279 = vadd.f32 0.0, %v1278
      %1280 = vmatprep.mubr.f32.mxu0 0.0
      %1281 = vmatmul.mubr.f32.gmra.mrb[0].mxu0 %v1113
      %v1282 = vpop.f32.mrb[0].mxu0
      %v1283 = vadd.f32 0.0, %v1282
      %v1284 = vpop.f32.mrb[0].mxu0
      %v1285 = vadd.f32 0.0, %v1284
      %1286 = vmatprep.mubr.f32.mxu0 0.0
      %1287 = vmatmul.mubr.f32.gmra.mrb[0].mxu0 %v1116
      %v1288 = vpop.f32.mrb[0].mxu0
      %v1289 = vadd.f32 0.0, %v1288
      %v1290 = vpop.f32.mrb[0].mxu0
      %v1291 = vadd.f32 0.0, %v1290
      %1292 = vmatprep.mubr.f32.mxu0 0.0
      %1293 = vmatmul.mubr.f32.gmra.mrb[0].mxu0 %v1119
      %v1294 = vpop.f32.mrb[0].mxu0
      %v1295 = vadd.f32 0.0, %v1294
      %v1296 = vpop.f32.mrb[0].mxu0
      %v1297 = vadd.f32 0.0, %v1296
      %1298 = vdwg.mxu0
      %v1299 = vld [vmem:[#allocation4] sm:$0xff]
      %v1300 = vld [vmem:[#allocation4 + $0x8] sm:$0xff]
      %v1301 = vld [vmem:[#allocation4 + $0x10] sm:$0xff]
      %v1302 = vld [vmem:[#allocation4 + $0x18] sm:$0xff]
      %v1303 = vld [vmem:[#allocation4 + $0x20] sm:$0xff]
      %v1304 = vld [vmem:[#allocation4 + $0x28] sm:$0xff]
      %v1305 = vld [vmem:[#allocation4 + $0x30] sm:$0xff]
      %v1306 = vld [vmem:[#allocation4 + $0x38] sm:$0xff]
      %v1307 = vld [vmem:[#allocation4 + $0x40] sm:$0xff]
      %v1308 = vld [vmem:[#allocation4 + $0x48] sm:$0xff]
      %v1309 = vld [vmem:[#allocation4 + $0x50] sm:$0xff]
      %v1310 = vld [vmem:[#allocation4 + $0x58] sm:$0xff]
      %v1311 = vld [vmem:[#allocation4 + $0x60] sm:$0xff]
      %v1312 = vld [vmem:[#allocation4 + $0x68] sm:$0xff]
      %v1313 = vld [vmem:[#allocation4 + $0x70] sm:$0xff]
      %v1314 = vld [vmem:[#allocation4 + $0x78] sm:$0xff]
      %v1315 = vld [vmem:[#allocation4 + $0x80] sm:$0xff]
      %v1316 = vld [vmem:[#allocation4 + $0x88] sm:$0xff]
      %v1317 = vld [vmem:[#allocation4 + $0x90] sm:$0xff]
      %v1318 = vld [vmem:[#allocation4 + $0x98] sm:$0xff]
      %v1319 = vld [vmem:[#allocation4 + $0xa0] sm:$0xff]
      %v1320 = vld [vmem:[#allocation4 + $0xa8] sm:$0xff]
      %v1321 = vld [vmem:[#allocation4 + $0xb0] sm:$0xff]
      %v1322 = vld [vmem:[#allocation4 + $0xb8] sm:$0xff]
      %v1323 = vld [vmem:[#allocation4 + $0xc0] sm:$0xff]
      %v1324 = vld [vmem:[#allocation4 + $0xc8] sm:$0xff]
      %v1325 = vld [vmem:[#allocation4 + $0xd0] sm:$0xff]
      %v1326 = vld [vmem:[#allocation4 + $0xd8] sm:$0xff]
      %v1327 = vld [vmem:[#allocation4 + $0xe0] sm:$0xff]
      %v1328 = vld [vmem:[#allocation4 + $0xe8] sm:$0xff]
      %v1329 = vld [vmem:[#allocation4 + $0xf0] sm:$0xff]
      %v1330 = vld [vmem:[#allocation4 + $0xf8] sm:$0xff]
      %v1331 = vld [vmem:[#allocation4 + $0x100] sm:$0xff]
      %v1332 = vld [vmem:[#allocation4 + $0x108] sm:$0xff]
      %v1333 = vld [vmem:[#allocation4 + $0x110] sm:$0xff]
      %v1334 = vld [vmem:[#allocation4 + $0x118] sm:$0xff]
      %v1335 = vld [vmem:[#allocation4 + $0x120] sm:$0xff]
      %v1336 = vld [vmem:[#allocation4 + $0x128] sm:$0xff]
      %v1337 = vld [vmem:[#allocation4 + $0x130] sm:$0xff]
      %v1338 = vld [vmem:[#allocation4 + $0x138] sm:$0xff]
      %v1339 = vld [vmem:[#allocation4 + $0x140] sm:$0xff]
      %v1340 = vld [vmem:[#allocation4 + $0x148] sm:$0xff]
      %v1341 = vld [vmem:[#allocation4 + $0x150] sm:$0xff]
      %v1342 = vld [vmem:[#allocation4 + $0x158] sm:$0xff]
      %v1343 = vld [vmem:[#allocation4 + $0x160] sm:$0xff]
      %v1344 = vld [vmem:[#allocation4 + $0x168] sm:$0xff]
      %v1345 = vld [vmem:[#allocation4 + $0x170] sm:$0xff]
      %v1346 = vld [vmem:[#allocation4 + $0x178] sm:$0xff]
      %v1347 = vld [vmem:[#allocation4 + $0x180] sm:$0xff]
      %v1348 = vld [vmem:[#allocation4 + $0x188] sm:$0xff]
      %v1349 = vld [vmem:[#allocation4 + $0x190] sm:$0xff]
      %v1350 = vld [vmem:[#allocation4 + $0x198] sm:$0xff]
      %v1351 = vld [vmem:[#allocation4 + $0x1a0] sm:$0xff]
      %v1352 = vld [vmem:[#allocation4 + $0x1a8] sm:$0xff]
      %v1353 = vld [vmem:[#allocation4 + $0x1b0] sm:$0xff]
      %v1354 = vld [vmem:[#allocation4 + $0x1b8] sm:$0xff]
      %1355 = vmatprep.subr.mxu0 %v1300
      %1356 = vmatpush1.msra.mxu0 %v1299
      %1357 = vmatprep.subr.mxu0 %v1304
      %1358 = vmatpush1.msra.mxu0 %v1303
      %1359 = vmatprep.subr.mxu0 %v1308
      %1360 = vmatpush1.msra.mxu0 %v1307
      %1361 = vmatprep.subr.mxu0 %v1312
      %1362 = vmatpush1.msra.mxu0 %v1311
      %1363 = vmatprep.subr.mxu0 %v1316
      %1364 = vmatpush1.msra.mxu0 %v1315
      %1365 = vmatprep.subr.mxu0 %v1320
      %1366 = vmatpush1.msra.mxu0 %v1319
      %1367 = vmatprep.subr.mxu0 %v1324
      %1368 = vmatpush1.msra.mxu0 %v1323
      %1369 = vmatprep.subr.mxu0 %v1328
      %1370 = vmatpush1.msra.mxu0 %v1327
      %1371 = vmatprep.subr.mxu0 %v1332
      %1372 = vmatpush1.msra.mxu0 %v1331
      %1373 = vmatprep.subr.mxu0 %v1336
      %1374 = vmatpush1.msra.mxu0 %v1335
      %1375 = vmatprep.subr.mxu0 %v1340
      %1376 = vmatpush1.msra.mxu0 %v1339
      %1377 = vmatprep.subr.mxu0 %v1344
      %1378 = vmatpush1.msra.mxu0 %v1343
      %1379 = vmatprep.subr.mxu0 %v1348
      %1380 = vmatpush1.msra.mxu0 %v1347
      %1381 = vmatprep.subr.mxu0 %v1352
      %1382 = vmatpush1.msra.mxu0 %v1351
      %1383 = vmatprep.subr.mxu0 0.0
      %1384 = vmatpush1.msra.mxu0 0.0
      %1385 = vmatprep.subr.mxu0 0.0
      %1386 = vmatpush1.msra.mxu0 0.0
      %1387 = vmatprep.subr.mxu0 0.0
      %1388 = vmatpush1.msra.mxu0 0.0
      %1389 = vmatprep.subr.mxu0 0.0
      %1390 = vmatpush1.msra.mxu0 0.0
      %1391 = vmatprep.subr.mxu0 0.0
      %1392 = vmatpush1.msra.mxu0 0.0
      %1393 = vmatprep.subr.mxu0 0.0
      %1394 = vmatpush1.msra.mxu0 0.0
      %1395 = vmatprep.subr.mxu0 0.0
      %1396 = vmatpush1.msra.mxu0 0.0
      %1397 = vmatprep.subr.mxu0 0.0
      %1398 = vmatpush1.msra.mxu0 0.0
      %1399 = vmatprep.subr.mxu0 0.0
      %1400 = vmatpush1.msra.mxu0 0.0
      %1401 = vmatprep.subr.mxu0 0.0
      %1402 = vmatpush1.msra.mxu0 0.0
      %1403 = vmatprep.subr.mxu0 0.0
      %1404 = vmatpush1.msra.mxu0 0.0
      %1405 = vmatprep.subr.mxu0 0.0
      %1406 = vmatpush1.msra.mxu0 0.0
      %1407 = vmatprep.subr.mxu0 0.0
      %1408 = vmatpush1.msra.mxu0 0.0
      %1409 = vmatprep.subr.mxu0 0.0
      %1410 = vmatpush1.msra.mxu0 0.0
      %1411 = vmatprep.subr.mxu0 0.0
      %1412 = vmatpush1.msra.mxu0 0.0
      %1413 = vmatprep.subr.mxu0 0.0
      %1414 = vmatpush1.msra.mxu0 0.0
      %1415 = vmatprep.subr.mxu0 0.0
      %1416 = vmatpush1.msra.mxu0 0.0
      %1417 = vmatprep.subr.mxu0 0.0
      %1418 = vmatpush1.msra.mxu0 0.0
      %1419 = vmatprep.mubr.f32.mxu0 0.0
      %1420 = vmatmul.mubr.f32.gmra.mrb[0].mxu0 %v1110
      %v1421 = vpop.f32.mrb[0].mxu0
      %v1422 = vadd.f32 0.0, %v1421
      %v1423 = vpop.f32.mrb[0].mxu0
      %v1424 = vadd.f32 0.0, %v1423
      %1425 = vmatprep.mubr.f32.mxu0 0.0
      %1426 = vmatmul.mubr.f32.gmra.mrb[0].mxu0 %v1113
      %v1427 = vpop.f32.mrb[0].mxu0
      %v1428 = vadd.f32 0.0, %v1427
      %v1429 = vpop.f32.mrb[0].mxu0
      %v1430 = vadd.f32 0.0, %v1429
      %1431 = vdwg.mxu0
      %1432 = vmatprep.subr.mxu0 %v1302
      %1433 = vmatpush1.msra.mxu0 %v1301
      %1434 = vmatprep.subr.mxu0 %v1306
      %1435 = vmatpush1.msra.mxu0 %v1305
      %1436 = vmatprep.subr.mxu0 %v1310
      %1437 = vmatpush1.msra.mxu0 %v1309
      %1438 = vmatprep.subr.mxu0 %v1314
      %1439 = vmatpush1.msra.mxu0 %v1313
      %1440 = vmatprep.subr.mxu0 %v1318
      %1441 = vmatpush1.msra.mxu0 %v1317
      %1442 = vmatprep.subr.mxu0 %v1322
      %1443 = vmatpush1.msra.mxu0 %v1321
      %1444 = vmatprep.subr.mxu0 %v1326
      %1445 = vmatpush1.msra.mxu0 %v1325
      %1446 = vmatprep.subr.mxu0 %v1330
      %1447 = vmatpush1.msra.mxu0 %v1329
      %1448 = vmatprep.subr.mxu0 %v1334
      %1449 = vmatpush1.msra.mxu0 %v1333
      %1450 = vmatprep.subr.mxu0 %v1338
      %1451 = vmatpush1.msra.mxu0 %v1337
      %1452 = vmatprep.subr.mxu0 %v1342
      %1453 = vmatpush1.msra.mxu0 %v1341
      %1454 = vmatprep.subr.mxu0 %v1346
      %1455 = vmatpush1.msra.mxu0 %v1345
      %1456 = vmatprep.subr.mxu0 %v1350
      %1457 = vmatpush1.msra.mxu0 %v1349
      %1458 = vmatprep.subr.mxu0 %v1354
      %1459 = vmatpush1.msra.mxu0 %v1353
      %1460 = vmatprep.subr.mxu0 0.0
      %1461 = vmatpush1.msra.mxu0 0.0
      %1462 = vmatprep.subr.mxu0 0.0
      %1463 = vmatpush1.msra.mxu0 0.0
      %1464 = vmatprep.subr.mxu0 0.0
      %1465 = vmatpush1.msra.mxu0 0.0
      %1466 = vmatprep.subr.mxu0 0.0
      %1467 = vmatpush1.msra.mxu0 0.0
      %1468 = vmatprep.subr.mxu0 0.0
      %1469 = vmatpush1.msra.mxu0 0.0
      %1470 = vmatprep.subr.mxu0 0.0
      %1471 = vmatpush1.msra.mxu0 0.0
      %1472 = vmatprep.subr.mxu0 0.0
      %1473 = vmatpush1.msra.mxu0 0.0
      %1474 = vmatprep.subr.mxu0 0.0
      %1475 = vmatpush1.msra.mxu0 0.0
      %1476 = vmatprep.subr.mxu0 0.0
      %1477 = vmatpush1.msra.mxu0 0.0
      %1478 = vmatprep.subr.mxu0 0.0
      %1479 = vmatpush1.msra.mxu0 0.0
      %1480 = vmatprep.subr.mxu0 0.0
      %1481 = vmatpush1.msra.mxu0 0.0
      %1482 = vmatprep.subr.mxu0 0.0
      %1483 = vmatpush1.msra.mxu0 0.0
      %1484 = vmatprep.subr.mxu0 0.0
      %1485 = vmatpush1.msra.mxu0 0.0
      %1486 = vmatprep.subr.mxu0 0.0
      %1487 = vmatpush1.msra.mxu0 0.0
      %1488 = vmatprep.subr.mxu0 0.0
      %1489 = vmatpush1.msra.mxu0 0.0
      %1490 = vmatprep.subr.mxu0 0.0
      %1491 = vmatpush1.msra.mxu0 0.0
      %1492 = vmatprep.subr.mxu0 0.0
      %1493 = vmatpush1.msra.mxu0 0.0
      %1494 = vmatprep.subr.mxu0 0.0
      %1495 = vmatpush1.msra.mxu0 0.0
      %1496 = vmatprep.mubr.f32.mxu0 0.0
      %1497 = vmatmul.mubr.f32.gmra.mrb[0].mxu0 %v1110
      %v1498 = vpop.f32.mrb[0].mxu0
      %v1499 = vadd.f32 0.0, %v1498
      %v1500 = vpop.f32.mrb[0].mxu0
      %v1501 = vadd.f32 0.0, %v1500
      %1502 = vmatprep.mubr.f32.mxu0 0.0
      %1503 = vmatmul.mubr.f32.gmra.mrb[0].mxu0 %v1113
      %v1504 = vpop.f32.mrb[0].mxu0
      %v1505 = vadd.f32 0.0, %v1504
      %v1506 = vpop.f32.mrb[0].mxu0
      %v1507 = vadd.f32 0.0, %v1506
      %1508 = vdwg.mxu0
      %v1509 = vadd.f32 %v1188, 0.0
      %v1510 = vadd.f32 %v1190, 0.0
      %v1511 = vadd.f32 %v1277, 0.0
      %v1512 = vadd.f32 %v1279, 0.0
      %v1513 = vadd.f32 %v1194, 0.0
      %v1514 = vadd.f32 %v1196, 0.0
      %v1515 = vadd.f32 %v1283, 0.0
      %v1516 = vadd.f32 %v1285, 0.0
      %v1517 = vadd.f32 %v1509, %v1200
      %v1518 = vadd.f32 %v1510, %v1202
      %v1519 = vadd.f32 %v1511, %v1289
      %v1520 = vadd.f32 %v1512, %v1291
      %v1521 = vadd.f32 %v1513, %v1206
      %v1522 = vadd.f32 %v1514, %v1208
      %v1523 = vadd.f32 %v1515, %v1295
      %v1524 = vadd.f32 %v1516, %v1297
      %v1525 = vadd.f32 %v1517, %v1422
      %v1526 = vadd.f32 %v1518, %v1424
      %v1527 = vadd.f32 %v1519, %v1499
      %v1528 = vadd.f32 %v1520, %v1501
      %v1529 = vadd.f32 %v1521, %v1428
      %v1530 = vadd.f32 %v1522, %v1430
      %v1531 = vadd.f32 %v1523, %v1505
      %v1532 = vadd.f32 %v1524, %v1507
      %1533 = vrot.lane.b32.xlu0 %v396, 25
      %v1534 = vpop.permute.xlu0 %1533
      %1535 = vrot.lane.b32.xlu0 %v397, 25
      %v1536 = vpop.permute.xlu0 %1535
      %1537 = vrot.lane.b32.xlu0 %v398, 25
      %v1538 = vpop.permute.xlu0 %1537
      %1539 = vrot.lane.b32.xlu0 %v399, 25
      %v1540 = vpop.permute.xlu0 %1539
      %1541 = vrot.lane.b32.xlu0 %v400, 25
      %v1542 = vpop.permute.xlu0 %1541
      %vm1543 = vcmask 203776
      %v1544 = vsel %vm1543, %v1534, %v1536
      %v1545 = vsel %vm1543, %v1536, %v1538
      %v1546 = vsel %vm1543, %v1538, %v1540
      %v1547 = vsel %vm1543, %v1540, %v1542
      %1552 = vst [vmem:[#allocation3] sm:$0xff] %v1544
      %1553 = vst [vmem:[#allocation3 + $0x8] sm:$0xff] %v1545
      %1554 = vst [vmem:[#allocation3 + $0x10] sm:$0xff] %v1546
      %1555 = vst [vmem:[#allocation3 + $0x18] sm:$0xff] %v1547
      %1556 = vrot.lane.b32.xlu0 %v402, 25
      %v1557 = vpop.permute.xlu0 %1556
      %1558 = vrot.lane.b32.xlu0 %v403, 25
      %v1559 = vpop.permute.xlu0 %1558
      %1560 = vrot.lane.b32.xlu0 %v404, 25
      %v1561 = vpop.permute.xlu0 %1560
      %1562 = vrot.lane.b32.xlu0 %v405, 25
      %v1563 = vpop.permute.xlu0 %1562
      %1564 = vrot.lane.b32.xlu0 %v406, 25
      %v1565 = vpop.permute.xlu0 %1564
      %v1566 = vsel %vm1543, %v1557, %v1559
      %v1567 = vsel %vm1543, %v1559, %v1561
      %v1568 = vsel %vm1543, %v1561, %v1563
      %v1569 = vsel %vm1543, %v1563, %v1565
      %1574 = vst [vmem:[#allocation5] sm:$0xff] %v1566
      %1575 = vst [vmem:[#allocation5 + $0x8] sm:$0xff] %v1567
      %1576 = vst [vmem:[#allocation5 + $0x10] sm:$0xff] %v1568
      %1577 = vst [vmem:[#allocation5 + $0x18] sm:$0xff] %v1569
      %1578 = vrot.lane.b32.xlu0 %v396, 24
      %v1579 = vpop.permute.xlu0 %1578
      %1580 = vrot.lane.b32.xlu0 %v397, 24
      %v1581 = vpop.permute.xlu0 %1580
      %1582 = vrot.lane.b32.xlu0 %v398, 24
      %v1583 = vpop.permute.xlu0 %1582
      %1584 = vrot.lane.b32.xlu0 %v399, 24
      %v1585 = vpop.permute.xlu0 %1584
      %1586 = vrot.lane.b32.xlu0 %v400, 24
      %v1587 = vpop.permute.xlu0 %1586
      %vm1588 = vcmask 195584
      %v1589 = vsel %vm1588, %v1579, %v1581
      %v1590 = vsel %vm1588, %v1581, %v1583
      %v1591 = vsel %vm1588, %v1583, %v1585
      %v1592 = vsel %vm1588, %v1585, %v1587
      %1597 = vst [vmem:[#allocation3 + $0x20] sm:$0xff] %v1589
      %1598 = vst [vmem:[#allocation3 + $0x28] sm:$0xff] %v1590
      %1599 = vst [vmem:[#allocation3 + $0x30] sm:$0xff] %v1591
      %1600 = vst [vmem:[#allocation3 + $0x38] sm:$0xff] %v1592
      %1601 = vrot.lane.b32.xlu0 %v402, 24
      %v1602 = vpop.permute.xlu0 %1601
      %1603 = vrot.lane.b32.xlu0 %v403, 24
      %v1604 = vpop.permute.xlu0 %1603
      %1605 = vrot.lane.b32.xlu0 %v404, 24
      %v1606 = vpop.permute.xlu0 %1605
      %1607 = vrot.lane.b32.xlu0 %v405, 24
      %v1608 = vpop.permute.xlu0 %1607
      %1609 = vrot.lane.b32.xlu0 %v406, 24
      %v1610 = vpop.permute.xlu0 %1609
      %v1611 = vsel %vm1588, %v1602, %v1604
      %v1612 = vsel %vm1588, %v1604, %v1606
      %v1613 = vsel %vm1588, %v1606, %v1608
      %v1614 = vsel %vm1588, %v1608, %v1610
      %1619 = vst [vmem:[#allocation5 + $0x20] sm:$0xff] %v1611
      %1620 = vst [vmem:[#allocation5 + $0x28] sm:$0xff] %v1612
      %1621 = vst [vmem:[#allocation5 + $0x30] sm:$0xff] %v1613
      %1622 = vst [vmem:[#allocation5 + $0x38] sm:$0xff] %v1614
      %1623 = vrot.lane.b32.xlu0 %v396, 23
      %v1624 = vpop.permute.xlu0 %1623
      %1625 = vrot.lane.b32.xlu0 %v397, 23
      %v1626 = vpop.permute.xlu0 %1625
      %1627 = vrot.lane.b32.xlu0 %v398, 23
      %v1628 = vpop.permute.xlu0 %1627
      %1629 = vrot.lane.b32.xlu0 %v399, 23
      %v1630 = vpop.permute.xlu0 %1629
      %1631 = vrot.lane.b32.xlu0 %v400, 23
      %v1632 = vpop.permute.xlu0 %1631
      %vm1633 = vcmask 187392
      %v1634 = vsel %vm1633, %v1624, %v1626
      %v1635 = vsel %vm1633, %v1626, %v1628
      %v1636 = vsel %vm1633, %v1628, %v1630
      %v1637 = vsel %vm1633, %v1630, %v1632
      %1642 = vst [vmem:[#allocation3 + $0x40] sm:$0xff] %v1634
      %1643 = vst [vmem:[#allocation3 + $0x48] sm:$0xff] %v1635
      %1644 = vst [vmem:[#allocation3 + $0x50] sm:$0xff] %v1636
      %1645 = vst [vmem:[#allocation3 + $0x58] sm:$0xff] %v1637
      %1646 = vrot.lane.b32.xlu0 %v402, 23
      %v1647 = vpop.permute.xlu0 %1646
      %1648 = vrot.lane.b32.xlu0 %v403, 23
      %v1649 = vpop.permute.xlu0 %1648
      %1650 = vrot.lane.b32.xlu0 %v404, 23
      %v1651 = vpop.permute.xlu0 %1650
      %1652 = vrot.lane.b32.xlu0 %v405, 23
      %v1653 = vpop.permute.xlu0 %1652
      %1654 = vrot.lane.b32.xlu0 %v406, 23
      %v1655 = vpop.permute.xlu0 %1654
      %v1656 = vsel %vm1633, %v1647, %v1649
      %v1657 = vsel %vm1633, %v1649, %v1651
      %v1658 = vsel %vm1633, %v1651, %v1653
      %v1659 = vsel %vm1633, %v1653, %v1655
      %1664 = vst [vmem:[#allocation5 + $0x40] sm:$0xff] %v1656
      %1665 = vst [vmem:[#allocation5 + $0x48] sm:$0xff] %v1657
      %1666 = vst [vmem:[#allocation5 + $0x50] sm:$0xff] %v1658
      %1667 = vst [vmem:[#allocation5 + $0x58] sm:$0xff] %v1659
      %1668 = vrot.lane.b32.xlu0 %v396, 22
      %v1669 = vpop.permute.xlu0 %1668
      %1670 = vrot.lane.b32.xlu0 %v397, 22
      %v1671 = vpop.permute.xlu0 %1670
      %1672 = vrot.lane.b32.xlu0 %v398, 22
      %v1673 = vpop.permute.xlu0 %1672
      %1674 = vrot.lane.b32.xlu0 %v399, 22
      %v1675 = vpop.permute.xlu0 %1674
      %1676 = vrot.lane.b32.xlu0 %v400, 22
      %v1677 = vpop.permute.xlu0 %1676
      %vm1678 = vcmask 179200
      %v1679 = vsel %vm1678, %v1669, %v1671
      %v1680 = vsel %vm1678, %v1671, %v1673
      %v1681 = vsel %vm1678, %v1673, %v1675
      %v1682 = vsel %vm1678, %v1675, %v1677
      %1687 = vst [vmem:[#allocation3 + $0x60] sm:$0xff] %v1679
      %1688 = vst [vmem:[#allocation3 + $0x68] sm:$0xff] %v1680
      %1689 = vst [vmem:[#allocation3 + $0x70] sm:$0xff] %v1681
      %1690 = vst [vmem:[#allocation3 + $0x78] sm:$0xff] %v1682
      %1691 = vrot.lane.b32.xlu0 %v402, 22
      %v1692 = vpop.permute.xlu0 %1691
      %1693 = vrot.lane.b32.xlu0 %v403, 22
      %v1694 = vpop.permute.xlu0 %1693
      %1695 = vrot.lane.b32.xlu0 %v404, 22
      %v1696 = vpop.permute.xlu0 %1695
      %1697 = vrot.lane.b32.xlu0 %v405, 22
      %v1698 = vpop.permute.xlu0 %1697
      %1699 = vrot.lane.b32.xlu0 %v406, 22
      %v1700 = vpop.permute.xlu0 %1699
      %v1701 = vsel %vm1678, %v1692, %v1694
      %v1702 = vsel %vm1678, %v1694, %v1696
      %v1703 = vsel %vm1678, %v1696, %v1698
      %v1704 = vsel %vm1678, %v1698, %v1700
      %1709 = vst [vmem:[#allocation5 + $0x60] sm:$0xff] %v1701
      %1710 = vst [vmem:[#allocation5 + $0x68] sm:$0xff] %v1702
      %1711 = vst [vmem:[#allocation5 + $0x70] sm:$0xff] %v1703
      %1712 = vst [vmem:[#allocation5 + $0x78] sm:$0xff] %v1704
      %1713 = vrot.lane.b32.xlu0 %v396, 21
      %v1714 = vpop.permute.xlu0 %1713
      %1715 = vrot.lane.b32.xlu0 %v397, 21
      %v1716 = vpop.permute.xlu0 %1715
      %1717 = vrot.lane.b32.xlu0 %v398, 21
      %v1718 = vpop.permute.xlu0 %1717
      %1719 = vrot.lane.b32.xlu0 %v399, 21
      %v1720 = vpop.permute.xlu0 %1719
      %1721 = vrot.lane.b32.xlu0 %v400, 21
      %v1722 = vpop.permute.xlu0 %1721
      %vm1723 = vcmask 171008
      %v1724 = vsel %vm1723, %v1714, %v1716
      %v1725 = vsel %vm1723, %v1716, %v1718
      %v1726 = vsel %vm1723, %v1718, %v1720
      %v1727 = vsel %vm1723, %v1720, %v1722
      %1732 = vst [vmem:[#allocation3 + $0x80] sm:$0xff] %v1724
      %1733 = vst [vmem:[#allocation3 + $0x88] sm:$0xff] %v1725
      %1734 = vst [vmem:[#allocation3 + $0x90] sm:$0xff] %v1726
      %1735 = vst [vmem:[#allocation3 + $0x98] sm:$0xff] %v1727
      %1736 = vrot.lane.b32.xlu0 %v402, 21
      %v1737 = vpop.permute.xlu0 %1736
      %1738 = vrot.lane.b32.xlu0 %v403, 21
      %v1739 = vpop.permute.xlu0 %1738
      %1740 = vrot.lane.b32.xlu0 %v404, 21
      %v1741 = vpop.permute.xlu0 %1740
      %1742 = vrot.lane.b32.xlu0 %v405, 21
      %v1743 = vpop.permute.xlu0 %1742
      %1744 = vrot.lane.b32.xlu0 %v406, 21
      %v1745 = vpop.permute.xlu0 %1744
      %v1746 = vsel %vm1723, %v1737, %v1739
      %v1747 = vsel %vm1723, %v1739, %v1741
      %v1748 = vsel %vm1723, %v1741, %v1743
      %v1749 = vsel %vm1723, %v1743, %v1745
      %1754 = vst [vmem:[#allocation5 + $0x80] sm:$0xff] %v1746
      %1755 = vst [vmem:[#allocation5 + $0x88] sm:$0xff] %v1747
      %1756 = vst [vmem:[#allocation5 + $0x90] sm:$0xff] %v1748
      %1757 = vst [vmem:[#allocation5 + $0x98] sm:$0xff] %v1749
      %1758 = vrot.lane.b32.xlu0 %v396, 20
      %v1759 = vpop.permute.xlu0 %1758
      %1760 = vrot.lane.b32.xlu0 %v397, 20
      %v1761 = vpop.permute.xlu0 %1760
      %1762 = vrot.lane.b32.xlu0 %v398, 20
      %v1763 = vpop.permute.xlu0 %1762
      %1764 = vrot.lane.b32.xlu0 %v399, 20
      %v1765 = vpop.permute.xlu0 %1764
      %1766 = vrot.lane.b32.xlu0 %v400, 20
      %v1767 = vpop.permute.xlu0 %1766
      %vm1768 = vcmask 162816
      %v1769 = vsel %vm1768, %v1759, %v1761
      %v1770 = vsel %vm1768, %v1761, %v1763
      %v1771 = vsel %vm1768, %v1763, %v1765
      %v1772 = vsel %vm1768, %v1765, %v1767
      %1777 = vst [vmem:[#allocation3 + $0xa0] sm:$0xff] %v1769
      %1778 = vst [vmem:[#allocation3 + $0xa8] sm:$0xff] %v1770
      %1779 = vst [vmem:[#allocation3 + $0xb0] sm:$0xff] %v1771
      %1780 = vst [vmem:[#allocation3 + $0xb8] sm:$0xff] %v1772
      %1781 = vrot.lane.b32.xlu0 %v402, 20
      %v1782 = vpop.permute.xlu0 %1781
      %1783 = vrot.lane.b32.xlu0 %v403, 20
      %v1784 = vpop.permute.xlu0 %1783
      %1785 = vrot.lane.b32.xlu0 %v404, 20
      %v1786 = vpop.permute.xlu0 %1785
      %1787 = vrot.lane.b32.xlu0 %v405, 20
      %v1788 = vpop.permute.xlu0 %1787
      %1789 = vrot.lane.b32.xlu0 %v406, 20
      %v1790 = vpop.permute.xlu0 %1789
      %v1791 = vsel %vm1768, %v1782, %v1784
      %v1792 = vsel %vm1768, %v1784, %v1786
      %v1793 = vsel %vm1768, %v1786, %v1788
      %v1794 = vsel %vm1768, %v1788, %v1790
      %1799 = vst [vmem:[#allocation5 + $0xa0] sm:$0xff] %v1791
      %1800 = vst [vmem:[#allocation5 + $0xa8] sm:$0xff] %v1792
      %1801 = vst [vmem:[#allocation5 + $0xb0] sm:$0xff] %v1793
      %1802 = vst [vmem:[#allocation5 + $0xb8] sm:$0xff] %v1794
      %1803 = vrot.lane.b32.xlu0 %v396, 19
      %v1804 = vpop.permute.xlu0 %1803
      %1805 = vrot.lane.b32.xlu0 %v397, 19
      %v1806 = vpop.permute.xlu0 %1805
      %1807 = vrot.lane.b32.xlu0 %v398, 19
      %v1808 = vpop.permute.xlu0 %1807
      %1809 = vrot.lane.b32.xlu0 %v399, 19
      %v1810 = vpop.permute.xlu0 %1809
      %1811 = vrot.lane.b32.xlu0 %v400, 19
      %v1812 = vpop.permute.xlu0 %1811
      %vm1813 = vcmask 154624
      %v1814 = vsel %vm1813, %v1804, %v1806
      %v1815 = vsel %vm1813, %v1806, %v1808
      %v1816 = vsel %vm1813, %v1808, %v1810
      %v1817 = vsel %vm1813, %v1810, %v1812
      %1822 = vst [vmem:[#allocation3 + $0xc0] sm:$0xff] %v1814
      %1823 = vst [vmem:[#allocation3 + $0xc8] sm:$0xff] %v1815
      %1824 = vst [vmem:[#allocation3 + $0xd0] sm:$0xff] %v1816
      %1825 = vst [vmem:[#allocation3 + $0xd8] sm:$0xff] %v1817
      %1826 = vrot.lane.b32.xlu0 %v402, 19
      %v1827 = vpop.permute.xlu0 %1826
      %1828 = vrot.lane.b32.xlu0 %v403, 19
      %v1829 = vpop.permute.xlu0 %1828
      %1830 = vrot.lane.b32.xlu0 %v404, 19
      %v1831 = vpop.permute.xlu0 %1830
      %1832 = vrot.lane.b32.xlu0 %v405, 19
      %v1833 = vpop.permute.xlu0 %1832
      %1834 = vrot.lane.b32.xlu0 %v406, 19
      %v1835 = vpop.permute.xlu0 %1834
      %v1836 = vsel %vm1813, %v1827, %v1829
      %v1837 = vsel %vm1813, %v1829, %v1831
      %v1838 = vsel %vm1813, %v1831, %v1833
      %v1839 = vsel %vm1813, %v1833, %v1835
      %1844 = vst [vmem:[#allocation5 + $0xc0] sm:$0xff] %v1836
      %1845 = vst [vmem:[#allocation5 + $0xc8] sm:$0xff] %v1837
      %1846 = vst [vmem:[#allocation5 + $0xd0] sm:$0xff] %v1838
      %1847 = vst [vmem:[#allocation5 + $0xd8] sm:$0xff] %v1839
      %1848 = vrot.lane.b32.xlu0 %v396, 3
      %v1849 = vpop.permute.xlu0 %1848
      %1850 = vrot.lane.b32.xlu0 %v397, 3
      %v1851 = vpop.permute.xlu0 %1850
      %1852 = vrot.lane.b32.xlu0 %v398, 3
      %v1853 = vpop.permute.xlu0 %1852
      %1854 = vrot.lane.b32.xlu0 %v399, 3
      %v1855 = vpop.permute.xlu0 %1854
      %1856 = vrot.lane.b32.xlu0 %v400, 3
      %v1857 = vpop.permute.xlu0 %1856
      %vm1858 = vcmask 23552
      %v1859 = vsel %vm1858, %v1849, %v1851
      %v1860 = vsel %vm1858, %v1851, %v1853
      %v1861 = vsel %vm1858, %v1853, %v1855
      %v1862 = vsel %vm1858, %v1855, %v1857
      %1867 = vst [vmem:[#allocation3 + $0xe0] sm:$0xff] %v1859
      %1868 = vst [vmem:[#allocation3 + $0xe8] sm:$0xff] %v1860
      %1869 = vst [vmem:[#allocation3 + $0xf0] sm:$0xff] %v1861
      %1870 = vst [vmem:[#allocation3 + $0xf8] sm:$0xff] %v1862
      %1871 = vrot.lane.b32.xlu0 %v402, 3
      %v1872 = vpop.permute.xlu0 %1871
      %1873 = vrot.lane.b32.xlu0 %v403, 3
      %v1874 = vpop.permute.xlu0 %1873
      %1875 = vrot.lane.b32.xlu0 %v404, 3
      %v1876 = vpop.permute.xlu0 %1875
      %1877 = vrot.lane.b32.xlu0 %v405, 3
      %v1878 = vpop.permute.xlu0 %1877
      %1879 = vrot.lane.b32.xlu0 %v406, 3
      %v1880 = vpop.permute.xlu0 %1879
      %v1881 = vsel %vm1858, %v1872, %v1874
      %v1882 = vsel %vm1858, %v1874, %v1876
      %v1883 = vsel %vm1858, %v1876, %v1878
      %v1884 = vsel %vm1858, %v1878, %v1880
      %1889 = vst [vmem:[#allocation5 + $0xe0] sm:$0xff] %v1881
      %1890 = vst [vmem:[#allocation5 + $0xe8] sm:$0xff] %v1882
      %1891 = vst [vmem:[#allocation5 + $0xf0] sm:$0xff] %v1883
      %1892 = vst [vmem:[#allocation5 + $0xf8] sm:$0xff] %v1884
      %1893 = vrot.lane.b32.xlu0 %v396, 2
      %v1894 = vpop.permute.xlu0 %1893
      %1895 = vrot.lane.b32.xlu0 %v397, 2
      %v1896 = vpop.permute.xlu0 %1895
      %1897 = vrot.lane.b32.xlu0 %v398, 2
      %v1898 = vpop.permute.xlu0 %1897
      %1899 = vrot.lane.b32.xlu0 %v399, 2
      %v1900 = vpop.permute.xlu0 %1899
      %1901 = vrot.lane.b32.xlu0 %v400, 2
      %v1902 = vpop.permute.xlu0 %1901
      %vm1903 = vcmask 15360
      %v1904 = vsel %vm1903, %v1894, %v1896
      %v1905 = vsel %vm1903, %v1896, %v1898
      %v1906 = vsel %vm1903, %v1898, %v1900
      %v1907 = vsel %vm1903, %v1900, %v1902
      %1912 = vst [vmem:[#allocation3 + $0x100] sm:$0xff] %v1904
      %1913 = vst [vmem:[#allocation3 + $0x108] sm:$0xff] %v1905
      %1914 = vst [vmem:[#allocation3 + $0x110] sm:$0xff] %v1906
      %1915 = vst [vmem:[#allocation3 + $0x118] sm:$0xff] %v1907
      %1916 = vrot.lane.b32.xlu0 %v402, 2
      %v1917 = vpop.permute.xlu0 %1916
      %1918 = vrot.lane.b32.xlu0 %v403, 2
      %v1919 = vpop.permute.xlu0 %1918
      %1920 = vrot.lane.b32.xlu0 %v404, 2
      %v1921 = vpop.permute.xlu0 %1920
      %1922 = vrot.lane.b32.xlu0 %v405, 2
      %v1923 = vpop.permute.xlu0 %1922
      %1924 = vrot.lane.b32.xlu0 %v406, 2
      %v1925 = vpop.permute.xlu0 %1924
      %v1926 = vsel %vm1903, %v1917, %v1919
      %v1927 = vsel %vm1903, %v1919, %v1921
      %v1928 = vsel %vm1903, %v1921, %v1923
      %v1929 = vsel %vm1903, %v1923, %v1925
      %1934 = vst [vmem:[#allocation5 + $0x100] sm:$0xff] %v1926
      %1935 = vst [vmem:[#allocation5 + $0x108] sm:$0xff] %v1927
      %1936 = vst [vmem:[#allocation5 + $0x110] sm:$0xff] %v1928
      %1937 = vst [vmem:[#allocation5 + $0x118] sm:$0xff] %v1929
      %1938 = vrot.lane.b32.xlu0 %v396, 1
      %v1939 = vpop.permute.xlu0 %1938
      %1940 = vrot.lane.b32.xlu0 %v397, 1
      %v1941 = vpop.permute.xlu0 %1940
      %1942 = vrot.lane.b32.xlu0 %v398, 1
      %v1943 = vpop.permute.xlu0 %1942
      %1944 = vrot.lane.b32.xlu0 %v399, 1
      %v1945 = vpop.permute.xlu0 %1944
      %1946 = vrot.lane.b32.xlu0 %v400, 1
      %v1947 = vpop.permute.xlu0 %1946
      %vm1948 = vcmask 7168
      %v1949 = vsel %vm1948, %v1939, %v1941
      %v1950 = vsel %vm1948, %v1941, %v1943
      %v1951 = vsel %vm1948, %v1943, %v1945
      %v1952 = vsel %vm1948, %v1945, %v1947
      %1957 = vst [vmem:[#allocation3 + $0x120] sm:$0xff] %v1949
      %1958 = vst [vmem:[#allocation3 + $0x128] sm:$0xff] %v1950
      %1959 = vst [vmem:[#allocation3 + $0x130] sm:$0xff] %v1951
      %1960 = vst [vmem:[#allocation3 + $0x138] sm:$0xff] %v1952
      %1961 = vrot.lane.b32.xlu0 %v402, 1
      %v1962 = vpop.permute.xlu0 %1961
      %1963 = vrot.lane.b32.xlu0 %v403, 1
      %v1964 = vpop.permute.xlu0 %1963
      %1965 = vrot.lane.b32.xlu0 %v404, 1
      %v1966 = vpop.permute.xlu0 %1965
      %1967 = vrot.lane.b32.xlu0 %v405, 1
      %v1968 = vpop.permute.xlu0 %1967
      %1969 = vrot.lane.b32.xlu0 %v406, 1
      %v1970 = vpop.permute.xlu0 %1969
      %v1971 = vsel %vm1948, %v1962, %v1964
      %v1972 = vsel %vm1948, %v1964, %v1966
      %v1973 = vsel %vm1948, %v1966, %v1968
      %v1974 = vsel %vm1948, %v1968, %v1970
      %1979 = vst [vmem:[#allocation5 + $0x120] sm:$0xff] %v1971
      %1980 = vst [vmem:[#allocation5 + $0x128] sm:$0xff] %v1972
      %1981 = vst [vmem:[#allocation5 + $0x130] sm:$0xff] %v1973
      %1982 = vst [vmem:[#allocation5 + $0x138] sm:$0xff] %v1974
      %1983 = vst [vmem:[#allocation3 + $0x140] sm:$0xff] %v397
      %1984 = vst [vmem:[#allocation3 + $0x148] sm:$0xff] %v398
      %1985 = vst [vmem:[#allocation3 + $0x150] sm:$0xff] %v399
      %1986 = vst [vmem:[#allocation3 + $0x158] sm:$0xff] %v400
      %1987 = vst [vmem:[#allocation5 + $0x140] sm:$0xff] %v403
      %1988 = vst [vmem:[#allocation5 + $0x148] sm:$0xff] %v404
      %1989 = vst [vmem:[#allocation5 + $0x150] sm:$0xff] %v405
      %1990 = vst [vmem:[#allocation5 + $0x158] sm:$0xff] %v406
      %1992 = vrot.lane.b32.xlu0 %v397, 127
      %v1993 = vpop.permute.xlu0 %1992
      %1994 = vrot.lane.b32.xlu0 %v398, 127
      %v1995 = vpop.permute.xlu0 %1994
      %1996 = vrot.lane.b32.xlu0 %v399, 127
      %v1997 = vpop.permute.xlu0 %1996
      %1998 = vrot.lane.b32.xlu0 %v400, 127
      %v1999 = vpop.permute.xlu0 %1998
      %2000 = vrot.lane.b32.xlu0 %v401, 127
      %v2001 = vpop.permute.xlu0 %2000
      %vm2002 = vcmask 1039360
      %v2003 = vsel %vm2002, %v1993, %v1995
      %v2004 = vsel %vm2002, %v1995, %v1997
      %v2005 = vsel %vm2002, %v1997, %v1999
      %v2006 = vsel %vm2002, %v1999, %v2001
      %2011 = vst [vmem:[#allocation3 + $0x160] sm:$0xff] %v2003
      %2012 = vst [vmem:[#allocation3 + $0x168] sm:$0xff] %v2004
      %2013 = vst [vmem:[#allocation3 + $0x170] sm:$0xff] %v2005
      %2014 = vst [vmem:[#allocation3 + $0x178] sm:$0xff] %v2006
      %2016 = vrot.lane.b32.xlu0 %v403, 127
      %v2017 = vpop.permute.xlu0 %2016
      %2018 = vrot.lane.b32.xlu0 %v404, 127
      %v2019 = vpop.permute.xlu0 %2018
      %2020 = vrot.lane.b32.xlu0 %v405, 127
      %v2021 = vpop.permute.xlu0 %2020
      %2022 = vrot.lane.b32.xlu0 %v406, 127
      %v2023 = vpop.permute.xlu0 %2022
      %2024 = vrot.lane.b32.xlu0 %v407, 127
      %v2025 = vpop.permute.xlu0 %2024
      %v2026 = vsel %vm2002, %v2017, %v2019
      %v2027 = vsel %vm2002, %v2019, %v2021
      %v2028 = vsel %vm2002, %v2021, %v2023
      %v2029 = vsel %vm2002, %v2023, %v2025
      %2034 = vst [vmem:[#allocation5 + $0x160] sm:$0xff] %v2026
      %2035 = vst [vmem:[#allocation5 + $0x168] sm:$0xff] %v2027
      %2036 = vst [vmem:[#allocation5 + $0x170] sm:$0xff] %v2028
      %2037 = vst [vmem:[#allocation5 + $0x178] sm:$0xff] %v2029
      %2038 = vrot.lane.b32.xlu0 %v397, 126
      %v2039 = vpop.permute.xlu0 %2038
      %2040 = vrot.lane.b32.xlu0 %v398, 126
      %v2041 = vpop.permute.xlu0 %2040
      %2042 = vrot.lane.b32.xlu0 %v399, 126
      %v2043 = vpop.permute.xlu0 %2042
      %2044 = vrot.lane.b32.xlu0 %v400, 126
      %v2045 = vpop.permute.xlu0 %2044
      %2046 = vrot.lane.b32.xlu0 %v401, 126
      %v2047 = vpop.permute.xlu0 %2046
      %vm2048 = vcmask 1031168
      %v2049 = vsel %vm2048, %v2039, %v2041
      %v2050 = vsel %vm2048, %v2041, %v2043
      %v2051 = vsel %vm2048, %v2043, %v2045
      %v2052 = vsel %vm2048, %v2045, %v2047
      %2057 = vst [vmem:[#allocation3 + $0x180] sm:$0xff] %v2049
      %2058 = vst [vmem:[#allocation3 + $0x188] sm:$0xff] %v2050
      %2059 = vst [vmem:[#allocation3 + $0x190] sm:$0xff] %v2051
      %2060 = vst [vmem:[#allocation3 + $0x198] sm:$0xff] %v2052
      %2061 = vrot.lane.b32.xlu0 %v403, 126
      %v2062 = vpop.permute.xlu0 %2061
      %2063 = vrot.lane.b32.xlu0 %v404, 126
      %v2064 = vpop.permute.xlu0 %2063
      %2065 = vrot.lane.b32.xlu0 %v405, 126
      %v2066 = vpop.permute.xlu0 %2065
      %2067 = vrot.lane.b32.xlu0 %v406, 126
      %v2068 = vpop.permute.xlu0 %2067
      %2069 = vrot.lane.b32.xlu0 %v407, 126
      %v2070 = vpop.permute.xlu0 %2069
      %v2071 = vsel %vm2048, %v2062, %v2064
      %v2072 = vsel %vm2048, %v2064, %v2066
      %v2073 = vsel %vm2048, %v2066, %v2068
      %v2074 = vsel %vm2048, %v2068, %v2070
      %2079 = vst [vmem:[#allocation5 + $0x180] sm:$0xff] %v2071
      %2080 = vst [vmem:[#allocation5 + $0x188] sm:$0xff] %v2072
      %2081 = vst [vmem:[#allocation5 + $0x190] sm:$0xff] %v2073
      %2082 = vst [vmem:[#allocation5 + $0x198] sm:$0xff] %v2074
      %2083 = vrot.lane.b32.xlu0 %v397, 125
      %v2084 = vpop.permute.xlu0 %2083
      %2085 = vrot.lane.b32.xlu0 %v398, 125
      %v2086 = vpop.permute.xlu0 %2085
      %2087 = vrot.lane.b32.xlu0 %v399, 125
      %v2088 = vpop.permute.xlu0 %2087
      %2089 = vrot.lane.b32.xlu0 %v400, 125
      %v2090 = vpop.permute.xlu0 %2089
      %2091 = vrot.lane.b32.xlu0 %v401, 125
      %v2092 = vpop.permute.xlu0 %2091
      %vm2093 = vcmask 1022976
      %v2094 = vsel %vm2093, %v2084, %v2086
      %v2095 = vsel %vm2093, %v2086, %v2088
      %v2096 = vsel %vm2093, %v2088, %v2090
      %v2097 = vsel %vm2093, %v2090, %v2092
      %2102 = vst [vmem:[#allocation3 + $0x1a0] sm:$0xff] %v2094
      %2103 = vst [vmem:[#allocation3 + $0x1a8] sm:$0xff] %v2095
      %2104 = vst [vmem:[#allocation3 + $0x1b0] sm:$0xff] %v2096
      %2105 = vst [vmem:[#allocation3 + $0x1b8] sm:$0xff] %v2097
      %2106 = vrot.lane.b32.xlu0 %v403, 125
      %v2107 = vpop.permute.xlu0 %2106
      %2108 = vrot.lane.b32.xlu0 %v404, 125
      %v2109 = vpop.permute.xlu0 %2108
      %2110 = vrot.lane.b32.xlu0 %v405, 125
      %v2111 = vpop.permute.xlu0 %2110
      %2112 = vrot.lane.b32.xlu0 %v406, 125
      %v2113 = vpop.permute.xlu0 %2112
      %2114 = vrot.lane.b32.xlu0 %v407, 125
      %v2115 = vpop.permute.xlu0 %2114
      %v2116 = vsel %vm2093, %v2107, %v2109
      %v2117 = vsel %vm2093, %v2109, %v2111
      %v2118 = vsel %vm2093, %v2111, %v2113
      %v2119 = vsel %vm2093, %v2113, %v2115
      %2124 = vst [vmem:[#allocation5 + $0x1a0] sm:$0xff] %v2116
      %2125 = vst [vmem:[#allocation5 + $0x1a8] sm:$0xff] %v2117
      %2126 = vst [vmem:[#allocation5 + $0x1b0] sm:$0xff] %v2118
      %2127 = vst [vmem:[#allocation5 + $0x1b8] sm:$0xff] %v2119
      %v2128 = vld [vmem:[%s2] sm:$0xff]
      %v2129 = vld [vmem:[%s2 + $0x8] sm:$0xff]
      %v2130 = vld [vmem:[%s2 + $0x20] sm:$0xff]
      %v2131 = vld [vmem:[%s2 + $0x28] sm:$0xff]
      %v2132 = vld [vmem:[%s2 + $0x40] sm:$0xff]
      %v2133 = vld [vmem:[%s2 + $0x48] sm:$0xff]
      %v2134 = vld [vmem:[%s2 + $0x60] sm:$0xff]
      %v2135 = vld [vmem:[%s2 + $0x68] sm:$0xff]
      %v2136 = vld [vmem:[#allocation3] sm:$0xff]
      %v2137 = vld [vmem:[#allocation3 + $0x8] sm:$0xff]
      %v2138 = vld [vmem:[#allocation3 + $0x10] sm:$0xff]
      %v2139 = vld [vmem:[#allocation3 + $0x18] sm:$0xff]
      %v2140 = vld [vmem:[#allocation3 + $0x20] sm:$0xff]
      %v2141 = vld [vmem:[#allocation3 + $0x28] sm:$0xff]
      %v2142 = vld [vmem:[#allocation3 + $0x30] sm:$0xff]
      %v2143 = vld [vmem:[#allocation3 + $0x38] sm:$0xff]
      %v2144 = vld [vmem:[#allocation3 + $0x40] sm:$0xff]
      %v2145 = vld [vmem:[#allocation3 + $0x48] sm:$0xff]
      %v2146 = vld [vmem:[#allocation3 + $0x50] sm:$0xff]
      %v2147 = vld [vmem:[#allocation3 + $0x58] sm:$0xff]
      %v2148 = vld [vmem:[#allocation3 + $0x60] sm:$0xff]
      %v2149 = vld [vmem:[#allocation3 + $0x68] sm:$0xff]
      %v2150 = vld [vmem:[#allocation3 + $0x70] sm:$0xff]
      %v2151 = vld [vmem:[#allocation3 + $0x78] sm:$0xff]
      %v2152 = vld [vmem:[#allocation3 + $0x80] sm:$0xff]
      %v2153 = vld [vmem:[#allocation3 + $0x88] sm:$0xff]
      %v2154 = vld [vmem:[#allocation3 + $0x90] sm:$0xff]
      %v2155 = vld [vmem:[#allocation3 + $0x98] sm:$0xff]
      %v2156 = vld [vmem:[#allocation3 + $0xa0] sm:$0xff]
      %v2157 = vld [vmem:[#allocation3 + $0xa8] sm:$0xff]
      %v2158 = vld [vmem:[#allocation3 + $0xb0] sm:$0xff]
      %v2159 = vld [vmem:[#allocation3 + $0xb8] sm:$0xff]
      %v2160 = vld [vmem:[#allocation3 + $0xc0] sm:$0xff]
      %v2161 = vld [vmem:[#allocation3 + $0xc8] sm:$0xff]
      %v2162 = vld [vmem:[#allocation3 + $0xd0] sm:$0xff]
      %v2163 = vld [vmem:[#allocation3 + $0xd8] sm:$0xff]
      %v2164 = vld [vmem:[#allocation3 + $0xe0] sm:$0xff]
      %v2165 = vld [vmem:[#allocation3 + $0xe8] sm:$0xff]
      %v2166 = vld [vmem:[#allocation3 + $0xf0] sm:$0xff]
      %v2167 = vld [vmem:[#allocation3 + $0xf8] sm:$0xff]
      %v2168 = vld [vmem:[#allocation3 + $0x100] sm:$0xff]
      %v2169 = vld [vmem:[#allocation3 + $0x108] sm:$0xff]
      %v2170 = vld [vmem:[#allocation3 + $0x110] sm:$0xff]
      %v2171 = vld [vmem:[#allocation3 + $0x118] sm:$0xff]
      %v2172 = vld [vmem:[#allocation3 + $0x120] sm:$0xff]
      %v2173 = vld [vmem:[#allocation3 + $0x128] sm:$0xff]
      %v2174 = vld [vmem:[#allocation3 + $0x130] sm:$0xff]
      %v2175 = vld [vmem:[#allocation3 + $0x138] sm:$0xff]
      %v2176 = vld [vmem:[#allocation3 + $0x140] sm:$0xff]
      %v2177 = vld [vmem:[#allocation3 + $0x148] sm:$0xff]
      %v2178 = vld [vmem:[#allocation3 + $0x150] sm:$0xff]
      %v2179 = vld [vmem:[#allocation3 + $0x158] sm:$0xff]
      %v2180 = vld [vmem:[#allocation3 + $0x160] sm:$0xff]
      %v2181 = vld [vmem:[#allocation3 + $0x168] sm:$0xff]
      %v2182 = vld [vmem:[#allocation3 + $0x170] sm:$0xff]
      %v2183 = vld [vmem:[#allocation3 + $0x178] sm:$0xff]
      %v2184 = vld [vmem:[#allocation3 + $0x180] sm:$0xff]
      %v2185 = vld [vmem:[#allocation3 + $0x188] sm:$0xff]
      %v2186 = vld [vmem:[#allocation3 + $0x190] sm:$0xff]
      %v2187 = vld [vmem:[#allocation3 + $0x198] sm:$0xff]
      %v2188 = vld [vmem:[#allocation3 + $0x1a0] sm:$0xff]
      %v2189 = vld [vmem:[#allocation3 + $0x1a8] sm:$0xff]
      %v2190 = vld [vmem:[#allocation3 + $0x1b0] sm:$0xff]
      %v2191 = vld [vmem:[#allocation3 + $0x1b8] sm:$0xff]
      %2200 = vrot.lane.b32.xlu0 %v2128, 16
      %v2201 = vpop.permute.xlu0 %2200
      %2202 = vrot.lane.b32.xlu0 %v2129, 16
      %v2203 = vpop.permute.xlu0 %2202
      %2204 = vrot.lane.b32.xlu0 %v2130, 16
      %v2205 = vpop.permute.xlu0 %2204
      %2206 = vrot.lane.b32.xlu0 %v2131, 16
      %v2207 = vpop.permute.xlu0 %2206
      %2208 = vrot.lane.b32.xlu0 %v2132, 16
      %v2209 = vpop.permute.xlu0 %2208
      %2210 = vrot.lane.b32.xlu0 %v2133, 16
      %v2211 = vpop.permute.xlu0 %2210
      %2212 = vrot.lane.b32.xlu0 %v2134, 16
      %v2213 = vpop.permute.xlu0 %2212
      %2214 = vrot.lane.b32.xlu0 %v2135, 16
      %v2215 = vpop.permute.xlu0 %2214
      %vm2216 = vcmask 130048
      %v2217 = vsel %vm2216, %v2201, %v2203
      %v2218 = vsel %vm2216, %v2205, %v2207
      %v2219 = vsel %vm2216, %v2209, %v2211
      %v2220 = vsel %vm2216, %v2213, %v2215
      %v2221 = vsel %vm1108, %v2217, 0
      %v2223 = vsel %vm1108, %v2218, 0
      %v2225 = vsel %vm1108, %v2219, 0
      %v2227 = vsel %vm1108, %v2220, 0
      %2229 = vmatprep.subr.mxu0 %v2137
      %2230 = vmatpush1.msra.mxu0 %v2136
      %2231 = vmatprep.subr.mxu0 %v2141
      %2232 = vmatpush1.msra.mxu0 %v2140
      %2233 = vmatprep.subr.mxu0 %v2145
      %2234 = vmatpush1.msra.mxu0 %v2144
      %2235 = vmatprep.subr.mxu0 %v2149
      %2236 = vmatpush1.msra.mxu0 %v2148
      %2237 = vmatprep.subr.mxu0 %v2153
      %2238 = vmatpush1.msra.mxu0 %v2152
      %2239 = vmatprep.subr.mxu0 %v2157
      %2240 = vmatpush1.msra.mxu0 %v2156
      %2241 = vmatprep.subr.mxu0 %v2161
      %2242 = vmatpush1.msra.mxu0 %v2160
      %2243 = vmatprep.subr.mxu0 %v2165
      %2244 = vmatpush1.msra.mxu0 %v2164
      %2245 = vmatprep.subr.mxu0 %v2169
      %2246 = vmatpush1.msra.mxu0 %v2168
      %2247 = vmatprep.subr.mxu0 %v2173
      %2248 = vmatpush1.msra.mxu0 %v2172
      %2249 = vmatprep.subr.mxu0 %v2177
      %2250 = vmatpush1.msra.mxu0 %v2176
      %2251 = vmatprep.subr.mxu0 %v2181
      %2252 = vmatpush1.msra.mxu0 %v2180
      %2253 = vmatprep.subr.mxu0 %v2185
      %2254 = vmatpush1.msra.mxu0 %v2184
      %2255 = vmatprep.subr.mxu0 %v2189
      %2256 = vmatpush1.msra.mxu0 %v2188
      %2257 = vmatprep.subr.mxu0 0.0
      %2258 = vmatpush1.msra.mxu0 0.0
      %2259 = vmatprep.subr.mxu0 0.0
      %2260 = vmatpush1.msra.mxu0 0.0
      %2261 = vmatprep.subr.mxu0 0.0
      %2262 = vmatpush1.msra.mxu0 0.0
      %2263 = vmatprep.subr.mxu0 0.0
      %2264 = vmatpush1.msra.mxu0 0.0
      %2265 = vmatprep.subr.mxu0 0.0
      %2266 = vmatpush1.msra.mxu0 0.0
      %2267 = vmatprep.subr.mxu0 0.0
      %2268 = vmatpush1.msra.mxu0 0.0
      %2269 = vmatprep.subr.mxu0 0.0
      %2270 = vmatpush1.msra.mxu0 0.0
      %2271 = vmatprep.subr.mxu0 0.0
      %2272 = vmatpush1.msra.mxu0 0.0
      %2273 = vmatprep.subr.mxu0 0.0
      %2274 = vmatpush1.msra.mxu0 0.0
      %2275 = vmatprep.subr.mxu0 0.0
      %2276 = vmatpush1.msra.mxu0 0.0
      %2277 = vmatprep.subr.mxu0 0.0
      %2278 = vmatpush1.msra.mxu0 0.0
      %2279 = vmatprep.subr.mxu0 0.0
      %2280 = vmatpush1.msra.mxu0 0.0
      %2281 = vmatprep.subr.mxu0 0.0
      %2282 = vmatpush1.msra.mxu0 0.0
      %2283 = vmatprep.subr.mxu0 0.0
      %2284 = vmatpush1.msra.mxu0 0.0
      %2285 = vmatprep.subr.mxu0 0.0
      %2286 = vmatpush1.msra.mxu0 0.0
      %2287 = vmatprep.subr.mxu0 0.0
      %2288 = vmatpush1.msra.mxu0 0.0
      %2289 = vmatprep.subr.mxu0 0.0
      %2290 = vmatpush1.msra.mxu0 0.0
      %2291 = vmatprep.subr.mxu0 0.0
      %2292 = vmatpush1.msra.mxu0 0.0
      %2293 = vmatprep.mubr.f32.mxu0 0.0
      %2294 = vmatmul.mubr.f32.gmra.mrb[0].mxu0 %v2221
      %v2295 = vpop.f32.mrb[0].mxu0
      %v2296 = vadd.f32 0.0, %v2295
      %v2297 = vpop.f32.mrb[0].mxu0
      %v2298 = vadd.f32 0.0, %v2297
      %2299 = vmatprep.mubr.f32.mxu0 0.0
      %2300 = vmatmul.mubr.f32.gmra.mrb[0].mxu0 %v2223
      %v2301 = vpop.f32.mrb[0].mxu0
      %v2302 = vadd.f32 0.0, %v2301
      %v2303 = vpop.f32.mrb[0].mxu0
      %v2304 = vadd.f32 0.0, %v2303
      %2305 = vmatprep.mubr.f32.mxu0 0.0
      %2306 = vmatmul.mubr.f32.gmra.mrb[0].mxu0 %v2225
      %v2307 = vpop.f32.mrb[0].mxu0
      %v2308 = vadd.f32 0.0, %v2307
      %v2309 = vpop.f32.mrb[0].mxu0
      %v2310 = vadd.f32 0.0, %v2309
      %2311 = vmatprep.mubr.f32.mxu0 0.0
      %2312 = vmatmul.mubr.f32.gmra.mrb[0].mxu0 %v2227
      %v2313 = vpop.f32.mrb[0].mxu0
      %v2314 = vadd.f32 0.0, %v2313
      %v2315 = vpop.f32.mrb[0].mxu0
      %v2316 = vadd.f32 0.0, %v2315
      %2317 = vdwg.mxu0
      %2318 = vmatprep.subr.mxu0 %v2139
      %2319 = vmatpush1.msra.mxu0 %v2138
      %2320 = vmatprep.subr.mxu0 %v2143
      %2321 = vmatpush1.msra.mxu0 %v2142
      %2322 = vmatprep.subr.mxu0 %v2147
      %2323 = vmatpush1.msra.mxu0 %v2146
      %2324 = vmatprep.subr.mxu0 %v2151
      %2325 = vmatpush1.msra.mxu0 %v2150
      %2326 = vmatprep.subr.mxu0 %v2155
      %2327 = vmatpush1.msra.mxu0 %v2154
      %2328 = vmatprep.subr.mxu0 %v2159
      %2329 = vmatpush1.msra.mxu0 %v2158
      %2330 = vmatprep.subr.mxu0 %v2163
      %2331 = vmatpush1.msra.mxu0 %v2162
      %2332 = vmatprep.subr.mxu0 %v2167
      %2333 = vmatpush1.msra.mxu0 %v2166
      %2334 = vmatprep.subr.mxu0 %v2171
      %2335 = vmatpush1.msra.mxu0 %v2170
      %2336 = vmatprep.subr.mxu0 %v2175
      %2337 = vmatpush1.msra.mxu0 %v2174
      %2338 = vmatprep.subr.mxu0 %v2179
      %2339 = vmatpush1.msra.mxu0 %v2178
      %2340 = vmatprep.subr.mxu0 %v2183
      %2341 = vmatpush1.msra.mxu0 %v2182
      %2342 = vmatprep.subr.mxu0 %v2187
      %2343 = vmatpush1.msra.mxu0 %v2186
      %2344 = vmatprep.subr.mxu0 %v2191
      %2345 = vmatpush1.msra.mxu0 %v2190
      %2346 = vmatprep.subr.mxu0 0.0
      %2347 = vmatpush1.msra.mxu0 0.0
      %2348 = vmatprep.subr.mxu0 0.0
      %2349 = vmatpush1.msra.mxu0 0.0
      %2350 = vmatprep.subr.mxu0 0.0
      %2351 = vmatpush1.msra.mxu0 0.0
      %2352 = vmatprep.subr.mxu0 0.0
      %2353 = vmatpush1.msra.mxu0 0.0
      %2354 = vmatprep.subr.mxu0 0.0
      %2355 = vmatpush1.msra.mxu0 0.0
      %2356 = vmatprep.subr.mxu0 0.0
      %2357 = vmatpush1.msra.mxu0 0.0
      %2358 = vmatprep.subr.mxu0 0.0
      %2359 = vmatpush1.msra.mxu0 0.0
      %2360 = vmatprep.subr.mxu0 0.0
      %2361 = vmatpush1.msra.mxu0 0.0
      %2362 = vmatprep.subr.mxu0 0.0
      %2363 = vmatpush1.msra.mxu0 0.0
      %2364 = vmatprep.subr.mxu0 0.0
      %2365 = vmatpush1.msra.mxu0 0.0
      %2366 = vmatprep.subr.mxu0 0.0
      %2367 = vmatpush1.msra.mxu0 0.0
      %2368 = vmatprep.subr.mxu0 0.0
      %2369 = vmatpush1.msra.mxu0 0.0
      %2370 = vmatprep.subr.mxu0 0.0
      %2371 = vmatpush1.msra.mxu0 0.0
      %2372 = vmatprep.subr.mxu0 0.0
      %2373 = vmatpush1.msra.mxu0 0.0
      %2374 = vmatprep.subr.mxu0 0.0
      %2375 = vmatpush1.msra.mxu0 0.0
      %2376 = vmatprep.subr.mxu0 0.0
      %2377 = vmatpush1.msra.mxu0 0.0
      %2378 = vmatprep.subr.mxu0 0.0
      %2379 = vmatpush1.msra.mxu0 0.0
      %2380 = vmatprep.subr.mxu0 0.0
      %2381 = vmatpush1.msra.mxu0 0.0
      %2382 = vmatprep.mubr.f32.mxu0 0.0
      %2383 = vmatmul.mubr.f32.gmra.mrb[0].mxu0 %v2221
      %v2384 = vpop.f32.mrb[0].mxu0
      %v2385 = vadd.f32 0.0, %v2384
      %v2386 = vpop.f32.mrb[0].mxu0
      %v2387 = vadd.f32 0.0, %v2386
      %2388 = vmatprep.mubr.f32.mxu0 0.0
      %2389 = vmatmul.mubr.f32.gmra.mrb[0].mxu0 %v2223
      %v2390 = vpop.f32.mrb[0].mxu0
      %v2391 = vadd.f32 0.0, %v2390
      %v2392 = vpop.f32.mrb[0].mxu0
      %v2393 = vadd.f32 0.0, %v2392
      %2394 = vmatprep.mubr.f32.mxu0 0.0
      %2395 = vmatmul.mubr.f32.gmra.mrb[0].mxu0 %v2225
      %v2396 = vpop.f32.mrb[0].mxu0
      %v2397 = vadd.f32 0.0, %v2396
      %v2398 = vpop.f32.mrb[0].mxu0
      %v2399 = vadd.f32 0.0, %v2398
      %2400 = vmatprep.mubr.f32.mxu0 0.0
      %2401 = vmatmul.mubr.f32.gmra.mrb[0].mxu0 %v2227
      %v2402 = vpop.f32.mrb[0].mxu0
      %v2403 = vadd.f32 0.0, %v2402
      %v2404 = vpop.f32.mrb[0].mxu0
      %v2405 = vadd.f32 0.0, %v2404
      %2406 = vdwg.mxu0
      %v2407 = vld [vmem:[#allocation5] sm:$0xff]
      %v2408 = vld [vmem:[#allocation5 + $0x8] sm:$0xff]
      %v2409 = vld [vmem:[#allocation5 + $0x10] sm:$0xff]
      %v2410 = vld [vmem:[#allocation5 + $0x18] sm:$0xff]
      %v2411 = vld [vmem:[#allocation5 + $0x20] sm:$0xff]
      %v2412 = vld [vmem:[#allocation5 + $0x28] sm:$0xff]
      %v2413 = vld [vmem:[#allocation5 + $0x30] sm:$0xff]
      %v2414 = vld [vmem:[#allocation5 + $0x38] sm:$0xff]
      %v2415 = vld [vmem:[#allocation5 + $0x40] sm:$0xff]
      %v2416 = vld [vmem:[#allocation5 + $0x48] sm:$0xff]
      %v2417 = vld [vmem:[#allocation5 + $0x50] sm:$0xff]
      %v2418 = vld [vmem:[#allocation5 + $0x58] sm:$0xff]
      %v2419 = vld [vmem:[#allocation5 + $0x60] sm:$0xff]
      %v2420 = vld [vmem:[#allocation5 + $0x68] sm:$0xff]
      %v2421 = vld [vmem:[#allocation5 + $0x70] sm:$0xff]
      %v2422 = vld [vmem:[#allocation5 + $0x78] sm:$0xff]
      %v2423 = vld [vmem:[#allocation5 + $0x80] sm:$0xff]
      %v2424 = vld [vmem:[#allocation5 + $0x88] sm:$0xff]
      %v2425 = vld [vmem:[#allocation5 + $0x90] sm:$0xff]
      %v2426 = vld [vmem:[#allocation5 + $0x98] sm:$0xff]
      %v2427 = vld [vmem:[#allocation5 + $0xa0] sm:$0xff]
      %v2428 = vld [vmem:[#allocation5 + $0xa8] sm:$0xff]
      %v2429 = vld [vmem:[#allocation5 + $0xb0] sm:$0xff]
      %v2430 = vld [vmem:[#allocation5 + $0xb8] sm:$0xff]
      %v2431 = vld [vmem:[#allocation5 + $0xc0] sm:$0xff]
      %v2432 = vld [vmem:[#allocation5 + $0xc8] sm:$0xff]
      %v2433 = vld [vmem:[#allocation5 + $0xd0] sm:$0xff]
      %v2434 = vld [vmem:[#allocation5 + $0xd8] sm:$0xff]
      %v2435 = vld [vmem:[#allocation5 + $0xe0] sm:$0xff]
      %v2436 = vld [vmem:[#allocation5 + $0xe8] sm:$0xff]
      %v2437 = vld [vmem:[#allocation5 + $0xf0] sm:$0xff]
      %v2438 = vld [vmem:[#allocation5 + $0xf8] sm:$0xff]
      %v2439 = vld [vmem:[#allocation5 + $0x100] sm:$0xff]
      %v2440 = vld [vmem:[#allocation5 + $0x108] sm:$0xff]
      %v2441 = vld [vmem:[#allocation5 + $0x110] sm:$0xff]
      %v2442 = vld [vmem:[#allocation5 + $0x118] sm:$0xff]
      %v2443 = vld [vmem:[#allocation5 + $0x120] sm:$0xff]
      %v2444 = vld [vmem:[#allocation5 + $0x128] sm:$0xff]
      %v2445 = vld [vmem:[#allocation5 + $0x130] sm:$0xff]
      %v2446 = vld [vmem:[#allocation5 + $0x138] sm:$0xff]
      %v2447 = vld [vmem:[#allocation5 + $0x140] sm:$0xff]
      %v2448 = vld [vmem:[#allocation5 + $0x148] sm:$0xff]
      %v2449 = vld [vmem:[#allocation5 + $0x150] sm:$0xff]
      %v2450 = vld [vmem:[#allocation5 + $0x158] sm:$0xff]
      %v2451 = vld [vmem:[#allocation5 + $0x160] sm:$0xff]
      %v2452 = vld [vmem:[#allocation5 + $0x168] sm:$0xff]
      %v2453 = vld [vmem:[#allocation5 + $0x170] sm:$0xff]
      %v2454 = vld [vmem:[#allocation5 + $0x178] sm:$0xff]
      %v2455 = vld [vmem:[#allocation5 + $0x180] sm:$0xff]
      %v2456 = vld [vmem:[#allocation5 + $0x188] sm:$0xff]
      %v2457 = vld [vmem:[#allocation5 + $0x190] sm:$0xff]
      %v2458 = vld [vmem:[#allocation5 + $0x198] sm:$0xff]
      %v2459 = vld [vmem:[#allocation5 + $0x1a0] sm:$0xff]
      %v2460 = vld [vmem:[#allocation5 + $0x1a8] sm:$0xff]
      %v2461 = vld [vmem:[#allocation5 + $0x1b0] sm:$0xff]
      %v2462 = vld [vmem:[#allocation5 + $0x1b8] sm:$0xff]
      %2463 = vmatprep.subr.mxu0 %v2408
      %2464 = vmatpush1.msra.mxu0 %v2407
      %2465 = vmatprep.subr.mxu0 %v2412
      %2466 = vmatpush1.msra.mxu0 %v2411
      %2467 = vmatprep.subr.mxu0 %v2416
      %2468 = vmatpush1.msra.mxu0 %v2415
      %2469 = vmatprep.subr.mxu0 %v2420
      %2470 = vmatpush1.msra.mxu0 %v2419
      %2471 = vmatprep.subr.mxu0 %v2424
      %2472 = vmatpush1.msra.mxu0 %v2423
      %2473 = vmatprep.subr.mxu0 %v2428
      %2474 = vmatpush1.msra.mxu0 %v2427
      %2475 = vmatprep.subr.mxu0 %v2432
      %2476 = vmatpush1.msra.mxu0 %v2431
      %2477 = vmatprep.subr.mxu0 %v2436
      %2478 = vmatpush1.msra.mxu0 %v2435
      %2479 = vmatprep.subr.mxu0 %v2440
      %2480 = vmatpush1.msra.mxu0 %v2439
      %2481 = vmatprep.subr.mxu0 %v2444
      %2482 = vmatpush1.msra.mxu0 %v2443
      %2483 = vmatprep.subr.mxu0 %v2448
      %2484 = vmatpush1.msra.mxu0 %v2447
      %2485 = vmatprep.subr.mxu0 %v2452
      %2486 = vmatpush1.msra.mxu0 %v2451
      %2487 = vmatprep.subr.mxu0 %v2456
      %2488 = vmatpush1.msra.mxu0 %v2455
      %2489 = vmatprep.subr.mxu0 %v2460
      %2490 = vmatpush1.msra.mxu0 %v2459
      %2491 = vmatprep.subr.mxu0 0.0
      %2492 = vmatpush1.msra.mxu0 0.0
      %2493 = vmatprep.subr.mxu0 0.0
      %2494 = vmatpush1.msra.mxu0 0.0
      %2495 = vmatprep.subr.mxu0 0.0
      %2496 = vmatpush1.msra.mxu0 0.0
      %2497 = vmatprep.subr.mxu0 0.0
      %2498 = vmatpush1.msra.mxu0 0.0
      %2499 = vmatprep.subr.mxu0 0.0
      %2500 = vmatpush1.msra.mxu0 0.0
      %2501 = vmatprep.subr.mxu0 0.0
      %2502 = vmatpush1.msra.mxu0 0.0
      %2503 = vmatprep.subr.mxu0 0.0
      %2504 = vmatpush1.msra.mxu0 0.0
      %2505 = vmatprep.subr.mxu0 0.0
      %2506 = vmatpush1.msra.mxu0 0.0
      %2507 = vmatprep.subr.mxu0 0.0
      %2508 = vmatpush1.msra.mxu0 0.0
      %2509 = vmatprep.subr.mxu0 0.0
      %2510 = vmatpush1.msra.mxu0 0.0
      %2511 = vmatprep.subr.mxu0 0.0
      %2512 = vmatpush1.msra.mxu0 0.0
      %2513 = vmatprep.subr.mxu0 0.0
      %2514 = vmatpush1.msra.mxu0 0.0
      %2515 = vmatprep.subr.mxu0 0.0
      %2516 = vmatpush1.msra.mxu0 0.0
      %2517 = vmatprep.subr.mxu0 0.0
      %2518 = vmatpush1.msra.mxu0 0.0
      %2519 = vmatprep.subr.mxu0 0.0
      %2520 = vmatpush1.msra.mxu0 0.0
      %2521 = vmatprep.subr.mxu0 0.0
      %2522 = vmatpush1.msra.mxu0 0.0
      %2523 = vmatprep.subr.mxu0 0.0
      %2524 = vmatpush1.msra.mxu0 0.0
      %2525 = vmatprep.subr.mxu0 0.0
      %2526 = vmatpush1.msra.mxu0 0.0
      %2527 = vmatprep.mubr.f32.mxu0 0.0
      %2528 = vmatmul.mubr.f32.gmra.mrb[0].mxu0 %v2221
      %v2529 = vpop.f32.mrb[0].mxu0
      %v2530 = vadd.f32 0.0, %v2529
      %v2531 = vpop.f32.mrb[0].mxu0
      %v2532 = vadd.f32 0.0, %v2531
      %2533 = vmatprep.mubr.f32.mxu0 0.0
      %2534 = vmatmul.mubr.f32.gmra.mrb[0].mxu0 %v2223
      %v2535 = vpop.f32.mrb[0].mxu0
      %v2536 = vadd.f32 0.0, %v2535
      %v2537 = vpop.f32.mrb[0].mxu0
      %v2538 = vadd.f32 0.0, %v2537
      %2539 = vdwg.mxu0
      %2540 = vmatprep.subr.mxu0 %v2410
      %2541 = vmatpush1.msra.mxu0 %v2409
      %2542 = vmatprep.subr.mxu0 %v2414
      %2543 = vmatpush1.msra.mxu0 %v2413
      %2544 = vmatprep.subr.mxu0 %v2418
      %2545 = vmatpush1.msra.mxu0 %v2417
      %2546 = vmatprep.subr.mxu0 %v2422
      %2547 = vmatpush1.msra.mxu0 %v2421
      %2548 = vmatprep.subr.mxu0 %v2426
      %2549 = vmatpush1.msra.mxu0 %v2425
      %2550 = vmatprep.subr.mxu0 %v2430
      %2551 = vmatpush1.msra.mxu0 %v2429
      %2552 = vmatprep.subr.mxu0 %v2434
      %2553 = vmatpush1.msra.mxu0 %v2433
      %2554 = vmatprep.subr.mxu0 %v2438
      %2555 = vmatpush1.msra.mxu0 %v2437
      %2556 = vmatprep.subr.mxu0 %v2442
      %2557 = vmatpush1.msra.mxu0 %v2441
      %2558 = vmatprep.subr.mxu0 %v2446
      %2559 = vmatpush1.msra.mxu0 %v2445
      %2560 = vmatprep.subr.mxu0 %v2450
      %2561 = vmatpush1.msra.mxu0 %v2449
      %2562 = vmatprep.subr.mxu0 %v2454
      %2563 = vmatpush1.msra.mxu0 %v2453
      %2564 = vmatprep.subr.mxu0 %v2458
      %2565 = vmatpush1.msra.mxu0 %v2457
      %2566 = vmatprep.subr.mxu0 %v2462
      %2567 = vmatpush1.msra.mxu0 %v2461
      %2568 = vmatprep.subr.mxu0 0.0
      %2569 = vmatpush1.msra.mxu0 0.0
      %2570 = vmatprep.subr.mxu0 0.0
      %2571 = vmatpush1.msra.mxu0 0.0
      %2572 = vmatprep.subr.mxu0 0.0
      %2573 = vmatpush1.msra.mxu0 0.0
      %2574 = vmatprep.subr.mxu0 0.0
      %2575 = vmatpush1.msra.mxu0 0.0
      %2576 = vmatprep.subr.mxu0 0.0
      %2577 = vmatpush1.msra.mxu0 0.0
      %2578 = vmatprep.subr.mxu0 0.0
      %2579 = vmatpush1.msra.mxu0 0.0
      %2580 = vmatprep.subr.mxu0 0.0
      %2581 = vmatpush1.msra.mxu0 0.0
      %2582 = vmatprep.subr.mxu0 0.0
      %2583 = vmatpush1.msra.mxu0 0.0
      %2584 = vmatprep.subr.mxu0 0.0
      %2585 = vmatpush1.msra.mxu0 0.0
      %2586 = vmatprep.subr.mxu0 0.0
      %2587 = vmatpush1.msra.mxu0 0.0
      %2588 = vmatprep.subr.mxu0 0.0
      %2589 = vmatpush1.msra.mxu0 0.0
      %2590 = vmatprep.subr.mxu0 0.0
      %2591 = vmatpush1.msra.mxu0 0.0
      %2592 = vmatprep.subr.mxu0 0.0
      %2593 = vmatpush1.msra.mxu0 0.0
      %2594 = vmatprep.subr.mxu0 0.0
      %2595 = vmatpush1.msra.mxu0 0.0
      %2596 = vmatprep.subr.mxu0 0.0
      %2597 = vmatpush1.msra.mxu0 0.0
      %2598 = vmatprep.subr.mxu0 0.0
      %2599 = vmatpush1.msra.mxu0 0.0
      %2600 = vmatprep.subr.mxu0 0.0
      %2601 = vmatpush1.msra.mxu0 0.0
      %2602 = vmatprep.subr.mxu0 0.0
      %2603 = vmatpush1.msra.mxu0 0.0
      %2604 = vmatprep.mubr.f32.mxu0 0.0
      %2605 = vmatmul.mubr.f32.gmra.mrb[0].mxu0 %v2221
      %v2606 = vpop.f32.mrb[0].mxu0
      %v2607 = vadd.f32 0.0, %v2606
      %v2608 = vpop.f32.mrb[0].mxu0
      %v2609 = vadd.f32 0.0, %v2608
      %2610 = vmatprep.mubr.f32.mxu0 0.0
      %2611 = vmatmul.mubr.f32.gmra.mrb[0].mxu0 %v2223
      %v2612 = vpop.f32.mrb[0].mxu0
      %v2613 = vadd.f32 0.0, %v2612
      %v2614 = vpop.f32.mrb[0].mxu0
      %v2615 = vadd.f32 0.0, %v2614
      %2616 = vdwg.mxu0
      %v2617 = vadd.f32 %v1525, %v2296
      %v2618 = vadd.f32 %v1526, %v2298
      %v2619 = vadd.f32 %v1527, %v2385
      %v2620 = vadd.f32 %v1528, %v2387
      %v2621 = vadd.f32 %v1529, %v2302
      %v2622 = vadd.f32 %v1530, %v2304
      %v2623 = vadd.f32 %v1531, %v2391
      %v2624 = vadd.f32 %v1532, %v2393
      %v2625 = vadd.f32 %v2617, %v2308
      %v2626 = vadd.f32 %v2618, %v2310
      %v2627 = vadd.f32 %v2619, %v2397
      %v2628 = vadd.f32 %v2620, %v2399
      %v2629 = vadd.f32 %v2621, %v2314
      %v2630 = vadd.f32 %v2622, %v2316
      %v2631 = vadd.f32 %v2623, %v2403
      %v2632 = vadd.f32 %v2624, %v2405
      %v2633 = vadd.f32 %v2625, %v2530
      %v2634 = vadd.f32 %v2626, %v2532
      %v2635 = vadd.f32 %v2627, %v2607
      %v2636 = vadd.f32 %v2628, %v2609
      %v2637 = vadd.f32 %v2629, %v2536
      %v2638 = vadd.f32 %v2630, %v2538
      %v2639 = vadd.f32 %v2631, %v2613
      %v2640 = vadd.f32 %v2632, %v2615
      %2641 = vrot.lane.b32.xlu0 %v397, 109
      %v2642 = vpop.permute.xlu0 %2641
      %2643 = vrot.lane.b32.xlu0 %v398, 109
      %v2644 = vpop.permute.xlu0 %2643
      %2645 = vrot.lane.b32.xlu0 %v399, 109
      %v2646 = vpop.permute.xlu0 %2645
      %2647 = vrot.lane.b32.xlu0 %v400, 109
      %v2648 = vpop.permute.xlu0 %2647
      %2649 = vrot.lane.b32.xlu0 %v401, 109
      %v2650 = vpop.permute.xlu0 %2649
      %vm2651 = vcmask 891904
      %v2652 = vsel %vm2651, %v2642, %v2644
      %v2653 = vsel %vm2651, %v2644, %v2646
      %v2654 = vsel %vm2651, %v2646, %v2648
      %v2655 = vsel %vm2651, %v2648, %v2650
      %2660 = vst [vmem:[#allocation2] sm:$0xff] %v2652
      %2661 = vst [vmem:[#allocation2 + $0x8] sm:$0xff] %v2653
      %2662 = vst [vmem:[#allocation2 + $0x10] sm:$0xff] %v2654
      %2663 = vst [vmem:[#allocation2 + $0x18] sm:$0xff] %v2655
      %2664 = vrot.lane.b32.xlu0 %v403, 109
      %v2665 = vpop.permute.xlu0 %2664
      %2666 = vrot.lane.b32.xlu0 %v404, 109
      %v2667 = vpop.permute.xlu0 %2666
      %2668 = vrot.lane.b32.xlu0 %v405, 109
      %v2669 = vpop.permute.xlu0 %2668
      %2670 = vrot.lane.b32.xlu0 %v406, 109
      %v2671 = vpop.permute.xlu0 %2670
      %2672 = vrot.lane.b32.xlu0 %v407, 109
      %v2673 = vpop.permute.xlu0 %2672
      %v2674 = vsel %vm2651, %v2665, %v2667
      %v2675 = vsel %vm2651, %v2667, %v2669
      %v2676 = vsel %vm2651, %v2669, %v2671
      %v2677 = vsel %vm2651, %v2671, %v2673
      %2682 = vst [vmem:[#allocation4] sm:$0xff] %v2674
      %2683 = vst [vmem:[#allocation4 + $0x8] sm:$0xff] %v2675
      %2684 = vst [vmem:[#allocation4 + $0x10] sm:$0xff] %v2676
      %2685 = vst [vmem:[#allocation4 + $0x18] sm:$0xff] %v2677
      %2686 = vrot.lane.b32.xlu0 %v397, 108
      %v2687 = vpop.permute.xlu0 %2686
      %2688 = vrot.lane.b32.xlu0 %v398, 108
      %v2689 = vpop.permute.xlu0 %2688
      %2690 = vrot.lane.b32.xlu0 %v399, 108
      %v2691 = vpop.permute.xlu0 %2690
      %2692 = vrot.lane.b32.xlu0 %v400, 108
      %v2693 = vpop.permute.xlu0 %2692
      %2694 = vrot.lane.b32.xlu0 %v401, 108
      %v2695 = vpop.permute.xlu0 %2694
      %vm2696 = vcmask 883712
      %v2697 = vsel %vm2696, %v2687, %v2689
      %v2698 = vsel %vm2696, %v2689, %v2691
      %v2699 = vsel %vm2696, %v2691, %v2693
      %v2700 = vsel %vm2696, %v2693, %v2695
      %2705 = vst [vmem:[#allocation2 + $0x20] sm:$0xff] %v2697
      %2706 = vst [vmem:[#allocation2 + $0x28] sm:$0xff] %v2698
      %2707 = vst [vmem:[#allocation2 + $0x30] sm:$0xff] %v2699
      %2708 = vst [vmem:[#allocation2 + $0x38] sm:$0xff] %v2700
      %2709 = vrot.lane.b32.xlu0 %v403, 108
      %v2710 = vpop.permute.xlu0 %2709
      %2711 = vrot.lane.b32.xlu0 %v404, 108
      %v2712 = vpop.permute.xlu0 %2711
      %2713 = vrot.lane.b32.xlu0 %v405, 108
      %v2714 = vpop.permute.xlu0 %2713
      %2715 = vrot.lane.b32.xlu0 %v406, 108
      %v2716 = vpop.permute.xlu0 %2715
      %2717 = vrot.lane.b32.xlu0 %v407, 108
      %v2718 = vpop.permute.xlu0 %2717
      %v2719 = vsel %vm2696, %v2710, %v2712
      %v2720 = vsel %vm2696, %v2712, %v2714
      %v2721 = vsel %vm2696, %v2714, %v2716
      %v2722 = vsel %vm2696, %v2716, %v2718
      %2727 = vst [vmem:[#allocation4 + $0x20] sm:$0xff] %v2719
      %2728 = vst [vmem:[#allocation4 + $0x28] sm:$0xff] %v2720
      %2729 = vst [vmem:[#allocation4 + $0x30] sm:$0xff] %v2721
      %2730 = vst [vmem:[#allocation4 + $0x38] sm:$0xff] %v2722
      %2731 = vrot.lane.b32.xlu0 %v397, 107
      %v2732 = vpop.permute.xlu0 %2731
      %2733 = vrot.lane.b32.xlu0 %v398, 107
      %v2734 = vpop.permute.xlu0 %2733
      %2735 = vrot.lane.b32.xlu0 %v399, 107
      %v2736 = vpop.permute.xlu0 %2735
      %2737 = vrot.lane.b32.xlu0 %v400, 107
      %v2738 = vpop.permute.xlu0 %2737
      %2739 = vrot.lane.b32.xlu0 %v401, 107
      %v2740 = vpop.permute.xlu0 %2739
      %vm2741 = vcmask 875520
      %v2742 = vsel %vm2741, %v2732, %v2734
      %v2743 = vsel %vm2741, %v2734, %v2736
      %v2744 = vsel %vm2741, %v2736, %v2738
      %v2745 = vsel %vm2741, %v2738, %v2740
      %2750 = vst [vmem:[#allocation2 + $0x40] sm:$0xff] %v2742
      %2751 = vst [vmem:[#allocation2 + $0x48] sm:$0xff] %v2743
      %2752 = vst [vmem:[#allocation2 + $0x50] sm:$0xff] %v2744
      %2753 = vst [vmem:[#allocation2 + $0x58] sm:$0xff] %v2745
      %2754 = vrot.lane.b32.xlu0 %v403, 107
      %v2755 = vpop.permute.xlu0 %2754
      %2756 = vrot.lane.b32.xlu0 %v404, 107
      %v2757 = vpop.permute.xlu0 %2756
      %2758 = vrot.lane.b32.xlu0 %v405, 107
      %v2759 = vpop.permute.xlu0 %2758
      %2760 = vrot.lane.b32.xlu0 %v406, 107
      %v2761 = vpop.permute.xlu0 %2760
      %2762 = vrot.lane.b32.xlu0 %v407, 107
      %v2763 = vpop.permute.xlu0 %2762
      %v2764 = vsel %vm2741, %v2755, %v2757
      %v2765 = vsel %vm2741, %v2757, %v2759
      %v2766 = vsel %vm2741, %v2759, %v2761
      %v2767 = vsel %vm2741, %v2761, %v2763
      %2772 = vst [vmem:[#allocation4 + $0x40] sm:$0xff] %v2764
      %2773 = vst [vmem:[#allocation4 + $0x48] sm:$0xff] %v2765
      %2774 = vst [vmem:[#allocation4 + $0x50] sm:$0xff] %v2766
      %2775 = vst [vmem:[#allocation4 + $0x58] sm:$0xff] %v2767
      %2776 = vrot.lane.b32.xlu0 %v397, 106
      %v2777 = vpop.permute.xlu0 %2776
      %2778 = vrot.lane.b32.xlu0 %v398, 106
      %v2779 = vpop.permute.xlu0 %2778
      %2780 = vrot.lane.b32.xlu0 %v399, 106
      %v2781 = vpop.permute.xlu0 %2780
      %2782 = vrot.lane.b32.xlu0 %v400, 106
      %v2783 = vpop.permute.xlu0 %2782
      %2784 = vrot.lane.b32.xlu0 %v401, 106
      %v2785 = vpop.permute.xlu0 %2784
      %vm2786 = vcmask 867328
      %v2787 = vsel %vm2786, %v2777, %v2779
      %v2788 = vsel %vm2786, %v2779, %v2781
      %v2789 = vsel %vm2786, %v2781, %v2783
      %v2790 = vsel %vm2786, %v2783, %v2785
      %2795 = vst [vmem:[#allocation2 + $0x60] sm:$0xff] %v2787
      %2796 = vst [vmem:[#allocation2 + $0x68] sm:$0xff] %v2788
      %2797 = vst [vmem:[#allocation2 + $0x70] sm:$0xff] %v2789
      %2798 = vst [vmem:[#allocation2 + $0x78] sm:$0xff] %v2790
      %2799 = vrot.lane.b32.xlu0 %v403, 106
      %v2800 = vpop.permute.xlu0 %2799
      %2801 = vrot.lane.b32.xlu0 %v404, 106
      %v2802 = vpop.permute.xlu0 %2801
      %2803 = vrot.lane.b32.xlu0 %v405, 106
      %v2804 = vpop.permute.xlu0 %2803
      %2805 = vrot.lane.b32.xlu0 %v406, 106
      %v2806 = vpop.permute.xlu0 %2805
      %2807 = vrot.lane.b32.xlu0 %v407, 106
      %v2808 = vpop.permute.xlu0 %2807
      %v2809 = vsel %vm2786, %v2800, %v2802
      %v2810 = vsel %vm2786, %v2802, %v2804
      %v2811 = vsel %vm2786, %v2804, %v2806
      %v2812 = vsel %vm2786, %v2806, %v2808
      %2817 = vst [vmem:[#allocation4 + $0x60] sm:$0xff] %v2809
      %2818 = vst [vmem:[#allocation4 + $0x68] sm:$0xff] %v2810
      %2819 = vst [vmem:[#allocation4 + $0x70] sm:$0xff] %v2811
      %2820 = vst [vmem:[#allocation4 + $0x78] sm:$0xff] %v2812
      %2821 = vrot.lane.b32.xlu0 %v397, 105
      %v2822 = vpop.permute.xlu0 %2821
      %2823 = vrot.lane.b32.xlu0 %v398, 105
      %v2824 = vpop.permute.xlu0 %2823
      %2825 = vrot.lane.b32.xlu0 %v399, 105
      %v2826 = vpop.permute.xlu0 %2825
      %2827 = vrot.lane.b32.xlu0 %v400, 105
      %v2828 = vpop.permute.xlu0 %2827
      %2829 = vrot.lane.b32.xlu0 %v401, 105
      %v2830 = vpop.permute.xlu0 %2829
      %vm2831 = vcmask 859136
      %v2832 = vsel %vm2831, %v2822, %v2824
      %v2833 = vsel %vm2831, %v2824, %v2826
      %v2834 = vsel %vm2831, %v2826, %v2828
      %v2835 = vsel %vm2831, %v2828, %v2830
      %2840 = vst [vmem:[#allocation2 + $0x80] sm:$0xff] %v2832
      %2841 = vst [vmem:[#allocation2 + $0x88] sm:$0xff] %v2833
      %2842 = vst [vmem:[#allocation2 + $0x90] sm:$0xff] %v2834
      %2843 = vst [vmem:[#allocation2 + $0x98] sm:$0xff] %v2835
      %2844 = vrot.lane.b32.xlu0 %v403, 105
      %v2845 = vpop.permute.xlu0 %2844
      %2846 = vrot.lane.b32.xlu0 %v404, 105
      %v2847 = vpop.permute.xlu0 %2846
      %2848 = vrot.lane.b32.xlu0 %v405, 105
      %v2849 = vpop.permute.xlu0 %2848
      %2850 = vrot.lane.b32.xlu0 %v406, 105
      %v2851 = vpop.permute.xlu0 %2850
      %2852 = vrot.lane.b32.xlu0 %v407, 105
      %v2853 = vpop.permute.xlu0 %2852
      %v2854 = vsel %vm2831, %v2845, %v2847
      %v2855 = vsel %vm2831, %v2847, %v2849
      %v2856 = vsel %vm2831, %v2849, %v2851
      %v2857 = vsel %vm2831, %v2851, %v2853
      %2862 = vst [vmem:[#allocation4 + $0x80] sm:$0xff] %v2854
      %2863 = vst [vmem:[#allocation4 + $0x88] sm:$0xff] %v2855
      %2864 = vst [vmem:[#allocation4 + $0x90] sm:$0xff] %v2856
      %2865 = vst [vmem:[#allocation4 + $0x98] sm:$0xff] %v2857
      %2866 = vrot.lane.b32.xlu0 %v397, 104
      %v2867 = vpop.permute.xlu0 %2866
      %2868 = vrot.lane.b32.xlu0 %v398, 104
      %v2869 = vpop.permute.xlu0 %2868
      %2870 = vrot.lane.b32.xlu0 %v399, 104
      %v2871 = vpop.permute.xlu0 %2870
      %2872 = vrot.lane.b32.xlu0 %v400, 104
      %v2873 = vpop.permute.xlu0 %2872
      %2874 = vrot.lane.b32.xlu0 %v401, 104
      %v2875 = vpop.permute.xlu0 %2874
      %vm2876 = vcmask 850944
      %v2877 = vsel %vm2876, %v2867, %v2869
      %v2878 = vsel %vm2876, %v2869, %v2871
      %v2879 = vsel %vm2876, %v2871, %v2873
      %v2880 = vsel %vm2876, %v2873, %v2875
      %2885 = vst [vmem:[#allocation2 + $0xa0] sm:$0xff] %v2877
      %2886 = vst [vmem:[#allocation2 + $0xa8] sm:$0xff] %v2878
      %2887 = vst [vmem:[#allocation2 + $0xb0] sm:$0xff] %v2879
      %2888 = vst [vmem:[#allocation2 + $0xb8] sm:$0xff] %v2880
      %2889 = vrot.lane.b32.xlu0 %v403, 104
      %v2890 = vpop.permute.xlu0 %2889
      %2891 = vrot.lane.b32.xlu0 %v404, 104
      %v2892 = vpop.permute.xlu0 %2891
      %2893 = vrot.lane.b32.xlu0 %v405, 104
      %v2894 = vpop.permute.xlu0 %2893
      %2895 = vrot.lane.b32.xlu0 %v406, 104
      %v2896 = vpop.permute.xlu0 %2895
      %2897 = vrot.lane.b32.xlu0 %v407, 104
      %v2898 = vpop.permute.xlu0 %2897
      %v2899 = vsel %vm2876, %v2890, %v2892
      %v2900 = vsel %vm2876, %v2892, %v2894
      %v2901 = vsel %vm2876, %v2894, %v2896
      %v2902 = vsel %vm2876, %v2896, %v2898
      %2907 = vst [vmem:[#allocation4 + $0xa0] sm:$0xff] %v2899
      %2908 = vst [vmem:[#allocation4 + $0xa8] sm:$0xff] %v2900
      %2909 = vst [vmem:[#allocation4 + $0xb0] sm:$0xff] %v2901
      %2910 = vst [vmem:[#allocation4 + $0xb8] sm:$0xff] %v2902
      %2911 = vrot.lane.b32.xlu0 %v397, 103
      %v2912 = vpop.permute.xlu0 %2911
      %2913 = vrot.lane.b32.xlu0 %v398, 103
      %v2914 = vpop.permute.xlu0 %2913
      %2915 = vrot.lane.b32.xlu0 %v399, 103
      %v2916 = vpop.permute.xlu0 %2915
      %2917 = vrot.lane.b32.xlu0 %v400, 103
      %v2918 = vpop.permute.xlu0 %2917
      %2919 = vrot.lane.b32.xlu0 %v401, 103
      %v2920 = vpop.permute.xlu0 %2919
      %vm2921 = vcmask 842752
      %v2922 = vsel %vm2921, %v2912, %v2914
      %v2923 = vsel %vm2921, %v2914, %v2916
      %v2924 = vsel %vm2921, %v2916, %v2918
      %v2925 = vsel %vm2921, %v2918, %v2920
      %2930 = vst [vmem:[#allocation2 + $0xc0] sm:$0xff] %v2922
      %2931 = vst [vmem:[#allocation2 + $0xc8] sm:$0xff] %v2923
      %2932 = vst [vmem:[#allocation2 + $0xd0] sm:$0xff] %v2924
      %2933 = vst [vmem:[#allocation2 + $0xd8] sm:$0xff] %v2925
      %2934 = vrot.lane.b32.xlu0 %v403, 103
      %v2935 = vpop.permute.xlu0 %2934
      %2936 = vrot.lane.b32.xlu0 %v404, 103
      %v2937 = vpop.permute.xlu0 %2936
      %2938 = vrot.lane.b32.xlu0 %v405, 103
      %v2939 = vpop.permute.xlu0 %2938
      %2940 = vrot.lane.b32.xlu0 %v406, 103
      %v2941 = vpop.permute.xlu0 %2940
      %2942 = vrot.lane.b32.xlu0 %v407, 103
      %v2943 = vpop.permute.xlu0 %2942
      %v2944 = vsel %vm2921, %v2935, %v2937
      %v2945 = vsel %vm2921, %v2937, %v2939
      %v2946 = vsel %vm2921, %v2939, %v2941
      %v2947 = vsel %vm2921, %v2941, %v2943
      %2952 = vst [vmem:[#allocation4 + $0xc0] sm:$0xff] %v2944
      %2953 = vst [vmem:[#allocation4 + $0xc8] sm:$0xff] %v2945
      %2954 = vst [vmem:[#allocation4 + $0xd0] sm:$0xff] %v2946
      %2955 = vst [vmem:[#allocation4 + $0xd8] sm:$0xff] %v2947
      %2956 = vrot.lane.b32.xlu0 %v397, 87
      %v2957 = vpop.permute.xlu0 %2956
      %2958 = vrot.lane.b32.xlu0 %v398, 87
      %v2959 = vpop.permute.xlu0 %2958
      %2960 = vrot.lane.b32.xlu0 %v399, 87
      %v2961 = vpop.permute.xlu0 %2960
      %2962 = vrot.lane.b32.xlu0 %v400, 87
      %v2963 = vpop.permute.xlu0 %2962
      %2964 = vrot.lane.b32.xlu0 %v401, 87
      %v2965 = vpop.permute.xlu0 %2964
      %vm2966 = vcmask 711680
      %v2967 = vsel %vm2966, %v2957, %v2959
      %v2968 = vsel %vm2966, %v2959, %v2961
      %v2969 = vsel %vm2966, %v2961, %v2963
      %v2970 = vsel %vm2966, %v2963, %v2965
      %2975 = vst [vmem:[#allocation2 + $0xe0] sm:$0xff] %v2967
      %2976 = vst [vmem:[#allocation2 + $0xe8] sm:$0xff] %v2968
      %2977 = vst [vmem:[#allocation2 + $0xf0] sm:$0xff] %v2969
      %2978 = vst [vmem:[#allocation2 + $0xf8] sm:$0xff] %v2970
      %2979 = vrot.lane.b32.xlu0 %v403, 87
      %v2980 = vpop.permute.xlu0 %2979
      %2981 = vrot.lane.b32.xlu0 %v404, 87
      %v2982 = vpop.permute.xlu0 %2981
      %2983 = vrot.lane.b32.xlu0 %v405, 87
      %v2984 = vpop.permute.xlu0 %2983
      %2985 = vrot.lane.b32.xlu0 %v406, 87
      %v2986 = vpop.permute.xlu0 %2985
      %2987 = vrot.lane.b32.xlu0 %v407, 87
      %v2988 = vpop.permute.xlu0 %2987
      %v2989 = vsel %vm2966, %v2980, %v2982
      %v2990 = vsel %vm2966, %v2982, %v2984
      %v2991 = vsel %vm2966, %v2984, %v2986
      %v2992 = vsel %vm2966, %v2986, %v2988
      %2997 = vst [vmem:[#allocation4 + $0xe0] sm:$0xff] %v2989
      %2998 = vst [vmem:[#allocation4 + $0xe8] sm:$0xff] %v2990
      %2999 = vst [vmem:[#allocation4 + $0xf0] sm:$0xff] %v2991
      %3000 = vst [vmem:[#allocation4 + $0xf8] sm:$0xff] %v2992
      %3001 = vrot.lane.b32.xlu0 %v397, 86
      %v3002 = vpop.permute.xlu0 %3001
      %3003 = vrot.lane.b32.xlu0 %v398, 86
      %v3004 = vpop.permute.xlu0 %3003
      %3005 = vrot.lane.b32.xlu0 %v399, 86
      %v3006 = vpop.permute.xlu0 %3005
      %3007 = vrot.lane.b32.xlu0 %v400, 86
      %v3008 = vpop.permute.xlu0 %3007
      %3009 = vrot.lane.b32.xlu0 %v401, 86
      %v3010 = vpop.permute.xlu0 %3009
      %vm3011 = vcmask 703488
      %v3012 = vsel %vm3011, %v3002, %v3004
      %v3013 = vsel %vm3011, %v3004, %v3006
      %v3014 = vsel %vm3011, %v3006, %v3008
      %v3015 = vsel %vm3011, %v3008, %v3010
      %3020 = vst [vmem:[#allocation2 + $0x100] sm:$0xff] %v3012
      %3021 = vst [vmem:[#allocation2 + $0x108] sm:$0xff] %v3013
      %3022 = vst [vmem:[#allocation2 + $0x110] sm:$0xff] %v3014
      %3023 = vst [vmem:[#allocation2 + $0x118] sm:$0xff] %v3015
      %3024 = vrot.lane.b32.xlu0 %v403, 86
      %v3025 = vpop.permute.xlu0 %3024
      %3026 = vrot.lane.b32.xlu0 %v404, 86
      %v3027 = vpop.permute.xlu0 %3026
      %3028 = vrot.lane.b32.xlu0 %v405, 86
      %v3029 = vpop.permute.xlu0 %3028
      %3030 = vrot.lane.b32.xlu0 %v406, 86
      %v3031 = vpop.permute.xlu0 %3030
      %3032 = vrot.lane.b32.xlu0 %v407, 86
      %v3033 = vpop.permute.xlu0 %3032
      %v3034 = vsel %vm3011, %v3025, %v3027
      %v3035 = vsel %vm3011, %v3027, %v3029
      %v3036 = vsel %vm3011, %v3029, %v3031
      %v3037 = vsel %vm3011, %v3031, %v3033
      %3042 = vst [vmem:[#allocation4 + $0x100] sm:$0xff] %v3034
      %3043 = vst [vmem:[#allocation4 + $0x108] sm:$0xff] %v3035
      %3044 = vst [vmem:[#allocation4 + $0x110] sm:$0xff] %v3036
      %3045 = vst [vmem:[#allocation4 + $0x118] sm:$0xff] %v3037
      %3046 = vrot.lane.b32.xlu0 %v397, 85
      %v3047 = vpop.permute.xlu0 %3046
      %3048 = vrot.lane.b32.xlu0 %v398, 85
      %v3049 = vpop.permute.xlu0 %3048
      %3050 = vrot.lane.b32.xlu0 %v399, 85
      %v3051 = vpop.permute.xlu0 %3050
      %3052 = vrot.lane.b32.xlu0 %v400, 85
      %v3053 = vpop.permute.xlu0 %3052
      %3054 = vrot.lane.b32.xlu0 %v401, 85
      %v3055 = vpop.permute.xlu0 %3054
      %vm3056 = vcmask 695296
      %v3057 = vsel %vm3056, %v3047, %v3049
      %v3058 = vsel %vm3056, %v3049, %v3051
      %v3059 = vsel %vm3056, %v3051, %v3053
      %v3060 = vsel %vm3056, %v3053, %v3055
      %3065 = vst [vmem:[#allocation2 + $0x120] sm:$0xff] %v3057
      %3066 = vst [vmem:[#allocation2 + $0x128] sm:$0xff] %v3058
      %3067 = vst [vmem:[#allocation2 + $0x130] sm:$0xff] %v3059
      %3068 = vst [vmem:[#allocation2 + $0x138] sm:$0xff] %v3060
      %3069 = vrot.lane.b32.xlu0 %v403, 85
      %v3070 = vpop.permute.xlu0 %3069
      %3071 = vrot.lane.b32.xlu0 %v404, 85
      %v3072 = vpop.permute.xlu0 %3071
      %3073 = vrot.lane.b32.xlu0 %v405, 85
      %v3074 = vpop.permute.xlu0 %3073
      %3075 = vrot.lane.b32.xlu0 %v406, 85
      %v3076 = vpop.permute.xlu0 %3075
      %3077 = vrot.lane.b32.xlu0 %v407, 85
      %v3078 = vpop.permute.xlu0 %3077
      %v3079 = vsel %vm3056, %v3070, %v3072
      %v3080 = vsel %vm3056, %v3072, %v3074
      %v3081 = vsel %vm3056, %v3074, %v3076
      %v3082 = vsel %vm3056, %v3076, %v3078
      %3087 = vst [vmem:[#allocation4 + $0x120] sm:$0xff] %v3079
      %3088 = vst [vmem:[#allocation4 + $0x128] sm:$0xff] %v3080
      %3089 = vst [vmem:[#allocation4 + $0x130] sm:$0xff] %v3081
      %3090 = vst [vmem:[#allocation4 + $0x138] sm:$0xff] %v3082
      %3091 = vrot.lane.b32.xlu0 %v397, 84
      %v3092 = vpop.permute.xlu0 %3091
      %3093 = vrot.lane.b32.xlu0 %v398, 84
      %v3094 = vpop.permute.xlu0 %3093
      %3095 = vrot.lane.b32.xlu0 %v399, 84
      %v3096 = vpop.permute.xlu0 %3095
      %3097 = vrot.lane.b32.xlu0 %v400, 84
      %v3098 = vpop.permute.xlu0 %3097
      %3099 = vrot.lane.b32.xlu0 %v401, 84
      %v3100 = vpop.permute.xlu0 %3099
      %vm3101 = vcmask 687104
      %v3102 = vsel %vm3101, %v3092, %v3094
      %v3103 = vsel %vm3101, %v3094, %v3096
      %v3104 = vsel %vm3101, %v3096, %v3098
      %v3105 = vsel %vm3101, %v3098, %v3100
      %3110 = vst [vmem:[#allocation2 + $0x140] sm:$0xff] %v3102
      %3111 = vst [vmem:[#allocation2 + $0x148] sm:$0xff] %v3103
      %3112 = vst [vmem:[#allocation2 + $0x150] sm:$0xff] %v3104
      %3113 = vst [vmem:[#allocation2 + $0x158] sm:$0xff] %v3105
      %3114 = vrot.lane.b32.xlu0 %v403, 84
      %v3115 = vpop.permute.xlu0 %3114
      %3116 = vrot.lane.b32.xlu0 %v404, 84
      %v3117 = vpop.permute.xlu0 %3116
      %3118 = vrot.lane.b32.xlu0 %v405, 84
      %v3119 = vpop.permute.xlu0 %3118
      %3120 = vrot.lane.b32.xlu0 %v406, 84
      %v3121 = vpop.permute.xlu0 %3120
      %3122 = vrot.lane.b32.xlu0 %v407, 84
      %v3123 = vpop.permute.xlu0 %3122
      %v3124 = vsel %vm3101, %v3115, %v3117
      %v3125 = vsel %vm3101, %v3117, %v3119
      %v3126 = vsel %vm3101, %v3119, %v3121
      %v3127 = vsel %vm3101, %v3121, %v3123
      %3132 = vst [vmem:[#allocation4 + $0x140] sm:$0xff] %v3124
      %3133 = vst [vmem:[#allocation4 + $0x148] sm:$0xff] %v3125
      %3134 = vst [vmem:[#allocation4 + $0x150] sm:$0xff] %v3126
      %3135 = vst [vmem:[#allocation4 + $0x158] sm:$0xff] %v3127
      %3136 = vrot.lane.b32.xlu0 %v397, 83
      %v3137 = vpop.permute.xlu0 %3136
      %3138 = vrot.lane.b32.xlu0 %v398, 83
      %v3139 = vpop.permute.xlu0 %3138
      %3140 = vrot.lane.b32.xlu0 %v399, 83
      %v3141 = vpop.permute.xlu0 %3140
      %3142 = vrot.lane.b32.xlu0 %v400, 83
      %v3143 = vpop.permute.xlu0 %3142
      %3144 = vrot.lane.b32.xlu0 %v401, 83
      %v3145 = vpop.permute.xlu0 %3144
      %vm3146 = vcmask 678912
      %v3147 = vsel %vm3146, %v3137, %v3139
      %v3148 = vsel %vm3146, %v3139, %v3141
      %v3149 = vsel %vm3146, %v3141, %v3143
      %v3150 = vsel %vm3146, %v3143, %v3145
      %3155 = vst [vmem:[#allocation2 + $0x160] sm:$0xff] %v3147
      %3156 = vst [vmem:[#allocation2 + $0x168] sm:$0xff] %v3148
      %3157 = vst [vmem:[#allocation2 + $0x170] sm:$0xff] %v3149
      %3158 = vst [vmem:[#allocation2 + $0x178] sm:$0xff] %v3150
      %3159 = vrot.lane.b32.xlu0 %v403, 83
      %v3160 = vpop.permute.xlu0 %3159
      %3161 = vrot.lane.b32.xlu0 %v404, 83
      %v3162 = vpop.permute.xlu0 %3161
      %3163 = vrot.lane.b32.xlu0 %v405, 83
      %v3164 = vpop.permute.xlu0 %3163
      %3165 = vrot.lane.b32.xlu0 %v406, 83
      %v3166 = vpop.permute.xlu0 %3165
      %3167 = vrot.lane.b32.xlu0 %v407, 83
      %v3168 = vpop.permute.xlu0 %3167
      %v3169 = vsel %vm3146, %v3160, %v3162
      %v3170 = vsel %vm3146, %v3162, %v3164
      %v3171 = vsel %vm3146, %v3164, %v3166
      %v3172 = vsel %vm3146, %v3166, %v3168
      %3177 = vst [vmem:[#allocation4 + $0x160] sm:$0xff] %v3169
      %3178 = vst [vmem:[#allocation4 + $0x168] sm:$0xff] %v3170
      %3179 = vst [vmem:[#allocation4 + $0x170] sm:$0xff] %v3171
      %3180 = vst [vmem:[#allocation4 + $0x178] sm:$0xff] %v3172
      %3181 = vrot.lane.b32.xlu0 %v397, 82
      %v3182 = vpop.permute.xlu0 %3181
      %3183 = vrot.lane.b32.xlu0 %v398, 82
      %v3184 = vpop.permute.xlu0 %3183
      %3185 = vrot.lane.b32.xlu0 %v399, 82
      %v3186 = vpop.permute.xlu0 %3185
      %3187 = vrot.lane.b32.xlu0 %v400, 82
      %v3188 = vpop.permute.xlu0 %3187
      %3189 = vrot.lane.b32.xlu0 %v401, 82
      %v3190 = vpop.permute.xlu0 %3189
      %vm3191 = vcmask 670720
      %v3192 = vsel %vm3191, %v3182, %v3184
      %v3193 = vsel %vm3191, %v3184, %v3186
      %v3194 = vsel %vm3191, %v3186, %v3188
      %v3195 = vsel %vm3191, %v3188, %v3190
      %3200 = vst [vmem:[#allocation2 + $0x180] sm:$0xff] %v3192
      %3201 = vst [vmem:[#allocation2 + $0x188] sm:$0xff] %v3193
      %3202 = vst [vmem:[#allocation2 + $0x190] sm:$0xff] %v3194
      %3203 = vst [vmem:[#allocation2 + $0x198] sm:$0xff] %v3195
      %3204 = vrot.lane.b32.xlu0 %v403, 82
      %v3205 = vpop.permute.xlu0 %3204
      %3206 = vrot.lane.b32.xlu0 %v404, 82
      %v3207 = vpop.permute.xlu0 %3206
      %3208 = vrot.lane.b32.xlu0 %v405, 82
      %v3209 = vpop.permute.xlu0 %3208
      %3210 = vrot.lane.b32.xlu0 %v406, 82
      %v3211 = vpop.permute.xlu0 %3210
      %3212 = vrot.lane.b32.xlu0 %v407, 82
      %v3213 = vpop.permute.xlu0 %3212
      %v3214 = vsel %vm3191, %v3205, %v3207
      %v3215 = vsel %vm3191, %v3207, %v3209
      %v3216 = vsel %vm3191, %v3209, %v3211
      %v3217 = vsel %vm3191, %v3211, %v3213
      %3222 = vst [vmem:[#allocation4 + $0x180] sm:$0xff] %v3214
      %3223 = vst [vmem:[#allocation4 + $0x188] sm:$0xff] %v3215
      %3224 = vst [vmem:[#allocation4 + $0x190] sm:$0xff] %v3216
      %3225 = vst [vmem:[#allocation4 + $0x198] sm:$0xff] %v3217
      %3226 = vrot.lane.b32.xlu0 %v397, 81
      %v3227 = vpop.permute.xlu0 %3226
      %3228 = vrot.lane.b32.xlu0 %v398, 81
      %v3229 = vpop.permute.xlu0 %3228
      %3230 = vrot.lane.b32.xlu0 %v399, 81
      %v3231 = vpop.permute.xlu0 %3230
      %3232 = vrot.lane.b32.xlu0 %v400, 81
      %v3233 = vpop.permute.xlu0 %3232
      %3234 = vrot.lane.b32.xlu0 %v401, 81
      %v3235 = vpop.permute.xlu0 %3234
      %vm3236 = vcmask 662528
      %v3237 = vsel %vm3236, %v3227, %v3229
      %v3238 = vsel %vm3236, %v3229, %v3231
      %v3239 = vsel %vm3236, %v3231, %v3233
      %v3240 = vsel %vm3236, %v3233, %v3235
      %3245 = vst [vmem:[#allocation2 + $0x1a0] sm:$0xff] %v3237
      %3246 = vst [vmem:[#allocation2 + $0x1a8] sm:$0xff] %v3238
      %3247 = vst [vmem:[#allocation2 + $0x1b0] sm:$0xff] %v3239
      %3248 = vst [vmem:[#allocation2 + $0x1b8] sm:$0xff] %v3240
      %3249 = vrot.lane.b32.xlu0 %v403, 81
      %v3250 = vpop.permute.xlu0 %3249
      %3251 = vrot.lane.b32.xlu0 %v404, 81
      %v3252 = vpop.permute.xlu0 %3251
      %3253 = vrot.lane.b32.xlu0 %v405, 81
      %v3254 = vpop.permute.xlu0 %3253
      %3255 = vrot.lane.b32.xlu0 %v406, 81
      %v3256 = vpop.permute.xlu0 %3255
      %3257 = vrot.lane.b32.xlu0 %v407, 81
      %v3258 = vpop.permute.xlu0 %3257
      %v3259 = vsel %vm3236, %v3250, %v3252
      %v3260 = vsel %vm3236, %v3252, %v3254
      %v3261 = vsel %vm3236, %v3254, %v3256
      %v3262 = vsel %vm3236, %v3256, %v3258
      %3267 = vst [vmem:[#allocation4 + $0x1a0] sm:$0xff] %v3259
      %3268 = vst [vmem:[#allocation4 + $0x1a8] sm:$0xff] %v3260
      %3269 = vst [vmem:[#allocation4 + $0x1b0] sm:$0xff] %v3261
      %3270 = vst [vmem:[#allocation4 + $0x1b8] sm:$0xff] %v3262
      %v3271 = vld [vmem:[%s2 + $0x8] sm:$0xff]
      %v3272 = vld [vmem:[%s2 + $0x10] sm:$0xff]
      %v3273 = vld [vmem:[%s2 + $0x28] sm:$0xff]
      %v3274 = vld [vmem:[%s2 + $0x30] sm:$0xff]
      %v3275 = vld [vmem:[%s2 + $0x48] sm:$0xff]
      %v3276 = vld [vmem:[%s2 + $0x50] sm:$0xff]
      %v3277 = vld [vmem:[%s2 + $0x68] sm:$0xff]
      %v3278 = vld [vmem:[%s2 + $0x70] sm:$0xff]
      %v3279 = vld [vmem:[#allocation2] sm:$0xff]
      %v3280 = vld [vmem:[#allocation2 + $0x8] sm:$0xff]
      %v3281 = vld [vmem:[#allocation2 + $0x10] sm:$0xff]
      %v3282 = vld [vmem:[#allocation2 + $0x18] sm:$0xff]
      %v3283 = vld [vmem:[#allocation2 + $0x20] sm:$0xff]
      %v3284 = vld [vmem:[#allocation2 + $0x28] sm:$0xff]
      %v3285 = vld [vmem:[#allocation2 + $0x30] sm:$0xff]
      %v3286 = vld [vmem:[#allocation2 + $0x38] sm:$0xff]
      %v3287 = vld [vmem:[#allocation2 + $0x40] sm:$0xff]
      %v3288 = vld [vmem:[#allocation2 + $0x48] sm:$0xff]
      %v3289 = vld [vmem:[#allocation2 + $0x50] sm:$0xff]
      %v3290 = vld [vmem:[#allocation2 + $0x58] sm:$0xff]
      %v3291 = vld [vmem:[#allocation2 + $0x60] sm:$0xff]
      %v3292 = vld [vmem:[#allocation2 + $0x68] sm:$0xff]
      %v3293 = vld [vmem:[#allocation2 + $0x70] sm:$0xff]
      %v3294 = vld [vmem:[#allocation2 + $0x78] sm:$0xff]
      %v3295 = vld [vmem:[#allocation2 + $0x80] sm:$0xff]
      %v3296 = vld [vmem:[#allocation2 + $0x88] sm:$0xff]
      %v3297 = vld [vmem:[#allocation2 + $0x90] sm:$0xff]
      %v3298 = vld [vmem:[#allocation2 + $0x98] sm:$0xff]
      %v3299 = vld [vmem:[#allocation2 + $0xa0] sm:$0xff]
      %v3300 = vld [vmem:[#allocation2 + $0xa8] sm:$0xff]
      %v3301 = vld [vmem:[#allocation2 + $0xb0] sm:$0xff]
      %v3302 = vld [vmem:[#allocation2 + $0xb8] sm:$0xff]
      %v3303 = vld [vmem:[#allocation2 + $0xc0] sm:$0xff]
      %v3304 = vld [vmem:[#allocation2 + $0xc8] sm:$0xff]
      %v3305 = vld [vmem:[#allocation2 + $0xd0] sm:$0xff]
      %v3306 = vld [vmem:[#allocation2 + $0xd8] sm:$0xff]
      %v3307 = vld [vmem:[#allocation2 + $0xe0] sm:$0xff]
      %v3308 = vld [vmem:[#allocation2 + $0xe8] sm:$0xff]
      %v3309 = vld [vmem:[#allocation2 + $0xf0] sm:$0xff]
      %v3310 = vld [vmem:[#allocation2 + $0xf8] sm:$0xff]
      %v3311 = vld [vmem:[#allocation2 + $0x100] sm:$0xff]
      %v3312 = vld [vmem:[#allocation2 + $0x108] sm:$0xff]
      %v3313 = vld [vmem:[#allocation2 + $0x110] sm:$0xff]
      %v3314 = vld [vmem:[#allocation2 + $0x118] sm:$0xff]
      %v3315 = vld [vmem:[#allocation2 + $0x120] sm:$0xff]
      %v3316 = vld [vmem:[#allocation2 + $0x128] sm:$0xff]
      %v3317 = vld [vmem:[#allocation2 + $0x130] sm:$0xff]
      %v3318 = vld [vmem:[#allocation2 + $0x138] sm:$0xff]
      %v3319 = vld [vmem:[#allocation2 + $0x140] sm:$0xff]
      %v3320 = vld [vmem:[#allocation2 + $0x148] sm:$0xff]
      %v3321 = vld [vmem:[#allocation2 + $0x150] sm:$0xff]
      %v3322 = vld [vmem:[#allocation2 + $0x158] sm:$0xff]
      %v3323 = vld [vmem:[#allocation2 + $0x160] sm:$0xff]
      %v3324 = vld [vmem:[#allocation2 + $0x168] sm:$0xff]
      %v3325 = vld [vmem:[#allocation2 + $0x170] sm:$0xff]
      %v3326 = vld [vmem:[#allocation2 + $0x178] sm:$0xff]
      %v3327 = vld [vmem:[#allocation2 + $0x180] sm:$0xff]
      %v3328 = vld [vmem:[#allocation2 + $0x188] sm:$0xff]
      %v3329 = vld [vmem:[#allocation2 + $0x190] sm:$0xff]
      %v3330 = vld [vmem:[#allocation2 + $0x198] sm:$0xff]
      %v3331 = vld [vmem:[#allocation2 + $0x1a0] sm:$0xff]
      %v3332 = vld [vmem:[#allocation2 + $0x1a8] sm:$0xff]
      %v3333 = vld [vmem:[#allocation2 + $0x1b0] sm:$0xff]
      %v3334 = vld [vmem:[#allocation2 + $0x1b8] sm:$0xff]
      %3343 = vrot.lane.b32.xlu0 %v3271, 32
      %v3344 = vpop.permute.xlu0 %3343
      %3345 = vrot.lane.b32.xlu0 %v3272, 32
      %v3346 = vpop.permute.xlu0 %3345
      %3347 = vrot.lane.b32.xlu0 %v3273, 32
      %v3348 = vpop.permute.xlu0 %3347
      %3349 = vrot.lane.b32.xlu0 %v3274, 32
      %v3350 = vpop.permute.xlu0 %3349
      %3351 = vrot.lane.b32.xlu0 %v3275, 32
      %v3352 = vpop.permute.xlu0 %3351
      %3353 = vrot.lane.b32.xlu0 %v3276, 32
      %v3354 = vpop.permute.xlu0 %3353
      %3355 = vrot.lane.b32.xlu0 %v3277, 32
      %v3356 = vpop.permute.xlu0 %3355
      %3357 = vrot.lane.b32.xlu0 %v3278, 32
      %v3358 = vpop.permute.xlu0 %3357
      %vm3359 = vcmask 261120
      %v3360 = vsel %vm3359, %v3344, %v3346
      %v3361 = vsel %vm3359, %v3348, %v3350
      %v3362 = vsel %vm3359, %v3352, %v3354
      %v3363 = vsel %vm3359, %v3356, %v3358
      %v3364 = vsel %vm1108, %v3360, 0
      %v3366 = vsel %vm1108, %v3361, 0
      %v3368 = vsel %vm1108, %v3362, 0
      %v3370 = vsel %vm1108, %v3363, 0
      %3372 = vmatprep.subr.mxu0 %v3280
      %3373 = vmatpush1.msra.mxu0 %v3279
      %3374 = vmatprep.subr.mxu0 %v3284
      %3375 = vmatpush1.msra.mxu0 %v3283
      %3376 = vmatprep.subr.mxu0 %v3288
      %3377 = vmatpush1.msra.mxu0 %v3287
      %3378 = vmatprep.subr.mxu0 %v3292
      %3379 = vmatpush1.msra.mxu0 %v3291
      %3380 = vmatprep.subr.mxu0 %v3296
      %3381 = vmatpush1.msra.mxu0 %v3295
      %3382 = vmatprep.subr.mxu0 %v3300
      %3383 = vmatpush1.msra.mxu0 %v3299
      %3384 = vmatprep.subr.mxu0 %v3304
      %3385 = vmatpush1.msra.mxu0 %v3303
      %3386 = vmatprep.subr.mxu0 %v3308
      %3387 = vmatpush1.msra.mxu0 %v3307
      %3388 = vmatprep.subr.mxu0 %v3312
      %3389 = vmatpush1.msra.mxu0 %v3311
      %3390 = vmatprep.subr.mxu0 %v3316
      %3391 = vmatpush1.msra.mxu0 %v3315
      %3392 = vmatprep.subr.mxu0 %v3320
      %3393 = vmatpush1.msra.mxu0 %v3319
      %3394 = vmatprep.subr.mxu0 %v3324
      %3395 = vmatpush1.msra.mxu0 %v3323
      %3396 = vmatprep.subr.mxu0 %v3328
      %3397 = vmatpush1.msra.mxu0 %v3327
      %3398 = vmatprep.subr.mxu0 %v3332
      %3399 = vmatpush1.msra.mxu0 %v3331
      %3400 = vmatprep.subr.mxu0 0.0
      %3401 = vmatpush1.msra.mxu0 0.0
      %3402 = vmatprep.subr.mxu0 0.0
      %3403 = vmatpush1.msra.mxu0 0.0
      %3404 = vmatprep.subr.mxu0 0.0
      %3405 = vmatpush1.msra.mxu0 0.0
      %3406 = vmatprep.subr.mxu0 0.0
      %3407 = vmatpush1.msra.mxu0 0.0
      %3408 = vmatprep.subr.mxu0 0.0
      %3409 = vmatpush1.msra.mxu0 0.0
      %3410 = vmatprep.subr.mxu0 0.0
      %3411 = vmatpush1.msra.mxu0 0.0
      %3412 = vmatprep.subr.mxu0 0.0
      %3413 = vmatpush1.msra.mxu0 0.0
      %3414 = vmatprep.subr.mxu0 0.0
      %3415 = vmatpush1.msra.mxu0 0.0
      %3416 = vmatprep.subr.mxu0 0.0
      %3417 = vmatpush1.msra.mxu0 0.0
      %3418 = vmatprep.subr.mxu0 0.0
      %3419 = vmatpush1.msra.mxu0 0.0
      %3420 = vmatprep.subr.mxu0 0.0
      %3421 = vmatpush1.msra.mxu0 0.0
      %3422 = vmatprep.subr.mxu0 0.0
      %3423 = vmatpush1.msra.mxu0 0.0
      %3424 = vmatprep.subr.mxu0 0.0
      %3425 = vmatpush1.msra.mxu0 0.0
      %3426 = vmatprep.subr.mxu0 0.0
      %3427 = vmatpush1.msra.mxu0 0.0
      %3428 = vmatprep.subr.mxu0 0.0
      %3429 = vmatpush1.msra.mxu0 0.0
      %3430 = vmatprep.subr.mxu0 0.0
      %3431 = vmatpush1.msra.mxu0 0.0
      %3432 = vmatprep.subr.mxu0 0.0
      %3433 = vmatpush1.msra.mxu0 0.0
      %3434 = vmatprep.subr.mxu0 0.0
      %3435 = vmatpush1.msra.mxu0 0.0
      %3436 = vmatprep.mubr.f32.mxu0 0.0
      %3437 = vmatmul.mubr.f32.gmra.mrb[0].mxu0 %v3364
      %v3438 = vpop.f32.mrb[0].mxu0
      %v3439 = vadd.f32 0.0, %v3438
      %v3440 = vpop.f32.mrb[0].mxu0
      %v3441 = vadd.f32 0.0, %v3440
      %3442 = vmatprep.mubr.f32.mxu0 0.0
      %3443 = vmatmul.mubr.f32.gmra.mrb[0].mxu0 %v3366
      %v3444 = vpop.f32.mrb[0].mxu0
      %v3445 = vadd.f32 0.0, %v3444
      %v3446 = vpop.f32.mrb[0].mxu0
      %v3447 = vadd.f32 0.0, %v3446
      %3448 = vmatprep.mubr.f32.mxu0 0.0
      %3449 = vmatmul.mubr.f32.gmra.mrb[0].mxu0 %v3368
      %v3450 = vpop.f32.mrb[0].mxu0
      %v3451 = vadd.f32 0.0, %v3450
      %v3452 = vpop.f32.mrb[0].mxu0
      %v3453 = vadd.f32 0.0, %v3452
      %3454 = vmatprep.mubr.f32.mxu0 0.0
      %3455 = vmatmul.mubr.f32.gmra.mrb[0].mxu0 %v3370
      %v3456 = vpop.f32.mrb[0].mxu0
      %v3457 = vadd.f32 0.0, %v3456
      %v3458 = vpop.f32.mrb[0].mxu0
      %v3459 = vadd.f32 0.0, %v3458
      %3460 = vdwg.mxu0
      %3461 = vmatprep.subr.mxu0 %v3282
      %3462 = vmatpush1.msra.mxu0 %v3281
      %3463 = vmatprep.subr.mxu0 %v3286
      %3464 = vmatpush1.msra.mxu0 %v3285
      %3465 = vmatprep.subr.mxu0 %v3290
      %3466 = vmatpush1.msra.mxu0 %v3289
      %3467 = vmatprep.subr.mxu0 %v3294
      %3468 = vmatpush1.msra.mxu0 %v3293
      %3469 = vmatprep.subr.mxu0 %v3298
      %3470 = vmatpush1.msra.mxu0 %v3297
      %3471 = vmatprep.subr.mxu0 %v3302
      %3472 = vmatpush1.msra.mxu0 %v3301
      %3473 = vmatprep.subr.mxu0 %v3306
      %3474 = vmatpush1.msra.mxu0 %v3305
      %3475 = vmatprep.subr.mxu0 %v3310
      %3476 = vmatpush1.msra.mxu0 %v3309
      %3477 = vmatprep.subr.mxu0 %v3314
      %3478 = vmatpush1.msra.mxu0 %v3313
      %3479 = vmatprep.subr.mxu0 %v3318
      %3480 = vmatpush1.msra.mxu0 %v3317
      %3481 = vmatprep.subr.mxu0 %v3322
      %3482 = vmatpush1.msra.mxu0 %v3321
      %3483 = vmatprep.subr.mxu0 %v3326
      %3484 = vmatpush1.msra.mxu0 %v3325
      %3485 = vmatprep.subr.mxu0 %v3330
      %3486 = vmatpush1.msra.mxu0 %v3329
      %3487 = vmatprep.subr.mxu0 %v3334
      %3488 = vmatpush1.msra.mxu0 %v3333
      %3489 = vmatprep.subr.mxu0 0.0
      %3490 = vmatpush1.msra.mxu0 0.0
      %3491 = vmatprep.subr.mxu0 0.0
      %3492 = vmatpush1.msra.mxu0 0.0
      %3493 = vmatprep.subr.mxu0 0.0
      %3494 = vmatpush1.msra.mxu0 0.0
      %3495 = vmatprep.subr.mxu0 0.0
      %3496 = vmatpush1.msra.mxu0 0.0
      %3497 = vmatprep.subr.mxu0 0.0
      %3498 = vmatpush1.msra.mxu0 0.0
      %3499 = vmatprep.subr.mxu0 0.0
      %3500 = vmatpush1.msra.mxu0 0.0
      %3501 = vmatprep.subr.mxu0 0.0
      %3502 = vmatpush1.msra.mxu0 0.0
      %3503 = vmatprep.subr.mxu0 0.0
      %3504 = vmatpush1.msra.mxu0 0.0
      %3505 = vmatprep.subr.mxu0 0.0
      %3506 = vmatpush1.msra.mxu0 0.0
      %3507 = vmatprep.subr.mxu0 0.0
      %3508 = vmatpush1.msra.mxu0 0.0
      %3509 = vmatprep.subr.mxu0 0.0
      %3510 = vmatpush1.msra.mxu0 0.0
      %3511 = vmatprep.subr.mxu0 0.0
      %3512 = vmatpush1.msra.mxu0 0.0
      %3513 = vmatprep.subr.mxu0 0.0
      %3514 = vmatpush1.msra.mxu0 0.0
      %3515 = vmatprep.subr.mxu0 0.0
      %3516 = vmatpush1.msra.mxu0 0.0
      %3517 = vmatprep.subr.mxu0 0.0
      %3518 = vmatpush1.msra.mxu0 0.0
      %3519 = vmatprep.subr.mxu0 0.0
      %3520 = vmatpush1.msra.mxu0 0.0
      %3521 = vmatprep.subr.mxu0 0.0
      %3522 = vmatpush1.msra.mxu0 0.0
      %3523 = vmatprep.subr.mxu0 0.0
      %3524 = vmatpush1.msra.mxu0 0.0
      %3525 = vmatprep.mubr.f32.mxu0 0.0
      %3526 = vmatmul.mubr.f32.gmra.mrb[0].mxu0 %v3364
      %v3527 = vpop.f32.mrb[0].mxu0
      %v3528 = vadd.f32 0.0, %v3527
      %v3529 = vpop.f32.mrb[0].mxu0
      %v3530 = vadd.f32 0.0, %v3529
      %3531 = vmatprep.mubr.f32.mxu0 0.0
      %3532 = vmatmul.mubr.f32.gmra.mrb[0].mxu0 %v3366
      %v3533 = vpop.f32.mrb[0].mxu0
      %v3534 = vadd.f32 0.0, %v3533
      %v3535 = vpop.f32.mrb[0].mxu0
      %v3536 = vadd.f32 0.0, %v3535
      %3537 = vmatprep.mubr.f32.mxu0 0.0
      %3538 = vmatmul.mubr.f32.gmra.mrb[0].mxu0 %v3368
      %v3539 = vpop.f32.mrb[0].mxu0
      %v3540 = vadd.f32 0.0, %v3539
      %v3541 = vpop.f32.mrb[0].mxu0
      %v3542 = vadd.f32 0.0, %v3541
      %3543 = vmatprep.mubr.f32.mxu0 0.0
      %3544 = vmatmul.mubr.f32.gmra.mrb[0].mxu0 %v3370
      %v3545 = vpop.f32.mrb[0].mxu0
      %v3546 = vadd.f32 0.0, %v3545
      %v3547 = vpop.f32.mrb[0].mxu0
      %v3548 = vadd.f32 0.0, %v3547
      %3549 = vdwg.mxu0
      %v3550 = vld [vmem:[#allocation4] sm:$0xff]
      %v3551 = vld [vmem:[#allocation4 + $0x8] sm:$0xff]
      %v3552 = vld [vmem:[#allocation4 + $0x10] sm:$0xff]
      %v3553 = vld [vmem:[#allocation4 + $0x18] sm:$0xff]
      %v3554 = vld [vmem:[#allocation4 + $0x20] sm:$0xff]
      %v3555 = vld [vmem:[#allocation4 + $0x28] sm:$0xff]
      %v3556 = vld [vmem:[#allocation4 + $0x30] sm:$0xff]
      %v3557 = vld [vmem:[#allocation4 + $0x38] sm:$0xff]
      %v3558 = vld [vmem:[#allocation4 + $0x40] sm:$0xff]
      %v3559 = vld [vmem:[#allocation4 + $0x48] sm:$0xff]
      %v3560 = vld [vmem:[#allocation4 + $0x50] sm:$0xff]
      %v3561 = vld [vmem:[#allocation4 + $0x58] sm:$0xff]
      %v3562 = vld [vmem:[#allocation4 + $0x60] sm:$0xff]
      %v3563 = vld [vmem:[#allocation4 + $0x68] sm:$0xff]
      %v3564 = vld [vmem:[#allocation4 + $0x70] sm:$0xff]
      %v3565 = vld [vmem:[#allocation4 + $0x78] sm:$0xff]
      %v3566 = vld [vmem:[#allocation4 + $0x80] sm:$0xff]
      %v3567 = vld [vmem:[#allocation4 + $0x88] sm:$0xff]
      %v3568 = vld [vmem:[#allocation4 + $0x90] sm:$0xff]
      %v3569 = vld [vmem:[#allocation4 + $0x98] sm:$0xff]
      %v3570 = vld [vmem:[#allocation4 + $0xa0] sm:$0xff]
      %v3571 = vld [vmem:[#allocation4 + $0xa8] sm:$0xff]
      %v3572 = vld [vmem:[#allocation4 + $0xb0] sm:$0xff]
      %v3573 = vld [vmem:[#allocation4 + $0xb8] sm:$0xff]
      %v3574 = vld [vmem:[#allocation4 + $0xc0] sm:$0xff]
      %v3575 = vld [vmem:[#allocation4 + $0xc8] sm:$0xff]
      %v3576 = vld [vmem:[#allocation4 + $0xd0] sm:$0xff]
      %v3577 = vld [vmem:[#allocation4 + $0xd8] sm:$0xff]
      %v3578 = vld [vmem:[#allocation4 + $0xe0] sm:$0xff]
      %v3579 = vld [vmem:[#allocation4 + $0xe8] sm:$0xff]
      %v3580 = vld [vmem:[#allocation4 + $0xf0] sm:$0xff]
      %v3581 = vld [vmem:[#allocation4 + $0xf8] sm:$0xff]
      %v3582 = vld [vmem:[#allocation4 + $0x100] sm:$0xff]
      %v3583 = vld [vmem:[#allocation4 + $0x108] sm:$0xff]
      %v3584 = vld [vmem:[#allocation4 + $0x110] sm:$0xff]
      %v3585 = vld [vmem:[#allocation4 + $0x118] sm:$0xff]
      %v3586 = vld [vmem:[#allocation4 + $0x120] sm:$0xff]
      %v3587 = vld [vmem:[#allocation4 + $0x128] sm:$0xff]
      %v3588 = vld [vmem:[#allocation4 + $0x130] sm:$0xff]
      %v3589 = vld [vmem:[#allocation4 + $0x138] sm:$0xff]
      %v3590 = vld [vmem:[#allocation4 + $0x140] sm:$0xff]
      %v3591 = vld [vmem:[#allocation4 + $0x148] sm:$0xff]
      %v3592 = vld [vmem:[#allocation4 + $0x150] sm:$0xff]
      %v3593 = vld [vmem:[#allocation4 + $0x158] sm:$0xff]
      %v3594 = vld [vmem:[#allocation4 + $0x160] sm:$0xff]
      %v3595 = vld [vmem:[#allocation4 + $0x168] sm:$0xff]
      %v3596 = vld [vmem:[#allocation4 + $0x170] sm:$0xff]
      %v3597 = vld [vmem:[#allocation4 + $0x178] sm:$0xff]
      %v3598 = vld [vmem:[#allocation4 + $0x180] sm:$0xff]
      %v3599 = vld [vmem:[#allocation4 + $0x188] sm:$0xff]
      %v3600 = vld [vmem:[#allocation4 + $0x190] sm:$0xff]
      %v3601 = vld [vmem:[#allocation4 + $0x198] sm:$0xff]
      %v3602 = vld [vmem:[#allocation4 + $0x1a0] sm:$0xff]
      %v3603 = vld [vmem:[#allocation4 + $0x1a8] sm:$0xff]
      %v3604 = vld [vmem:[#allocation4 + $0x1b0] sm:$0xff]
      %v3605 = vld [vmem:[#allocation4 + $0x1b8] sm:$0xff]
      %3606 = vmatprep.subr.mxu0 %v3551
      %3607 = vmatpush1.msra.mxu0 %v3550
      %3608 = vmatprep.subr.mxu0 %v3555
      %3609 = vmatpush1.msra.mxu0 %v3554
      %3610 = vmatprep.subr.mxu0 %v3559
      %3611 = vmatpush1.msra.mxu0 %v3558
      %3612 = vmatprep.subr.mxu0 %v3563
      %3613 = vmatpush1.msra.mxu0 %v3562
      %3614 = vmatprep.subr.mxu0 %v3567
      %3615 = vmatpush1.msra.mxu0 %v3566
      %3616 = vmatprep.subr.mxu0 %v3571
      %3617 = vmatpush1.msra.mxu0 %v3570
      %3618 = vmatprep.subr.mxu0 %v3575
      %3619 = vmatpush1.msra.mxu0 %v3574
      %3620 = vmatprep.subr.mxu0 %v3579
      %3621 = vmatpush1.msra.mxu0 %v3578
      %3622 = vmatprep.subr.mxu0 %v3583
      %3623 = vmatpush1.msra.mxu0 %v3582
      %3624 = vmatprep.subr.mxu0 %v3587
      %3625 = vmatpush1.msra.mxu0 %v3586
      %3626 = vmatprep.subr.mxu0 %v3591
      %3627 = vmatpush1.msra.mxu0 %v3590
      %3628 = vmatprep.subr.mxu0 %v3595
      %3629 = vmatpush1.msra.mxu0 %v3594
      %3630 = vmatprep.subr.mxu0 %v3599
      %3631 = vmatpush1.msra.mxu0 %v3598
      %3632 = vmatprep.subr.mxu0 %v3603
      %3633 = vmatpush1.msra.mxu0 %v3602
      %3634 = vmatprep.subr.mxu0 0.0
      %3635 = vmatpush1.msra.mxu0 0.0
      %3636 = vmatprep.subr.mxu0 0.0
      %3637 = vmatpush1.msra.mxu0 0.0
      %3638 = vmatprep.subr.mxu0 0.0
      %3639 = vmatpush1.msra.mxu0 0.0
      %3640 = vmatprep.subr.mxu0 0.0
      %3641 = vmatpush1.msra.mxu0 0.0
      %3642 = vmatprep.subr.mxu0 0.0
      %3643 = vmatpush1.msra.mxu0 0.0
      %3644 = vmatprep.subr.mxu0 0.0
      %3645 = vmatpush1.msra.mxu0 0.0
      %3646 = vmatprep.subr.mxu0 0.0
      %3647 = vmatpush1.msra.mxu0 0.0
      %3648 = vmatprep.subr.mxu0 0.0
      %3649 = vmatpush1.msra.mxu0 0.0
      %3650 = vmatprep.subr.mxu0 0.0
      %3651 = vmatpush1.msra.mxu0 0.0
      %3652 = vmatprep.subr.mxu0 0.0
      %3653 = vmatpush1.msra.mxu0 0.0
      %3654 = vmatprep.subr.mxu0 0.0
      %3655 = vmatpush1.msra.mxu0 0.0
      %3656 = vmatprep.subr.mxu0 0.0
      %3657 = vmatpush1.msra.mxu0 0.0
      %3658 = vmatprep.subr.mxu0 0.0
      %3659 = vmatpush1.msra.mxu0 0.0
      %3660 = vmatprep.subr.mxu0 0.0
      %3661 = vmatpush1.msra.mxu0 0.0
      %3662 = vmatprep.subr.mxu0 0.0
      %3663 = vmatpush1.msra.mxu0 0.0
      %3664 = vmatprep.subr.mxu0 0.0
      %3665 = vmatpush1.msra.mxu0 0.0
      %3666 = vmatprep.subr.mxu0 0.0
      %3667 = vmatpush1.msra.mxu0 0.0
      %3668 = vmatprep.subr.mxu0 0.0
      %3669 = vmatpush1.msra.mxu0 0.0
      %3670 = vmatprep.mubr.f32.mxu0 0.0
      %3671 = vmatmul.mubr.f32.gmra.mrb[0].mxu0 %v3364
      %v3672 = vpop.f32.mrb[0].mxu0
      %v3673 = vadd.f32 0.0, %v3672
      %v3674 = vpop.f32.mrb[0].mxu0
      %v3675 = vadd.f32 0.0, %v3674
      %3676 = vmatprep.mubr.f32.mxu0 0.0
      %3677 = vmatmul.mubr.f32.gmra.mrb[0].mxu0 %v3366
      %v3678 = vpop.f32.mrb[0].mxu0
      %v3679 = vadd.f32 0.0, %v3678
      %v3680 = vpop.f32.mrb[0].mxu0
      %v3681 = vadd.f32 0.0, %v3680
      %3682 = vdwg.mxu0
      %3683 = vmatprep.subr.mxu0 %v3553
      %3684 = vmatpush1.msra.mxu0 %v3552
      %3685 = vmatprep.subr.mxu0 %v3557
      %3686 = vmatpush1.msra.mxu0 %v3556
      %3687 = vmatprep.subr.mxu0 %v3561
      %3688 = vmatpush1.msra.mxu0 %v3560
      %3689 = vmatprep.subr.mxu0 %v3565
      %3690 = vmatpush1.msra.mxu0 %v3564
      %3691 = vmatprep.subr.mxu0 %v3569
      %3692 = vmatpush1.msra.mxu0 %v3568
      %3693 = vmatprep.subr.mxu0 %v3573
      %3694 = vmatpush1.msra.mxu0 %v3572
      %3695 = vmatprep.subr.mxu0 %v3577
      %3696 = vmatpush1.msra.mxu0 %v3576
      %3697 = vmatprep.subr.mxu0 %v3581
      %3698 = vmatpush1.msra.mxu0 %v3580
      %3699 = vmatprep.subr.mxu0 %v3585
      %3700 = vmatpush1.msra.mxu0 %v3584
      %3701 = vmatprep.subr.mxu0 %v3589
      %3702 = vmatpush1.msra.mxu0 %v3588
      %3703 = vmatprep.subr.mxu0 %v3593
      %3704 = vmatpush1.msra.mxu0 %v3592
      %3705 = vmatprep.subr.mxu0 %v3597
      %3706 = vmatpush1.msra.mxu0 %v3596
      %3707 = vmatprep.subr.mxu0 %v3601
      %3708 = vmatpush1.msra.mxu0 %v3600
      %3709 = vmatprep.subr.mxu0 %v3605
      %3710 = vmatpush1.msra.mxu0 %v3604
      %3711 = vmatprep.subr.mxu0 0.0
      %3712 = vmatpush1.msra.mxu0 0.0
      %3713 = vmatprep.subr.mxu0 0.0
      %3714 = vmatpush1.msra.mxu0 0.0
      %3715 = vmatprep.subr.mxu0 0.0
      %3716 = vmatpush1.msra.mxu0 0.0
      %3717 = vmatprep.subr.mxu0 0.0
      %3718 = vmatpush1.msra.mxu0 0.0
      %3719 = vmatprep.subr.mxu0 0.0
      %3720 = vmatpush1.msra.mxu0 0.0
      %3721 = vmatprep.subr.mxu0 0.0
      %3722 = vmatpush1.msra.mxu0 0.0
      %3723 = vmatprep.subr.mxu0 0.0
      %3724 = vmatpush1.msra.mxu0 0.0
      %3725 = vmatprep.subr.mxu0 0.0
      %3726 = vmatpush1.msra.mxu0 0.0
      %3727 = vmatprep.subr.mxu0 0.0
      %3728 = vmatpush1.msra.mxu0 0.0
      %3729 = vmatprep.subr.mxu0 0.0
      %3730 = vmatpush1.msra.mxu0 0.0
      %3731 = vmatprep.subr.mxu0 0.0
      %3732 = vmatpush1.msra.mxu0 0.0
      %3733 = vmatprep.subr.mxu0 0.0
      %3734 = vmatpush1.msra.mxu0 0.0
      %3735 = vmatprep.subr.mxu0 0.0
      %3736 = vmatpush1.msra.mxu0 0.0
      %3737 = vmatprep.subr.mxu0 0.0
      %3738 = vmatpush1.msra.mxu0 0.0
      %3739 = vmatprep.subr.mxu0 0.0
      %3740 = vmatpush1.msra.mxu0 0.0
      %3741 = vmatprep.subr.mxu0 0.0
      %3742 = vmatpush1.msra.mxu0 0.0
      %3743 = vmatprep.subr.mxu0 0.0
      %3744 = vmatpush1.msra.mxu0 0.0
      %3745 = vmatprep.subr.mxu0 0.0
      %3746 = vmatpush1.msra.mxu0 0.0
      %3747 = vmatprep.mubr.f32.mxu0 0.0
      %3748 = vmatmul.mubr.f32.gmra.mrb[0].mxu0 %v3364
      %v3749 = vpop.f32.mrb[0].mxu0
      %v3750 = vadd.f32 0.0, %v3749
      %v3751 = vpop.f32.mrb[0].mxu0
      %v3752 = vadd.f32 0.0, %v3751
      %3753 = vmatprep.mubr.f32.mxu0 0.0
      %3754 = vmatmul.mubr.f32.gmra.mrb[0].mxu0 %v3366
      %v3755 = vpop.f32.mrb[0].mxu0
      %v3756 = vadd.f32 0.0, %v3755
      %v3757 = vpop.f32.mrb[0].mxu0
      %v3758 = vadd.f32 0.0, %v3757
      %3759 = vdwg.mxu0
      %v3760 = vadd.f32 %v2633, %v3439
      %v3761 = vadd.f32 %v2634, %v3441
      %v3762 = vadd.f32 %v2635, %v3528
      %v3763 = vadd.f32 %v2636, %v3530
      %v3764 = vadd.f32 %v2637, %v3445
      %v3765 = vadd.f32 %v2638, %v3447
      %v3766 = vadd.f32 %v2639, %v3534
      %v3767 = vadd.f32 %v2640, %v3536
      %v3768 = vadd.f32 %v3760, %v3451
      %v3769 = vadd.f32 %v3761, %v3453
      %v3770 = vadd.f32 %v3762, %v3540
      %v3771 = vadd.f32 %v3763, %v3542
      %v3772 = vadd.f32 %v3764, %v3457
      %v3773 = vadd.f32 %v3765, %v3459
      %v3774 = vadd.f32 %v3766, %v3546
      %v3775 = vadd.f32 %v3767, %v3548
      %v3776 = vadd.f32 %v3768, %v3673
      %v3777 = vadd.f32 %v3769, %v3675
      %v3778 = vadd.f32 %v3770, %v3750
      %v3779 = vadd.f32 %v3771, %v3752
      %v3780 = vadd.f32 %v3772, %v3679
      %v3781 = vadd.f32 %v3773, %v3681
      %v3782 = vadd.f32 %v3774, %v3756
      %v3783 = vadd.f32 %v3775, %v3758
      %3784 = vrot.lane.b32.xlu0 %v401, 65
      %v3785 = vpop.permute.xlu0 %3784
      %v3786 = vsel %vm608, %v607, %v3785
      %3788 = vst [vmem:[#allocation3] sm:$0xff] %v610
      %3789 = vst [vmem:[#allocation3 + $0x8] sm:$0xff] %v611
      %3790 = vst [vmem:[#allocation3 + $0x10] sm:$0xff] %v612
      %3791 = vst [vmem:[#allocation3 + $0x18] sm:$0xff] %v3786
      %3792 = vrot.lane.b32.xlu0 %v407, 65
      %v3793 = vpop.permute.xlu0 %3792
      %v3794 = vsel %vm608, %v630, %v3793
      %3796 = vst [vmem:[#allocation5] sm:$0xff] %v632
      %3797 = vst [vmem:[#allocation5 + $0x8] sm:$0xff] %v633
      %3798 = vst [vmem:[#allocation5 + $0x10] sm:$0xff] %v634
      %3799 = vst [vmem:[#allocation5 + $0x18] sm:$0xff] %v3794
      %3800 = vrot.lane.b32.xlu0 %v401, 64
      %v3801 = vpop.permute.xlu0 %3800
      %v3802 = vsel %vm653, %v652, %v3801
      %3804 = vst [vmem:[#allocation3 + $0x20] sm:$0xff] %v655
      %3805 = vst [vmem:[#allocation3 + $0x28] sm:$0xff] %v656
      %3806 = vst [vmem:[#allocation3 + $0x30] sm:$0xff] %v657
      %3807 = vst [vmem:[#allocation3 + $0x38] sm:$0xff] %v3802
      %3808 = vrot.lane.b32.xlu0 %v407, 64
      %v3809 = vpop.permute.xlu0 %3808
      %v3810 = vsel %vm653, %v675, %v3809
      %3812 = vst [vmem:[#allocation5 + $0x20] sm:$0xff] %v677
      %3813 = vst [vmem:[#allocation5 + $0x28] sm:$0xff] %v678
      %3814 = vst [vmem:[#allocation5 + $0x30] sm:$0xff] %v679
      %3815 = vst [vmem:[#allocation5 + $0x38] sm:$0xff] %v3810
      %3816 = vrot.lane.b32.xlu0 %v401, 63
      %v3817 = vpop.permute.xlu0 %3816
      %v3818 = vsel %vm698, %v697, %v3817
      %3820 = vst [vmem:[#allocation3 + $0x40] sm:$0xff] %v700
      %3821 = vst [vmem:[#allocation3 + $0x48] sm:$0xff] %v701
      %3822 = vst [vmem:[#allocation3 + $0x50] sm:$0xff] %v702
      %3823 = vst [vmem:[#allocation3 + $0x58] sm:$0xff] %v3818
      %3824 = vrot.lane.b32.xlu0 %v407, 63
      %v3825 = vpop.permute.xlu0 %3824
      %v3826 = vsel %vm698, %v720, %v3825
      %3828 = vst [vmem:[#allocation5 + $0x40] sm:$0xff] %v722
      %3829 = vst [vmem:[#allocation5 + $0x48] sm:$0xff] %v723
      %3830 = vst [vmem:[#allocation5 + $0x50] sm:$0xff] %v724
      %3831 = vst [vmem:[#allocation5 + $0x58] sm:$0xff] %v3826
      %3832 = vrot.lane.b32.xlu0 %v397, 62
      %v3833 = vpop.permute.xlu0 %3832
      %3834 = vrot.lane.b32.xlu0 %v398, 62
      %v3835 = vpop.permute.xlu0 %3834
      %3836 = vrot.lane.b32.xlu0 %v399, 62
      %v3837 = vpop.permute.xlu0 %3836
      %3838 = vrot.lane.b32.xlu0 %v400, 62
      %v3839 = vpop.permute.xlu0 %3838
      %3840 = vrot.lane.b32.xlu0 %v401, 62
      %v3841 = vpop.permute.xlu0 %3840
      %vm3842 = vcmask 506880
      %v3843 = vsel %vm3842, %v3833, %v3835
      %v3844 = vsel %vm3842, %v3835, %v3837
      %v3845 = vsel %vm3842, %v3837, %v3839
      %v3846 = vsel %vm3842, %v3839, %v3841
      %3851 = vst [vmem:[#allocation3 + $0x60] sm:$0xff] %v3843
      %3852 = vst [vmem:[#allocation3 + $0x68] sm:$0xff] %v3844
      %3853 = vst [vmem:[#allocation3 + $0x70] sm:$0xff] %v3845
      %3854 = vst [vmem:[#allocation3 + $0x78] sm:$0xff] %v3846
      %3855 = vrot.lane.b32.xlu0 %v403, 62
      %v3856 = vpop.permute.xlu0 %3855
      %3857 = vrot.lane.b32.xlu0 %v404, 62
      %v3858 = vpop.permute.xlu0 %3857
      %3859 = vrot.lane.b32.xlu0 %v405, 62
      %v3860 = vpop.permute.xlu0 %3859
      %3861 = vrot.lane.b32.xlu0 %v406, 62
      %v3862 = vpop.permute.xlu0 %3861
      %3863 = vrot.lane.b32.xlu0 %v407, 62
      %v3864 = vpop.permute.xlu0 %3863
      %v3865 = vsel %vm3842, %v3856, %v3858
      %v3866 = vsel %vm3842, %v3858, %v3860
      %v3867 = vsel %vm3842, %v3860, %v3862
      %v3868 = vsel %vm3842, %v3862, %v3864
      %3873 = vst [vmem:[#allocation5 + $0x60] sm:$0xff] %v3865
      %3874 = vst [vmem:[#allocation5 + $0x68] sm:$0xff] %v3866
      %3875 = vst [vmem:[#allocation5 + $0x70] sm:$0xff] %v3867
      %3876 = vst [vmem:[#allocation5 + $0x78] sm:$0xff] %v3868
      %3877 = vrot.lane.b32.xlu0 %v397, 61
      %v3878 = vpop.permute.xlu0 %3877
      %3879 = vrot.lane.b32.xlu0 %v398, 61
      %v3880 = vpop.permute.xlu0 %3879
      %3881 = vrot.lane.b32.xlu0 %v399, 61
      %v3882 = vpop.permute.xlu0 %3881
      %3883 = vrot.lane.b32.xlu0 %v400, 61
      %v3884 = vpop.permute.xlu0 %3883
      %3885 = vrot.lane.b32.xlu0 %v401, 61
      %v3886 = vpop.permute.xlu0 %3885
      %vm3887 = vcmask 498688
      %v3888 = vsel %vm3887, %v3878, %v3880
      %v3889 = vsel %vm3887, %v3880, %v3882
      %v3890 = vsel %vm3887, %v3882, %v3884
      %v3891 = vsel %vm3887, %v3884, %v3886
      %3896 = vst [vmem:[#allocation3 + $0x80] sm:$0xff] %v3888
      %3897 = vst [vmem:[#allocation3 + $0x88] sm:$0xff] %v3889
      %3898 = vst [vmem:[#allocation3 + $0x90] sm:$0xff] %v3890
      %3899 = vst [vmem:[#allocation3 + $0x98] sm:$0xff] %v3891
      %3900 = vrot.lane.b32.xlu0 %v403, 61
      %v3901 = vpop.permute.xlu0 %3900
      %3902 = vrot.lane.b32.xlu0 %v404, 61
      %v3903 = vpop.permute.xlu0 %3902
      %3904 = vrot.lane.b32.xlu0 %v405, 61
      %v3905 = vpop.permute.xlu0 %3904
      %3906 = vrot.lane.b32.xlu0 %v406, 61
      %v3907 = vpop.permute.xlu0 %3906
      %3908 = vrot.lane.b32.xlu0 %v407, 61
      %v3909 = vpop.permute.xlu0 %3908
      %v3910 = vsel %vm3887, %v3901, %v3903
      %v3911 = vsel %vm3887, %v3903, %v3905
      %v3912 = vsel %vm3887, %v3905, %v3907
      %v3913 = vsel %vm3887, %v3907, %v3909
      %3918 = vst [vmem:[#allocation5 + $0x80] sm:$0xff] %v3910
      %3919 = vst [vmem:[#allocation5 + $0x88] sm:$0xff] %v3911
      %3920 = vst [vmem:[#allocation5 + $0x90] sm:$0xff] %v3912
      %3921 = vst [vmem:[#allocation5 + $0x98] sm:$0xff] %v3913
      %3922 = vrot.lane.b32.xlu0 %v397, 60
      %v3923 = vpop.permute.xlu0 %3922
      %3924 = vrot.lane.b32.xlu0 %v398, 60
      %v3925 = vpop.permute.xlu0 %3924
      %3926 = vrot.lane.b32.xlu0 %v399, 60
      %v3927 = vpop.permute.xlu0 %3926
      %3928 = vrot.lane.b32.xlu0 %v400, 60
      %v3929 = vpop.permute.xlu0 %3928
      %3930 = vrot.lane.b32.xlu0 %v401, 60
      %v3931 = vpop.permute.xlu0 %3930
      %vm3932 = vcmask 490496
      %v3933 = vsel %vm3932, %v3923, %v3925
      %v3934 = vsel %vm3932, %v3925, %v3927
      %v3935 = vsel %vm3932, %v3927, %v3929
      %v3936 = vsel %vm3932, %v3929, %v3931
      %3941 = vst [vmem:[#allocation3 + $0xa0] sm:$0xff] %v3933
      %3942 = vst [vmem:[#allocation3 + $0xa8] sm:$0xff] %v3934
      %3943 = vst [vmem:[#allocation3 + $0xb0] sm:$0xff] %v3935
      %3944 = vst [vmem:[#allocation3 + $0xb8] sm:$0xff] %v3936
      %3945 = vrot.lane.b32.xlu0 %v403, 60
      %v3946 = vpop.permute.xlu0 %3945
      %3947 = vrot.lane.b32.xlu0 %v404, 60
      %v3948 = vpop.permute.xlu0 %3947
      %3949 = vrot.lane.b32.xlu0 %v405, 60
      %v3950 = vpop.permute.xlu0 %3949
      %3951 = vrot.lane.b32.xlu0 %v406, 60
      %v3952 = vpop.permute.xlu0 %3951
      %3953 = vrot.lane.b32.xlu0 %v407, 60
      %v3954 = vpop.permute.xlu0 %3953
      %v3955 = vsel %vm3932, %v3946, %v3948
      %v3956 = vsel %vm3932, %v3948, %v3950
      %v3957 = vsel %vm3932, %v3950, %v3952
      %v3958 = vsel %vm3932, %v3952, %v3954
      %3963 = vst [vmem:[#allocation5 + $0xa0] sm:$0xff] %v3955
      %3964 = vst [vmem:[#allocation5 + $0xa8] sm:$0xff] %v3956
      %3965 = vst [vmem:[#allocation5 + $0xb0] sm:$0xff] %v3957
      %3966 = vst [vmem:[#allocation5 + $0xb8] sm:$0xff] %v3958
      %3967 = vrot.lane.b32.xlu0 %v397, 59
      %v3968 = vpop.permute.xlu0 %3967
      %3969 = vrot.lane.b32.xlu0 %v398, 59
      %v3970 = vpop.permute.xlu0 %3969
      %3971 = vrot.lane.b32.xlu0 %v399, 59
      %v3972 = vpop.permute.xlu0 %3971
      %3973 = vrot.lane.b32.xlu0 %v400, 59
      %v3974 = vpop.permute.xlu0 %3973
      %3975 = vrot.lane.b32.xlu0 %v401, 59
      %v3976 = vpop.permute.xlu0 %3975
      %vm3977 = vcmask 482304
      %v3978 = vsel %vm3977, %v3968, %v3970
      %v3979 = vsel %vm3977, %v3970, %v3972
      %v3980 = vsel %vm3977, %v3972, %v3974
      %v3981 = vsel %vm3977, %v3974, %v3976
      %3986 = vst [vmem:[#allocation3 + $0xc0] sm:$0xff] %v3978
      %3987 = vst [vmem:[#allocation3 + $0xc8] sm:$0xff] %v3979
      %3988 = vst [vmem:[#allocation3 + $0xd0] sm:$0xff] %v3980
      %3989 = vst [vmem:[#allocation3 + $0xd8] sm:$0xff] %v3981
      %3990 = vrot.lane.b32.xlu0 %v403, 59
      %v3991 = vpop.permute.xlu0 %3990
      %3992 = vrot.lane.b32.xlu0 %v404, 59
      %v3993 = vpop.permute.xlu0 %3992
      %3994 = vrot.lane.b32.xlu0 %v405, 59
      %v3995 = vpop.permute.xlu0 %3994
      %3996 = vrot.lane.b32.xlu0 %v406, 59
      %v3997 = vpop.permute.xlu0 %3996
      %3998 = vrot.lane.b32.xlu0 %v407, 59
      %v3999 = vpop.permute.xlu0 %3998
      %v4000 = vsel %vm3977, %v3991, %v3993
      %v4001 = vsel %vm3977, %v3993, %v3995
      %v4002 = vsel %vm3977, %v3995, %v3997
      %v4003 = vsel %vm3977, %v3997, %v3999
      %4008 = vst [vmem:[#allocation5 + $0xc0] sm:$0xff] %v4000
      %4009 = vst [vmem:[#allocation5 + $0xc8] sm:$0xff] %v4001
      %4010 = vst [vmem:[#allocation5 + $0xd0] sm:$0xff] %v4002
      %4011 = vst [vmem:[#allocation5 + $0xd8] sm:$0xff] %v4003
      %v4012 = vld [vmem:[%s2 + $0x10] sm:$0xff]
      %v4013 = vld [vmem:[%s2 + $0x18] sm:$0xff]
      %v4014 = vld [vmem:[%s2 + $0x30] sm:$0xff]
      %v4015 = vld [vmem:[%s2 + $0x38] sm:$0xff]
      %v4016 = vld [vmem:[%s2 + $0x50] sm:$0xff]
      %v4017 = vld [vmem:[%s2 + $0x58] sm:$0xff]
      %v4018 = vld [vmem:[%s2 + $0x70] sm:$0xff]
      %v4019 = vld [vmem:[%s2 + $0x78] sm:$0xff]
      %v4020 = vld [vmem:[#allocation3] sm:$0xff]
      %v4021 = vld [vmem:[#allocation3 + $0x8] sm:$0xff]
      %v4022 = vld [vmem:[#allocation3 + $0x10] sm:$0xff]
      %v4023 = vld [vmem:[#allocation3 + $0x18] sm:$0xff]
      %v4024 = vld [vmem:[#allocation3 + $0x20] sm:$0xff]
      %v4025 = vld [vmem:[#allocation3 + $0x28] sm:$0xff]
      %v4026 = vld [vmem:[#allocation3 + $0x30] sm:$0xff]
      %v4027 = vld [vmem:[#allocation3 + $0x38] sm:$0xff]
      %v4028 = vld [vmem:[#allocation3 + $0x40] sm:$0xff]
      %v4029 = vld [vmem:[#allocation3 + $0x48] sm:$0xff]
      %v4030 = vld [vmem:[#allocation3 + $0x50] sm:$0xff]
      %v4031 = vld [vmem:[#allocation3 + $0x58] sm:$0xff]
      %v4032 = vld [vmem:[#allocation3 + $0x60] sm:$0xff]
      %v4033 = vld [vmem:[#allocation3 + $0x68] sm:$0xff]
      %v4034 = vld [vmem:[#allocation3 + $0x70] sm:$0xff]
      %v4035 = vld [vmem:[#allocation3 + $0x78] sm:$0xff]
      %v4036 = vld [vmem:[#allocation3 + $0x80] sm:$0xff]
      %v4037 = vld [vmem:[#allocation3 + $0x88] sm:$0xff]
      %v4038 = vld [vmem:[#allocation3 + $0x90] sm:$0xff]
      %v4039 = vld [vmem:[#allocation3 + $0x98] sm:$0xff]
      %v4040 = vld [vmem:[#allocation3 + $0xa0] sm:$0xff]
      %v4041 = vld [vmem:[#allocation3 + $0xa8] sm:$0xff]
      %v4042 = vld [vmem:[#allocation3 + $0xb0] sm:$0xff]
      %v4043 = vld [vmem:[#allocation3 + $0xb8] sm:$0xff]
      %v4044 = vld [vmem:[#allocation3 + $0xc0] sm:$0xff]
      %v4045 = vld [vmem:[#allocation3 + $0xc8] sm:$0xff]
      %v4046 = vld [vmem:[#allocation3 + $0xd0] sm:$0xff]
      %v4047 = vld [vmem:[#allocation3 + $0xd8] sm:$0xff]
      %4056 = vrot.lane.b32.xlu0 %v4012, 48
      %v4057 = vpop.permute.xlu0 %4056
      %4058 = vrot.lane.b32.xlu0 %v4013, 48
      %v4059 = vpop.permute.xlu0 %4058
      %4060 = vrot.lane.b32.xlu0 %v4014, 48
      %v4061 = vpop.permute.xlu0 %4060
      %4062 = vrot.lane.b32.xlu0 %v4015, 48
      %v4063 = vpop.permute.xlu0 %4062
      %4064 = vrot.lane.b32.xlu0 %v4016, 48
      %v4065 = vpop.permute.xlu0 %4064
      %4066 = vrot.lane.b32.xlu0 %v4017, 48
      %v4067 = vpop.permute.xlu0 %4066
      %4068 = vrot.lane.b32.xlu0 %v4018, 48
      %v4069 = vpop.permute.xlu0 %4068
      %4070 = vrot.lane.b32.xlu0 %v4019, 48
      %v4071 = vpop.permute.xlu0 %4070
      %vm4072 = vcmask 392192
      %v4073 = vsel %vm4072, %v4057, %v4059
      %v4074 = vsel %vm4072, %v4061, %v4063
      %v4075 = vsel %vm4072, %v4065, %v4067
      %v4076 = vsel %vm4072, %v4069, %v4071
      %vm4077 = vcmask 457728
      %v4078 = vsel %vm4077, %v4073, 0
      %v4080 = vsel %vm4077, %v4074, 0
      %v4082 = vsel %vm4077, %v4075, 0
      %v4084 = vsel %vm4077, %v4076, 0
      %4086 = vmatprep.subr.mxu0 %v4021
      %4087 = vmatpush1.msra.mxu0 %v4020
      %4088 = vmatprep.subr.mxu0 %v4025
      %4089 = vmatpush1.msra.mxu0 %v4024
      %4090 = vmatprep.subr.mxu0 %v4029
      %4091 = vmatpush1.msra.mxu0 %v4028
      %4092 = vmatprep.subr.mxu0 %v4033
      %4093 = vmatpush1.msra.mxu0 %v4032
      %4094 = vmatprep.subr.mxu0 %v4037
      %4095 = vmatpush1.msra.mxu0 %v4036
      %4096 = vmatprep.subr.mxu0 %v4041
      %4097 = vmatpush1.msra.mxu0 %v4040
      %4098 = vmatprep.subr.mxu0 %v4045
      %4099 = vmatpush1.msra.mxu0 %v4044
      %4100 = vmatprep.subr.mxu0 0.0
      %4101 = vmatpush1.msra.mxu0 0.0
      %4102 = vmatprep.subr.mxu0 0.0
      %4103 = vmatpush1.msra.mxu0 0.0
      %4104 = vmatprep.subr.mxu0 0.0
      %4105 = vmatpush1.msra.mxu0 0.0
      %4106 = vmatprep.subr.mxu0 0.0
      %4107 = vmatpush1.msra.mxu0 0.0
      %4108 = vmatprep.subr.mxu0 0.0
      %4109 = vmatpush1.msra.mxu0 0.0
      %4110 = vmatprep.subr.mxu0 0.0
      %4111 = vmatpush1.msra.mxu0 0.0
      %4112 = vmatprep.subr.mxu0 0.0
      %4113 = vmatpush1.msra.mxu0 0.0
      %4114 = vmatprep.subr.mxu0 0.0
      %4115 = vmatpush1.msra.mxu0 0.0
      %4116 = vmatprep.subr.mxu0 0.0
      %4117 = vmatpush1.msra.mxu0 0.0
      %4118 = vmatprep.subr.mxu0 0.0
      %4119 = vmatpush1.msra.mxu0 0.0
      %4120 = vmatprep.subr.mxu0 0.0
      %4121 = vmatpush1.msra.mxu0 0.0
      %4122 = vmatprep.subr.mxu0 0.0
      %4123 = vmatpush1.msra.mxu0 0.0
      %4124 = vmatprep.subr.mxu0 0.0
      %4125 = vmatpush1.msra.mxu0 0.0
      %4126 = vmatprep.subr.mxu0 0.0
      %4127 = vmatpush1.msra.mxu0 0.0
      %4128 = vmatprep.subr.mxu0 0.0
      %4129 = vmatpush1.msra.mxu0 0.0
      %4130 = vmatprep.subr.mxu0 0.0
      %4131 = vmatpush1.msra.mxu0 0.0
      %4132 = vmatprep.subr.mxu0 0.0
      %4133 = vmatpush1.msra.mxu0 0.0
      %4134 = vmatprep.subr.mxu0 0.0
      %4135 = vmatpush1.msra.mxu0 0.0
      %4136 = vmatprep.subr.mxu0 0.0
      %4137 = vmatpush1.msra.mxu0 0.0
      %4138 = vmatprep.subr.mxu0 0.0
      %4139 = vmatpush1.msra.mxu0 0.0
      %4140 = vmatprep.subr.mxu0 0.0
      %4141 = vmatpush1.msra.mxu0 0.0
      %4142 = vmatprep.subr.mxu0 0.0
      %4143 = vmatpush1.msra.mxu0 0.0
      %4144 = vmatprep.subr.mxu0 0.0
      %4145 = vmatpush1.msra.mxu0 0.0
      %4146 = vmatprep.subr.mxu0 0.0
      %4147 = vmatpush1.msra.mxu0 0.0
      %4148 = vmatprep.subr.mxu0 0.0
      %4149 = vmatpush1.msra.mxu0 0.0
      %4150 = vmatprep.mubr.f32.mxu0 0.0
      %4151 = vmatmul.mubr.f32.gmra.mrb[0].mxu0 %v4078
      %v4152 = vpop.f32.mrb[0].mxu0
      %v4153 = vadd.f32 0.0, %v4152
      %v4154 = vpop.f32.mrb[0].mxu0
      %v4155 = vadd.f32 0.0, %v4154
      %4156 = vmatprep.mubr.f32.mxu0 0.0
      %4157 = vmatmul.mubr.f32.gmra.mrb[0].mxu0 %v4080
      %v4158 = vpop.f32.mrb[0].mxu0
      %v4159 = vadd.f32 0.0, %v4158
      %v4160 = vpop.f32.mrb[0].mxu0
      %v4161 = vadd.f32 0.0, %v4160
      %4162 = vmatprep.mubr.f32.mxu0 0.0
      %4163 = vmatmul.mubr.f32.gmra.mrb[0].mxu0 %v4082
      %v4164 = vpop.f32.mrb[0].mxu0
      %v4165 = vadd.f32 0.0, %v4164
      %v4166 = vpop.f32.mrb[0].mxu0
      %v4167 = vadd.f32 0.0, %v4166
      %4168 = vmatprep.mubr.f32.mxu0 0.0
      %4169 = vmatmul.mubr.f32.gmra.mrb[0].mxu0 %v4084
      %v4170 = vpop.f32.mrb[0].mxu0
      %v4171 = vadd.f32 0.0, %v4170
      %v4172 = vpop.f32.mrb[0].mxu0
      %v4173 = vadd.f32 0.0, %v4172
      %4174 = vdwg.mxu0
      %4175 = vmatprep.subr.mxu0 %v4023
      %4176 = vmatpush1.msra.mxu0 %v4022
      %4177 = vmatprep.subr.mxu0 %v4027
      %4178 = vmatpush1.msra.mxu0 %v4026
      %4179 = vmatprep.subr.mxu0 %v4031
      %4180 = vmatpush1.msra.mxu0 %v4030
      %4181 = vmatprep.subr.mxu0 %v4035
      %4182 = vmatpush1.msra.mxu0 %v4034
      %4183 = vmatprep.subr.mxu0 %v4039
      %4184 = vmatpush1.msra.mxu0 %v4038
      %4185 = vmatprep.subr.mxu0 %v4043
      %4186 = vmatpush1.msra.mxu0 %v4042
      %4187 = vmatprep.subr.mxu0 %v4047
      %4188 = vmatpush1.msra.mxu0 %v4046
      %4189 = vmatprep.subr.mxu0 0.0
      %4190 = vmatpush1.msra.mxu0 0.0
      %4191 = vmatprep.subr.mxu0 0.0
      %4192 = vmatpush1.msra.mxu0 0.0
      %4193 = vmatprep.subr.mxu0 0.0
      %4194 = vmatpush1.msra.mxu0 0.0
      %4195 = vmatprep.subr.mxu0 0.0
      %4196 = vmatpush1.msra.mxu0 0.0
      %4197 = vmatprep.subr.mxu0 0.0
      %4198 = vmatpush1.msra.mxu0 0.0
      %4199 = vmatprep.subr.mxu0 0.0
      %4200 = vmatpush1.msra.mxu0 0.0
      %4201 = vmatprep.subr.mxu0 0.0
      %4202 = vmatpush1.msra.mxu0 0.0
      %4203 = vmatprep.subr.mxu0 0.0
      %4204 = vmatpush1.msra.mxu0 0.0
      %4205 = vmatprep.subr.mxu0 0.0
      %4206 = vmatpush1.msra.mxu0 0.0
      %4207 = vmatprep.subr.mxu0 0.0
      %4208 = vmatpush1.msra.mxu0 0.0
      %4209 = vmatprep.subr.mxu0 0.0
      %4210 = vmatpush1.msra.mxu0 0.0
      %4211 = vmatprep.subr.mxu0 0.0
      %4212 = vmatpush1.msra.mxu0 0.0
      %4213 = vmatprep.subr.mxu0 0.0
      %4214 = vmatpush1.msra.mxu0 0.0
      %4215 = vmatprep.subr.mxu0 0.0
      %4216 = vmatpush1.msra.mxu0 0.0
      %4217 = vmatprep.subr.mxu0 0.0
      %4218 = vmatpush1.msra.mxu0 0.0
      %4219 = vmatprep.subr.mxu0 0.0
      %4220 = vmatpush1.msra.mxu0 0.0
      %4221 = vmatprep.subr.mxu0 0.0
      %4222 = vmatpush1.msra.mxu0 0.0
      %4223 = vmatprep.subr.mxu0 0.0
      %4224 = vmatpush1.msra.mxu0 0.0
      %4225 = vmatprep.subr.mxu0 0.0
      %4226 = vmatpush1.msra.mxu0 0.0
      %4227 = vmatprep.subr.mxu0 0.0
      %4228 = vmatpush1.msra.mxu0 0.0
      %4229 = vmatprep.subr.mxu0 0.0
      %4230 = vmatpush1.msra.mxu0 0.0
      %4231 = vmatprep.subr.mxu0 0.0
      %4232 = vmatpush1.msra.mxu0 0.0
      %4233 = vmatprep.subr.mxu0 0.0
      %4234 = vmatpush1.msra.mxu0 0.0
      %4235 = vmatprep.subr.mxu0 0.0
      %4236 = vmatpush1.msra.mxu0 0.0
      %4237 = vmatprep.subr.mxu0 0.0
      %4238 = vmatpush1.msra.mxu0 0.0
      %4239 = vmatprep.mubr.f32.mxu0 0.0
      %4240 = vmatmul.mubr.f32.gmra.mrb[0].mxu0 %v4078
      %v4241 = vpop.f32.mrb[0].mxu0
      %v4242 = vadd.f32 0.0, %v4241
      %v4243 = vpop.f32.mrb[0].mxu0
      %v4244 = vadd.f32 0.0, %v4243
      %4245 = vmatprep.mubr.f32.mxu0 0.0
      %4246 = vmatmul.mubr.f32.gmra.mrb[0].mxu0 %v4080
      %v4247 = vpop.f32.mrb[0].mxu0
      %v4248 = vadd.f32 0.0, %v4247
      %v4249 = vpop.f32.mrb[0].mxu0
      %v4250 = vadd.f32 0.0, %v4249
      %4251 = vmatprep.mubr.f32.mxu0 0.0
      %4252 = vmatmul.mubr.f32.gmra.mrb[0].mxu0 %v4082
      %v4253 = vpop.f32.mrb[0].mxu0
      %v4254 = vadd.f32 0.0, %v4253
      %v4255 = vpop.f32.mrb[0].mxu0
      %v4256 = vadd.f32 0.0, %v4255
      %4257 = vmatprep.mubr.f32.mxu0 0.0
      %4258 = vmatmul.mubr.f32.gmra.mrb[0].mxu0 %v4084
      %v4259 = vpop.f32.mrb[0].mxu0
      %v4260 = vadd.f32 0.0, %v4259
      %v4261 = vpop.f32.mrb[0].mxu0
      %v4262 = vadd.f32 0.0, %v4261
      %4263 = vdwg.mxu0
      %v4264 = vld [vmem:[#allocation5] sm:$0xff]
      %v4265 = vld [vmem:[#allocation5 + $0x8] sm:$0xff]
      %v4266 = vld [vmem:[#allocation5 + $0x10] sm:$0xff]
      %v4267 = vld [vmem:[#allocation5 + $0x18] sm:$0xff]
      %v4268 = vld [vmem:[#allocation5 + $0x20] sm:$0xff]
      %v4269 = vld [vmem:[#allocation5 + $0x28] sm:$0xff]
      %v4270 = vld [vmem:[#allocation5 + $0x30] sm:$0xff]
      %v4271 = vld [vmem:[#allocation5 + $0x38] sm:$0xff]
      %v4272 = vld [vmem:[#allocation5 + $0x40] sm:$0xff]
      %v4273 = vld [vmem:[#allocation5 + $0x48] sm:$0xff]
      %v4274 = vld [vmem:[#allocation5 + $0x50] sm:$0xff]
      %v4275 = vld [vmem:[#allocation5 + $0x58] sm:$0xff]
      %v4276 = vld [vmem:[#allocation5 + $0x60] sm:$0xff]
      %v4277 = vld [vmem:[#allocation5 + $0x68] sm:$0xff]
      %v4278 = vld [vmem:[#allocation5 + $0x70] sm:$0xff]
      %v4279 = vld [vmem:[#allocation5 + $0x78] sm:$0xff]
      %v4280 = vld [vmem:[#allocation5 + $0x80] sm:$0xff]
      %v4281 = vld [vmem:[#allocation5 + $0x88] sm:$0xff]
      %v4282 = vld [vmem:[#allocation5 + $0x90] sm:$0xff]
      %v4283 = vld [vmem:[#allocation5 + $0x98] sm:$0xff]
      %v4284 = vld [vmem:[#allocation5 + $0xa0] sm:$0xff]
      %v4285 = vld [vmem:[#allocation5 + $0xa8] sm:$0xff]
      %v4286 = vld [vmem:[#allocation5 + $0xb0] sm:$0xff]
      %v4287 = vld [vmem:[#allocation5 + $0xb8] sm:$0xff]
      %v4288 = vld [vmem:[#allocation5 + $0xc0] sm:$0xff]
      %v4289 = vld [vmem:[#allocation5 + $0xc8] sm:$0xff]
      %v4290 = vld [vmem:[#allocation5 + $0xd0] sm:$0xff]
      %v4291 = vld [vmem:[#allocation5 + $0xd8] sm:$0xff]
      %4292 = vmatprep.subr.mxu0 %v4265
      %4293 = vmatpush1.msra.mxu0 %v4264
      %4294 = vmatprep.subr.mxu0 %v4269
      %4295 = vmatpush1.msra.mxu0 %v4268
      %4296 = vmatprep.subr.mxu0 %v4273
      %4297 = vmatpush1.msra.mxu0 %v4272
      %4298 = vmatprep.subr.mxu0 %v4277
      %4299 = vmatpush1.msra.mxu0 %v4276
      %4300 = vmatprep.subr.mxu0 %v4281
      %4301 = vmatpush1.msra.mxu0 %v4280
      %4302 = vmatprep.subr.mxu0 %v4285
      %4303 = vmatpush1.msra.mxu0 %v4284
      %4304 = vmatprep.subr.mxu0 %v4289
      %4305 = vmatpush1.msra.mxu0 %v4288
      %4306 = vmatprep.subr.mxu0 0.0
      %4307 = vmatpush1.msra.mxu0 0.0
      %4308 = vmatprep.subr.mxu0 0.0
      %4309 = vmatpush1.msra.mxu0 0.0
      %4310 = vmatprep.subr.mxu0 0.0
      %4311 = vmatpush1.msra.mxu0 0.0
      %4312 = vmatprep.subr.mxu0 0.0
      %4313 = vmatpush1.msra.mxu0 0.0
      %4314 = vmatprep.subr.mxu0 0.0
      %4315 = vmatpush1.msra.mxu0 0.0
      %4316 = vmatprep.subr.mxu0 0.0
      %4317 = vmatpush1.msra.mxu0 0.0
      %4318 = vmatprep.subr.mxu0 0.0
      %4319 = vmatpush1.msra.mxu0 0.0
      %4320 = vmatprep.subr.mxu0 0.0
      %4321 = vmatpush1.msra.mxu0 0.0
      %4322 = vmatprep.subr.mxu0 0.0
      %4323 = vmatpush1.msra.mxu0 0.0
      %4324 = vmatprep.subr.mxu0 0.0
      %4325 = vmatpush1.msra.mxu0 0.0
      %4326 = vmatprep.subr.mxu0 0.0
      %4327 = vmatpush1.msra.mxu0 0.0
      %4328 = vmatprep.subr.mxu0 0.0
      %4329 = vmatpush1.msra.mxu0 0.0
      %4330 = vmatprep.subr.mxu0 0.0
      %4331 = vmatpush1.msra.mxu0 0.0
      %4332 = vmatprep.subr.mxu0 0.0
      %4333 = vmatpush1.msra.mxu0 0.0
      %4334 = vmatprep.subr.mxu0 0.0
      %4335 = vmatpush1.msra.mxu0 0.0
      %4336 = vmatprep.subr.mxu0 0.0
      %4337 = vmatpush1.msra.mxu0 0.0
      %4338 = vmatprep.subr.mxu0 0.0
      %4339 = vmatpush1.msra.mxu0 0.0
      %4340 = vmatprep.subr.mxu0 0.0
      %4341 = vmatpush1.msra.mxu0 0.0
      %4342 = vmatprep.subr.mxu0 0.0
      %4343 = vmatpush1.msra.mxu0 0.0
      %4344 = vmatprep.subr.mxu0 0.0
      %4345 = vmatpush1.msra.mxu0 0.0
      %4346 = vmatprep.subr.mxu0 0.0
      %4347 = vmatpush1.msra.mxu0 0.0
      %4348 = vmatprep.subr.mxu0 0.0
      %4349 = vmatpush1.msra.mxu0 0.0
      %4350 = vmatprep.subr.mxu0 0.0
      %4351 = vmatpush1.msra.mxu0 0.0
      %4352 = vmatprep.subr.mxu0 0.0
      %4353 = vmatpush1.msra.mxu0 0.0
      %4354 = vmatprep.subr.mxu0 0.0
      %4355 = vmatpush1.msra.mxu0 0.0
      %4356 = vmatprep.mubr.f32.mxu0 0.0
      %4357 = vmatmul.mubr.f32.gmra.mrb[0].mxu0 %v4078
      %v4358 = vpop.f32.mrb[0].mxu0
      %v4359 = vadd.f32 0.0, %v4358
      %v4360 = vpop.f32.mrb[0].mxu0
      %v4361 = vadd.f32 0.0, %v4360
      %4362 = vmatprep.mubr.f32.mxu0 0.0
      %4363 = vmatmul.mubr.f32.gmra.mrb[0].mxu0 %v4080
      %v4364 = vpop.f32.mrb[0].mxu0
      %v4365 = vadd.f32 0.0, %v4364
      %v4366 = vpop.f32.mrb[0].mxu0
      %v4367 = vadd.f32 0.0, %v4366
      %4368 = vdwg.mxu0
      %4369 = vmatprep.subr.mxu0 %v4267
      %4370 = vmatpush1.msra.mxu0 %v4266
      %4371 = vmatprep.subr.mxu0 %v4271
      %4372 = vmatpush1.msra.mxu0 %v4270
      %4373 = vmatprep.subr.mxu0 %v4275
      %4374 = vmatpush1.msra.mxu0 %v4274
      %4375 = vmatprep.subr.mxu0 %v4279
      %4376 = vmatpush1.msra.mxu0 %v4278
      %4377 = vmatprep.subr.mxu0 %v4283
      %4378 = vmatpush1.msra.mxu0 %v4282
      %4379 = vmatprep.subr.mxu0 %v4287
      %4380 = vmatpush1.msra.mxu0 %v4286
      %4381 = vmatprep.subr.mxu0 %v4291
      %4382 = vmatpush1.msra.mxu0 %v4290
      %4383 = vmatprep.subr.mxu0 0.0
      %4384 = vmatpush1.msra.mxu0 0.0
      %4385 = vmatprep.subr.mxu0 0.0
      %4386 = vmatpush1.msra.mxu0 0.0
      %4387 = vmatprep.subr.mxu0 0.0
      %4388 = vmatpush1.msra.mxu0 0.0
      %4389 = vmatprep.subr.mxu0 0.0
      %4390 = vmatpush1.msra.mxu0 0.0
      %4391 = vmatprep.subr.mxu0 0.0
      %4392 = vmatpush1.msra.mxu0 0.0
      %4393 = vmatprep.subr.mxu0 0.0
      %4394 = vmatpush1.msra.mxu0 0.0
      %4395 = vmatprep.subr.mxu0 0.0
      %4396 = vmatpush1.msra.mxu0 0.0
      %4397 = vmatprep.subr.mxu0 0.0
      %4398 = vmatpush1.msra.mxu0 0.0
      %4399 = vmatprep.subr.mxu0 0.0
      %4400 = vmatpush1.msra.mxu0 0.0
      %4401 = vmatprep.subr.mxu0 0.0
      %4402 = vmatpush1.msra.mxu0 0.0
      %4403 = vmatprep.subr.mxu0 0.0
      %4404 = vmatpush1.msra.mxu0 0.0
      %4405 = vmatprep.subr.mxu0 0.0
      %4406 = vmatpush1.msra.mxu0 0.0
      %4407 = vmatprep.subr.mxu0 0.0
      %4408 = vmatpush1.msra.mxu0 0.0
      %4409 = vmatprep.subr.mxu0 0.0
      %4410 = vmatpush1.msra.mxu0 0.0
      %4411 = vmatprep.subr.mxu0 0.0
      %4412 = vmatpush1.msra.mxu0 0.0
      %4413 = vmatprep.subr.mxu0 0.0
      %4414 = vmatpush1.msra.mxu0 0.0
      %4415 = vmatprep.subr.mxu0 0.0
      %4416 = vmatpush1.msra.mxu0 0.0
      %4417 = vmatprep.subr.mxu0 0.0
      %4418 = vmatpush1.msra.mxu0 0.0
      %4419 = vmatprep.subr.mxu0 0.0
      %4420 = vmatpush1.msra.mxu0 0.0
      %4421 = vmatprep.subr.mxu0 0.0
      %4422 = vmatpush1.msra.mxu0 0.0
      %4423 = vmatprep.subr.mxu0 0.0
      %4424 = vmatpush1.msra.mxu0 0.0
      %4425 = vmatprep.subr.mxu0 0.0
      %4426 = vmatpush1.msra.mxu0 0.0
      %4427 = vmatprep.subr.mxu0 0.0
      %4428 = vmatpush1.msra.mxu0 0.0
      %4429 = vmatprep.subr.mxu0 0.0
      %4430 = vmatpush1.msra.mxu0 0.0
      %4431 = vmatprep.subr.mxu0 0.0
      %4432 = vmatpush1.msra.mxu0 0.0
      %4433 = vmatprep.mubr.f32.mxu0 0.0
      %4434 = vmatmul.mubr.f32.gmra.mrb[0].mxu0 %v4078
      %v4435 = vpop.f32.mrb[0].mxu0
      %v4436 = vadd.f32 0.0, %v4435
      %v4437 = vpop.f32.mrb[0].mxu0
      %v4438 = vadd.f32 0.0, %v4437
      %4439 = vmatprep.mubr.f32.mxu0 0.0
      %4440 = vmatmul.mubr.f32.gmra.mrb[0].mxu0 %v4080
      %v4441 = vpop.f32.mrb[0].mxu0
      %v4442 = vadd.f32 0.0, %v4441
      %v4443 = vpop.f32.mrb[0].mxu0
      %v4444 = vadd.f32 0.0, %v4443
      %4445 = vdwg.mxu0
      %v4446 = vadd.f32 %v3776, %v4153
      %v4447 = vadd.f32 %v3777, %v4155
      %v4448 = vadd.f32 %v3778, %v4242
      %v4449 = vadd.f32 %v3779, %v4244
      %v4450 = vadd.f32 %v3780, %v4159
      %v4451 = vadd.f32 %v3781, %v4161
      %v4452 = vadd.f32 %v3782, %v4248
      %v4453 = vadd.f32 %v3783, %v4250
      %v4454 = vadd.f32 %v4446, %v4165
      %v4455 = vadd.f32 %v4447, %v4167
      %v4456 = vadd.f32 %v4448, %v4254
      %v4457 = vadd.f32 %v4449, %v4256
      %v4458 = vadd.f32 %v4450, %v4171
      %v4459 = vadd.f32 %v4451, %v4173
      %v4460 = vadd.f32 %v4452, %v4260
      %v4461 = vadd.f32 %v4453, %v4262
      %v4462 = vadd.f32 %v4454, %v4359
      %v4463 = vadd.f32 %v4455, %v4361
      %v4464 = vadd.f32 %v4456, %v4436
      %v4465 = vadd.f32 %v4457, %v4438
      %v4466 = vadd.f32 %v4458, %v4365
      %v4467 = vadd.f32 %v4459, %v4367
      %v4468 = vadd.f32 %v4460, %v4442
      %v4469 = vadd.f32 %v4461, %v4444
      %vm4470 = vcmp.gt.f32.partialorder %v4462, 0.0
      %vm4471 = vcmp.gt.f32.partialorder %v4463, 0.0
      %vm4472 = vcmp.gt.f32.partialorder %v4464, 0.0
      %vm4473 = vcmp.gt.f32.partialorder %v4465, 0.0
      %v4474 = vstv %s384
      %v4475 = vmul.f32 %v4474, %v4462
      %v4476 = vmul.f32 %v4474, %v4463
      %v4477 = vmul.f32 %v4474, %v4464
      %v4478 = vmul.f32 %v4474, %v4465
      %v4479 = vsel %vm4470, %v4462, %v4475
      %v4480 = vsel %vm4471, %v4463, %v4476
      %v4481 = vsel %vm4472, %v4464, %v4477
      %v4482 = vsel %vm4473, %v4465, %v4478
      %vm4483 = vcmp.gt.f32.partialorder %v4466, 0.0
      %vm4484 = vcmp.gt.f32.partialorder %v4467, 0.0
      %vm4485 = vcmp.gt.f32.partialorder %v4468, 0.0
      %vm4486 = vcmp.gt.f32.partialorder %v4469, 0.0
      %v4487 = vstv %s385
      %v4488 = vmul.f32 %v4487, %v4466
      %v4489 = vmul.f32 %v4487, %v4467
      %v4490 = vmul.f32 %v4487, %v4468
      %v4491 = vmul.f32 %v4487, %v4469
      %v4492 = vsel %vm4483, %v4466, %v4488
      %v4493 = vsel %vm4484, %v4467, %v4489
      %v4494 = vsel %vm4485, %v4468, %v4490
      %v4495 = vsel %vm4486, %v4469, %v4491
      %v4496 = vsub.f32 %v4479, %v4492
      %v4497 = vsub.f32 %v4480, %v4493
      %v4498 = vsub.f32 %v4481, %v4494
      %v4499 = vsub.f32 %v4482, %v4495
      %v4500 = vand.u32 2147483647, %v4496
      %v4501 = vand.u32 2147483647, %v4497
      %v4502 = vand.u32 2147483647, %v4498
      %v4503 = vand.u32 2147483647, %v4499
      %v4504 = vsub.f32 0.0, %v4500
      %v4505 = vsub.f32 0.0, %v4501
      %v4506 = vsub.f32 0.0, %v4502
      %v4507 = vsub.f32 0.0, %v4503
      %v4508 = vmul.f32 %v4504, 1.442695
      %v4509 = vpow.pop %v4508
      %v4510 = vmul.f32 %v4505, 1.442695
      %v4511 = vpow.pop %v4510
      %v4512 = vmul.f32 %v4506, 1.442695
      %v4513 = vpow.pop %v4512
      %v4514 = vmul.f32 %v4507, 1.442695
      %v4515 = vpow.pop %v4514
      %v4516 = vadd.f32 %v4509, 1.0
      %v4517 = vadd.f32 %v4511, 1.0
      %v4518 = vadd.f32 %v4513, 1.0
      %v4519 = vadd.f32 %v4515, 1.0
      %v4520 = vrcp.pop %v4516
      %v4521 = vmul.f32 1.0, %v4520
      %v4522 = vrcp.pop %v4517
      %v4523 = vmul.f32 1.0, %v4522
      %v4524 = vrcp.pop %v4518
      %v4525 = vmul.f32 1.0, %v4524
      %v4526 = vrcp.pop %v4519
      %v4527 = vmul.f32 1.0, %v4526
      %v4529 = vlaneseq
      %v4530 = vshrl.u32 %v4529, 7
      %v4531 = vsub.s32 0, %v4530
      %v4532 = vrot.slane %v383, %v4531
      %v4533 = vlaneseq
      %v4534 = vshrl.u32 %v4533, 7
      %v4535 = vsub.s32 1, %v4534
      %v4536 = vrot.slane %v383, %v4535
      %v4537 = vlaneseq
      %v4538 = vshrl.u32 %v4537, 7
      %v4539 = vsub.s32 2, %v4538
      %v4540 = vrot.slane %v383, %v4539
      %v4541 = vlaneseq
      %v4542 = vshrl.u32 %v4541, 7
      %v4543 = vsub.s32 3, %v4542
      %v4544 = vrot.slane %v383, %v4543
      %v4549 = vmul.f32 %v4521, %v4532
      %v4550 = vmul.f32 %v4523, %v4536
      %v4551 = vmul.f32 %v4525, %v4540
      %v4552 = vmul.f32 %v4527, %v4544
      %4553 = vst [vmem:[#allocation6 + $0x8] sm:$0xff] %v4549
      %4554 = vst [vmem:[#allocation6 + $0x10] sm:$0xff] %v4550
      %4555 = vst [vmem:[#allocation6 + $0x18] sm:$0xff] %v4551
      %4556 = vst [vmem:[#allocation6 + $0x20] sm:$0xff] %v4552
      %v4557 = vld [vmem:[#allocation6] sm:$0xff]
      %v4558 = vld [vmem:[#allocation6 + $0x8] sm:$0xff]
      %v4559 = vld [vmem:[#allocation6 + $0x10] sm:$0xff]
      %v4560 = vld [vmem:[#allocation6 + $0x18] sm:$0xff]
      %v4561 = vld [vmem:[#allocation6 + $0x20] sm:$0xff]
      %v4562 = vld [vmem:[#allocation6 + $0x28] sm:$0xff]
      %v4563 = vpack.c.bf16 %v4557, %v4557
      %v4564 = vpack.c.bf16 %v4558, %v4558
      %v4565 = vpack.c.bf16 %v4559, %v4559
      %v4566 = vpack.c.bf16 %v4560, %v4560
      %v4567 = vpack.c.bf16 %v4561, %v4561
      %v4568 = vpack.c.bf16 %v4562, %v4562
      %v4569 = vunpack.c.l.bf16 %v4563
      %v4570 = vunpack.c.l.bf16 %v4564
      %v4571 = vunpack.c.l.bf16 %v4565
      %v4572 = vunpack.c.l.bf16 %v4566
      %v4573 = vunpack.c.l.bf16 %v4567
      %v4574 = vunpack.c.l.bf16 %v4568
      %v4575 = vsub.f32 %v4557, %v4569
      %v4576 = vsub.f32 %v4558, %v4570
      %v4577 = vsub.f32 %v4559, %v4571
      %v4578 = vsub.f32 %v4560, %v4572
      %v4579 = vsub.f32 %v4561, %v4573
      %v4580 = vsub.f32 %v4562, %v4574
      %4586 = vrot.lane.b32.xlu0 %v4569, 46
      %v4587 = vpop.permute.xlu0 %4586
      %4588 = vrot.lane.b32.xlu0 %v4570, 46
      %v4589 = vpop.permute.xlu0 %4588
      %4590 = vrot.lane.b32.xlu0 %v4571, 46
      %v4591 = vpop.permute.xlu0 %4590
      %4592 = vrot.lane.b32.xlu0 %v4572, 46
      %v4593 = vpop.permute.xlu0 %4592
      %4594 = vrot.lane.b32.xlu0 %v4573, 46
      %v4595 = vpop.permute.xlu0 %4594
      %v4596 = vsel %vm788, %v4587, %v4589
      %v4597 = vsel %vm788, %v4589, %v4591
      %v4598 = vsel %vm788, %v4591, %v4593
      %v4599 = vsel %vm788, %v4593, %v4595
      %4604 = vst [vmem:[#allocation2] sm:$0xff] %v4596
      %4605 = vst [vmem:[#allocation2 + $0x8] sm:$0xff] %v4597
      %4606 = vst [vmem:[#allocation2 + $0x10] sm:$0xff] %v4598
      %4607 = vst [vmem:[#allocation2 + $0x18] sm:$0xff] %v4599
      %4613 = vrot.lane.b32.xlu0 %v4575, 46
      %v4614 = vpop.permute.xlu0 %4613
      %4615 = vrot.lane.b32.xlu0 %v4576, 46
      %v4616 = vpop.permute.xlu0 %4615
      %4617 = vrot.lane.b32.xlu0 %v4577, 46
      %v4618 = vpop.permute.xlu0 %4617
      %4619 = vrot.lane.b32.xlu0 %v4578, 46
      %v4620 = vpop.permute.xlu0 %4619
      %4621 = vrot.lane.b32.xlu0 %v4579, 46
      %v4622 = vpop.permute.xlu0 %4621
      %v4623 = vsel %vm788, %v4614, %v4616
      %v4624 = vsel %vm788, %v4616, %v4618
      %v4625 = vsel %vm788, %v4618, %v4620
      %v4626 = vsel %vm788, %v4620, %v4622
      %4631 = vst [vmem:[#allocation4] sm:$0xff] %v4623
      %4632 = vst [vmem:[#allocation4 + $0x8] sm:$0xff] %v4624
      %4633 = vst [vmem:[#allocation4 + $0x10] sm:$0xff] %v4625
      %4634 = vst [vmem:[#allocation4 + $0x18] sm:$0xff] %v4626
      %4635 = vrot.lane.b32.xlu0 %v4569, 45
      %v4636 = vpop.permute.xlu0 %4635
      %4637 = vrot.lane.b32.xlu0 %v4570, 45
      %v4638 = vpop.permute.xlu0 %4637
      %4639 = vrot.lane.b32.xlu0 %v4571, 45
      %v4640 = vpop.permute.xlu0 %4639
      %4641 = vrot.lane.b32.xlu0 %v4572, 45
      %v4642 = vpop.permute.xlu0 %4641
      %4643 = vrot.lane.b32.xlu0 %v4573, 45
      %v4644 = vpop.permute.xlu0 %4643
      %v4645 = vsel %vm833, %v4636, %v4638
      %v4646 = vsel %vm833, %v4638, %v4640
      %v4647 = vsel %vm833, %v4640, %v4642
      %v4648 = vsel %vm833, %v4642, %v4644
      %4653 = vst [vmem:[#allocation2 + $0x20] sm:$0xff] %v4645
      %4654 = vst [vmem:[#allocation2 + $0x28] sm:$0xff] %v4646
      %4655 = vst [vmem:[#allocation2 + $0x30] sm:$0xff] %v4647
      %4656 = vst [vmem:[#allocation2 + $0x38] sm:$0xff] %v4648
      %4657 = vrot.lane.b32.xlu0 %v4575, 45
      %v4658 = vpop.permute.xlu0 %4657
      %4659 = vrot.lane.b32.xlu0 %v4576, 45
      %v4660 = vpop.permute.xlu0 %4659
      %4661 = vrot.lane.b32.xlu0 %v4577, 45
      %v4662 = vpop.permute.xlu0 %4661
      %4663 = vrot.lane.b32.xlu0 %v4578, 45
      %v4664 = vpop.permute.xlu0 %4663
      %4665 = vrot.lane.b32.xlu0 %v4579, 45
      %v4666 = vpop.permute.xlu0 %4665
      %v4667 = vsel %vm833, %v4658, %v4660
      %v4668 = vsel %vm833, %v4660, %v4662
      %v4669 = vsel %vm833, %v4662, %v4664
      %v4670 = vsel %vm833, %v4664, %v4666
      %4675 = vst [vmem:[#allocation4 + $0x20] sm:$0xff] %v4667
      %4676 = vst [vmem:[#allocation4 + $0x28] sm:$0xff] %v4668
      %4677 = vst [vmem:[#allocation4 + $0x30] sm:$0xff] %v4669
      %4678 = vst [vmem:[#allocation4 + $0x38] sm:$0xff] %v4670
      %4679 = vrot.lane.b32.xlu0 %v4569, 44
      %v4680 = vpop.permute.xlu0 %4679
      %4681 = vrot.lane.b32.xlu0 %v4570, 44
      %v4682 = vpop.permute.xlu0 %4681
      %4683 = vrot.lane.b32.xlu0 %v4571, 44
      %v4684 = vpop.permute.xlu0 %4683
      %4685 = vrot.lane.b32.xlu0 %v4572, 44
      %v4686 = vpop.permute.xlu0 %4685
      %4687 = vrot.lane.b32.xlu0 %v4573, 44
      %v4688 = vpop.permute.xlu0 %4687
      %v4689 = vsel %vm878, %v4680, %v4682
      %v4690 = vsel %vm878, %v4682, %v4684
      %v4691 = vsel %vm878, %v4684, %v4686
      %v4692 = vsel %vm878, %v4686, %v4688
      %4697 = vst [vmem:[#allocation2 + $0x40] sm:$0xff] %v4689
      %4698 = vst [vmem:[#allocation2 + $0x48] sm:$0xff] %v4690
      %4699 = vst [vmem:[#allocation2 + $0x50] sm:$0xff] %v4691
      %4700 = vst [vmem:[#allocation2 + $0x58] sm:$0xff] %v4692
      %4701 = vrot.lane.b32.xlu0 %v4575, 44
      %v4702 = vpop.permute.xlu0 %4701
      %4703 = vrot.lane.b32.xlu0 %v4576, 44
      %v4704 = vpop.permute.xlu0 %4703
      %4705 = vrot.lane.b32.xlu0 %v4577, 44
      %v4706 = vpop.permute.xlu0 %4705
      %4707 = vrot.lane.b32.xlu0 %v4578, 44
      %v4708 = vpop.permute.xlu0 %4707
      %4709 = vrot.lane.b32.xlu0 %v4579, 44
      %v4710 = vpop.permute.xlu0 %4709
      %v4711 = vsel %vm878, %v4702, %v4704
      %v4712 = vsel %vm878, %v4704, %v4706
      %v4713 = vsel %vm878, %v4706, %v4708
      %v4714 = vsel %vm878, %v4708, %v4710
      %4719 = vst [vmem:[#allocation4 + $0x40] sm:$0xff] %v4711
      %4720 = vst [vmem:[#allocation4 + $0x48] sm:$0xff] %v4712
      %4721 = vst [vmem:[#allocation4 + $0x50] sm:$0xff] %v4713
      %4722 = vst [vmem:[#allocation4 + $0x58] sm:$0xff] %v4714
      %4723 = vrot.lane.b32.xlu0 %v4569, 43
      %v4724 = vpop.permute.xlu0 %4723
      %4725 = vrot.lane.b32.xlu0 %v4570, 43
      %v4726 = vpop.permute.xlu0 %4725
      %4727 = vrot.lane.b32.xlu0 %v4571, 43
      %v4728 = vpop.permute.xlu0 %4727
      %4729 = vrot.lane.b32.xlu0 %v4572, 43
      %v4730 = vpop.permute.xlu0 %4729
      %4731 = vrot.lane.b32.xlu0 %v4573, 43
      %v4732 = vpop.permute.xlu0 %4731
      %v4733 = vsel %vm923, %v4724, %v4726
      %v4734 = vsel %vm923, %v4726, %v4728
      %v4735 = vsel %vm923, %v4728, %v4730
      %v4736 = vsel %vm923, %v4730, %v4732
      %4741 = vst [vmem:[#allocation2 + $0x60] sm:$0xff] %v4733
      %4742 = vst [vmem:[#allocation2 + $0x68] sm:$0xff] %v4734
      %4743 = vst [vmem:[#allocation2 + $0x70] sm:$0xff] %v4735
      %4744 = vst [vmem:[#allocation2 + $0x78] sm:$0xff] %v4736
      %4745 = vrot.lane.b32.xlu0 %v4575, 43
      %v4746 = vpop.permute.xlu0 %4745
      %4747 = vrot.lane.b32.xlu0 %v4576, 43
      %v4748 = vpop.permute.xlu0 %4747
      %4749 = vrot.lane.b32.xlu0 %v4577, 43
      %v4750 = vpop.permute.xlu0 %4749
      %4751 = vrot.lane.b32.xlu0 %v4578, 43
      %v4752 = vpop.permute.xlu0 %4751
      %4753 = vrot.lane.b32.xlu0 %v4579, 43
      %v4754 = vpop.permute.xlu0 %4753
      %v4755 = vsel %vm923, %v4746, %v4748
      %v4756 = vsel %vm923, %v4748, %v4750
      %v4757 = vsel %vm923, %v4750, %v4752
      %v4758 = vsel %vm923, %v4752, %v4754
      %4763 = vst [vmem:[#allocation4 + $0x60] sm:$0xff] %v4755
      %4764 = vst [vmem:[#allocation4 + $0x68] sm:$0xff] %v4756
      %4765 = vst [vmem:[#allocation4 + $0x70] sm:$0xff] %v4757
      %4766 = vst [vmem:[#allocation4 + $0x78] sm:$0xff] %v4758
      %4767 = vrot.lane.b32.xlu0 %v4569, 42
      %v4768 = vpop.permute.xlu0 %4767
      %4769 = vrot.lane.b32.xlu0 %v4570, 42
      %v4770 = vpop.permute.xlu0 %4769
      %4771 = vrot.lane.b32.xlu0 %v4571, 42
      %v4772 = vpop.permute.xlu0 %4771
      %4773 = vrot.lane.b32.xlu0 %v4572, 42
      %v4774 = vpop.permute.xlu0 %4773
      %4775 = vrot.lane.b32.xlu0 %v4573, 42
      %v4776 = vpop.permute.xlu0 %4775
      %v4777 = vsel %vm968, %v4768, %v4770
      %v4778 = vsel %vm968, %v4770, %v4772
      %v4779 = vsel %vm968, %v4772, %v4774
      %v4780 = vsel %vm968, %v4774, %v4776
      %4785 = vst [vmem:[#allocation2 + $0x80] sm:$0xff] %v4777
      %4786 = vst [vmem:[#allocation2 + $0x88] sm:$0xff] %v4778
      %4787 = vst [vmem:[#allocation2 + $0x90] sm:$0xff] %v4779
      %4788 = vst [vmem:[#allocation2 + $0x98] sm:$0xff] %v4780
      %4789 = vrot.lane.b32.xlu0 %v4575, 42
      %v4790 = vpop.permute.xlu0 %4789
      %4791 = vrot.lane.b32.xlu0 %v4576, 42
      %v4792 = vpop.permute.xlu0 %4791
      %4793 = vrot.lane.b32.xlu0 %v4577, 42
      %v4794 = vpop.permute.xlu0 %4793
      %4795 = vrot.lane.b32.xlu0 %v4578, 42
      %v4796 = vpop.permute.xlu0 %4795
      %4797 = vrot.lane.b32.xlu0 %v4579, 42
      %v4798 = vpop.permute.xlu0 %4797
      %v4799 = vsel %vm968, %v4790, %v4792
      %v4800 = vsel %vm968, %v4792, %v4794
      %v4801 = vsel %vm968, %v4794, %v4796
      %v4802 = vsel %vm968, %v4796, %v4798
      %4807 = vst [vmem:[#allocation4 + $0x80] sm:$0xff] %v4799
      %4808 = vst [vmem:[#allocation4 + $0x88] sm:$0xff] %v4800
      %4809 = vst [vmem:[#allocation4 + $0x90] sm:$0xff] %v4801
      %4810 = vst [vmem:[#allocation4 + $0x98] sm:$0xff] %v4802
      %4811 = vrot.lane.b32.xlu0 %v4569, 24
      %v4812 = vpop.permute.xlu0 %4811
      %4813 = vrot.lane.b32.xlu0 %v4570, 24
      %v4814 = vpop.permute.xlu0 %4813
      %4815 = vrot.lane.b32.xlu0 %v4571, 24
      %v4816 = vpop.permute.xlu0 %4815
      %4817 = vrot.lane.b32.xlu0 %v4572, 24
      %v4818 = vpop.permute.xlu0 %4817
      %4819 = vrot.lane.b32.xlu0 %v4573, 24
      %v4820 = vpop.permute.xlu0 %4819
      %v4821 = vsel %vm1588, %v4812, %v4814
      %v4822 = vsel %vm1588, %v4814, %v4816
      %v4823 = vsel %vm1588, %v4816, %v4818
      %v4824 = vsel %vm1588, %v4818, %v4820
      %4829 = vst [vmem:[#allocation2 + $0xa0] sm:$0xff] %v4821
      %4830 = vst [vmem:[#allocation2 + $0xa8] sm:$0xff] %v4822
      %4831 = vst [vmem:[#allocation2 + $0xb0] sm:$0xff] %v4823
      %4832 = vst [vmem:[#allocation2 + $0xb8] sm:$0xff] %v4824
      %4833 = vrot.lane.b32.xlu0 %v4575, 24
      %v4834 = vpop.permute.xlu0 %4833
      %4835 = vrot.lane.b32.xlu0 %v4576, 24
      %v4836 = vpop.permute.xlu0 %4835
      %4837 = vrot.lane.b32.xlu0 %v4577, 24
      %v4838 = vpop.permute.xlu0 %4837
      %4839 = vrot.lane.b32.xlu0 %v4578, 24
      %v4840 = vpop.permute.xlu0 %4839
      %4841 = vrot.lane.b32.xlu0 %v4579, 24
      %v4842 = vpop.permute.xlu0 %4841
      %v4843 = vsel %vm1588, %v4834, %v4836
      %v4844 = vsel %vm1588, %v4836, %v4838
      %v4845 = vsel %vm1588, %v4838, %v4840
      %v4846 = vsel %vm1588, %v4840, %v4842
      %4851 = vst [vmem:[#allocation4 + $0xa0] sm:$0xff] %v4843
      %4852 = vst [vmem:[#allocation4 + $0xa8] sm:$0xff] %v4844
      %4853 = vst [vmem:[#allocation4 + $0xb0] sm:$0xff] %v4845
      %4854 = vst [vmem:[#allocation4 + $0xb8] sm:$0xff] %v4846
      %4855 = vrot.lane.b32.xlu0 %v4569, 23
      %v4856 = vpop.permute.xlu0 %4855
      %4857 = vrot.lane.b32.xlu0 %v4570, 23
      %v4858 = vpop.permute.xlu0 %4857
      %4859 = vrot.lane.b32.xlu0 %v4571, 23
      %v4860 = vpop.permute.xlu0 %4859
      %4861 = vrot.lane.b32.xlu0 %v4572, 23
      %v4862 = vpop.permute.xlu0 %4861
      %4863 = vrot.lane.b32.xlu0 %v4573, 23
      %v4864 = vpop.permute.xlu0 %4863
      %v4865 = vsel %vm1633, %v4856, %v4858
      %v4866 = vsel %vm1633, %v4858, %v4860
      %v4867 = vsel %vm1633, %v4860, %v4862
      %v4868 = vsel %vm1633, %v4862, %v4864
      %4873 = vst [vmem:[#allocation2 + $0xc0] sm:$0xff] %v4865
      %4874 = vst [vmem:[#allocation2 + $0xc8] sm:$0xff] %v4866
      %4875 = vst [vmem:[#allocation2 + $0xd0] sm:$0xff] %v4867
      %4876 = vst [vmem:[#allocation2 + $0xd8] sm:$0xff] %v4868
      %4877 = vrot.lane.b32.xlu0 %v4575, 23
      %v4878 = vpop.permute.xlu0 %4877
      %4879 = vrot.lane.b32.xlu0 %v4576, 23
      %v4880 = vpop.permute.xlu0 %4879
      %4881 = vrot.lane.b32.xlu0 %v4577, 23
      %v4882 = vpop.permute.xlu0 %4881
      %4883 = vrot.lane.b32.xlu0 %v4578, 23
      %v4884 = vpop.permute.xlu0 %4883
      %4885 = vrot.lane.b32.xlu0 %v4579, 23
      %v4886 = vpop.permute.xlu0 %4885
      %v4887 = vsel %vm1633, %v4878, %v4880
      %v4888 = vsel %vm1633, %v4880, %v4882
      %v4889 = vsel %vm1633, %v4882, %v4884
      %v4890 = vsel %vm1633, %v4884, %v4886
      %4895 = vst [vmem:[#allocation4 + $0xc0] sm:$0xff] %v4887
      %4896 = vst [vmem:[#allocation4 + $0xc8] sm:$0xff] %v4888
      %4897 = vst [vmem:[#allocation4 + $0xd0] sm:$0xff] %v4889
      %4898 = vst [vmem:[#allocation4 + $0xd8] sm:$0xff] %v4890
      %4899 = vrot.lane.b32.xlu0 %v4569, 22
      %v4900 = vpop.permute.xlu0 %4899
      %4901 = vrot.lane.b32.xlu0 %v4570, 22
      %v4902 = vpop.permute.xlu0 %4901
      %4903 = vrot.lane.b32.xlu0 %v4571, 22
      %v4904 = vpop.permute.xlu0 %4903
      %4905 = vrot.lane.b32.xlu0 %v4572, 22
      %v4906 = vpop.permute.xlu0 %4905
      %4907 = vrot.lane.b32.xlu0 %v4573, 22
      %v4908 = vpop.permute.xlu0 %4907
      %v4909 = vsel %vm1678, %v4900, %v4902
      %v4910 = vsel %vm1678, %v4902, %v4904
      %v4911 = vsel %vm1678, %v4904, %v4906
      %v4912 = vsel %vm1678, %v4906, %v4908
      %4917 = vst [vmem:[#allocation2 + $0xe0] sm:$0xff] %v4909
      %4918 = vst [vmem:[#allocation2 + $0xe8] sm:$0xff] %v4910
      %4919 = vst [vmem:[#allocation2 + $0xf0] sm:$0xff] %v4911
      %4920 = vst [vmem:[#allocation2 + $0xf8] sm:$0xff] %v4912
      %4921 = vrot.lane.b32.xlu0 %v4575, 22
      %v4922 = vpop.permute.xlu0 %4921
      %4923 = vrot.lane.b32.xlu0 %v4576, 22
      %v4924 = vpop.permute.xlu0 %4923
      %4925 = vrot.lane.b32.xlu0 %v4577, 22
      %v4926 = vpop.permute.xlu0 %4925
      %4927 = vrot.lane.b32.xlu0 %v4578, 22
      %v4928 = vpop.permute.xlu0 %4927
      %4929 = vrot.lane.b32.xlu0 %v4579, 22
      %v4930 = vpop.permute.xlu0 %4929
      %v4931 = vsel %vm1678, %v4922, %v4924
      %v4932 = vsel %vm1678, %v4924, %v4926
      %v4933 = vsel %vm1678, %v4926, %v4928
      %v4934 = vsel %vm1678, %v4928, %v4930
      %4939 = vst [vmem:[#allocation4 + $0xe0] sm:$0xff] %v4931
      %4940 = vst [vmem:[#allocation4 + $0xe8] sm:$0xff] %v4932
      %4941 = vst [vmem:[#allocation4 + $0xf0] sm:$0xff] %v4933
      %4942 = vst [vmem:[#allocation4 + $0xf8] sm:$0xff] %v4934
      %4943 = vrot.lane.b32.xlu0 %v4569, 21
      %v4944 = vpop.permute.xlu0 %4943
      %4945 = vrot.lane.b32.xlu0 %v4570, 21
      %v4946 = vpop.permute.xlu0 %4945
      %4947 = vrot.lane.b32.xlu0 %v4571, 21
      %v4948 = vpop.permute.xlu0 %4947
      %4949 = vrot.lane.b32.xlu0 %v4572, 21
      %v4950 = vpop.permute.xlu0 %4949
      %4951 = vrot.lane.b32.xlu0 %v4573, 21
      %v4952 = vpop.permute.xlu0 %4951
      %v4953 = vsel %vm1723, %v4944, %v4946
      %v4954 = vsel %vm1723, %v4946, %v4948
      %v4955 = vsel %vm1723, %v4948, %v4950
      %v4956 = vsel %vm1723, %v4950, %v4952
      %4961 = vst [vmem:[#allocation2 + $0x100] sm:$0xff] %v4953
      %4962 = vst [vmem:[#allocation2 + $0x108] sm:$0xff] %v4954
      %4963 = vst [vmem:[#allocation2 + $0x110] sm:$0xff] %v4955
      %4964 = vst [vmem:[#allocation2 + $0x118] sm:$0xff] %v4956
      %4965 = vrot.lane.b32.xlu0 %v4575, 21
      %v4966 = vpop.permute.xlu0 %4965
      %4967 = vrot.lane.b32.xlu0 %v4576, 21
      %v4968 = vpop.permute.xlu0 %4967
      %4969 = vrot.lane.b32.xlu0 %v4577, 21
      %v4970 = vpop.permute.xlu0 %4969
      %4971 = vrot.lane.b32.xlu0 %v4578, 21
      %v4972 = vpop.permute.xlu0 %4971
      %4973 = vrot.lane.b32.xlu0 %v4579, 21
      %v4974 = vpop.permute.xlu0 %4973
      %v4975 = vsel %vm1723, %v4966, %v4968
      %v4976 = vsel %vm1723, %v4968, %v4970
      %v4977 = vsel %vm1723, %v4970, %v4972
      %v4978 = vsel %vm1723, %v4972, %v4974
      %4983 = vst [vmem:[#allocation4 + $0x100] sm:$0xff] %v4975
      %4984 = vst [vmem:[#allocation4 + $0x108] sm:$0xff] %v4976
      %4985 = vst [vmem:[#allocation4 + $0x110] sm:$0xff] %v4977
      %4986 = vst [vmem:[#allocation4 + $0x118] sm:$0xff] %v4978
      %4987 = vrot.lane.b32.xlu0 %v4569, 20
      %v4988 = vpop.permute.xlu0 %4987
      %4989 = vrot.lane.b32.xlu0 %v4570, 20
      %v4990 = vpop.permute.xlu0 %4989
      %4991 = vrot.lane.b32.xlu0 %v4571, 20
      %v4992 = vpop.permute.xlu0 %4991
      %4993 = vrot.lane.b32.xlu0 %v4572, 20
      %v4994 = vpop.permute.xlu0 %4993
      %4995 = vrot.lane.b32.xlu0 %v4573, 20
      %v4996 = vpop.permute.xlu0 %4995
      %v4997 = vsel %vm1768, %v4988, %v4990
      %v4998 = vsel %vm1768, %v4990, %v4992
      %v4999 = vsel %vm1768, %v4992, %v4994
      %v5000 = vsel %vm1768, %v4994, %v4996
      %5005 = vst [vmem:[#allocation2 + $0x120] sm:$0xff] %v4997
      %5006 = vst [vmem:[#allocation2 + $0x128] sm:$0xff] %v4998
      %5007 = vst [vmem:[#allocation2 + $0x130] sm:$0xff] %v4999
      %5008 = vst [vmem:[#allocation2 + $0x138] sm:$0xff] %v5000
      %5009 = vrot.lane.b32.xlu0 %v4575, 20
      %v5010 = vpop.permute.xlu0 %5009
      %5011 = vrot.lane.b32.xlu0 %v4576, 20
      %v5012 = vpop.permute.xlu0 %5011
      %5013 = vrot.lane.b32.xlu0 %v4577, 20
      %v5014 = vpop.permute.xlu0 %5013
      %5015 = vrot.lane.b32.xlu0 %v4578, 20
      %v5016 = vpop.permute.xlu0 %5015
      %5017 = vrot.lane.b32.xlu0 %v4579, 20
      %v5018 = vpop.permute.xlu0 %5017
      %v5019 = vsel %vm1768, %v5010, %v5012
      %v5020 = vsel %vm1768, %v5012, %v5014
      %v5021 = vsel %vm1768, %v5014, %v5016
      %v5022 = vsel %vm1768, %v5016, %v5018
      %5027 = vst [vmem:[#allocation4 + $0x120] sm:$0xff] %v5019
      %5028 = vst [vmem:[#allocation4 + $0x128] sm:$0xff] %v5020
      %5029 = vst [vmem:[#allocation4 + $0x130] sm:$0xff] %v5021
      %5030 = vst [vmem:[#allocation4 + $0x138] sm:$0xff] %v5022
      %5031 = vrot.lane.b32.xlu0 %v4569, 2
      %v5032 = vpop.permute.xlu0 %5031
      %5033 = vrot.lane.b32.xlu0 %v4570, 2
      %v5034 = vpop.permute.xlu0 %5033
      %5035 = vrot.lane.b32.xlu0 %v4571, 2
      %v5036 = vpop.permute.xlu0 %5035
      %5037 = vrot.lane.b32.xlu0 %v4572, 2
      %v5038 = vpop.permute.xlu0 %5037
      %5039 = vrot.lane.b32.xlu0 %v4573, 2
      %v5040 = vpop.permute.xlu0 %5039
      %v5041 = vsel %vm1903, %v5032, %v5034
      %v5042 = vsel %vm1903, %v5034, %v5036
      %v5043 = vsel %vm1903, %v5036, %v5038
      %v5044 = vsel %vm1903, %v5038, %v5040
      %5049 = vst [vmem:[#allocation2 + $0x140] sm:$0xff] %v5041
      %5050 = vst [vmem:[#allocation2 + $0x148] sm:$0xff] %v5042
      %5051 = vst [vmem:[#allocation2 + $0x150] sm:$0xff] %v5043
      %5052 = vst [vmem:[#allocation2 + $0x158] sm:$0xff] %v5044
      %5053 = vrot.lane.b32.xlu0 %v4575, 2
      %v5054 = vpop.permute.xlu0 %5053
      %5055 = vrot.lane.b32.xlu0 %v4576, 2
      %v5056 = vpop.permute.xlu0 %5055
      %5057 = vrot.lane.b32.xlu0 %v4577, 2
      %v5058 = vpop.permute.xlu0 %5057
      %5059 = vrot.lane.b32.xlu0 %v4578, 2
      %v5060 = vpop.permute.xlu0 %5059
      %5061 = vrot.lane.b32.xlu0 %v4579, 2
      %v5062 = vpop.permute.xlu0 %5061
      %v5063 = vsel %vm1903, %v5054, %v5056
      %v5064 = vsel %vm1903, %v5056, %v5058
      %v5065 = vsel %vm1903, %v5058, %v5060
      %v5066 = vsel %vm1903, %v5060, %v5062
      %5071 = vst [vmem:[#allocation4 + $0x140] sm:$0xff] %v5063
      %5072 = vst [vmem:[#allocation4 + $0x148] sm:$0xff] %v5064
      %5073 = vst [vmem:[#allocation4 + $0x150] sm:$0xff] %v5065
      %5074 = vst [vmem:[#allocation4 + $0x158] sm:$0xff] %v5066
      %5075 = vrot.lane.b32.xlu0 %v4569, 1
      %v5076 = vpop.permute.xlu0 %5075
      %5077 = vrot.lane.b32.xlu0 %v4570, 1
      %v5078 = vpop.permute.xlu0 %5077
      %5079 = vrot.lane.b32.xlu0 %v4571, 1
      %v5080 = vpop.permute.xlu0 %5079
      %5081 = vrot.lane.b32.xlu0 %v4572, 1
      %v5082 = vpop.permute.xlu0 %5081
      %5083 = vrot.lane.b32.xlu0 %v4573, 1
      %v5084 = vpop.permute.xlu0 %5083
      %v5085 = vsel %vm1948, %v5076, %v5078
      %v5086 = vsel %vm1948, %v5078, %v5080
      %v5087 = vsel %vm1948, %v5080, %v5082
      %v5088 = vsel %vm1948, %v5082, %v5084
      %5093 = vst [vmem:[#allocation2 + $0x160] sm:$0xff] %v5085
      %5094 = vst [vmem:[#allocation2 + $0x168] sm:$0xff] %v5086
      %5095 = vst [vmem:[#allocation2 + $0x170] sm:$0xff] %v5087
      %5096 = vst [vmem:[#allocation2 + $0x178] sm:$0xff] %v5088
      %5097 = vrot.lane.b32.xlu0 %v4575, 1
      %v5098 = vpop.permute.xlu0 %5097
      %5099 = vrot.lane.b32.xlu0 %v4576, 1
      %v5100 = vpop.permute.xlu0 %5099
      %5101 = vrot.lane.b32.xlu0 %v4577, 1
      %v5102 = vpop.permute.xlu0 %5101
      %5103 = vrot.lane.b32.xlu0 %v4578, 1
      %v5104 = vpop.permute.xlu0 %5103
      %5105 = vrot.lane.b32.xlu0 %v4579, 1
      %v5106 = vpop.permute.xlu0 %5105
      %v5107 = vsel %vm1948, %v5098, %v5100
      %v5108 = vsel %vm1948, %v5100, %v5102
      %v5109 = vsel %vm1948, %v5102, %v5104
      %v5110 = vsel %vm1948, %v5104, %v5106
      %5115 = vst [vmem:[#allocation4 + $0x160] sm:$0xff] %v5107
      %5116 = vst [vmem:[#allocation4 + $0x168] sm:$0xff] %v5108
      %5117 = vst [vmem:[#allocation4 + $0x170] sm:$0xff] %v5109
      %5118 = vst [vmem:[#allocation4 + $0x178] sm:$0xff] %v5110
      %5119 = vst [vmem:[#allocation2 + $0x180] sm:$0xff] %v4570
      %5120 = vst [vmem:[#allocation2 + $0x188] sm:$0xff] %v4571
      %5121 = vst [vmem:[#allocation2 + $0x190] sm:$0xff] %v4572
      %5122 = vst [vmem:[#allocation2 + $0x198] sm:$0xff] %v4573
      %5123 = vst [vmem:[#allocation4 + $0x180] sm:$0xff] %v4576
      %5124 = vst [vmem:[#allocation4 + $0x188] sm:$0xff] %v4577
      %5125 = vst [vmem:[#allocation4 + $0x190] sm:$0xff] %v4578
      %5126 = vst [vmem:[#allocation4 + $0x198] sm:$0xff] %v4579
      %5128 = vrot.lane.b32.xlu0 %v4570, 127
      %v5129 = vpop.permute.xlu0 %5128
      %5130 = vrot.lane.b32.xlu0 %v4571, 127
      %v5131 = vpop.permute.xlu0 %5130
      %5132 = vrot.lane.b32.xlu0 %v4572, 127
      %v5133 = vpop.permute.xlu0 %5132
      %5134 = vrot.lane.b32.xlu0 %v4573, 127
      %v5135 = vpop.permute.xlu0 %5134
      %5136 = vrot.lane.b32.xlu0 %v4574, 127
      %v5137 = vpop.permute.xlu0 %5136
      %v5138 = vsel %vm2002, %v5129, %v5131
      %v5139 = vsel %vm2002, %v5131, %v5133
      %v5140 = vsel %vm2002, %v5133, %v5135
      %v5141 = vsel %vm2002, %v5135, %v5137
      %5146 = vst [vmem:[#allocation2 + $0x1a0] sm:$0xff] %v5138
      %5147 = vst [vmem:[#allocation2 + $0x1a8] sm:$0xff] %v5139
      %5148 = vst [vmem:[#allocation2 + $0x1b0] sm:$0xff] %v5140
      %5149 = vst [vmem:[#allocation2 + $0x1b8] sm:$0xff] %v5141
      %5151 = vrot.lane.b32.xlu0 %v4576, 127
      %v5152 = vpop.permute.xlu0 %5151
      %5153 = vrot.lane.b32.xlu0 %v4577, 127
      %v5154 = vpop.permute.xlu0 %5153
      %5155 = vrot.lane.b32.xlu0 %v4578, 127
      %v5156 = vpop.permute.xlu0 %5155
      %5157 = vrot.lane.b32.xlu0 %v4579, 127
      %v5158 = vpop.permute.xlu0 %5157
      %5159 = vrot.lane.b32.xlu0 %v4580, 127
      %v5160 = vpop.permute.xlu0 %5159
      %v5161 = vsel %vm2002, %v5152, %v5154
      %v5162 = vsel %vm2002, %v5154, %v5156
      %v5163 = vsel %vm2002, %v5156, %v5158
      %v5164 = vsel %vm2002, %v5158, %v5160
      %5169 = vst [vmem:[#allocation4 + $0x1a0] sm:$0xff] %v5161
      %5170 = vst [vmem:[#allocation4 + $0x1a8] sm:$0xff] %v5162
      %5171 = vst [vmem:[#allocation4 + $0x1b0] sm:$0xff] %v5163
      %5172 = vst [vmem:[#allocation4 + $0x1b8] sm:$0xff] %v5164
      %5173 = vrot.lane.b32.xlu0 %v4570, 126
      %v5174 = vpop.permute.xlu0 %5173
      %5175 = vrot.lane.b32.xlu0 %v4571, 126
      %v5176 = vpop.permute.xlu0 %5175
      %5177 = vrot.lane.b32.xlu0 %v4572, 126
      %v5178 = vpop.permute.xlu0 %5177
      %5179 = vrot.lane.b32.xlu0 %v4573, 126
      %v5180 = vpop.permute.xlu0 %5179
      %5181 = vrot.lane.b32.xlu0 %v4574, 126
      %v5182 = vpop.permute.xlu0 %5181
      %v5183 = vsel %vm2048, %v5174, %v5176
      %v5184 = vsel %vm2048, %v5176, %v5178
      %v5185 = vsel %vm2048, %v5178, %v5180
      %v5186 = vsel %vm2048, %v5180, %v5182
      %5191 = vst [vmem:[#allocation2 + $0x1c0] sm:$0xff] %v5183
      %5192 = vst [vmem:[#allocation2 + $0x1c8] sm:$0xff] %v5184
      %5193 = vst [vmem:[#allocation2 + $0x1d0] sm:$0xff] %v5185
      %5194 = vst [vmem:[#allocation2 + $0x1d8] sm:$0xff] %v5186
      %5195 = vrot.lane.b32.xlu0 %v4576, 126
      %v5196 = vpop.permute.xlu0 %5195
      %5197 = vrot.lane.b32.xlu0 %v4577, 126
      %v5198 = vpop.permute.xlu0 %5197
      %5199 = vrot.lane.b32.xlu0 %v4578, 126
      %v5200 = vpop.permute.xlu0 %5199
      %5201 = vrot.lane.b32.xlu0 %v4579, 126
      %v5202 = vpop.permute.xlu0 %5201
      %5203 = vrot.lane.b32.xlu0 %v4580, 126
      %v5204 = vpop.permute.xlu0 %5203
      %v5205 = vsel %vm2048, %v5196, %v5198
      %v5206 = vsel %vm2048, %v5198, %v5200
      %v5207 = vsel %vm2048, %v5200, %v5202
      %v5208 = vsel %vm2048, %v5202, %v5204
      %5213 = vst [vmem:[#allocation4 + $0x1c0] sm:$0xff] %v5205
      %5214 = vst [vmem:[#allocation4 + $0x1c8] sm:$0xff] %v5206
      %5215 = vst [vmem:[#allocation4 + $0x1d0] sm:$0xff] %v5207
      %5216 = vst [vmem:[#allocation4 + $0x1d8] sm:$0xff] %v5208
      %v5217 = vld [vmem:[%s3] sm:$0xff]
      %v5218 = vld [vmem:[%s3 + $0x10] sm:$0xff]
      %v5219 = vld [vmem:[%s3 + $0x20] sm:$0xff]
      %v5220 = vld [vmem:[%s3 + $0x30] sm:$0xff]
      %v5221 = vld [vmem:[#allocation2] sm:$0xff]
      %v5222 = vld [vmem:[#allocation2 + $0x8] sm:$0xff]
      %v5223 = vld [vmem:[#allocation2 + $0x10] sm:$0xff]
      %v5224 = vld [vmem:[#allocation2 + $0x18] sm:$0xff]
      %v5225 = vld [vmem:[#allocation2 + $0x20] sm:$0xff]
      %v5226 = vld [vmem:[#allocation2 + $0x28] sm:$0xff]
      %v5227 = vld [vmem:[#allocation2 + $0x30] sm:$0xff]
      %v5228 = vld [vmem:[#allocation2 + $0x38] sm:$0xff]
      %v5229 = vld [vmem:[#allocation2 + $0x40] sm:$0xff]
      %v5230 = vld [vmem:[#allocation2 + $0x48] sm:$0xff]
      %v5231 = vld [vmem:[#allocation2 + $0x50] sm:$0xff]
      %v5232 = vld [vmem:[#allocation2 + $0x58] sm:$0xff]
      %v5233 = vld [vmem:[#allocation2 + $0x60] sm:$0xff]
      %v5234 = vld [vmem:[#allocation2 + $0x68] sm:$0xff]
      %v5235 = vld [vmem:[#allocation2 + $0x70] sm:$0xff]
      %v5236 = vld [vmem:[#allocation2 + $0x78] sm:$0xff]
      %v5237 = vld [vmem:[#allocation2 + $0x80] sm:$0xff]
      %v5238 = vld [vmem:[#allocation2 + $0x88] sm:$0xff]
      %v5239 = vld [vmem:[#allocation2 + $0x90] sm:$0xff]
      %v5240 = vld [vmem:[#allocation2 + $0x98] sm:$0xff]
      %v5241 = vld [vmem:[#allocation2 + $0xa0] sm:$0xff]
      %v5242 = vld [vmem:[#allocation2 + $0xa8] sm:$0xff]
      %v5243 = vld [vmem:[#allocation2 + $0xb0] sm:$0xff]
      %v5244 = vld [vmem:[#allocation2 + $0xb8] sm:$0xff]
      %v5245 = vld [vmem:[#allocation2 + $0xc0] sm:$0xff]
      %v5246 = vld [vmem:[#allocation2 + $0xc8] sm:$0xff]
      %v5247 = vld [vmem:[#allocation2 + $0xd0] sm:$0xff]
      %v5248 = vld [vmem:[#allocation2 + $0xd8] sm:$0xff]
      %v5249 = vld [vmem:[#allocation2 + $0xe0] sm:$0xff]
      %v5250 = vld [vmem:[#allocation2 + $0xe8] sm:$0xff]
      %v5251 = vld [vmem:[#allocation2 + $0xf0] sm:$0xff]
      %v5252 = vld [vmem:[#allocation2 + $0xf8] sm:$0xff]
      %v5253 = vld [vmem:[#allocation2 + $0x100] sm:$0xff]
      %v5254 = vld [vmem:[#allocation2 + $0x108] sm:$0xff]
      %v5255 = vld [vmem:[#allocation2 + $0x110] sm:$0xff]
      %v5256 = vld [vmem:[#allocation2 + $0x118] sm:$0xff]
      %v5257 = vld [vmem:[#allocation2 + $0x120] sm:$0xff]
      %v5258 = vld [vmem:[#allocation2 + $0x128] sm:$0xff]
      %v5259 = vld [vmem:[#allocation2 + $0x130] sm:$0xff]
      %v5260 = vld [vmem:[#allocation2 + $0x138] sm:$0xff]
      %v5261 = vld [vmem:[#allocation2 + $0x140] sm:$0xff]
      %v5262 = vld [vmem:[#allocation2 + $0x148] sm:$0xff]
      %v5263 = vld [vmem:[#allocation2 + $0x150] sm:$0xff]
      %v5264 = vld [vmem:[#allocation2 + $0x158] sm:$0xff]
      %v5265 = vld [vmem:[#allocation2 + $0x160] sm:$0xff]
      %v5266 = vld [vmem:[#allocation2 + $0x168] sm:$0xff]
      %v5267 = vld [vmem:[#allocation2 + $0x170] sm:$0xff]
      %v5268 = vld [vmem:[#allocation2 + $0x178] sm:$0xff]
      %v5269 = vld [vmem:[#allocation2 + $0x180] sm:$0xff]
      %v5270 = vld [vmem:[#allocation2 + $0x188] sm:$0xff]
      %v5271 = vld [vmem:[#allocation2 + $0x190] sm:$0xff]
      %v5272 = vld [vmem:[#allocation2 + $0x198] sm:$0xff]
      %v5273 = vld [vmem:[#allocation2 + $0x1a0] sm:$0xff]
      %v5274 = vld [vmem:[#allocation2 + $0x1a8] sm:$0xff]
      %v5275 = vld [vmem:[#allocation2 + $0x1b0] sm:$0xff]
      %v5276 = vld [vmem:[#allocation2 + $0x1b8] sm:$0xff]
      %v5277 = vld [vmem:[#allocation2 + $0x1c0] sm:$0xff]
      %v5278 = vld [vmem:[#allocation2 + $0x1c8] sm:$0xff]
      %v5279 = vld [vmem:[#allocation2 + $0x1d0] sm:$0xff]
      %v5280 = vld [vmem:[#allocation2 + $0x1d8] sm:$0xff]
      %vm5281 = vcmask 982016
      %v5283 = vsel %vm5281, %v5217, 0
      %v5286 = vsel %vm5281, %v5218, 0
      %v5289 = vsel %vm5281, %v5219, 0
      %v5292 = vsel %vm5281, %v5220, 0
      %5294 = vmatprep.subr.mxu0 %v5222
      %5295 = vmatpush1.msra.mxu0 %v5221
      %5296 = vmatprep.subr.mxu0 %v5226
      %5297 = vmatpush1.msra.mxu0 %v5225
      %5298 = vmatprep.subr.mxu0 %v5230
      %5299 = vmatpush1.msra.mxu0 %v5229
      %5300 = vmatprep.subr.mxu0 %v5234
      %5301 = vmatpush1.msra.mxu0 %v5233
      %5302 = vmatprep.subr.mxu0 %v5238
      %5303 = vmatpush1.msra.mxu0 %v5237
      %5304 = vmatprep.subr.mxu0 %v5242
      %5305 = vmatpush1.msra.mxu0 %v5241
      %5306 = vmatprep.subr.mxu0 %v5246
      %5307 = vmatpush1.msra.mxu0 %v5245
      %5308 = vmatprep.subr.mxu0 %v5250
      %5309 = vmatpush1.msra.mxu0 %v5249
      %5310 = vmatprep.subr.mxu0 %v5254
      %5311 = vmatpush1.msra.mxu0 %v5253
      %5312 = vmatprep.subr.mxu0 %v5258
      %5313 = vmatpush1.msra.mxu0 %v5257
      %5314 = vmatprep.subr.mxu0 %v5262
      %5315 = vmatpush1.msra.mxu0 %v5261
      %5316 = vmatprep.subr.mxu0 %v5266
      %5317 = vmatpush1.msra.mxu0 %v5265
      %5318 = vmatprep.subr.mxu0 %v5270
      %5319 = vmatpush1.msra.mxu0 %v5269
      %5320 = vmatprep.subr.mxu0 %v5274
      %5321 = vmatpush1.msra.mxu0 %v5273
      %5322 = vmatprep.subr.mxu0 %v5278
      %5323 = vmatpush1.msra.mxu0 %v5277
      %5324 = vmatprep.subr.mxu0 0.0
      %5325 = vmatpush1.msra.mxu0 0.0
      %5326 = vmatprep.subr.mxu0 0.0
      %5327 = vmatpush1.msra.mxu0 0.0
      %5328 = vmatprep.subr.mxu0 0.0
      %5329 = vmatpush1.msra.mxu0 0.0
      %5330 = vmatprep.subr.mxu0 0.0
      %5331 = vmatpush1.msra.mxu0 0.0
      %5332 = vmatprep.subr.mxu0 0.0
      %5333 = vmatpush1.msra.mxu0 0.0
      %5334 = vmatprep.subr.mxu0 0.0
      %5335 = vmatpush1.msra.mxu0 0.0
      %5336 = vmatprep.subr.mxu0 0.0
      %5337 = vmatpush1.msra.mxu0 0.0
      %5338 = vmatprep.subr.mxu0 0.0
      %5339 = vmatpush1.msra.mxu0 0.0
      %5340 = vmatprep.subr.mxu0 0.0
      %5341 = vmatpush1.msra.mxu0 0.0
      %5342 = vmatprep.subr.mxu0 0.0
      %5343 = vmatpush1.msra.mxu0 0.0
      %5344 = vmatprep.subr.mxu0 0.0
      %5345 = vmatpush1.msra.mxu0 0.0
      %5346 = vmatprep.subr.mxu0 0.0
      %5347 = vmatpush1.msra.mxu0 0.0
      %5348 = vmatprep.subr.mxu0 0.0
      %5349 = vmatpush1.msra.mxu0 0.0
      %5350 = vmatprep.subr.mxu0 0.0
      %5351 = vmatpush1.msra.mxu0 0.0
      %5352 = vmatprep.subr.mxu0 0.0
      %5353 = vmatpush1.msra.mxu0 0.0
      %5354 = vmatprep.subr.mxu0 0.0
      %5355 = vmatpush1.msra.mxu0 0.0
      %5356 = vmatprep.subr.mxu0 0.0
      %5357 = vmatpush1.msra.mxu0 0.0
      %5358 = vmatprep.mubr.f32.mxu0 0.0
      %5359 = vmatmul.mubr.f32.gmra.mrb[0].mxu0 %v5283
      %v5360 = vpop.f32.mrb[0].mxu0
      %v5361 = vadd.f32 0.0, %v5360
      %v5362 = vpop.f32.mrb[0].mxu0
      %v5363 = vadd.f32 0.0, %v5362
      %5364 = vmatprep.mubr.f32.mxu0 0.0
      %5365 = vmatmul.mubr.f32.gmra.mrb[0].mxu0 %v5286
      %v5366 = vpop.f32.mrb[0].mxu0
      %v5367 = vadd.f32 0.0, %v5366
      %v5368 = vpop.f32.mrb[0].mxu0
      %v5369 = vadd.f32 0.0, %v5368
      %5370 = vmatprep.mubr.f32.mxu0 0.0
      %5371 = vmatmul.mubr.f32.gmra.mrb[0].mxu0 %v5289
      %v5372 = vpop.f32.mrb[0].mxu0
      %v5373 = vadd.f32 0.0, %v5372
      %v5374 = vpop.f32.mrb[0].mxu0
      %v5375 = vadd.f32 0.0, %v5374
      %5376 = vmatprep.mubr.f32.mxu0 0.0
      %5377 = vmatmul.mubr.f32.gmra.mrb[0].mxu0 %v5292
      %v5378 = vpop.f32.mrb[0].mxu0
      %v5379 = vadd.f32 0.0, %v5378
      %v5380 = vpop.f32.mrb[0].mxu0
      %v5381 = vadd.f32 0.0, %v5380
      %5382 = vdwg.mxu0
      %5383 = vmatprep.subr.mxu0 %v5224
      %5384 = vmatpush1.msra.mxu0 %v5223
      %5385 = vmatprep.subr.mxu0 %v5228
      %5386 = vmatpush1.msra.mxu0 %v5227
      %5387 = vmatprep.subr.mxu0 %v5232
      %5388 = vmatpush1.msra.mxu0 %v5231
      %5389 = vmatprep.subr.mxu0 %v5236
      %5390 = vmatpush1.msra.mxu0 %v5235
      %5391 = vmatprep.subr.mxu0 %v5240
      %5392 = vmatpush1.msra.mxu0 %v5239
      %5393 = vmatprep.subr.mxu0 %v5244
      %5394 = vmatpush1.msra.mxu0 %v5243
      %5395 = vmatprep.subr.mxu0 %v5248
      %5396 = vmatpush1.msra.mxu0 %v5247
      %5397 = vmatprep.subr.mxu0 %v5252
      %5398 = vmatpush1.msra.mxu0 %v5251
      %5399 = vmatprep.subr.mxu0 %v5256
      %5400 = vmatpush1.msra.mxu0 %v5255
      %5401 = vmatprep.subr.mxu0 %v5260
      %5402 = vmatpush1.msra.mxu0 %v5259
      %5403 = vmatprep.subr.mxu0 %v5264
      %5404 = vmatpush1.msra.mxu0 %v5263
      %5405 = vmatprep.subr.mxu0 %v5268
      %5406 = vmatpush1.msra.mxu0 %v5267
      %5407 = vmatprep.subr.mxu0 %v5272
      %5408 = vmatpush1.msra.mxu0 %v5271
      %5409 = vmatprep.subr.mxu0 %v5276
      %5410 = vmatpush1.msra.mxu0 %v5275
      %5411 = vmatprep.subr.mxu0 %v5280
      %5412 = vmatpush1.msra.mxu0 %v5279
      %5413 = vmatprep.subr.mxu0 0.0
      %5414 = vmatpush1.msra.mxu0 0.0
      %5415 = vmatprep.subr.mxu0 0.0
      %5416 = vmatpush1.msra.mxu0 0.0
      %5417 = vmatprep.subr.mxu0 0.0
      %5418 = vmatpush1.msra.mxu0 0.0
      %5419 = vmatprep.subr.mxu0 0.0
      %5420 = vmatpush1.msra.mxu0 0.0
      %5421 = vmatprep.subr.mxu0 0.0
      %5422 = vmatpush1.msra.mxu0 0.0
      %5423 = vmatprep.subr.mxu0 0.0
      %5424 = vmatpush1.msra.mxu0 0.0
      %5425 = vmatprep.subr.mxu0 0.0
      %5426 = vmatpush1.msra.mxu0 0.0
      %5427 = vmatprep.subr.mxu0 0.0
      %5428 = vmatpush1.msra.mxu0 0.0
      %5429 = vmatprep.subr.mxu0 0.0
      %5430 = vmatpush1.msra.mxu0 0.0
      %5431 = vmatprep.subr.mxu0 0.0
      %5432 = vmatpush1.msra.mxu0 0.0
      %5433 = vmatprep.subr.mxu0 0.0
      %5434 = vmatpush1.msra.mxu0 0.0
      %5435 = vmatprep.subr.mxu0 0.0
      %5436 = vmatpush1.msra.mxu0 0.0
      %5437 = vmatprep.subr.mxu0 0.0
      %5438 = vmatpush1.msra.mxu0 0.0
      %5439 = vmatprep.subr.mxu0 0.0
      %5440 = vmatpush1.msra.mxu0 0.0
      %5441 = vmatprep.subr.mxu0 0.0
      %5442 = vmatpush1.msra.mxu0 0.0
      %5443 = vmatprep.subr.mxu0 0.0
      %5444 = vmatpush1.msra.mxu0 0.0
      %5445 = vmatprep.subr.mxu0 0.0
      %5446 = vmatpush1.msra.mxu0 0.0
      %5447 = vmatprep.mubr.f32.mxu0 0.0
      %5448 = vmatmul.mubr.f32.gmra.mrb[0].mxu0 %v5283
      %v5449 = vpop.f32.mrb[0].mxu0
      %v5450 = vadd.f32 0.0, %v5449
      %v5451 = vpop.f32.mrb[0].mxu0
      %v5452 = vadd.f32 0.0, %v5451
      %5453 = vmatprep.mubr.f32.mxu0 0.0
      %5454 = vmatmul.mubr.f32.gmra.mrb[0].mxu0 %v5286
      %v5455 = vpop.f32.mrb[0].mxu0
      %v5456 = vadd.f32 0.0, %v5455
      %v5457 = vpop.f32.mrb[0].mxu0
      %v5458 = vadd.f32 0.0, %v5457
      %5459 = vmatprep.mubr.f32.mxu0 0.0
      %5460 = vmatmul.mubr.f32.gmra.mrb[0].mxu0 %v5289
      %v5461 = vpop.f32.mrb[0].mxu0
      %v5462 = vadd.f32 0.0, %v5461
      %v5463 = vpop.f32.mrb[0].mxu0
      %v5464 = vadd.f32 0.0, %v5463
      %5465 = vmatprep.mubr.f32.mxu0 0.0
      %5466 = vmatmul.mubr.f32.gmra.mrb[0].mxu0 %v5292
      %v5467 = vpop.f32.mrb[0].mxu0
      %v5468 = vadd.f32 0.0, %v5467
      %v5469 = vpop.f32.mrb[0].mxu0
      %v5470 = vadd.f32 0.0, %v5469
      %5471 = vdwg.mxu0
      %v5472 = vld [vmem:[#allocation4] sm:$0xff]
      %v5473 = vld [vmem:[#allocation4 + $0x8] sm:$0xff]
      %v5474 = vld [vmem:[#allocation4 + $0x10] sm:$0xff]
      %v5475 = vld [vmem:[#allocation4 + $0x18] sm:$0xff]
      %v5476 = vld [vmem:[#allocation4 + $0x20] sm:$0xff]
      %v5477 = vld [vmem:[#allocation4 + $0x28] sm:$0xff]
      %v5478 = vld [vmem:[#allocation4 + $0x30] sm:$0xff]
      %v5479 = vld [vmem:[#allocation4 + $0x38] sm:$0xff]
      %v5480 = vld [vmem:[#allocation4 + $0x40] sm:$0xff]
      %v5481 = vld [vmem:[#allocation4 + $0x48] sm:$0xff]
      %v5482 = vld [vmem:[#allocation4 + $0x50] sm:$0xff]
      %v5483 = vld [vmem:[#allocation4 + $0x58] sm:$0xff]
      %v5484 = vld [vmem:[#allocation4 + $0x60] sm:$0xff]
      %v5485 = vld [vmem:[#allocation4 + $0x68] sm:$0xff]
      %v5486 = vld [vmem:[#allocation4 + $0x70] sm:$0xff]
      %v5487 = vld [vmem:[#allocation4 + $0x78] sm:$0xff]
      %v5488 = vld [vmem:[#allocation4 + $0x80] sm:$0xff]
      %v5489 = vld [vmem:[#allocation4 + $0x88] sm:$0xff]
      %v5490 = vld [vmem:[#allocation4 + $0x90] sm:$0xff]
      %v5491 = vld [vmem:[#allocation4 + $0x98] sm:$0xff]
      %v5492 = vld [vmem:[#allocation4 + $0xa0] sm:$0xff]
      %v5493 = vld [vmem:[#allocation4 + $0xa8] sm:$0xff]
      %v5494 = vld [vmem:[#allocation4 + $0xb0] sm:$0xff]
      %v5495 = vld [vmem:[#allocation4 + $0xb8] sm:$0xff]
      %v5496 = vld [vmem:[#allocation4 + $0xc0] sm:$0xff]
      %v5497 = vld [vmem:[#allocation4 + $0xc8] sm:$0xff]
      %v5498 = vld [vmem:[#allocation4 + $0xd0] sm:$0xff]
      %v5499 = vld [vmem:[#allocation4 + $0xd8] sm:$0xff]
      %v5500 = vld [vmem:[#allocation4 + $0xe0] sm:$0xff]
      %v5501 = vld [vmem:[#allocation4 + $0xe8] sm:$0xff]
      %v5502 = vld [vmem:[#allocation4 + $0xf0] sm:$0xff]
      %v5503 = vld [vmem:[#allocation4 + $0xf8] sm:$0xff]
      %v5504 = vld [vmem:[#allocation4 + $0x100] sm:$0xff]
      %v5505 = vld [vmem:[#allocation4 + $0x108] sm:$0xff]
      %v5506 = vld [vmem:[#allocation4 + $0x110] sm:$0xff]
      %v5507 = vld [vmem:[#allocation4 + $0x118] sm:$0xff]
      %v5508 = vld [vmem:[#allocation4 + $0x120] sm:$0xff]
      %v5509 = vld [vmem:[#allocation4 + $0x128] sm:$0xff]
      %v5510 = vld [vmem:[#allocation4 + $0x130] sm:$0xff]
      %v5511 = vld [vmem:[#allocation4 + $0x138] sm:$0xff]
      %v5512 = vld [vmem:[#allocation4 + $0x140] sm:$0xff]
      %v5513 = vld [vmem:[#allocation4 + $0x148] sm:$0xff]
      %v5514 = vld [vmem:[#allocation4 + $0x150] sm:$0xff]
      %v5515 = vld [vmem:[#allocation4 + $0x158] sm:$0xff]
      %v5516 = vld [vmem:[#allocation4 + $0x160] sm:$0xff]
      %v5517 = vld [vmem:[#allocation4 + $0x168] sm:$0xff]
      %v5518 = vld [vmem:[#allocation4 + $0x170] sm:$0xff]
      %v5519 = vld [vmem:[#allocation4 + $0x178] sm:$0xff]
      %v5520 = vld [vmem:[#allocation4 + $0x180] sm:$0xff]
      %v5521 = vld [vmem:[#allocation4 + $0x188] sm:$0xff]
      %v5522 = vld [vmem:[#allocation4 + $0x190] sm:$0xff]
      %v5523 = vld [vmem:[#allocation4 + $0x198] sm:$0xff]
      %v5524 = vld [vmem:[#allocation4 + $0x1a0] sm:$0xff]
      %v5525 = vld [vmem:[#allocation4 + $0x1a8] sm:$0xff]
      %v5526 = vld [vmem:[#allocation4 + $0x1b0] sm:$0xff]
      %v5527 = vld [vmem:[#allocation4 + $0x1b8] sm:$0xff]
      %v5528 = vld [vmem:[#allocation4 + $0x1c0] sm:$0xff]
      %v5529 = vld [vmem:[#allocation4 + $0x1c8] sm:$0xff]
      %v5530 = vld [vmem:[#allocation4 + $0x1d0] sm:$0xff]
      %v5531 = vld [vmem:[#allocation4 + $0x1d8] sm:$0xff]
      %5532 = vmatprep.subr.mxu0 %v5473
      %5533 = vmatpush1.msra.mxu0 %v5472
      %5534 = vmatprep.subr.mxu0 %v5477
      %5535 = vmatpush1.msra.mxu0 %v5476
      %5536 = vmatprep.subr.mxu0 %v5481
      %5537 = vmatpush1.msra.mxu0 %v5480
      %5538 = vmatprep.subr.mxu0 %v5485
      %5539 = vmatpush1.msra.mxu0 %v5484
      %5540 = vmatprep.subr.mxu0 %v5489
      %5541 = vmatpush1.msra.mxu0 %v5488
      %5542 = vmatprep.subr.mxu0 %v5493
      %5543 = vmatpush1.msra.mxu0 %v5492
      %5544 = vmatprep.subr.mxu0 %v5497
      %5545 = vmatpush1.msra.mxu0 %v5496
      %5546 = vmatprep.subr.mxu0 %v5501
      %5547 = vmatpush1.msra.mxu0 %v5500
      %5548 = vmatprep.subr.mxu0 %v5505
      %5549 = vmatpush1.msra.mxu0 %v5504
      %5550 = vmatprep.subr.mxu0 %v5509
      %5551 = vmatpush1.msra.mxu0 %v5508
      %5552 = vmatprep.subr.mxu0 %v5513
      %5553 = vmatpush1.msra.mxu0 %v5512
      %5554 = vmatprep.subr.mxu0 %v5517
      %5555 = vmatpush1.msra.mxu0 %v5516
      %5556 = vmatprep.subr.mxu0 %v5521
      %5557 = vmatpush1.msra.mxu0 %v5520
      %5558 = vmatprep.subr.mxu0 %v5525
      %5559 = vmatpush1.msra.mxu0 %v5524
      %5560 = vmatprep.subr.mxu0 %v5529
      %5561 = vmatpush1.msra.mxu0 %v5528
      %5562 = vmatprep.subr.mxu0 0.0
      %5563 = vmatpush1.msra.mxu0 0.0
      %5564 = vmatprep.subr.mxu0 0.0
      %5565 = vmatpush1.msra.mxu0 0.0
      %5566 = vmatprep.subr.mxu0 0.0
      %5567 = vmatpush1.msra.mxu0 0.0
      %5568 = vmatprep.subr.mxu0 0.0
      %5569 = vmatpush1.msra.mxu0 0.0
      %5570 = vmatprep.subr.mxu0 0.0
      %5571 = vmatpush1.msra.mxu0 0.0
      %5572 = vmatprep.subr.mxu0 0.0
      %5573 = vmatpush1.msra.mxu0 0.0
      %5574 = vmatprep.subr.mxu0 0.0
      %5575 = vmatpush1.msra.mxu0 0.0
      %5576 = vmatprep.subr.mxu0 0.0
      %5577 = vmatpush1.msra.mxu0 0.0
      %5578 = vmatprep.subr.mxu0 0.0
      %5579 = vmatpush1.msra.mxu0 0.0
      %5580 = vmatprep.subr.mxu0 0.0
      %5581 = vmatpush1.msra.mxu0 0.0
      %5582 = vmatprep.subr.mxu0 0.0
      %5583 = vmatpush1.msra.mxu0 0.0
      %5584 = vmatprep.subr.mxu0 0.0
      %5585 = vmatpush1.msra.mxu0 0.0
      %5586 = vmatprep.subr.mxu0 0.0
      %5587 = vmatpush1.msra.mxu0 0.0
      %5588 = vmatprep.subr.mxu0 0.0
      %5589 = vmatpush1.msra.mxu0 0.0
      %5590 = vmatprep.subr.mxu0 0.0
      %5591 = vmatpush1.msra.mxu0 0.0
      %5592 = vmatprep.subr.mxu0 0.0
      %5593 = vmatpush1.msra.mxu0 0.0
      %5594 = vmatprep.subr.mxu0 0.0
      %5595 = vmatpush1.msra.mxu0 0.0
      %5596 = vmatprep.mubr.f32.mxu0 0.0
      %5597 = vmatmul.mubr.f32.gmra.mrb[0].mxu0 %v5283
      %v5598 = vpop.f32.mrb[0].mxu0
      %v5599 = vadd.f32 0.0, %v5598
      %v5600 = vpop.f32.mrb[0].mxu0
      %v5601 = vadd.f32 0.0, %v5600
      %5602 = vmatprep.mubr.f32.mxu0 0.0
      %5603 = vmatmul.mubr.f32.gmra.mrb[0].mxu0 %v5286
      %v5604 = vpop.f32.mrb[0].mxu0
      %v5605 = vadd.f32 0.0, %v5604
      %v5606 = vpop.f32.mrb[0].mxu0
      %v5607 = vadd.f32 0.0, %v5606
      %5608 = vdwg.mxu0
      %5609 = vmatprep.subr.mxu0 %v5475
      %5610 = vmatpush1.msra.mxu0 %v5474
      %5611 = vmatprep.subr.mxu0 %v5479
      %5612 = vmatpush1.msra.mxu0 %v5478
      %5613 = vmatprep.subr.mxu0 %v5483
      %5614 = vmatpush1.msra.mxu0 %v5482
      %5615 = vmatprep.subr.mxu0 %v5487
      %5616 = vmatpush1.msra.mxu0 %v5486
      %5617 = vmatprep.subr.mxu0 %v5491
      %5618 = vmatpush1.msra.mxu0 %v5490
      %5619 = vmatprep.subr.mxu0 %v5495
      %5620 = vmatpush1.msra.mxu0 %v5494
      %5621 = vmatprep.subr.mxu0 %v5499
      %5622 = vmatpush1.msra.mxu0 %v5498
      %5623 = vmatprep.subr.mxu0 %v5503
      %5624 = vmatpush1.msra.mxu0 %v5502
      %5625 = vmatprep.subr.mxu0 %v5507
      %5626 = vmatpush1.msra.mxu0 %v5506
      %5627 = vmatprep.subr.mxu0 %v5511
      %5628 = vmatpush1.msra.mxu0 %v5510
      %5629 = vmatprep.subr.mxu0 %v5515
      %5630 = vmatpush1.msra.mxu0 %v5514
      %5631 = vmatprep.subr.mxu0 %v5519
      %5632 = vmatpush1.msra.mxu0 %v5518
      %5633 = vmatprep.subr.mxu0 %v5523
      %5634 = vmatpush1.msra.mxu0 %v5522
      %5635 = vmatprep.subr.mxu0 %v5527
      %5636 = vmatpush1.msra.mxu0 %v5526
      %5637 = vmatprep.subr.mxu0 %v5531
      %5638 = vmatpush1.msra.mxu0 %v5530
      %5639 = vmatprep.subr.mxu0 0.0
      %5640 = vmatpush1.msra.mxu0 0.0
      %5641 = vmatprep.subr.mxu0 0.0
      %5642 = vmatpush1.msra.mxu0 0.0
      %5643 = vmatprep.subr.mxu0 0.0
      %5644 = vmatpush1.msra.mxu0 0.0
      %5645 = vmatprep.subr.mxu0 0.0
      %5646 = vmatpush1.msra.mxu0 0.0
      %5647 = vmatprep.subr.mxu0 0.0
      %5648 = vmatpush1.msra.mxu0 0.0
      %5649 = vmatprep.subr.mxu0 0.0
      %5650 = vmatpush1.msra.mxu0 0.0
      %5651 = vmatprep.subr.mxu0 0.0
      %5652 = vmatpush1.msra.mxu0 0.0
      %5653 = vmatprep.subr.mxu0 0.0
      %5654 = vmatpush1.msra.mxu0 0.0
      %5655 = vmatprep.subr.mxu0 0.0
      %5656 = vmatpush1.msra.mxu0 0.0
      %5657 = vmatprep.subr.mxu0 0.0
      %5658 = vmatpush1.msra.mxu0 0.0
      %5659 = vmatprep.subr.mxu0 0.0
      %5660 = vmatpush1.msra.mxu0 0.0
      %5661 = vmatprep.subr.mxu0 0.0
      %5662 = vmatpush1.msra.mxu0 0.0
      %5663 = vmatprep.subr.mxu0 0.0
      %5664 = vmatpush1.msra.mxu0 0.0
      %5665 = vmatprep.subr.mxu0 0.0
      %5666 = vmatpush1.msra.mxu0 0.0
      %5667 = vmatprep.subr.mxu0 0.0
      %5668 = vmatpush1.msra.mxu0 0.0
      %5669 = vmatprep.subr.mxu0 0.0
      %5670 = vmatpush1.msra.mxu0 0.0
      %5671 = vmatprep.subr.mxu0 0.0
      %5672 = vmatpush1.msra.mxu0 0.0
      %5673 = vmatprep.mubr.f32.mxu0 0.0
      %5674 = vmatmul.mubr.f32.gmra.mrb[0].mxu0 %v5283
      %v5675 = vpop.f32.mrb[0].mxu0
      %v5676 = vadd.f32 0.0, %v5675
      %v5677 = vpop.f32.mrb[0].mxu0
      %v5678 = vadd.f32 0.0, %v5677
      %5679 = vmatprep.mubr.f32.mxu0 0.0
      %5680 = vmatmul.mubr.f32.gmra.mrb[0].mxu0 %v5286
      %v5681 = vpop.f32.mrb[0].mxu0
      %v5682 = vadd.f32 0.0, %v5681
      %v5683 = vpop.f32.mrb[0].mxu0
      %v5684 = vadd.f32 0.0, %v5683
      %5685 = vdwg.mxu0
      %v5686 = vadd.f32 %v5361, 0.0
      %v5687 = vadd.f32 %v5363, 0.0
      %v5688 = vadd.f32 %v5450, 0.0
      %v5689 = vadd.f32 %v5452, 0.0
      %v5690 = vadd.f32 %v5367, 0.0
      %v5691 = vadd.f32 %v5369, 0.0
      %v5692 = vadd.f32 %v5456, 0.0
      %v5693 = vadd.f32 %v5458, 0.0
      %v5694 = vadd.f32 %v5686, %v5373
      %v5695 = vadd.f32 %v5687, %v5375
      %v5696 = vadd.f32 %v5688, %v5462
      %v5697 = vadd.f32 %v5689, %v5464
      %v5698 = vadd.f32 %v5690, %v5379
      %v5699 = vadd.f32 %v5691, %v5381
      %v5700 = vadd.f32 %v5692, %v5468
      %v5701 = vadd.f32 %v5693, %v5470
      %v5702 = vadd.f32 %v5694, %v5599
      %v5703 = vadd.f32 %v5695, %v5601
      %v5704 = vadd.f32 %v5696, %v5676
      %v5705 = vadd.f32 %v5697, %v5678
      %v5706 = vadd.f32 %v5698, %v5605
      %v5707 = vadd.f32 %v5699, %v5607
      %v5708 = vadd.f32 %v5700, %v5682
      %v5709 = vadd.f32 %v5701, %v5684
      %5710 = vrot.lane.b32.xlu0 %v4570, 108
      %v5711 = vpop.permute.xlu0 %5710
      %5712 = vrot.lane.b32.xlu0 %v4571, 108
      %v5713 = vpop.permute.xlu0 %5712
      %5714 = vrot.lane.b32.xlu0 %v4572, 108
      %v5715 = vpop.permute.xlu0 %5714
      %5716 = vrot.lane.b32.xlu0 %v4573, 108
      %v5717 = vpop.permute.xlu0 %5716
      %5718 = vrot.lane.b32.xlu0 %v4574, 108
      %v5719 = vpop.permute.xlu0 %5718
      %v5720 = vsel %vm2696, %v5711, %v5713
      %v5721 = vsel %vm2696, %v5713, %v5715
      %v5722 = vsel %vm2696, %v5715, %v5717
      %v5723 = vsel %vm2696, %v5717, %v5719
      %5728 = vst [vmem:[#allocation3] sm:$0xff] %v5720
      %5729 = vst [vmem:[#allocation3 + $0x8] sm:$0xff] %v5721
      %5730 = vst [vmem:[#allocation3 + $0x10] sm:$0xff] %v5722
      %5731 = vst [vmem:[#allocation3 + $0x18] sm:$0xff] %v5723
      %5732 = vrot.lane.b32.xlu0 %v4576, 108
      %v5733 = vpop.permute.xlu0 %5732
      %5734 = vrot.lane.b32.xlu0 %v4577, 108
      %v5735 = vpop.permute.xlu0 %5734
      %5736 = vrot.lane.b32.xlu0 %v4578, 108
      %v5737 = vpop.permute.xlu0 %5736
      %5738 = vrot.lane.b32.xlu0 %v4579, 108
      %v5739 = vpop.permute.xlu0 %5738
      %5740 = vrot.lane.b32.xlu0 %v4580, 108
      %v5741 = vpop.permute.xlu0 %5740
      %v5742 = vsel %vm2696, %v5733, %v5735
      %v5743 = vsel %vm2696, %v5735, %v5737
      %v5744 = vsel %vm2696, %v5737, %v5739
      %v5745 = vsel %vm2696, %v5739, %v5741
      %5750 = vst [vmem:[#allocation5] sm:$0xff] %v5742
      %5751 = vst [vmem:[#allocation5 + $0x8] sm:$0xff] %v5743
      %5752 = vst [vmem:[#allocation5 + $0x10] sm:$0xff] %v5744
      %5753 = vst [vmem:[#allocation5 + $0x18] sm:$0xff] %v5745
      %5754 = vrot.lane.b32.xlu0 %v4570, 107
      %v5755 = vpop.permute.xlu0 %5754
      %5756 = vrot.lane.b32.xlu0 %v4571, 107
      %v5757 = vpop.permute.xlu0 %5756
      %5758 = vrot.lane.b32.xlu0 %v4572, 107
      %v5759 = vpop.permute.xlu0 %5758
      %5760 = vrot.lane.b32.xlu0 %v4573, 107
      %v5761 = vpop.permute.xlu0 %5760
      %5762 = vrot.lane.b32.xlu0 %v4574, 107
      %v5763 = vpop.permute.xlu0 %5762
      %v5764 = vsel %vm2741, %v5755, %v5757
      %v5765 = vsel %vm2741, %v5757, %v5759
      %v5766 = vsel %vm2741, %v5759, %v5761
      %v5767 = vsel %vm2741, %v5761, %v5763
      %5772 = vst [vmem:[#allocation3 + $0x20] sm:$0xff] %v5764
      %5773 = vst [vmem:[#allocation3 + $0x28] sm:$0xff] %v5765
      %5774 = vst [vmem:[#allocation3 + $0x30] sm:$0xff] %v5766
      %5775 = vst [vmem:[#allocation3 + $0x38] sm:$0xff] %v5767
      %5776 = vrot.lane.b32.xlu0 %v4576, 107
      %v5777 = vpop.permute.xlu0 %5776
      %5778 = vrot.lane.b32.xlu0 %v4577, 107
      %v5779 = vpop.permute.xlu0 %5778
      %5780 = vrot.lane.b32.xlu0 %v4578, 107
      %v5781 = vpop.permute.xlu0 %5780
      %5782 = vrot.lane.b32.xlu0 %v4579, 107
      %v5783 = vpop.permute.xlu0 %5782
      %5784 = vrot.lane.b32.xlu0 %v4580, 107
      %v5785 = vpop.permute.xlu0 %5784
      %v5786 = vsel %vm2741, %v5777, %v5779
      %v5787 = vsel %vm2741, %v5779, %v5781
      %v5788 = vsel %vm2741, %v5781, %v5783
      %v5789 = vsel %vm2741, %v5783, %v5785
      %5794 = vst [vmem:[#allocation5 + $0x20] sm:$0xff] %v5786
      %5795 = vst [vmem:[#allocation5 + $0x28] sm:$0xff] %v5787
      %5796 = vst [vmem:[#allocation5 + $0x30] sm:$0xff] %v5788
      %5797 = vst [vmem:[#allocation5 + $0x38] sm:$0xff] %v5789
      %5798 = vrot.lane.b32.xlu0 %v4570, 106
      %v5799 = vpop.permute.xlu0 %5798
      %5800 = vrot.lane.b32.xlu0 %v4571, 106
      %v5801 = vpop.permute.xlu0 %5800
      %5802 = vrot.lane.b32.xlu0 %v4572, 106
      %v5803 = vpop.permute.xlu0 %5802
      %5804 = vrot.lane.b32.xlu0 %v4573, 106
      %v5805 = vpop.permute.xlu0 %5804
      %5806 = vrot.lane.b32.xlu0 %v4574, 106
      %v5807 = vpop.permute.xlu0 %5806
      %v5808 = vsel %vm2786, %v5799, %v5801
      %v5809 = vsel %vm2786, %v5801, %v5803
      %v5810 = vsel %vm2786, %v5803, %v5805
      %v5811 = vsel %vm2786, %v5805, %v5807
      %5816 = vst [vmem:[#allocation3 + $0x40] sm:$0xff] %v5808
      %5817 = vst [vmem:[#allocation3 + $0x48] sm:$0xff] %v5809
      %5818 = vst [vmem:[#allocation3 + $0x50] sm:$0xff] %v5810
      %5819 = vst [vmem:[#allocation3 + $0x58] sm:$0xff] %v5811
      %5820 = vrot.lane.b32.xlu0 %v4576, 106
      %v5821 = vpop.permute.xlu0 %5820
      %5822 = vrot.lane.b32.xlu0 %v4577, 106
      %v5823 = vpop.permute.xlu0 %5822
      %5824 = vrot.lane.b32.xlu0 %v4578, 106
      %v5825 = vpop.permute.xlu0 %5824
      %5826 = vrot.lane.b32.xlu0 %v4579, 106
      %v5827 = vpop.permute.xlu0 %5826
      %5828 = vrot.lane.b32.xlu0 %v4580, 106
      %v5829 = vpop.permute.xlu0 %5828
      %v5830 = vsel %vm2786, %v5821, %v5823
      %v5831 = vsel %vm2786, %v5823, %v5825
      %v5832 = vsel %vm2786, %v5825, %v5827
      %v5833 = vsel %vm2786, %v5827, %v5829
      %5838 = vst [vmem:[#allocation5 + $0x40] sm:$0xff] %v5830
      %5839 = vst [vmem:[#allocation5 + $0x48] sm:$0xff] %v5831
      %5840 = vst [vmem:[#allocation5 + $0x50] sm:$0xff] %v5832
      %5841 = vst [vmem:[#allocation5 + $0x58] sm:$0xff] %v5833
      %5842 = vrot.lane.b32.xlu0 %v4570, 105
      %v5843 = vpop.permute.xlu0 %5842
      %5844 = vrot.lane.b32.xlu0 %v4571, 105
      %v5845 = vpop.permute.xlu0 %5844
      %5846 = vrot.lane.b32.xlu0 %v4572, 105
      %v5847 = vpop.permute.xlu0 %5846
      %5848 = vrot.lane.b32.xlu0 %v4573, 105
      %v5849 = vpop.permute.xlu0 %5848
      %5850 = vrot.lane.b32.xlu0 %v4574, 105
      %v5851 = vpop.permute.xlu0 %5850
      %v5852 = vsel %vm2831, %v5843, %v5845
      %v5853 = vsel %vm2831, %v5845, %v5847
      %v5854 = vsel %vm2831, %v5847, %v5849
      %v5855 = vsel %vm2831, %v5849, %v5851
      %5860 = vst [vmem:[#allocation3 + $0x60] sm:$0xff] %v5852
      %5861 = vst [vmem:[#allocation3 + $0x68] sm:$0xff] %v5853
      %5862 = vst [vmem:[#allocation3 + $0x70] sm:$0xff] %v5854
      %5863 = vst [vmem:[#allocation3 + $0x78] sm:$0xff] %v5855
      %5864 = vrot.lane.b32.xlu0 %v4576, 105
      %v5865 = vpop.permute.xlu0 %5864
      %5866 = vrot.lane.b32.xlu0 %v4577, 105
      %v5867 = vpop.permute.xlu0 %5866
      %5868 = vrot.lane.b32.xlu0 %v4578, 105
      %v5869 = vpop.permute.xlu0 %5868
      %5870 = vrot.lane.b32.xlu0 %v4579, 105
      %v5871 = vpop.permute.xlu0 %5870
      %5872 = vrot.lane.b32.xlu0 %v4580, 105
      %v5873 = vpop.permute.xlu0 %5872
      %v5874 = vsel %vm2831, %v5865, %v5867
      %v5875 = vsel %vm2831, %v5867, %v5869
      %v5876 = vsel %vm2831, %v5869, %v5871
      %v5877 = vsel %vm2831, %v5871, %v5873
      %5882 = vst [vmem:[#allocation5 + $0x60] sm:$0xff] %v5874
      %5883 = vst [vmem:[#allocation5 + $0x68] sm:$0xff] %v5875
      %5884 = vst [vmem:[#allocation5 + $0x70] sm:$0xff] %v5876
      %5885 = vst [vmem:[#allocation5 + $0x78] sm:$0xff] %v5877
      %5886 = vrot.lane.b32.xlu0 %v4570, 104
      %v5887 = vpop.permute.xlu0 %5886
      %5888 = vrot.lane.b32.xlu0 %v4571, 104
      %v5889 = vpop.permute.xlu0 %5888
      %5890 = vrot.lane.b32.xlu0 %v4572, 104
      %v5891 = vpop.permute.xlu0 %5890
      %5892 = vrot.lane.b32.xlu0 %v4573, 104
      %v5893 = vpop.permute.xlu0 %5892
      %5894 = vrot.lane.b32.xlu0 %v4574, 104
      %v5895 = vpop.permute.xlu0 %5894
      %v5896 = vsel %vm2876, %v5887, %v5889
      %v5897 = vsel %vm2876, %v5889, %v5891
      %v5898 = vsel %vm2876, %v5891, %v5893
      %v5899 = vsel %vm2876, %v5893, %v5895
      %5904 = vst [vmem:[#allocation3 + $0x80] sm:$0xff] %v5896
      %5905 = vst [vmem:[#allocation3 + $0x88] sm:$0xff] %v5897
      %5906 = vst [vmem:[#allocation3 + $0x90] sm:$0xff] %v5898
      %5907 = vst [vmem:[#allocation3 + $0x98] sm:$0xff] %v5899
      %5908 = vrot.lane.b32.xlu0 %v4576, 104
      %v5909 = vpop.permute.xlu0 %5908
      %5910 = vrot.lane.b32.xlu0 %v4577, 104
      %v5911 = vpop.permute.xlu0 %5910
      %5912 = vrot.lane.b32.xlu0 %v4578, 104
      %v5913 = vpop.permute.xlu0 %5912
      %5914 = vrot.lane.b32.xlu0 %v4579, 104
      %v5915 = vpop.permute.xlu0 %5914
      %5916 = vrot.lane.b32.xlu0 %v4580, 104
      %v5917 = vpop.permute.xlu0 %5916
      %v5918 = vsel %vm2876, %v5909, %v5911
      %v5919 = vsel %vm2876, %v5911, %v5913
      %v5920 = vsel %vm2876, %v5913, %v5915
      %v5921 = vsel %vm2876, %v5915, %v5917
      %5926 = vst [vmem:[#allocation5 + $0x80] sm:$0xff] %v5918
      %5927 = vst [vmem:[#allocation5 + $0x88] sm:$0xff] %v5919
      %5928 = vst [vmem:[#allocation5 + $0x90] sm:$0xff] %v5920
      %5929 = vst [vmem:[#allocation5 + $0x98] sm:$0xff] %v5921
      %5930 = vrot.lane.b32.xlu0 %v4570, 86
      %v5931 = vpop.permute.xlu0 %5930
      %5932 = vrot.lane.b32.xlu0 %v4571, 86
      %v5933 = vpop.permute.xlu0 %5932
      %5934 = vrot.lane.b32.xlu0 %v4572, 86
      %v5935 = vpop.permute.xlu0 %5934
      %5936 = vrot.lane.b32.xlu0 %v4573, 86
      %v5937 = vpop.permute.xlu0 %5936
      %5938 = vrot.lane.b32.xlu0 %v4574, 86
      %v5939 = vpop.permute.xlu0 %5938
      %v5940 = vsel %vm3011, %v5931, %v5933
      %v5941 = vsel %vm3011, %v5933, %v5935
      %v5942 = vsel %vm3011, %v5935, %v5937
      %v5943 = vsel %vm3011, %v5937, %v5939
      %5948 = vst [vmem:[#allocation3 + $0xa0] sm:$0xff] %v5940
      %5949 = vst [vmem:[#allocation3 + $0xa8] sm:$0xff] %v5941
      %5950 = vst [vmem:[#allocation3 + $0xb0] sm:$0xff] %v5942
      %5951 = vst [vmem:[#allocation3 + $0xb8] sm:$0xff] %v5943
      %5952 = vrot.lane.b32.xlu0 %v4576, 86
      %v5953 = vpop.permute.xlu0 %5952
      %5954 = vrot.lane.b32.xlu0 %v4577, 86
      %v5955 = vpop.permute.xlu0 %5954
      %5956 = vrot.lane.b32.xlu0 %v4578, 86
      %v5957 = vpop.permute.xlu0 %5956
      %5958 = vrot.lane.b32.xlu0 %v4579, 86
      %v5959 = vpop.permute.xlu0 %5958
      %5960 = vrot.lane.b32.xlu0 %v4580, 86
      %v5961 = vpop.permute.xlu0 %5960
      %v5962 = vsel %vm3011, %v5953, %v5955
      %v5963 = vsel %vm3011, %v5955, %v5957
      %v5964 = vsel %vm3011, %v5957, %v5959
      %v5965 = vsel %vm3011, %v5959, %v5961
      %5970 = vst [vmem:[#allocation5 + $0xa0] sm:$0xff] %v5962
      %5971 = vst [vmem:[#allocation5 + $0xa8] sm:$0xff] %v5963
      %5972 = vst [vmem:[#allocation5 + $0xb0] sm:$0xff] %v5964
      %5973 = vst [vmem:[#allocation5 + $0xb8] sm:$0xff] %v5965
      %5974 = vrot.lane.b32.xlu0 %v4570, 85
      %v5975 = vpop.permute.xlu0 %5974
      %5976 = vrot.lane.b32.xlu0 %v4571, 85
      %v5977 = vpop.permute.xlu0 %5976
      %5978 = vrot.lane.b32.xlu0 %v4572, 85
      %v5979 = vpop.permute.xlu0 %5978
      %5980 = vrot.lane.b32.xlu0 %v4573, 85
      %v5981 = vpop.permute.xlu0 %5980
      %5982 = vrot.lane.b32.xlu0 %v4574, 85
      %v5983 = vpop.permute.xlu0 %5982
      %v5984 = vsel %vm3056, %v5975, %v5977
      %v5985 = vsel %vm3056, %v5977, %v5979
      %v5986 = vsel %vm3056, %v5979, %v5981
      %v5987 = vsel %vm3056, %v5981, %v5983
      %5992 = vst [vmem:[#allocation3 + $0xc0] sm:$0xff] %v5984
      %5993 = vst [vmem:[#allocation3 + $0xc8] sm:$0xff] %v5985
      %5994 = vst [vmem:[#allocation3 + $0xd0] sm:$0xff] %v5986
      %5995 = vst [vmem:[#allocation3 + $0xd8] sm:$0xff] %v5987
      %5996 = vrot.lane.b32.xlu0 %v4576, 85
      %v5997 = vpop.permute.xlu0 %5996
      %5998 = vrot.lane.b32.xlu0 %v4577, 85
      %v5999 = vpop.permute.xlu0 %5998
      %6000 = vrot.lane.b32.xlu0 %v4578, 85
      %v6001 = vpop.permute.xlu0 %6000
      %6002 = vrot.lane.b32.xlu0 %v4579, 85
      %v6003 = vpop.permute.xlu0 %6002
      %6004 = vrot.lane.b32.xlu0 %v4580, 85
      %v6005 = vpop.permute.xlu0 %6004
      %v6006 = vsel %vm3056, %v5997, %v5999
      %v6007 = vsel %vm3056, %v5999, %v6001
      %v6008 = vsel %vm3056, %v6001, %v6003
      %v6009 = vsel %vm3056, %v6003, %v6005
      %6014 = vst [vmem:[#allocation5 + $0xc0] sm:$0xff] %v6006
      %6015 = vst [vmem:[#allocation5 + $0xc8] sm:$0xff] %v6007
      %6016 = vst [vmem:[#allocation5 + $0xd0] sm:$0xff] %v6008
      %6017 = vst [vmem:[#allocation5 + $0xd8] sm:$0xff] %v6009
      %6018 = vrot.lane.b32.xlu0 %v4570, 84
      %v6019 = vpop.permute.xlu0 %6018
      %6020 = vrot.lane.b32.xlu0 %v4571, 84
      %v6021 = vpop.permute.xlu0 %6020
      %6022 = vrot.lane.b32.xlu0 %v4572, 84
      %v6023 = vpop.permute.xlu0 %6022
      %6024 = vrot.lane.b32.xlu0 %v4573, 84
      %v6025 = vpop.permute.xlu0 %6024
      %6026 = vrot.lane.b32.xlu0 %v4574, 84
      %v6027 = vpop.permute.xlu0 %6026
      %v6028 = vsel %vm3101, %v6019, %v6021
      %v6029 = vsel %vm3101, %v6021, %v6023
      %v6030 = vsel %vm3101, %v6023, %v6025
      %v6031 = vsel %vm3101, %v6025, %v6027
      %6036 = vst [vmem:[#allocation3 + $0xe0] sm:$0xff] %v6028
      %6037 = vst [vmem:[#allocation3 + $0xe8] sm:$0xff] %v6029
      %6038 = vst [vmem:[#allocation3 + $0xf0] sm:$0xff] %v6030
      %6039 = vst [vmem:[#allocation3 + $0xf8] sm:$0xff] %v6031
      %6040 = vrot.lane.b32.xlu0 %v4576, 84
      %v6041 = vpop.permute.xlu0 %6040
      %6042 = vrot.lane.b32.xlu0 %v4577, 84
      %v6043 = vpop.permute.xlu0 %6042
      %6044 = vrot.lane.b32.xlu0 %v4578, 84
      %v6045 = vpop.permute.xlu0 %6044
      %6046 = vrot.lane.b32.xlu0 %v4579, 84
      %v6047 = vpop.permute.xlu0 %6046
      %6048 = vrot.lane.b32.xlu0 %v4580, 84
      %v6049 = vpop.permute.xlu0 %6048
      %v6050 = vsel %vm3101, %v6041, %v6043
      %v6051 = vsel %vm3101, %v6043, %v6045
      %v6052 = vsel %vm3101, %v6045, %v6047
      %v6053 = vsel %vm3101, %v6047, %v6049
      %6058 = vst [vmem:[#allocation5 + $0xe0] sm:$0xff] %v6050
      %6059 = vst [vmem:[#allocation5 + $0xe8] sm:$0xff] %v6051
      %6060 = vst [vmem:[#allocation5 + $0xf0] sm:$0xff] %v6052
      %6061 = vst [vmem:[#allocation5 + $0xf8] sm:$0xff] %v6053
      %6062 = vrot.lane.b32.xlu0 %v4570, 83
      %v6063 = vpop.permute.xlu0 %6062
      %6064 = vrot.lane.b32.xlu0 %v4571, 83
      %v6065 = vpop.permute.xlu0 %6064
      %6066 = vrot.lane.b32.xlu0 %v4572, 83
      %v6067 = vpop.permute.xlu0 %6066
      %6068 = vrot.lane.b32.xlu0 %v4573, 83
      %v6069 = vpop.permute.xlu0 %6068
      %6070 = vrot.lane.b32.xlu0 %v4574, 83
      %v6071 = vpop.permute.xlu0 %6070
      %v6072 = vsel %vm3146, %v6063, %v6065
      %v6073 = vsel %vm3146, %v6065, %v6067
      %v6074 = vsel %vm3146, %v6067, %v6069
      %v6075 = vsel %vm3146, %v6069, %v6071
      %6080 = vst [vmem:[#allocation3 + $0x100] sm:$0xff] %v6072
      %6081 = vst [vmem:[#allocation3 + $0x108] sm:$0xff] %v6073
      %6082 = vst [vmem:[#allocation3 + $0x110] sm:$0xff] %v6074
      %6083 = vst [vmem:[#allocation3 + $0x118] sm:$0xff] %v6075
      %6084 = vrot.lane.b32.xlu0 %v4576, 83
      %v6085 = vpop.permute.xlu0 %6084
      %6086 = vrot.lane.b32.xlu0 %v4577, 83
      %v6087 = vpop.permute.xlu0 %6086
      %6088 = vrot.lane.b32.xlu0 %v4578, 83
      %v6089 = vpop.permute.xlu0 %6088
      %6090 = vrot.lane.b32.xlu0 %v4579, 83
      %v6091 = vpop.permute.xlu0 %6090
      %6092 = vrot.lane.b32.xlu0 %v4580, 83
      %v6093 = vpop.permute.xlu0 %6092
      %v6094 = vsel %vm3146, %v6085, %v6087
      %v6095 = vsel %vm3146, %v6087, %v6089
      %v6096 = vsel %vm3146, %v6089, %v6091
      %v6097 = vsel %vm3146, %v6091, %v6093
      %6102 = vst [vmem:[#allocation5 + $0x100] sm:$0xff] %v6094
      %6103 = vst [vmem:[#allocation5 + $0x108] sm:$0xff] %v6095
      %6104 = vst [vmem:[#allocation5 + $0x110] sm:$0xff] %v6096
      %6105 = vst [vmem:[#allocation5 + $0x118] sm:$0xff] %v6097
      %6106 = vrot.lane.b32.xlu0 %v4570, 82
      %v6107 = vpop.permute.xlu0 %6106
      %6108 = vrot.lane.b32.xlu0 %v4571, 82
      %v6109 = vpop.permute.xlu0 %6108
      %6110 = vrot.lane.b32.xlu0 %v4572, 82
      %v6111 = vpop.permute.xlu0 %6110
      %6112 = vrot.lane.b32.xlu0 %v4573, 82
      %v6113 = vpop.permute.xlu0 %6112
      %6114 = vrot.lane.b32.xlu0 %v4574, 82
      %v6115 = vpop.permute.xlu0 %6114
      %v6116 = vsel %vm3191, %v6107, %v6109
      %v6117 = vsel %vm3191, %v6109, %v6111
      %v6118 = vsel %vm3191, %v6111, %v6113
      %v6119 = vsel %vm3191, %v6113, %v6115
      %6124 = vst [vmem:[#allocation3 + $0x120] sm:$0xff] %v6116
      %6125 = vst [vmem:[#allocation3 + $0x128] sm:$0xff] %v6117
      %6126 = vst [vmem:[#allocation3 + $0x130] sm:$0xff] %v6118
      %6127 = vst [vmem:[#allocation3 + $0x138] sm:$0xff] %v6119
      %6128 = vrot.lane.b32.xlu0 %v4576, 82
      %v6129 = vpop.permute.xlu0 %6128
      %6130 = vrot.lane.b32.xlu0 %v4577, 82
      %v6131 = vpop.permute.xlu0 %6130
      %6132 = vrot.lane.b32.xlu0 %v4578, 82
      %v6133 = vpop.permute.xlu0 %6132
      %6134 = vrot.lane.b32.xlu0 %v4579, 82
      %v6135 = vpop.permute.xlu0 %6134
      %6136 = vrot.lane.b32.xlu0 %v4580, 82
      %v6137 = vpop.permute.xlu0 %6136
      %v6138 = vsel %vm3191, %v6129, %v6131
      %v6139 = vsel %vm3191, %v6131, %v6133
      %v6140 = vsel %vm3191, %v6133, %v6135
      %v6141 = vsel %vm3191, %v6135, %v6137
      %6146 = vst [vmem:[#allocation5 + $0x120] sm:$0xff] %v6138
      %6147 = vst [vmem:[#allocation5 + $0x128] sm:$0xff] %v6139
      %6148 = vst [vmem:[#allocation5 + $0x130] sm:$0xff] %v6140
      %6149 = vst [vmem:[#allocation5 + $0x138] sm:$0xff] %v6141
      %v6150 = vld [vmem:[%s3] sm:$0xff]
      %v6151 = vld [vmem:[%s3 + $0x8] sm:$0xff]
      %v6152 = vld [vmem:[%s3 + $0x10] sm:$0xff]
      %v6153 = vld [vmem:[%s3 + $0x18] sm:$0xff]
      %v6154 = vld [vmem:[%s3 + $0x20] sm:$0xff]
      %v6155 = vld [vmem:[%s3 + $0x28] sm:$0xff]
      %v6156 = vld [vmem:[%s3 + $0x30] sm:$0xff]
      %v6157 = vld [vmem:[%s3 + $0x38] sm:$0xff]
      %v6158 = vld [vmem:[#allocation3] sm:$0xff]
      %v6159 = vld [vmem:[#allocation3 + $0x8] sm:$0xff]
      %v6160 = vld [vmem:[#allocation3 + $0x10] sm:$0xff]
      %v6161 = vld [vmem:[#allocation3 + $0x18] sm:$0xff]
      %v6162 = vld [vmem:[#allocation3 + $0x20] sm:$0xff]
      %v6163 = vld [vmem:[#allocation3 + $0x28] sm:$0xff]
      %v6164 = vld [vmem:[#allocation3 + $0x30] sm:$0xff]
      %v6165 = vld [vmem:[#allocation3 + $0x38] sm:$0xff]
      %v6166 = vld [vmem:[#allocation3 + $0x40] sm:$0xff]
      %v6167 = vld [vmem:[#allocation3 + $0x48] sm:$0xff]
      %v6168 = vld [vmem:[#allocation3 + $0x50] sm:$0xff]
      %v6169 = vld [vmem:[#allocation3 + $0x58] sm:$0xff]
      %v6170 = vld [vmem:[#allocation3 + $0x60] sm:$0xff]
      %v6171 = vld [vmem:[#allocation3 + $0x68] sm:$0xff]
      %v6172 = vld [vmem:[#allocation3 + $0x70] sm:$0xff]
      %v6173 = vld [vmem:[#allocation3 + $0x78] sm:$0xff]
      %v6174 = vld [vmem:[#allocation3 + $0x80] sm:$0xff]
      %v6175 = vld [vmem:[#allocation3 + $0x88] sm:$0xff]
      %v6176 = vld [vmem:[#allocation3 + $0x90] sm:$0xff]
      %v6177 = vld [vmem:[#allocation3 + $0x98] sm:$0xff]
      %v6178 = vld [vmem:[#allocation3 + $0xa0] sm:$0xff]
      %v6179 = vld [vmem:[#allocation3 + $0xa8] sm:$0xff]
      %v6180 = vld [vmem:[#allocation3 + $0xb0] sm:$0xff]
      %v6181 = vld [vmem:[#allocation3 + $0xb8] sm:$0xff]
      %v6182 = vld [vmem:[#allocation3 + $0xc0] sm:$0xff]
      %v6183 = vld [vmem:[#allocation3 + $0xc8] sm:$0xff]
      %v6184 = vld [vmem:[#allocation3 + $0xd0] sm:$0xff]
      %v6185 = vld [vmem:[#allocation3 + $0xd8] sm:$0xff]
      %v6186 = vld [vmem:[#allocation3 + $0xe0] sm:$0xff]
      %v6187 = vld [vmem:[#allocation3 + $0xe8] sm:$0xff]
      %v6188 = vld [vmem:[#allocation3 + $0xf0] sm:$0xff]
      %v6189 = vld [vmem:[#allocation3 + $0xf8] sm:$0xff]
      %v6190 = vld [vmem:[#allocation3 + $0x100] sm:$0xff]
      %v6191 = vld [vmem:[#allocation3 + $0x108] sm:$0xff]
      %v6192 = vld [vmem:[#allocation3 + $0x110] sm:$0xff]
      %v6193 = vld [vmem:[#allocation3 + $0x118] sm:$0xff]
      %v6194 = vld [vmem:[#allocation3 + $0x120] sm:$0xff]
      %v6195 = vld [vmem:[#allocation3 + $0x128] sm:$0xff]
      %v6196 = vld [vmem:[#allocation3 + $0x130] sm:$0xff]
      %v6197 = vld [vmem:[#allocation3 + $0x138] sm:$0xff]
      %6206 = vrot.lane.b32.xlu0 %v6150, 8
      %v6207 = vpop.permute.xlu0 %6206
      %6208 = vrot.lane.b32.xlu0 %v6151, 8
      %v6209 = vpop.permute.xlu0 %6208
      %6210 = vrot.lane.b32.xlu0 %v6152, 8
      %v6211 = vpop.permute.xlu0 %6210
      %6212 = vrot.lane.b32.xlu0 %v6153, 8
      %v6213 = vpop.permute.xlu0 %6212
      %6214 = vrot.lane.b32.xlu0 %v6154, 8
      %v6215 = vpop.permute.xlu0 %6214
      %6216 = vrot.lane.b32.xlu0 %v6155, 8
      %v6217 = vpop.permute.xlu0 %6216
      %6218 = vrot.lane.b32.xlu0 %v6156, 8
      %v6219 = vpop.permute.xlu0 %6218
      %6220 = vrot.lane.b32.xlu0 %v6157, 8
      %v6221 = vpop.permute.xlu0 %6220
      %vm6222 = vcmask 64512
      %v6223 = vsel %vm6222, %v6207, %v6209
      %v6224 = vsel %vm6222, %v6211, %v6213
      %v6225 = vsel %vm6222, %v6215, %v6217
      %v6226 = vsel %vm6222, %v6219, %v6221
      %vm6227 = vcmask 654336
      %v6228 = vsel %vm6227, %v6223, 0
      %v6230 = vsel %vm6227, %v6224, 0
      %v6232 = vsel %vm6227, %v6225, 0
      %v6234 = vsel %vm6227, %v6226, 0
      %6236 = vmatprep.subr.mxu0 %v6159
      %6237 = vmatpush1.msra.mxu0 %v6158
      %6238 = vmatprep.subr.mxu0 %v6163
      %6239 = vmatpush1.msra.mxu0 %v6162
      %6240 = vmatprep.subr.mxu0 %v6167
      %6241 = vmatpush1.msra.mxu0 %v6166
      %6242 = vmatprep.subr.mxu0 %v6171
      %6243 = vmatpush1.msra.mxu0 %v6170
      %6244 = vmatprep.subr.mxu0 %v6175
      %6245 = vmatpush1.msra.mxu0 %v6174
      %6246 = vmatprep.subr.mxu0 %v6179
      %6247 = vmatpush1.msra.mxu0 %v6178
      %6248 = vmatprep.subr.mxu0 %v6183
      %6249 = vmatpush1.msra.mxu0 %v6182
      %6250 = vmatprep.subr.mxu0 %v6187
      %6251 = vmatpush1.msra.mxu0 %v6186
      %6252 = vmatprep.subr.mxu0 %v6191
      %6253 = vmatpush1.msra.mxu0 %v6190
      %6254 = vmatprep.subr.mxu0 %v6195
      %6255 = vmatpush1.msra.mxu0 %v6194
      %6256 = vmatprep.subr.mxu0 0.0
      %6257 = vmatpush1.msra.mxu0 0.0
      %6258 = vmatprep.subr.mxu0 0.0
      %6259 = vmatpush1.msra.mxu0 0.0
      %6260 = vmatprep.subr.mxu0 0.0
      %6261 = vmatpush1.msra.mxu0 0.0
      %6262 = vmatprep.subr.mxu0 0.0
      %6263 = vmatpush1.msra.mxu0 0.0
      %6264 = vmatprep.subr.mxu0 0.0
      %6265 = vmatpush1.msra.mxu0 0.0
      %6266 = vmatprep.subr.mxu0 0.0
      %6267 = vmatpush1.msra.mxu0 0.0
      %6268 = vmatprep.subr.mxu0 0.0
      %6269 = vmatpush1.msra.mxu0 0.0
      %6270 = vmatprep.subr.mxu0 0.0
      %6271 = vmatpush1.msra.mxu0 0.0
      %6272 = vmatprep.subr.mxu0 0.0
      %6273 = vmatpush1.msra.mxu0 0.0
      %6274 = vmatprep.subr.mxu0 0.0
      %6275 = vmatpush1.msra.mxu0 0.0
      %6276 = vmatprep.subr.mxu0 0.0
      %6277 = vmatpush1.msra.mxu0 0.0
      %6278 = vmatprep.subr.mxu0 0.0
      %6279 = vmatpush1.msra.mxu0 0.0
      %6280 = vmatprep.subr.mxu0 0.0
      %6281 = vmatpush1.msra.mxu0 0.0
      %6282 = vmatprep.subr.mxu0 0.0
      %6283 = vmatpush1.msra.mxu0 0.0
      %6284 = vmatprep.subr.mxu0 0.0
      %6285 = vmatpush1.msra.mxu0 0.0
      %6286 = vmatprep.subr.mxu0 0.0
      %6287 = vmatpush1.msra.mxu0 0.0
      %6288 = vmatprep.subr.mxu0 0.0
      %6289 = vmatpush1.msra.mxu0 0.0
      %6290 = vmatprep.subr.mxu0 0.0
      %6291 = vmatpush1.msra.mxu0 0.0
      %6292 = vmatprep.subr.mxu0 0.0
      %6293 = vmatpush1.msra.mxu0 0.0
      %6294 = vmatprep.subr.mxu0 0.0
      %6295 = vmatpush1.msra.mxu0 0.0
      %6296 = vmatprep.subr.mxu0 0.0
      %6297 = vmatpush1.msra.mxu0 0.0
      %6298 = vmatprep.subr.mxu0 0.0
      %6299 = vmatpush1.msra.mxu0 0.0
      %6300 = vmatprep.mubr.f32.mxu0 0.0
      %6301 = vmatmul.mubr.f32.gmra.mrb[0].mxu0 %v6228
      %v6302 = vpop.f32.mrb[0].mxu0
      %v6303 = vadd.f32 0.0, %v6302
      %v6304 = vpop.f32.mrb[0].mxu0
      %v6305 = vadd.f32 0.0, %v6304
      %6306 = vmatprep.mubr.f32.mxu0 0.0
      %6307 = vmatmul.mubr.f32.gmra.mrb[0].mxu0 %v6230
      %v6308 = vpop.f32.mrb[0].mxu0
      %v6309 = vadd.f32 0.0, %v6308
      %v6310 = vpop.f32.mrb[0].mxu0
      %v6311 = vadd.f32 0.0, %v6310
      %6312 = vmatprep.mubr.f32.mxu0 0.0
      %6313 = vmatmul.mubr.f32.gmra.mrb[0].mxu0 %v6232
      %v6314 = vpop.f32.mrb[0].mxu0
      %v6315 = vadd.f32 0.0, %v6314
      %v6316 = vpop.f32.mrb[0].mxu0
      %v6317 = vadd.f32 0.0, %v6316
      %6318 = vmatprep.mubr.f32.mxu0 0.0
      %6319 = vmatmul.mubr.f32.gmra.mrb[0].mxu0 %v6234
      %v6320 = vpop.f32.mrb[0].mxu0
      %v6321 = vadd.f32 0.0, %v6320
      %v6322 = vpop.f32.mrb[0].mxu0
      %v6323 = vadd.f32 0.0, %v6322
      %6324 = vdwg.mxu0
      %6325 = vmatprep.subr.mxu0 %v6161
      %6326 = vmatpush1.msra.mxu0 %v6160
      %6327 = vmatprep.subr.mxu0 %v6165
      %6328 = vmatpush1.msra.mxu0 %v6164
      %6329 = vmatprep.subr.mxu0 %v6169
      %6330 = vmatpush1.msra.mxu0 %v6168
      %6331 = vmatprep.subr.mxu0 %v6173
      %6332 = vmatpush1.msra.mxu0 %v6172
      %6333 = vmatprep.subr.mxu0 %v6177
      %6334 = vmatpush1.msra.mxu0 %v6176
      %6335 = vmatprep.subr.mxu0 %v6181
      %6336 = vmatpush1.msra.mxu0 %v6180
      %6337 = vmatprep.subr.mxu0 %v6185
      %6338 = vmatpush1.msra.mxu0 %v6184
      %6339 = vmatprep.subr.mxu0 %v6189
      %6340 = vmatpush1.msra.mxu0 %v6188
      %6341 = vmatprep.subr.mxu0 %v6193
      %6342 = vmatpush1.msra.mxu0 %v6192
      %6343 = vmatprep.subr.mxu0 %v6197
      %6344 = vmatpush1.msra.mxu0 %v6196
      %6345 = vmatprep.subr.mxu0 0.0
      %6346 = vmatpush1.msra.mxu0 0.0
      %6347 = vmatprep.subr.mxu0 0.0
      %6348 = vmatpush1.msra.mxu0 0.0
      %6349 = vmatprep.subr.mxu0 0.0
      %6350 = vmatpush1.msra.mxu0 0.0
      %6351 = vmatprep.subr.mxu0 0.0
      %6352 = vmatpush1.msra.mxu0 0.0
      %6353 = vmatprep.subr.mxu0 0.0
      %6354 = vmatpush1.msra.mxu0 0.0
      %6355 = vmatprep.subr.mxu0 0.0
      %6356 = vmatpush1.msra.mxu0 0.0
      %6357 = vmatprep.subr.mxu0 0.0
      %6358 = vmatpush1.msra.mxu0 0.0
      %6359 = vmatprep.subr.mxu0 0.0
      %6360 = vmatpush1.msra.mxu0 0.0
      %6361 = vmatprep.subr.mxu0 0.0
      %6362 = vmatpush1.msra.mxu0 0.0
      %6363 = vmatprep.subr.mxu0 0.0
      %6364 = vmatpush1.msra.mxu0 0.0
      %6365 = vmatprep.subr.mxu0 0.0
      %6366 = vmatpush1.msra.mxu0 0.0
      %6367 = vmatprep.subr.mxu0 0.0
      %6368 = vmatpush1.msra.mxu0 0.0
      %6369 = vmatprep.subr.mxu0 0.0
      %6370 = vmatpush1.msra.mxu0 0.0
      %6371 = vmatprep.subr.mxu0 0.0
      %6372 = vmatpush1.msra.mxu0 0.0
      %6373 = vmatprep.subr.mxu0 0.0
      %6374 = vmatpush1.msra.mxu0 0.0
      %6375 = vmatprep.subr.mxu0 0.0
      %6376 = vmatpush1.msra.mxu0 0.0
      %6377 = vmatprep.subr.mxu0 0.0
      %6378 = vmatpush1.msra.mxu0 0.0
      %6379 = vmatprep.subr.mxu0 0.0
      %6380 = vmatpush1.msra.mxu0 0.0
      %6381 = vmatprep.subr.mxu0 0.0
      %6382 = vmatpush1.msra.mxu0 0.0
      %6383 = vmatprep.subr.mxu0 0.0
      %6384 = vmatpush1.msra.mxu0 0.0
      %6385 = vmatprep.subr.mxu0 0.0
      %6386 = vmatpush1.msra.mxu0 0.0
      %6387 = vmatprep.subr.mxu0 0.0
      %6388 = vmatpush1.msra.mxu0 0.0
      %6389 = vmatprep.mubr.f32.mxu0 0.0
      %6390 = vmatmul.mubr.f32.gmra.mrb[0].mxu0 %v6228
      %v6391 = vpop.f32.mrb[0].mxu0
      %v6392 = vadd.f32 0.0, %v6391
      %v6393 = vpop.f32.mrb[0].mxu0
      %v6394 = vadd.f32 0.0, %v6393
      %6395 = vmatprep.mubr.f32.mxu0 0.0
      %6396 = vmatmul.mubr.f32.gmra.mrb[0].mxu0 %v6230
      %v6397 = vpop.f32.mrb[0].mxu0
      %v6398 = vadd.f32 0.0, %v6397
      %v6399 = vpop.f32.mrb[0].mxu0
      %v6400 = vadd.f32 0.0, %v6399
      %6401 = vmatprep.mubr.f32.mxu0 0.0
      %6402 = vmatmul.mubr.f32.gmra.mrb[0].mxu0 %v6232
      %v6403 = vpop.f32.mrb[0].mxu0
      %v6404 = vadd.f32 0.0, %v6403
      %v6405 = vpop.f32.mrb[0].mxu0
      %v6406 = vadd.f32 0.0, %v6405
      %6407 = vmatprep.mubr.f32.mxu0 0.0
      %6408 = vmatmul.mubr.f32.gmra.mrb[0].mxu0 %v6234
      %v6409 = vpop.f32.mrb[0].mxu0
      %v6410 = vadd.f32 0.0, %v6409
      %v6411 = vpop.f32.mrb[0].mxu0
      %v6412 = vadd.f32 0.0, %v6411
      %6413 = vdwg.mxu0
      %v6414 = vld [vmem:[#allocation5] sm:$0xff]
      %v6415 = vld [vmem:[#allocation5 + $0x8] sm:$0xff]
      %v6416 = vld [vmem:[#allocation5 + $0x10] sm:$0xff]
      %v6417 = vld [vmem:[#allocation5 + $0x18] sm:$0xff]
      %v6418 = vld [vmem:[#allocation5 + $0x20] sm:$0xff]
      %v6419 = vld [vmem:[#allocation5 + $0x28] sm:$0xff]
      %v6420 = vld [vmem:[#allocation5 + $0x30] sm:$0xff]
      %v6421 = vld [vmem:[#allocation5 + $0x38] sm:$0xff]
      %v6422 = vld [vmem:[#allocation5 + $0x40] sm:$0xff]
      %v6423 = vld [vmem:[#allocation5 + $0x48] sm:$0xff]
      %v6424 = vld [vmem:[#allocation5 + $0x50] sm:$0xff]
      %v6425 = vld [vmem:[#allocation5 + $0x58] sm:$0xff]
      %v6426 = vld [vmem:[#allocation5 + $0x60] sm:$0xff]
      %v6427 = vld [vmem:[#allocation5 + $0x68] sm:$0xff]
      %v6428 = vld [vmem:[#allocation5 + $0x70] sm:$0xff]
      %v6429 = vld [vmem:[#allocation5 + $0x78] sm:$0xff]
      %v6430 = vld [vmem:[#allocation5 + $0x80] sm:$0xff]
      %v6431 = vld [vmem:[#allocation5 + $0x88] sm:$0xff]
      %v6432 = vld [vmem:[#allocation5 + $0x90] sm:$0xff]
      %v6433 = vld [vmem:[#allocation5 + $0x98] sm:$0xff]
      %v6434 = vld [vmem:[#allocation5 + $0xa0] sm:$0xff]
      %v6435 = vld [vmem:[#allocation5 + $0xa8] sm:$0xff]
      %v6436 = vld [vmem:[#allocation5 + $0xb0] sm:$0xff]
      %v6437 = vld [vmem:[#allocation5 + $0xb8] sm:$0xff]
      %v6438 = vld [vmem:[#allocation5 + $0xc0] sm:$0xff]
      %v6439 = vld [vmem:[#allocation5 + $0xc8] sm:$0xff]
      %v6440 = vld [vmem:[#allocation5 + $0xd0] sm:$0xff]
      %v6441 = vld [vmem:[#allocation5 + $0xd8] sm:$0xff]
      %v6442 = vld [vmem:[#allocation5 + $0xe0] sm:$0xff]
      %v6443 = vld [vmem:[#allocation5 + $0xe8] sm:$0xff]
      %v6444 = vld [vmem:[#allocation5 + $0xf0] sm:$0xff]
      %v6445 = vld [vmem:[#allocation5 + $0xf8] sm:$0xff]
      %v6446 = vld [vmem:[#allocation5 + $0x100] sm:$0xff]
      %v6447 = vld [vmem:[#allocation5 + $0x108] sm:$0xff]
      %v6448 = vld [vmem:[#allocation5 + $0x110] sm:$0xff]
      %v6449 = vld [vmem:[#allocation5 + $0x118] sm:$0xff]
      %v6450 = vld [vmem:[#allocation5 + $0x120] sm:$0xff]
      %v6451 = vld [vmem:[#allocation5 + $0x128] sm:$0xff]
      %v6452 = vld [vmem:[#allocation5 + $0x130] sm:$0xff]
      %v6453 = vld [vmem:[#allocation5 + $0x138] sm:$0xff]
      %6454 = vmatprep.subr.mxu0 %v6415
      %6455 = vmatpush1.msra.mxu0 %v6414
      %6456 = vmatprep.subr.mxu0 %v6419
      %6457 = vmatpush1.msra.mxu0 %v6418
      %6458 = vmatprep.subr.mxu0 %v6423
      %6459 = vmatpush1.msra.mxu0 %v6422
      %6460 = vmatprep.subr.mxu0 %v6427
      %6461 = vmatpush1.msra.mxu0 %v6426
      %6462 = vmatprep.subr.mxu0 %v6431
      %6463 = vmatpush1.msra.mxu0 %v6430
      %6464 = vmatprep.subr.mxu0 %v6435
      %6465 = vmatpush1.msra.mxu0 %v6434
      %6466 = vmatprep.subr.mxu0 %v6439
      %6467 = vmatpush1.msra.mxu0 %v6438
      %6468 = vmatprep.subr.mxu0 %v6443
      %6469 = vmatpush1.msra.mxu0 %v6442
      %6470 = vmatprep.subr.mxu0 %v6447
      %6471 = vmatpush1.msra.mxu0 %v6446
      %6472 = vmatprep.subr.mxu0 %v6451
      %6473 = vmatpush1.msra.mxu0 %v6450
      %6474 = vmatprep.subr.mxu0 0.0
      %6475 = vmatpush1.msra.mxu0 0.0
      %6476 = vmatprep.subr.mxu0 0.0
      %6477 = vmatpush1.msra.mxu0 0.0
      %6478 = vmatprep.subr.mxu0 0.0
      %6479 = vmatpush1.msra.mxu0 0.0
      %6480 = vmatprep.subr.mxu0 0.0
      %6481 = vmatpush1.msra.mxu0 0.0
      %6482 = vmatprep.subr.mxu0 0.0
      %6483 = vmatpush1.msra.mxu0 0.0
      %6484 = vmatprep.subr.mxu0 0.0
      %6485 = vmatpush1.msra.mxu0 0.0
      %6486 = vmatprep.subr.mxu0 0.0
      %6487 = vmatpush1.msra.mxu0 0.0
      %6488 = vmatprep.subr.mxu0 0.0
      %6489 = vmatpush1.msra.mxu0 0.0
      %6490 = vmatprep.subr.mxu0 0.0
      %6491 = vmatpush1.msra.mxu0 0.0
      %6492 = vmatprep.subr.mxu0 0.0
      %6493 = vmatpush1.msra.mxu0 0.0
      %6494 = vmatprep.subr.mxu0 0.0
      %6495 = vmatpush1.msra.mxu0 0.0
      %6496 = vmatprep.subr.mxu0 0.0
      %6497 = vmatpush1.msra.mxu0 0.0
      %6498 = vmatprep.subr.mxu0 0.0
      %6499 = vmatpush1.msra.mxu0 0.0
      %6500 = vmatprep.subr.mxu0 0.0
      %6501 = vmatpush1.msra.mxu0 0.0
      %6502 = vmatprep.subr.mxu0 0.0
      %6503 = vmatpush1.msra.mxu0 0.0
      %6504 = vmatprep.subr.mxu0 0.0
      %6505 = vmatpush1.msra.mxu0 0.0
      %6506 = vmatprep.subr.mxu0 0.0
      %6507 = vmatpush1.msra.mxu0 0.0
      %6508 = vmatprep.subr.mxu0 0.0
      %6509 = vmatpush1.msra.mxu0 0.0
      %6510 = vmatprep.subr.mxu0 0.0
      %6511 = vmatpush1.msra.mxu0 0.0
      %6512 = vmatprep.subr.mxu0 0.0
      %6513 = vmatpush1.msra.mxu0 0.0
      %6514 = vmatprep.subr.mxu0 0.0
      %6515 = vmatpush1.msra.mxu0 0.0
      %6516 = vmatprep.subr.mxu0 0.0
      %6517 = vmatpush1.msra.mxu0 0.0
      %6518 = vmatprep.mubr.f32.mxu0 0.0
      %6519 = vmatmul.mubr.f32.gmra.mrb[0].mxu0 %v6228
      %v6520 = vpop.f32.mrb[0].mxu0
      %v6521 = vadd.f32 0.0, %v6520
      %v6522 = vpop.f32.mrb[0].mxu0
      %v6523 = vadd.f32 0.0, %v6522
      %6524 = vmatprep.mubr.f32.mxu0 0.0
      %6525 = vmatmul.mubr.f32.gmra.mrb[0].mxu0 %v6230
      %v6526 = vpop.f32.mrb[0].mxu0
      %v6527 = vadd.f32 0.0, %v6526
      %v6528 = vpop.f32.mrb[0].mxu0
      %v6529 = vadd.f32 0.0, %v6528
      %6530 = vdwg.mxu0
      %6531 = vmatprep.subr.mxu0 %v6417
      %6532 = vmatpush1.msra.mxu0 %v6416
      %6533 = vmatprep.subr.mxu0 %v6421
      %6534 = vmatpush1.msra.mxu0 %v6420
      %6535 = vmatprep.subr.mxu0 %v6425
      %6536 = vmatpush1.msra.mxu0 %v6424
      %6537 = vmatprep.subr.mxu0 %v6429
      %6538 = vmatpush1.msra.mxu0 %v6428
      %6539 = vmatprep.subr.mxu0 %v6433
      %6540 = vmatpush1.msra.mxu0 %v6432
      %6541 = vmatprep.subr.mxu0 %v6437
      %6542 = vmatpush1.msra.mxu0 %v6436
      %6543 = vmatprep.subr.mxu0 %v6441
      %6544 = vmatpush1.msra.mxu0 %v6440
      %6545 = vmatprep.subr.mxu0 %v6445
      %6546 = vmatpush1.msra.mxu0 %v6444
      %6547 = vmatprep.subr.mxu0 %v6449
      %6548 = vmatpush1.msra.mxu0 %v6448
      %6549 = vmatprep.subr.mxu0 %v6453
      %6550 = vmatpush1.msra.mxu0 %v6452
      %6551 = vmatprep.subr.mxu0 0.0
      %6552 = vmatpush1.msra.mxu0 0.0
      %6553 = vmatprep.subr.mxu0 0.0
      %6554 = vmatpush1.msra.mxu0 0.0
      %6555 = vmatprep.subr.mxu0 0.0
      %6556 = vmatpush1.msra.mxu0 0.0
      %6557 = vmatprep.subr.mxu0 0.0
      %6558 = vmatpush1.msra.mxu0 0.0
      %6559 = vmatprep.subr.mxu0 0.0
      %6560 = vmatpush1.msra.mxu0 0.0
      %6561 = vmatprep.subr.mxu0 0.0
      %6562 = vmatpush1.msra.mxu0 0.0
      %6563 = vmatprep.subr.mxu0 0.0
      %6564 = vmatpush1.msra.mxu0 0.0
      %6565 = vmatprep.subr.mxu0 0.0
      %6566 = vmatpush1.msra.mxu0 0.0
      %6567 = vmatprep.subr.mxu0 0.0
      %6568 = vmatpush1.msra.mxu0 0.0
      %6569 = vmatprep.subr.mxu0 0.0
      %6570 = vmatpush1.msra.mxu0 0.0
      %6571 = vmatprep.subr.mxu0 0.0
      %6572 = vmatpush1.msra.mxu0 0.0
      %6573 = vmatprep.subr.mxu0 0.0
      %6574 = vmatpush1.msra.mxu0 0.0
      %6575 = vmatprep.subr.mxu0 0.0
      %6576 = vmatpush1.msra.mxu0 0.0
      %6577 = vmatprep.subr.mxu0 0.0
      %6578 = vmatpush1.msra.mxu0 0.0
      %6579 = vmatprep.subr.mxu0 0.0
      %6580 = vmatpush1.msra.mxu0 0.0
      %6581 = vmatprep.subr.mxu0 0.0
      %6582 = vmatpush1.msra.mxu0 0.0
      %6583 = vmatprep.subr.mxu0 0.0
      %6584 = vmatpush1.msra.mxu0 0.0
      %6585 = vmatprep.subr.mxu0 0.0
      %6586 = vmatpush1.msra.mxu0 0.0
      %6587 = vmatprep.subr.mxu0 0.0
      %6588 = vmatpush1.msra.mxu0 0.0
      %6589 = vmatprep.subr.mxu0 0.0
      %6590 = vmatpush1.msra.mxu0 0.0
      %6591 = vmatprep.subr.mxu0 0.0
      %6592 = vmatpush1.msra.mxu0 0.0
      %6593 = vmatprep.subr.mxu0 0.0
      %6594 = vmatpush1.msra.mxu0 0.0
      %6595 = vmatprep.mubr.f32.mxu0 0.0
      %6596 = vmatmul.mubr.f32.gmra.mrb[0].mxu0 %v6228
      %v6597 = vpop.f32.mrb[0].mxu0
      %v6598 = vadd.f32 0.0, %v6597
      %v6599 = vpop.f32.mrb[0].mxu0
      %v6600 = vadd.f32 0.0, %v6599
      %6601 = vmatprep.mubr.f32.mxu0 0.0
      %6602 = vmatmul.mubr.f32.gmra.mrb[0].mxu0 %v6230
      %v6603 = vpop.f32.mrb[0].mxu0
      %v6604 = vadd.f32 0.0, %v6603
      %v6605 = vpop.f32.mrb[0].mxu0
      %v6606 = vadd.f32 0.0, %v6605
      %6607 = vdwg.mxu0
      %v6608 = vadd.f32 %v5702, %v6303
      %v6609 = vadd.f32 %v5703, %v6305
      %v6610 = vadd.f32 %v5704, %v6392
      %v6611 = vadd.f32 %v5705, %v6394
      %v6612 = vadd.f32 %v5706, %v6309
      %v6613 = vadd.f32 %v5707, %v6311
      %v6614 = vadd.f32 %v5708, %v6398
      %v6615 = vadd.f32 %v5709, %v6400
      %v6616 = vadd.f32 %v6608, %v6315
      %v6617 = vadd.f32 %v6609, %v6317
      %v6618 = vadd.f32 %v6610, %v6404
      %v6619 = vadd.f32 %v6611, %v6406
      %v6620 = vadd.f32 %v6612, %v6321
      %v6621 = vadd.f32 %v6613, %v6323
      %v6622 = vadd.f32 %v6614, %v6410
      %v6623 = vadd.f32 %v6615, %v6412
      %v6624 = vadd.f32 %v6616, %v6521
      %v6625 = vadd.f32 %v6617, %v6523
      %v6626 = vadd.f32 %v6618, %v6598
      %v6627 = vadd.f32 %v6619, %v6600
      %v6628 = vadd.f32 %v6620, %v6527
      %v6629 = vadd.f32 %v6621, %v6529
      %v6630 = vadd.f32 %v6622, %v6604
      %v6631 = vadd.f32 %v6623, %v6606
      %vm6632 = vcmp.gt.f32.partialorder %v6624, 0.0
      %vm6633 = vcmp.gt.f32.partialorder %v6625, 0.0
      %vm6634 = vcmp.gt.f32.partialorder %v6626, 0.0
      %vm6635 = vcmp.gt.f32.partialorder %v6627, 0.0
      %v6636 = vmul.f32 %v4474, %v6624
      %v6637 = vmul.f32 %v4474, %v6625
      %v6638 = vmul.f32 %v4474, %v6626
      %v6639 = vmul.f32 %v4474, %v6627
      %v6640 = vsel %vm6632, %v6624, %v6636
      %v6641 = vsel %vm6633, %v6625, %v6637
      %v6642 = vsel %vm6634, %v6626, %v6638
      %v6643 = vsel %vm6635, %v6627, %v6639
      %vm6644 = vcmp.gt.f32.partialorder %v6628, 0.0
      %vm6645 = vcmp.gt.f32.partialorder %v6629, 0.0
      %vm6646 = vcmp.gt.f32.partialorder %v6630, 0.0
      %vm6647 = vcmp.gt.f32.partialorder %v6631, 0.0
      %v6648 = vmul.f32 %v4487, %v6628
      %v6649 = vmul.f32 %v4487, %v6629
      %v6650 = vmul.f32 %v4487, %v6630
      %v6651 = vmul.f32 %v4487, %v6631
      %v6652 = vsel %vm6644, %v6628, %v6648
      %v6653 = vsel %vm6645, %v6629, %v6649
      %v6654 = vsel %vm6646, %v6630, %v6650
      %v6655 = vsel %vm6647, %v6631, %v6651
      %v6656 = vsub.f32 %v6640, %v6652
      %v6657 = vsub.f32 %v6641, %v6653
      %v6658 = vsub.f32 %v6642, %v6654
      %v6659 = vsub.f32 %v6643, %v6655
      %v6660 = vand.u32 2147483647, %v6656
      %v6661 = vand.u32 2147483647, %v6657
      %v6662 = vand.u32 2147483647, %v6658
      %v6663 = vand.u32 2147483647, %v6659
      %v6664 = vsub.f32 0.0, %v6660
      %v6665 = vsub.f32 0.0, %v6661
      %v6666 = vsub.f32 0.0, %v6662
      %v6667 = vsub.f32 0.0, %v6663
      %v6668 = vmul.f32 %v6664, 1.442695
      %v6669 = vpow.pop %v6668
      %v6670 = vmul.f32 %v6665, 1.442695
      %v6671 = vpow.pop %v6670
      %v6672 = vmul.f32 %v6666, 1.442695
      %v6673 = vpow.pop %v6672
      %v6674 = vmul.f32 %v6667, 1.442695
      %v6675 = vpow.pop %v6674
      %v6676 = vadd.f32 %v6669, 1.0
      %v6677 = vadd.f32 %v6671, 1.0
      %v6678 = vadd.f32 %v6673, 1.0
      %v6679 = vadd.f32 %v6675, 1.0
      %v6680 = vrcp.pop %v6676
      %v6681 = vmul.f32 1.0, %v6680
      %v6682 = vrcp.pop %v6677
      %v6683 = vmul.f32 1.0, %v6682
      %v6684 = vrcp.pop %v6678
      %v6685 = vmul.f32 1.0, %v6684
      %v6686 = vrcp.pop %v6679
      %v6687 = vmul.f32 1.0, %v6686
      %v6688 = vmul.f32 %v6681, %v4532
      %v6689 = vmul.f32 %v6683, %v4536
      %v6690 = vmul.f32 %v6685, %v4540
      %v6691 = vmul.f32 %v6687, %v4544
      %6692 = vst [vmem:[#allocation6 + $0x8] sm:$0xff] %v6688
      %6693 = vst [vmem:[#allocation6 + $0x10] sm:$0xff] %v6689
      %6694 = vst [vmem:[#allocation6 + $0x18] sm:$0xff] %v6690
      %6695 = vst [vmem:[#allocation6 + $0x20] sm:$0xff] %v6691
      %v6696 = vld [vmem:[#allocation6] sm:$0xff]
      %v6697 = vld [vmem:[#allocation6 + $0x8] sm:$0xff]
      %v6698 = vld [vmem:[#allocation6 + $0x10] sm:$0xff]
      %v6699 = vld [vmem:[#allocation6 + $0x18] sm:$0xff]
      %v6700 = vld [vmem:[#allocation6 + $0x20] sm:$0xff]
      %v6701 = vld [vmem:[#allocation6 + $0x28] sm:$0xff]
      %v6702 = vpack.c.bf16 %v6696, %v6696
      %v6703 = vpack.c.bf16 %v6697, %v6697
      %v6704 = vpack.c.bf16 %v6698, %v6698
      %v6705 = vpack.c.bf16 %v6699, %v6699
      %v6706 = vpack.c.bf16 %v6700, %v6700
      %v6707 = vpack.c.bf16 %v6701, %v6701
      %v6708 = vunpack.c.l.bf16 %v6702
      %v6709 = vunpack.c.l.bf16 %v6703
      %v6710 = vunpack.c.l.bf16 %v6704
      %v6711 = vunpack.c.l.bf16 %v6705
      %v6712 = vunpack.c.l.bf16 %v6706
      %v6713 = vunpack.c.l.bf16 %v6707
      %v6714 = vsub.f32 %v6696, %v6708
      %v6715 = vsub.f32 %v6697, %v6709
      %v6716 = vsub.f32 %v6698, %v6710
      %v6717 = vsub.f32 %v6699, %v6711
      %v6718 = vsub.f32 %v6700, %v6712
      %v6719 = vsub.f32 %v6701, %v6713
      %6725 = vrot.lane.b32.xlu0 %v6708, 23
      %v6726 = vpop.permute.xlu0 %6725
      %6727 = vrot.lane.b32.xlu0 %v6709, 23
      %v6728 = vpop.permute.xlu0 %6727
      %6729 = vrot.lane.b32.xlu0 %v6710, 23
      %v6730 = vpop.permute.xlu0 %6729
      %6731 = vrot.lane.b32.xlu0 %v6711, 23
      %v6732 = vpop.permute.xlu0 %6731
      %6733 = vrot.lane.b32.xlu0 %v6712, 23
      %v6734 = vpop.permute.xlu0 %6733
      %v6735 = vsel %vm1633, %v6726, %v6728
      %v6736 = vsel %vm1633, %v6728, %v6730
      %v6737 = vsel %vm1633, %v6730, %v6732
      %v6738 = vsel %vm1633, %v6732, %v6734
      %6743 = vst [vmem:[#allocation2] sm:$0xff] %v6735
      %6744 = vst [vmem:[#allocation2 + $0x8] sm:$0xff] %v6736
      %6745 = vst [vmem:[#allocation2 + $0x10] sm:$0xff] %v6737
      %6746 = vst [vmem:[#allocation2 + $0x18] sm:$0xff] %v6738
      %6752 = vrot.lane.b32.xlu0 %v6714, 23
      %v6753 = vpop.permute.xlu0 %6752
      %6754 = vrot.lane.b32.xlu0 %v6715, 23
      %v6755 = vpop.permute.xlu0 %6754
      %6756 = vrot.lane.b32.xlu0 %v6716, 23
      %v6757 = vpop.permute.xlu0 %6756
      %6758 = vrot.lane.b32.xlu0 %v6717, 23
      %v6759 = vpop.permute.xlu0 %6758
      %6760 = vrot.lane.b32.xlu0 %v6718, 23
      %v6761 = vpop.permute.xlu0 %6760
      %v6762 = vsel %vm1633, %v6753, %v6755
      %v6763 = vsel %vm1633, %v6755, %v6757
      %v6764 = vsel %vm1633, %v6757, %v6759
      %v6765 = vsel %vm1633, %v6759, %v6761
      %6770 = vst [vmem:[#allocation4] sm:$0xff] %v6762
      %6771 = vst [vmem:[#allocation4 + $0x8] sm:$0xff] %v6763
      %6772 = vst [vmem:[#allocation4 + $0x10] sm:$0xff] %v6764
      %6773 = vst [vmem:[#allocation4 + $0x18] sm:$0xff] %v6765
      %6774 = vrot.lane.b32.xlu0 %v6708, 22
      %v6775 = vpop.permute.xlu0 %6774
      %6776 = vrot.lane.b32.xlu0 %v6709, 22
      %v6777 = vpop.permute.xlu0 %6776
      %6778 = vrot.lane.b32.xlu0 %v6710, 22
      %v6779 = vpop.permute.xlu0 %6778
      %6780 = vrot.lane.b32.xlu0 %v6711, 22
      %v6781 = vpop.permute.xlu0 %6780
      %6782 = vrot.lane.b32.xlu0 %v6712, 22
      %v6783 = vpop.permute.xlu0 %6782
      %v6784 = vsel %vm1678, %v6775, %v6777
      %v6785 = vsel %vm1678, %v6777, %v6779
      %v6786 = vsel %vm1678, %v6779, %v6781
      %v6787 = vsel %vm1678, %v6781, %v6783
      %6792 = vst [vmem:[#allocation2 + $0x20] sm:$0xff] %v6784
      %6793 = vst [vmem:[#allocation2 + $0x28] sm:$0xff] %v6785
      %6794 = vst [vmem:[#allocation2 + $0x30] sm:$0xff] %v6786
      %6795 = vst [vmem:[#allocation2 + $0x38] sm:$0xff] %v6787
      %6796 = vrot.lane.b32.xlu0 %v6714, 22
      %v6797 = vpop.permute.xlu0 %6796
      %6798 = vrot.lane.b32.xlu0 %v6715, 22
      %v6799 = vpop.permute.xlu0 %6798
      %6800 = vrot.lane.b32.xlu0 %v6716, 22
      %v6801 = vpop.permute.xlu0 %6800
      %6802 = vrot.lane.b32.xlu0 %v6717, 22
      %v6803 = vpop.permute.xlu0 %6802
      %6804 = vrot.lane.b32.xlu0 %v6718, 22
      %v6805 = vpop.permute.xlu0 %6804
      %v6806 = vsel %vm1678, %v6797, %v6799
      %v6807 = vsel %vm1678, %v6799, %v6801
      %v6808 = vsel %vm1678, %v6801, %v6803
      %v6809 = vsel %vm1678, %v6803, %v6805
      %6814 = vst [vmem:[#allocation4 + $0x20] sm:$0xff] %v6806
      %6815 = vst [vmem:[#allocation4 + $0x28] sm:$0xff] %v6807
      %6816 = vst [vmem:[#allocation4 + $0x30] sm:$0xff] %v6808
      %6817 = vst [vmem:[#allocation4 + $0x38] sm:$0xff] %v6809
      %6818 = vrot.lane.b32.xlu0 %v6708, 21
      %v6819 = vpop.permute.xlu0 %6818
      %6820 = vrot.lane.b32.xlu0 %v6709, 21
      %v6821 = vpop.permute.xlu0 %6820
      %6822 = vrot.lane.b32.xlu0 %v6710, 21
      %v6823 = vpop.permute.xlu0 %6822
      %6824 = vrot.lane.b32.xlu0 %v6711, 21
      %v6825 = vpop.permute.xlu0 %6824
      %6826 = vrot.lane.b32.xlu0 %v6712, 21
      %v6827 = vpop.permute.xlu0 %6826
      %v6828 = vsel %vm1723, %v6819, %v6821
      %v6829 = vsel %vm1723, %v6821, %v6823
      %v6830 = vsel %vm1723, %v6823, %v6825
      %v6831 = vsel %vm1723, %v6825, %v6827
      %6836 = vst [vmem:[#allocation2 + $0x40] sm:$0xff] %v6828
      %6837 = vst [vmem:[#allocation2 + $0x48] sm:$0xff] %v6829
      %6838 = vst [vmem:[#allocation2 + $0x50] sm:$0xff] %v6830
      %6839 = vst [vmem:[#allocation2 + $0x58] sm:$0xff] %v6831
      %6840 = vrot.lane.b32.xlu0 %v6714, 21
      %v6841 = vpop.permute.xlu0 %6840
      %6842 = vrot.lane.b32.xlu0 %v6715, 21
      %v6843 = vpop.permute.xlu0 %6842
      %6844 = vrot.lane.b32.xlu0 %v6716, 21
      %v6845 = vpop.permute.xlu0 %6844
      %6846 = vrot.lane.b32.xlu0 %v6717, 21
      %v6847 = vpop.permute.xlu0 %6846
      %6848 = vrot.lane.b32.xlu0 %v6718, 21
      %v6849 = vpop.permute.xlu0 %6848
      %v6850 = vsel %vm1723, %v6841, %v6843
      %v6851 = vsel %vm1723, %v6843, %v6845
      %v6852 = vsel %vm1723, %v6845, %v6847
      %v6853 = vsel %vm1723, %v6847, %v6849
      %6858 = vst [vmem:[#allocation4 + $0x40] sm:$0xff] %v6850
      %6859 = vst [vmem:[#allocation4 + $0x48] sm:$0xff] %v6851
      %6860 = vst [vmem:[#allocation4 + $0x50] sm:$0xff] %v6852
      %6861 = vst [vmem:[#allocation4 + $0x58] sm:$0xff] %v6853
      %6862 = vrot.lane.b32.xlu0 %v6708, 1
      %v6863 = vpop.permute.xlu0 %6862
      %6864 = vrot.lane.b32.xlu0 %v6709, 1
      %v6865 = vpop.permute.xlu0 %6864
      %6866 = vrot.lane.b32.xlu0 %v6710, 1
      %v6867 = vpop.permute.xlu0 %6866
      %6868 = vrot.lane.b32.xlu0 %v6711, 1
      %v6869 = vpop.permute.xlu0 %6868
      %6870 = vrot.lane.b32.xlu0 %v6712, 1
      %v6871 = vpop.permute.xlu0 %6870
      %v6872 = vsel %vm1948, %v6863, %v6865
      %v6873 = vsel %vm1948, %v6865, %v6867
      %v6874 = vsel %vm1948, %v6867, %v6869
      %v6875 = vsel %vm1948, %v6869, %v6871
      %6880 = vst [vmem:[#allocation2 + $0x60] sm:$0xff] %v6872
      %6881 = vst [vmem:[#allocation2 + $0x68] sm:$0xff] %v6873
      %6882 = vst [vmem:[#allocation2 + $0x70] sm:$0xff] %v6874
      %6883 = vst [vmem:[#allocation2 + $0x78] sm:$0xff] %v6875
      %6884 = vrot.lane.b32.xlu0 %v6714, 1
      %v6885 = vpop.permute.xlu0 %6884
      %6886 = vrot.lane.b32.xlu0 %v6715, 1
      %v6887 = vpop.permute.xlu0 %6886
      %6888 = vrot.lane.b32.xlu0 %v6716, 1
      %v6889 = vpop.permute.xlu0 %6888
      %6890 = vrot.lane.b32.xlu0 %v6717, 1
      %v6891 = vpop.permute.xlu0 %6890
      %6892 = vrot.lane.b32.xlu0 %v6718, 1
      %v6893 = vpop.permute.xlu0 %6892
      %v6894 = vsel %vm1948, %v6885, %v6887
      %v6895 = vsel %vm1948, %v6887, %v6889
      %v6896 = vsel %vm1948, %v6889, %v6891
      %v6897 = vsel %vm1948, %v6891, %v6893
      %6902 = vst [vmem:[#allocation4 + $0x60] sm:$0xff] %v6894
      %6903 = vst [vmem:[#allocation4 + $0x68] sm:$0xff] %v6895
      %6904 = vst [vmem:[#allocation4 + $0x70] sm:$0xff] %v6896
      %6905 = vst [vmem:[#allocation4 + $0x78] sm:$0xff] %v6897
      %6906 = vst [vmem:[#allocation2 + $0x80] sm:$0xff] %v6709
      %6907 = vst [vmem:[#allocation2 + $0x88] sm:$0xff] %v6710
      %6908 = vst [vmem:[#allocation2 + $0x90] sm:$0xff] %v6711
      %6909 = vst [vmem:[#allocation2 + $0x98] sm:$0xff] %v6712
      %6910 = vst [vmem:[#allocation4 + $0x80] sm:$0xff] %v6715
      %6911 = vst [vmem:[#allocation4 + $0x88] sm:$0xff] %v6716
      %6912 = vst [vmem:[#allocation4 + $0x90] sm:$0xff] %v6717
      %6913 = vst [vmem:[#allocation4 + $0x98] sm:$0xff] %v6718
      %6915 = vrot.lane.b32.xlu0 %v6709, 127
      %v6916 = vpop.permute.xlu0 %6915
      %6917 = vrot.lane.b32.xlu0 %v6710, 127
      %v6918 = vpop.permute.xlu0 %6917
      %6919 = vrot.lane.b32.xlu0 %v6711, 127
      %v6920 = vpop.permute.xlu0 %6919
      %6921 = vrot.lane.b32.xlu0 %v6712, 127
      %v6922 = vpop.permute.xlu0 %6921
      %6923 = vrot.lane.b32.xlu0 %v6713, 127
      %v6924 = vpop.permute.xlu0 %6923
      %v6925 = vsel %vm2002, %v6916, %v6918
      %v6926 = vsel %vm2002, %v6918, %v6920
      %v6927 = vsel %vm2002, %v6920, %v6922
      %v6928 = vsel %vm2002, %v6922, %v6924
      %6933 = vst [vmem:[#allocation2 + $0xa0] sm:$0xff] %v6925
      %6934 = vst [vmem:[#allocation2 + $0xa8] sm:$0xff] %v6926
      %6935 = vst [vmem:[#allocation2 + $0xb0] sm:$0xff] %v6927
      %6936 = vst [vmem:[#allocation2 + $0xb8] sm:$0xff] %v6928
      %6938 = vrot.lane.b32.xlu0 %v6715, 127
      %v6939 = vpop.permute.xlu0 %6938
      %6940 = vrot.lane.b32.xlu0 %v6716, 127
      %v6941 = vpop.permute.xlu0 %6940
      %6942 = vrot.lane.b32.xlu0 %v6717, 127
      %v6943 = vpop.permute.xlu0 %6942
      %6944 = vrot.lane.b32.xlu0 %v6718, 127
      %v6945 = vpop.permute.xlu0 %6944
      %6946 = vrot.lane.b32.xlu0 %v6719, 127
      %v6947 = vpop.permute.xlu0 %6946
      %v6948 = vsel %vm2002, %v6939, %v6941
      %v6949 = vsel %vm2002, %v6941, %v6943
      %v6950 = vsel %vm2002, %v6943, %v6945
      %v6951 = vsel %vm2002, %v6945, %v6947
      %6956 = vst [vmem:[#allocation4 + $0xa0] sm:$0xff] %v6948
      %6957 = vst [vmem:[#allocation4 + $0xa8] sm:$0xff] %v6949
      %6958 = vst [vmem:[#allocation4 + $0xb0] sm:$0xff] %v6950
      %6959 = vst [vmem:[#allocation4 + $0xb8] sm:$0xff] %v6951
      %6960 = vrot.lane.b32.xlu0 %v6709, 107
      %v6961 = vpop.permute.xlu0 %6960
      %6962 = vrot.lane.b32.xlu0 %v6710, 107
      %v6963 = vpop.permute.xlu0 %6962
      %6964 = vrot.lane.b32.xlu0 %v6711, 107
      %v6965 = vpop.permute.xlu0 %6964
      %6966 = vrot.lane.b32.xlu0 %v6712, 107
      %v6967 = vpop.permute.xlu0 %6966
      %6968 = vrot.lane.b32.xlu0 %v6713, 107
      %v6969 = vpop.permute.xlu0 %6968
      %v6970 = vsel %vm2741, %v6961, %v6963
      %v6971 = vsel %vm2741, %v6963, %v6965
      %v6972 = vsel %vm2741, %v6965, %v6967
      %v6973 = vsel %vm2741, %v6967, %v6969
      %6978 = vst [vmem:[#allocation2 + $0xc0] sm:$0xff] %v6970
      %6979 = vst [vmem:[#allocation2 + $0xc8] sm:$0xff] %v6971
      %6980 = vst [vmem:[#allocation2 + $0xd0] sm:$0xff] %v6972
      %6981 = vst [vmem:[#allocation2 + $0xd8] sm:$0xff] %v6973
      %6982 = vrot.lane.b32.xlu0 %v6715, 107
      %v6983 = vpop.permute.xlu0 %6982
      %6984 = vrot.lane.b32.xlu0 %v6716, 107
      %v6985 = vpop.permute.xlu0 %6984
      %6986 = vrot.lane.b32.xlu0 %v6717, 107
      %v6987 = vpop.permute.xlu0 %6986
      %6988 = vrot.lane.b32.xlu0 %v6718, 107
      %v6989 = vpop.permute.xlu0 %6988
      %6990 = vrot.lane.b32.xlu0 %v6719, 107
      %v6991 = vpop.permute.xlu0 %6990
      %v6992 = vsel %vm2741, %v6983, %v6985
      %v6993 = vsel %vm2741, %v6985, %v6987
      %v6994 = vsel %vm2741, %v6987, %v6989
      %v6995 = vsel %vm2741, %v6989, %v6991
      %7000 = vst [vmem:[#allocation4 + $0xc0] sm:$0xff] %v6992
      %7001 = vst [vmem:[#allocation4 + $0xc8] sm:$0xff] %v6993
      %7002 = vst [vmem:[#allocation4 + $0xd0] sm:$0xff] %v6994
      %7003 = vst [vmem:[#allocation4 + $0xd8] sm:$0xff] %v6995
      %7004 = vrot.lane.b32.xlu0 %v6709, 106
      %v7005 = vpop.permute.xlu0 %7004
      %7006 = vrot.lane.b32.xlu0 %v6710, 106
      %v7007 = vpop.permute.xlu0 %7006
      %7008 = vrot.lane.b32.xlu0 %v6711, 106
      %v7009 = vpop.permute.xlu0 %7008
      %7010 = vrot.lane.b32.xlu0 %v6712, 106
      %v7011 = vpop.permute.xlu0 %7010
      %7012 = vrot.lane.b32.xlu0 %v6713, 106
      %v7013 = vpop.permute.xlu0 %7012
      %v7014 = vsel %vm2786, %v7005, %v7007
      %v7015 = vsel %vm2786, %v7007, %v7009
      %v7016 = vsel %vm2786, %v7009, %v7011
      %v7017 = vsel %vm2786, %v7011, %v7013
      %7022 = vst [vmem:[#allocation2 + $0xe0] sm:$0xff] %v7014
      %7023 = vst [vmem:[#allocation2 + $0xe8] sm:$0xff] %v7015
      %7024 = vst [vmem:[#allocation2 + $0xf0] sm:$0xff] %v7016
      %7025 = vst [vmem:[#allocation2 + $0xf8] sm:$0xff] %v7017
      %7026 = vrot.lane.b32.xlu0 %v6715, 106
      %v7027 = vpop.permute.xlu0 %7026
      %7028 = vrot.lane.b32.xlu0 %v6716, 106
      %v7029 = vpop.permute.xlu0 %7028
      %7030 = vrot.lane.b32.xlu0 %v6717, 106
      %v7031 = vpop.permute.xlu0 %7030
      %7032 = vrot.lane.b32.xlu0 %v6718, 106
      %v7033 = vpop.permute.xlu0 %7032
      %7034 = vrot.lane.b32.xlu0 %v6719, 106
      %v7035 = vpop.permute.xlu0 %7034
      %v7036 = vsel %vm2786, %v7027, %v7029
      %v7037 = vsel %vm2786, %v7029, %v7031
      %v7038 = vsel %vm2786, %v7031, %v7033
      %v7039 = vsel %vm2786, %v7033, %v7035
      %7044 = vst [vmem:[#allocation4 + $0xe0] sm:$0xff] %v7036
      %7045 = vst [vmem:[#allocation4 + $0xe8] sm:$0xff] %v7037
      %7046 = vst [vmem:[#allocation4 + $0xf0] sm:$0xff] %v7038
      %7047 = vst [vmem:[#allocation4 + $0xf8] sm:$0xff] %v7039
      %7048 = vrot.lane.b32.xlu0 %v6709, 105
      %v7049 = vpop.permute.xlu0 %7048
      %7050 = vrot.lane.b32.xlu0 %v6710, 105
      %v7051 = vpop.permute.xlu0 %7050
      %7052 = vrot.lane.b32.xlu0 %v6711, 105
      %v7053 = vpop.permute.xlu0 %7052
      %7054 = vrot.lane.b32.xlu0 %v6712, 105
      %v7055 = vpop.permute.xlu0 %7054
      %7056 = vrot.lane.b32.xlu0 %v6713, 105
      %v7057 = vpop.permute.xlu0 %7056
      %v7058 = vsel %vm2831, %v7049, %v7051
      %v7059 = vsel %vm2831, %v7051, %v7053
      %v7060 = vsel %vm2831, %v7053, %v7055
      %v7061 = vsel %vm2831, %v7055, %v7057
      %7066 = vst [vmem:[#allocation2 + $0x100] sm:$0xff] %v7058
      %7067 = vst [vmem:[#allocation2 + $0x108] sm:$0xff] %v7059
      %7068 = vst [vmem:[#allocation2 + $0x110] sm:$0xff] %v7060
      %7069 = vst [vmem:[#allocation2 + $0x118] sm:$0xff] %v7061
      %7070 = vrot.lane.b32.xlu0 %v6715, 105
      %v7071 = vpop.permute.xlu0 %7070
      %7072 = vrot.lane.b32.xlu0 %v6716, 105
      %v7073 = vpop.permute.xlu0 %7072
      %7074 = vrot.lane.b32.xlu0 %v6717, 105
      %v7075 = vpop.permute.xlu0 %7074
      %7076 = vrot.lane.b32.xlu0 %v6718, 105
      %v7077 = vpop.permute.xlu0 %7076
      %7078 = vrot.lane.b32.xlu0 %v6719, 105
      %v7079 = vpop.permute.xlu0 %7078
      %v7080 = vsel %vm2831, %v7071, %v7073
      %v7081 = vsel %vm2831, %v7073, %v7075
      %v7082 = vsel %vm2831, %v7075, %v7077
      %v7083 = vsel %vm2831, %v7077, %v7079
      %7088 = vst [vmem:[#allocation4 + $0x100] sm:$0xff] %v7080
      %7089 = vst [vmem:[#allocation4 + $0x108] sm:$0xff] %v7081
      %7090 = vst [vmem:[#allocation4 + $0x110] sm:$0xff] %v7082
      %7091 = vst [vmem:[#allocation4 + $0x118] sm:$0xff] %v7083
      %v7092 = vld [vmem:[%s4] sm:$0xff]
      %v7093 = vld [vmem:[%s4 + $0x8] sm:$0xff]
      %v7094 = vld [vmem:[%s4 + $0x10] sm:$0xff]
      %v7095 = vld [vmem:[%s4 + $0x18] sm:$0xff]
      %v7096 = vld [vmem:[#allocation2] sm:$0xff]
      %v7097 = vld [vmem:[#allocation2 + $0x8] sm:$0xff]
      %v7098 = vld [vmem:[#allocation2 + $0x10] sm:$0xff]
      %v7099 = vld [vmem:[#allocation2 + $0x18] sm:$0xff]
      %v7100 = vld [vmem:[#allocation2 + $0x20] sm:$0xff]
      %v7101 = vld [vmem:[#allocation2 + $0x28] sm:$0xff]
      %v7102 = vld [vmem:[#allocation2 + $0x30] sm:$0xff]
      %v7103 = vld [vmem:[#allocation2 + $0x38] sm:$0xff]
      %v7104 = vld [vmem:[#allocation2 + $0x40] sm:$0xff]
      %v7105 = vld [vmem:[#allocation2 + $0x48] sm:$0xff]
      %v7106 = vld [vmem:[#allocation2 + $0x50] sm:$0xff]
      %v7107 = vld [vmem:[#allocation2 + $0x58] sm:$0xff]
      %v7108 = vld [vmem:[#allocation2 + $0x60] sm:$0xff]
      %v7109 = vld [vmem:[#allocation2 + $0x68] sm:$0xff]
      %v7110 = vld [vmem:[#allocation2 + $0x70] sm:$0xff]
      %v7111 = vld [vmem:[#allocation2 + $0x78] sm:$0xff]
      %v7112 = vld [vmem:[#allocation2 + $0x80] sm:$0xff]
      %v7113 = vld [vmem:[#allocation2 + $0x88] sm:$0xff]
      %v7114 = vld [vmem:[#allocation2 + $0x90] sm:$0xff]
      %v7115 = vld [vmem:[#allocation2 + $0x98] sm:$0xff]
      %v7116 = vld [vmem:[#allocation2 + $0xa0] sm:$0xff]
      %v7117 = vld [vmem:[#allocation2 + $0xa8] sm:$0xff]
      %v7118 = vld [vmem:[#allocation2 + $0xb0] sm:$0xff]
      %v7119 = vld [vmem:[#allocation2 + $0xb8] sm:$0xff]
      %v7120 = vld [vmem:[#allocation2 + $0xc0] sm:$0xff]
      %v7121 = vld [vmem:[#allocation2 + $0xc8] sm:$0xff]
      %v7122 = vld [vmem:[#allocation2 + $0xd0] sm:$0xff]
      %v7123 = vld [vmem:[#allocation2 + $0xd8] sm:$0xff]
      %v7124 = vld [vmem:[#allocation2 + $0xe0] sm:$0xff]
      %v7125 = vld [vmem:[#allocation2 + $0xe8] sm:$0xff]
      %v7126 = vld [vmem:[#allocation2 + $0xf0] sm:$0xff]
      %v7127 = vld [vmem:[#allocation2 + $0xf8] sm:$0xff]
      %v7128 = vld [vmem:[#allocation2 + $0x100] sm:$0xff]
      %v7129 = vld [vmem:[#allocation2 + $0x108] sm:$0xff]
      %v7130 = vld [vmem:[#allocation2 + $0x110] sm:$0xff]
      %v7131 = vld [vmem:[#allocation2 + $0x118] sm:$0xff]
      %vm7132 = vcmask 588800
      %v7134 = vsel %vm7132, %v7092, 0
      %v7137 = vsel %vm7132, %v7093, 0
      %v7140 = vsel %vm7132, %v7094, 0
      %v7143 = vsel %vm7132, %v7095, 0
      %7145 = vmatprep.subr.mxu0 %v7097
      %7146 = vmatpush1.msra.mxu0 %v7096
      %7147 = vmatprep.subr.mxu0 %v7101
      %7148 = vmatpush1.msra.mxu0 %v7100
      %7149 = vmatprep.subr.mxu0 %v7105
      %7150 = vmatpush1.msra.mxu0 %v7104
      %7151 = vmatprep.subr.mxu0 %v7109
      %7152 = vmatpush1.msra.mxu0 %v7108
      %7153 = vmatprep.subr.mxu0 %v7113
      %7154 = vmatpush1.msra.mxu0 %v7112
      %7155 = vmatprep.subr.mxu0 %v7117
      %7156 = vmatpush1.msra.mxu0 %v7116
      %7157 = vmatprep.subr.mxu0 %v7121
      %7158 = vmatpush1.msra.mxu0 %v7120
      %7159 = vmatprep.subr.mxu0 %v7125
      %7160 = vmatpush1.msra.mxu0 %v7124
      %7161 = vmatprep.subr.mxu0 %v7129
      %7162 = vmatpush1.msra.mxu0 %v7128
      %7163 = vmatprep.subr.mxu0 0.0
      %7164 = vmatpush1.msra.mxu0 0.0
      %7165 = vmatprep.subr.mxu0 0.0
      %7166 = vmatpush1.msra.mxu0 0.0
      %7167 = vmatprep.subr.mxu0 0.0
      %7168 = vmatpush1.msra.mxu0 0.0
      %7169 = vmatprep.subr.mxu0 0.0
      %7170 = vmatpush1.msra.mxu0 0.0
      %7171 = vmatprep.subr.mxu0 0.0
      %7172 = vmatpush1.msra.mxu0 0.0
      %7173 = vmatprep.subr.mxu0 0.0
      %7174 = vmatpush1.msra.mxu0 0.0
      %7175 = vmatprep.subr.mxu0 0.0
      %7176 = vmatpush1.msra.mxu0 0.0
      %7177 = vmatprep.subr.mxu0 0.0
      %7178 = vmatpush1.msra.mxu0 0.0
      %7179 = vmatprep.subr.mxu0 0.0
      %7180 = vmatpush1.msra.mxu0 0.0
      %7181 = vmatprep.subr.mxu0 0.0
      %7182 = vmatpush1.msra.mxu0 0.0
      %7183 = vmatprep.subr.mxu0 0.0
      %7184 = vmatpush1.msra.mxu0 0.0
      %7185 = vmatprep.subr.mxu0 0.0
      %7186 = vmatpush1.msra.mxu0 0.0
      %7187 = vmatprep.subr.mxu0 0.0
      %7188 = vmatpush1.msra.mxu0 0.0
      %7189 = vmatprep.subr.mxu0 0.0
      %7190 = vmatpush1.msra.mxu0 0.0
      %7191 = vmatprep.subr.mxu0 0.0
      %7192 = vmatpush1.msra.mxu0 0.0
      %7193 = vmatprep.subr.mxu0 0.0
      %7194 = vmatpush1.msra.mxu0 0.0
      %7195 = vmatprep.subr.mxu0 0.0
      %7196 = vmatpush1.msra.mxu0 0.0
      %7197 = vmatprep.subr.mxu0 0.0
      %7198 = vmatpush1.msra.mxu0 0.0
      %7199 = vmatprep.subr.mxu0 0.0
      %7200 = vmatpush1.msra.mxu0 0.0
      %7201 = vmatprep.subr.mxu0 0.0
      %7202 = vmatpush1.msra.mxu0 0.0
      %7203 = vmatprep.subr.mxu0 0.0
      %7204 = vmatpush1.msra.mxu0 0.0
      %7205 = vmatprep.subr.mxu0 0.0
      %7206 = vmatpush1.msra.mxu0 0.0
      %7207 = vmatprep.subr.mxu0 0.0
      %7208 = vmatpush1.msra.mxu0 0.0
      %7209 = vmatprep.mubr.f32.mxu0 0.0
      %7210 = vmatmul.mubr.f32.gmra.mrb[0].mxu0 %v7134
      %v7211 = vpop.f32.mrb[0].mxu0
      %v7212 = vadd.f32 0.0, %v7211
      %v7213 = vpop.f32.mrb[0].mxu0
      %v7214 = vadd.f32 0.0, %v7213
      %7215 = vmatprep.mubr.f32.mxu0 0.0
      %7216 = vmatmul.mubr.f32.gmra.mrb[0].mxu0 %v7137
      %v7217 = vpop.f32.mrb[0].mxu0
      %v7218 = vadd.f32 0.0, %v7217
      %v7219 = vpop.f32.mrb[0].mxu0
      %v7220 = vadd.f32 0.0, %v7219
      %7221 = vmatprep.mubr.f32.mxu0 0.0
      %7222 = vmatmul.mubr.f32.gmra.mrb[0].mxu0 %v7140
      %v7223 = vpop.f32.mrb[0].mxu0
      %v7224 = vadd.f32 0.0, %v7223
      %v7225 = vpop.f32.mrb[0].mxu0
      %v7226 = vadd.f32 0.0, %v7225
      %7227 = vmatprep.mubr.f32.mxu0 0.0
      %7228 = vmatmul.mubr.f32.gmra.mrb[0].mxu0 %v7143
      %v7229 = vpop.f32.mrb[0].mxu0
      %v7230 = vadd.f32 0.0, %v7229
      %v7231 = vpop.f32.mrb[0].mxu0
      %v7232 = vadd.f32 0.0, %v7231
      %7233 = vdwg.mxu0
      %7234 = vmatprep.subr.mxu0 %v7099
      %7235 = vmatpush1.msra.mxu0 %v7098
      %7236 = vmatprep.subr.mxu0 %v7103
      %7237 = vmatpush1.msra.mxu0 %v7102
      %7238 = vmatprep.subr.mxu0 %v7107
      %7239 = vmatpush1.msra.mxu0 %v7106
      %7240 = vmatprep.subr.mxu0 %v7111
      %7241 = vmatpush1.msra.mxu0 %v7110
      %7242 = vmatprep.subr.mxu0 %v7115
      %7243 = vmatpush1.msra.mxu0 %v7114
      %7244 = vmatprep.subr.mxu0 %v7119
      %7245 = vmatpush1.msra.mxu0 %v7118
      %7246 = vmatprep.subr.mxu0 %v7123
      %7247 = vmatpush1.msra.mxu0 %v7122
      %7248 = vmatprep.subr.mxu0 %v7127
      %7249 = vmatpush1.msra.mxu0 %v7126
      %7250 = vmatprep.subr.mxu0 %v7131
      %7251 = vmatpush1.msra.mxu0 %v7130
      %7252 = vmatprep.subr.mxu0 0.0
      %7253 = vmatpush1.msra.mxu0 0.0
      %7254 = vmatprep.subr.mxu0 0.0
      %7255 = vmatpush1.msra.mxu0 0.0
      %7256 = vmatprep.subr.mxu0 0.0
      %7257 = vmatpush1.msra.mxu0 0.0
      %7258 = vmatprep.subr.mxu0 0.0
      %7259 = vmatpush1.msra.mxu0 0.0
      %7260 = vmatprep.subr.mxu0 0.0
      %7261 = vmatpush1.msra.mxu0 0.0
      %7262 = vmatprep.subr.mxu0 0.0
      %7263 = vmatpush1.msra.mxu0 0.0
      %7264 = vmatprep.subr.mxu0 0.0
      %7265 = vmatpush1.msra.mxu0 0.0
      %7266 = vmatprep.subr.mxu0 0.0
      %7267 = vmatpush1.msra.mxu0 0.0
      %7268 = vmatprep.subr.mxu0 0.0
      %7269 = vmatpush1.msra.mxu0 0.0
      %7270 = vmatprep.subr.mxu0 0.0
      %7271 = vmatpush1.msra.mxu0 0.0
      %7272 = vmatprep.subr.mxu0 0.0
      %7273 = vmatpush1.msra.mxu0 0.0
      %7274 = vmatprep.subr.mxu0 0.0
      %7275 = vmatpush1.msra.mxu0 0.0
      %7276 = vmatprep.subr.mxu0 0.0
      %7277 = vmatpush1.msra.mxu0 0.0
      %7278 = vmatprep.subr.mxu0 0.0
      %7279 = vmatpush1.msra.mxu0 0.0
      %7280 = vmatprep.subr.mxu0 0.0
      %7281 = vmatpush1.msra.mxu0 0.0
      %7282 = vmatprep.subr.mxu0 0.0
      %7283 = vmatpush1.msra.mxu0 0.0
      %7284 = vmatprep.subr.mxu0 0.0
      %7285 = vmatpush1.msra.mxu0 0.0
      %7286 = vmatprep.subr.mxu0 0.0
      %7287 = vmatpush1.msra.mxu0 0.0
      %7288 = vmatprep.subr.mxu0 0.0
      %7289 = vmatpush1.msra.mxu0 0.0
      %7290 = vmatprep.subr.mxu0 0.0
      %7291 = vmatpush1.msra.mxu0 0.0
      %7292 = vmatprep.subr.mxu0 0.0
      %7293 = vmatpush1.msra.mxu0 0.0
      %7294 = vmatprep.subr.mxu0 0.0
      %7295 = vmatpush1.msra.mxu0 0.0
      %7296 = vmatprep.subr.mxu0 0.0
      %7297 = vmatpush1.msra.mxu0 0.0
      %7298 = vmatprep.mubr.f32.mxu0 0.0
      %7299 = vmatmul.mubr.f32.gmra.mrb[0].mxu0 %v7134
      %v7300 = vpop.f32.mrb[0].mxu0
      %v7301 = vadd.f32 0.0, %v7300
      %v7302 = vpop.f32.mrb[0].mxu0
      %v7303 = vadd.f32 0.0, %v7302
      %7304 = vmatprep.mubr.f32.mxu0 0.0
      %7305 = vmatmul.mubr.f32.gmra.mrb[0].mxu0 %v7137
      %v7306 = vpop.f32.mrb[0].mxu0
      %v7307 = vadd.f32 0.0, %v7306
      %v7308 = vpop.f32.mrb[0].mxu0
      %v7309 = vadd.f32 0.0, %v7308
      %7310 = vmatprep.mubr.f32.mxu0 0.0
      %7311 = vmatmul.mubr.f32.gmra.mrb[0].mxu0 %v7140
      %v7312 = vpop.f32.mrb[0].mxu0
      %v7313 = vadd.f32 0.0, %v7312
      %v7314 = vpop.f32.mrb[0].mxu0
      %v7315 = vadd.f32 0.0, %v7314
      %7316 = vmatprep.mubr.f32.mxu0 0.0
      %7317 = vmatmul.mubr.f32.gmra.mrb[0].mxu0 %v7143
      %v7318 = vpop.f32.mrb[0].mxu0
      %v7319 = vadd.f32 0.0, %v7318
      %v7320 = vpop.f32.mrb[0].mxu0
      %v7321 = vadd.f32 0.0, %v7320
      %7322 = vdwg.mxu0
      %v7323 = vld [vmem:[#allocation4] sm:$0xff]
      %v7324 = vld [vmem:[#allocation4 + $0x8] sm:$0xff]
      %v7325 = vld [vmem:[#allocation4 + $0x10] sm:$0xff]
      %v7326 = vld [vmem:[#allocation4 + $0x18] sm:$0xff]
      %v7327 = vld [vmem:[#allocation4 + $0x20] sm:$0xff]
      %v7328 = vld [vmem:[#allocation4 + $0x28] sm:$0xff]
      %v7329 = vld [vmem:[#allocation4 + $0x30] sm:$0xff]
      %v7330 = vld [vmem:[#allocation4 + $0x38] sm:$0xff]
      %v7331 = vld [vmem:[#allocation4 + $0x40] sm:$0xff]
      %v7332 = vld [vmem:[#allocation4 + $0x48] sm:$0xff]
      %v7333 = vld [vmem:[#allocation4 + $0x50] sm:$0xff]
      %v7334 = vld [vmem:[#allocation4 + $0x58] sm:$0xff]
      %v7335 = vld [vmem:[#allocation4 + $0x60] sm:$0xff]
      %v7336 = vld [vmem:[#allocation4 + $0x68] sm:$0xff]
      %v7337 = vld [vmem:[#allocation4 + $0x70] sm:$0xff]
      %v7338 = vld [vmem:[#allocation4 + $0x78] sm:$0xff]
      %v7339 = vld [vmem:[#allocation4 + $0x80] sm:$0xff]
      %v7340 = vld [vmem:[#allocation4 + $0x88] sm:$0xff]
      %v7341 = vld [vmem:[#allocation4 + $0x90] sm:$0xff]
      %v7342 = vld [vmem:[#allocation4 + $0x98] sm:$0xff]
      %v7343 = vld [vmem:[#allocation4 + $0xa0] sm:$0xff]
      %v7344 = vld [vmem:[#allocation4 + $0xa8] sm:$0xff]
      %v7345 = vld [vmem:[#allocation4 + $0xb0] sm:$0xff]
      %v7346 = vld [vmem:[#allocation4 + $0xb8] sm:$0xff]
      %v7347 = vld [vmem:[#allocation4 + $0xc0] sm:$0xff]
      %v7348 = vld [vmem:[#allocation4 + $0xc8] sm:$0xff]
      %v7349 = vld [vmem:[#allocation4 + $0xd0] sm:$0xff]
      %v7350 = vld [vmem:[#allocation4 + $0xd8] sm:$0xff]
      %v7351 = vld [vmem:[#allocation4 + $0xe0] sm:$0xff]
      %v7352 = vld [vmem:[#allocation4 + $0xe8] sm:$0xff]
      %v7353 = vld [vmem:[#allocation4 + $0xf0] sm:$0xff]
      %v7354 = vld [vmem:[#allocation4 + $0xf8] sm:$0xff]
      %v7355 = vld [vmem:[#allocation4 + $0x100] sm:$0xff]
      %v7356 = vld [vmem:[#allocation4 + $0x108] sm:$0xff]
      %v7357 = vld [vmem:[#allocation4 + $0x110] sm:$0xff]
      %v7358 = vld [vmem:[#allocation4 + $0x118] sm:$0xff]
      %7359 = vmatprep.subr.mxu0 %v7324
      %7360 = vmatpush1.msra.mxu0 %v7323
      %7361 = vmatprep.subr.mxu0 %v7328
      %7362 = vmatpush1.msra.mxu0 %v7327
      %7363 = vmatprep.subr.mxu0 %v7332
      %7364 = vmatpush1.msra.mxu0 %v7331
      %7365 = vmatprep.subr.mxu0 %v7336
      %7366 = vmatpush1.msra.mxu0 %v7335
      %7367 = vmatprep.subr.mxu0 %v7340
      %7368 = vmatpush1.msra.mxu0 %v7339
      %7369 = vmatprep.subr.mxu0 %v7344
      %7370 = vmatpush1.msra.mxu0 %v7343
      %7371 = vmatprep.subr.mxu0 %v7348
      %7372 = vmatpush1.msra.mxu0 %v7347
      %7373 = vmatprep.subr.mxu0 %v7352
      %7374 = vmatpush1.msra.mxu0 %v7351
      %7375 = vmatprep.subr.mxu0 %v7356
      %7376 = vmatpush1.msra.mxu0 %v7355
      %7377 = vmatprep.subr.mxu0 0.0
      %7378 = vmatpush1.msra.mxu0 0.0
      %7379 = vmatprep.subr.mxu0 0.0
      %7380 = vmatpush1.msra.mxu0 0.0
      %7381 = vmatprep.subr.mxu0 0.0
      %7382 = vmatpush1.msra.mxu0 0.0
      %7383 = vmatprep.subr.mxu0 0.0
      %7384 = vmatpush1.msra.mxu0 0.0
      %7385 = vmatprep.subr.mxu0 0.0
      %7386 = vmatpush1.msra.mxu0 0.0
      %7387 = vmatprep.subr.mxu0 0.0
      %7388 = vmatpush1.msra.mxu0 0.0
      %7389 = vmatprep.subr.mxu0 0.0
      %7390 = vmatpush1.msra.mxu0 0.0
      %7391 = vmatprep.subr.mxu0 0.0
      %7392 = vmatpush1.msra.mxu0 0.0
      %7393 = vmatprep.subr.mxu0 0.0
      %7394 = vmatpush1.msra.mxu0 0.0
      %7395 = vmatprep.subr.mxu0 0.0
      %7396 = vmatpush1.msra.mxu0 0.0
      %7397 = vmatprep.subr.mxu0 0.0
      %7398 = vmatpush1.msra.mxu0 0.0
      %7399 = vmatprep.subr.mxu0 0.0
      %7400 = vmatpush1.msra.mxu0 0.0
      %7401 = vmatprep.subr.mxu0 0.0
      %7402 = vmatpush1.msra.mxu0 0.0
      %7403 = vmatprep.subr.mxu0 0.0
      %7404 = vmatpush1.msra.mxu0 0.0
      %7405 = vmatprep.subr.mxu0 0.0
      %7406 = vmatpush1.msra.mxu0 0.0
      %7407 = vmatprep.subr.mxu0 0.0
      %7408 = vmatpush1.msra.mxu0 0.0
      %7409 = vmatprep.subr.mxu0 0.0
      %7410 = vmatpush1.msra.mxu0 0.0
      %7411 = vmatprep.subr.mxu0 0.0
      %7412 = vmatpush1.msra.mxu0 0.0
      %7413 = vmatprep.subr.mxu0 0.0
      %7414 = vmatpush1.msra.mxu0 0.0
      %7415 = vmatprep.subr.mxu0 0.0
      %7416 = vmatpush1.msra.mxu0 0.0
      %7417 = vmatprep.subr.mxu0 0.0
      %7418 = vmatpush1.msra.mxu0 0.0
      %7419 = vmatprep.subr.mxu0 0.0
      %7420 = vmatpush1.msra.mxu0 0.0
      %7421 = vmatprep.subr.mxu0 0.0
      %7422 = vmatpush1.msra.mxu0 0.0
      %7423 = vmatprep.mubr.f32.mxu0 0.0
      %7424 = vmatmul.mubr.f32.gmra.mrb[0].mxu0 %v7134
      %v7425 = vpop.f32.mrb[0].mxu0
      %v7426 = vadd.f32 0.0, %v7425
      %v7427 = vpop.f32.mrb[0].mxu0
      %v7428 = vadd.f32 0.0, %v7427
      %7429 = vmatprep.mubr.f32.mxu0 0.0
      %7430 = vmatmul.mubr.f32.gmra.mrb[0].mxu0 %v7137
      %v7431 = vpop.f32.mrb[0].mxu0
      %v7432 = vadd.f32 0.0, %v7431
      %v7433 = vpop.f32.mrb[0].mxu0
      %v7434 = vadd.f32 0.0, %v7433
      %7435 = vdwg.mxu0
      %7436 = vmatprep.subr.mxu0 %v7326
      %7437 = vmatpush1.msra.mxu0 %v7325
      %7438 = vmatprep.subr.mxu0 %v7330
      %7439 = vmatpush1.msra.mxu0 %v7329
      %7440 = vmatprep.subr.mxu0 %v7334
      %7441 = vmatpush1.msra.mxu0 %v7333
      %7442 = vmatprep.subr.mxu0 %v7338
      %7443 = vmatpush1.msra.mxu0 %v7337
      %7444 = vmatprep.subr.mxu0 %v7342
      %7445 = vmatpush1.msra.mxu0 %v7341
      %7446 = vmatprep.subr.mxu0 %v7346
      %7447 = vmatpush1.msra.mxu0 %v7345
      %7448 = vmatprep.subr.mxu0 %v7350
      %7449 = vmatpush1.msra.mxu0 %v7349
      %7450 = vmatprep.subr.mxu0 %v7354
      %7451 = vmatpush1.msra.mxu0 %v7353
      %7452 = vmatprep.subr.mxu0 %v7358
      %7453 = vmatpush1.msra.mxu0 %v7357
      %7454 = vmatprep.subr.mxu0 0.0
      %7455 = vmatpush1.msra.mxu0 0.0
      %7456 = vmatprep.subr.mxu0 0.0
      %7457 = vmatpush1.msra.mxu0 0.0
      %7458 = vmatprep.subr.mxu0 0.0
      %7459 = vmatpush1.msra.mxu0 0.0
      %7460 = vmatprep.subr.mxu0 0.0
      %7461 = vmatpush1.msra.mxu0 0.0
      %7462 = vmatprep.subr.mxu0 0.0
      %7463 = vmatpush1.msra.mxu0 0.0
      %7464 = vmatprep.subr.mxu0 0.0
      %7465 = vmatpush1.msra.mxu0 0.0
      %7466 = vmatprep.subr.mxu0 0.0
      %7467 = vmatpush1.msra.mxu0 0.0
      %7468 = vmatprep.subr.mxu0 0.0
      %7469 = vmatpush1.msra.mxu0 0.0
      %7470 = vmatprep.subr.mxu0 0.0
      %7471 = vmatpush1.msra.mxu0 0.0
      %7472 = vmatprep.subr.mxu0 0.0
      %7473 = vmatpush1.msra.mxu0 0.0
      %7474 = vmatprep.subr.mxu0 0.0
      %7475 = vmatpush1.msra.mxu0 0.0
      %7476 = vmatprep.subr.mxu0 0.0
      %7477 = vmatpush1.msra.mxu0 0.0
      %7478 = vmatprep.subr.mxu0 0.0
      %7479 = vmatpush1.msra.mxu0 0.0
      %7480 = vmatprep.subr.mxu0 0.0
      %7481 = vmatpush1.msra.mxu0 0.0
      %7482 = vmatprep.subr.mxu0 0.0
      %7483 = vmatpush1.msra.mxu0 0.0
      %7484 = vmatprep.subr.mxu0 0.0
      %7485 = vmatpush1.msra.mxu0 0.0
      %7486 = vmatprep.subr.mxu0 0.0
      %7487 = vmatpush1.msra.mxu0 0.0
      %7488 = vmatprep.subr.mxu0 0.0
      %7489 = vmatpush1.msra.mxu0 0.0
      %7490 = vmatprep.subr.mxu0 0.0
      %7491 = vmatpush1.msra.mxu0 0.0
      %7492 = vmatprep.subr.mxu0 0.0
      %7493 = vmatpush1.msra.mxu0 0.0
      %7494 = vmatprep.subr.mxu0 0.0
      %7495 = vmatpush1.msra.mxu0 0.0
      %7496 = vmatprep.subr.mxu0 0.0
      %7497 = vmatpush1.msra.mxu0 0.0
      %7498 = vmatprep.subr.mxu0 0.0
      %7499 = vmatpush1.msra.mxu0 0.0
      %7500 = vmatprep.mubr.f32.mxu0 0.0
      %7501 = vmatmul.mubr.f32.gmra.mrb[0].mxu0 %v7134
      %v7502 = vpop.f32.mrb[0].mxu0
      %v7503 = vadd.f32 0.0, %v7502
      %v7504 = vpop.f32.mrb[0].mxu0
      %v7505 = vadd.f32 0.0, %v7504
      %7506 = vmatprep.mubr.f32.mxu0 0.0
      %7507 = vmatmul.mubr.f32.gmra.mrb[0].mxu0 %v7137
      %v7508 = vpop.f32.mrb[0].mxu0
      %v7509 = vadd.f32 0.0, %v7508
      %v7510 = vpop.f32.mrb[0].mxu0
      %v7511 = vadd.f32 0.0, %v7510
      %7512 = vdwg.mxu0
      %v7513 = vadd.f32 %v7212, 0.0
      %v7514 = vadd.f32 %v7214, 0.0
      %v7515 = vadd.f32 %v7301, 0.0
      %v7516 = vadd.f32 %v7303, 0.0
      %v7517 = vadd.f32 %v7218, 0.0
      %v7518 = vadd.f32 %v7220, 0.0
      %v7519 = vadd.f32 %v7307, 0.0
      %v7520 = vadd.f32 %v7309, 0.0
      %v7521 = vadd.f32 %v7513, %v7224
      %v7522 = vadd.f32 %v7514, %v7226
      %v7523 = vadd.f32 %v7515, %v7313
      %v7524 = vadd.f32 %v7516, %v7315
      %v7525 = vadd.f32 %v7517, %v7230
      %v7526 = vadd.f32 %v7518, %v7232
      %v7527 = vadd.f32 %v7519, %v7319
      %v7528 = vadd.f32 %v7520, %v7321
      %v7529 = vadd.f32 %v7521, %v7426
      %v7530 = vadd.f32 %v7522, %v7428
      %v7531 = vadd.f32 %v7523, %v7503
      %v7532 = vadd.f32 %v7524, %v7505
      %v7533 = vadd.f32 %v7525, %v7432
      %v7534 = vadd.f32 %v7526, %v7434
      %v7535 = vadd.f32 %v7527, %v7509
      %v7536 = vadd.f32 %v7528, %v7511
      %vm7537 = vcmp.gt.f32.partialorder %v7529, 0.0
      %vm7538 = vcmp.gt.f32.partialorder %v7530, 0.0
      %vm7539 = vcmp.gt.f32.partialorder %v7531, 0.0
      %vm7540 = vcmp.gt.f32.partialorder %v7532, 0.0
      %v7541 = vstv %s386
      %v7542 = vmul.f32 %v7541, %v7529
      %v7543 = vmul.f32 %v7541, %v7530
      %v7544 = vmul.f32 %v7541, %v7531
      %v7545 = vmul.f32 %v7541, %v7532
      %v7546 = vsel %vm7537, %v7529, %v7542
      %v7547 = vsel %vm7538, %v7530, %v7543
      %v7548 = vsel %vm7539, %v7531, %v7544
      %v7549 = vsel %vm7540, %v7532, %v7545
      %vm7550 = vcmp.gt.f32.partialorder %v7533, 0.0
      %vm7551 = vcmp.gt.f32.partialorder %v7534, 0.0
      %vm7552 = vcmp.gt.f32.partialorder %v7535, 0.0
      %vm7553 = vcmp.gt.f32.partialorder %v7536, 0.0
      %v7554 = vstv %s387
      %v7555 = vmul.f32 %v7554, %v7533
      %v7556 = vmul.f32 %v7554, %v7534
      %v7557 = vmul.f32 %v7554, %v7535
      %v7558 = vmul.f32 %v7554, %v7536
      %v7559 = vsel %vm7550, %v7533, %v7555
      %v7560 = vsel %vm7551, %v7534, %v7556
      %v7561 = vsel %vm7552, %v7535, %v7557
      %v7562 = vsel %vm7553, %v7536, %v7558
      %v7563 = vsub.f32 %v7546, %v7559
      %v7564 = vsub.f32 %v7547, %v7560
      %v7565 = vsub.f32 %v7548, %v7561
      %v7566 = vsub.f32 %v7549, %v7562
      %v7567 = vand.u32 2147483647, %v7563
      %v7568 = vand.u32 2147483647, %v7564
      %v7569 = vand.u32 2147483647, %v7565
      %v7570 = vand.u32 2147483647, %v7566
      %v7571 = vsub.f32 0.0, %v7567
      %v7572 = vsub.f32 0.0, %v7568
      %v7573 = vsub.f32 0.0, %v7569
      %v7574 = vsub.f32 0.0, %v7570
      %v7575 = vmul.f32 %v7571, 1.442695
      %v7576 = vpow.pop %v7575
      %v7577 = vmul.f32 %v7572, 1.442695
      %v7578 = vpow.pop %v7577
      %v7579 = vmul.f32 %v7573, 1.442695
      %v7580 = vpow.pop %v7579
      %v7581 = vmul.f32 %v7574, 1.442695
      %v7582 = vpow.pop %v7581
      %v7583 = vadd.f32 %v7576, 1.0
      %v7584 = vadd.f32 %v7578, 1.0
      %v7585 = vadd.f32 %v7580, 1.0
      %v7586 = vadd.f32 %v7582, 1.0
      %v7587 = vrcp.pop %v7583
      %v7588 = vmul.f32 1.0, %v7587
      %v7589 = vrcp.pop %v7584
      %v7590 = vmul.f32 1.0, %v7589
      %v7591 = vrcp.pop %v7585
      %v7592 = vmul.f32 1.0, %v7591
      %v7593 = vrcp.pop %v7586
      %v7594 = vmul.f32 1.0, %v7593
      %7595 = vst [vmem:[%s371] sm:$0xff] %v7588
      %7596 = vst [vmem:[%s371 + $0x8] sm:$0xff] %v7590
      %7597 = vst [vmem:[%s371 + $0x10] sm:$0xff] %v7592
      %7598 = vst [vmem:[%s371 + $0x18] sm:$0xff] %v7594
      %v7599 = vsub.f32 %v378, %v7588
      %v7600 = vsub.f32 %v379, %v7590
      %v7601 = vsub.f32 %v380, %v7592
      %v7602 = vsub.f32 %v381, %v7594
      %7603 = vst [vmem:[%s376] sm:$0xff] %v7599
      %7604 = vst [vmem:[%s376 + $0x8] sm:$0xff] %v7600
      %7605 = vst [vmem:[%s376 + $0x10] sm:$0xff] %v7601
      %7606 = vst [vmem:[%s376 + $0x18] sm:$0xff] %v7602
      %p7607 = scmp.lt.s32.totalorder %s26, 1
      %s7608 = scalar_select %p7607, %s26, 1
      %s7609 = smul.addr %s7608, 4
      %s7610 = smul.addr %s7609, 8
      %s7611 = scalar_lea.vmem %s9, %s7610
      %p7612 = scmp.lt.s32.totalorder %s26, 1
      %s7613 = scalar_select %p7612, %s26, 1
      %s7614 = smul.addr %s7613, 4
      %s7615 = smul.addr %s7614, 8
      %s7616 = scalar_lea.vmem %s10, %s7615
      // Predicated region
      $region57: #{dcn_forward.1} parent=55 // pred_check
        %p7617 = pneg %p238
      $region58: #{dcn_forward.1} parent=55 // pred_check_branch
        %7619 = sbr.rel (%p7617) target = $region60
      $region59: #{dcn_forward.1} parent=55 // pred_region
        _
      $region60: #{dcn_forward.1} parent=55 // pred_fallthru
        _
      // Predicated region
      $region61: #{dcn_forward.1} parent=55 // pred_check
        %p7620 = pneg %p264
      $region62: #{dcn_forward.1} parent=55 // pred_check_branch
        %7622 = sbr.rel (%p7620) target = $region64
      $region63: #{dcn_forward.1} parent=55 // pred_region
        _
      $region64: #{dcn_forward.1} parent=55 // pred_fallthru
        _
    $region56: #{dcn_forward.1} parent=5 // pred_fallthru
      _
    %p7623 = scmp.le.s32.totalorder 2, %s21
    // Predicated region
    $region65: #{dcn_forward.1} parent=5 // pred_check
      %p7624 = pneg %p7623
    $region66: #{dcn_forward.1} parent=5 // pred_check_branch
      %7626 = sbr.rel (%p7624) target = $region68
    $region67: #{dcn_forward.1} parent=5 // pred_region
      %s7627 = ssub.s32 %s21, 2
      // Predicated region
      $region69: #{dcn_forward.1} parent=67 // pred_check
        %p7628 = pneg %p244
      $region70: #{dcn_forward.1} parent=67 // pred_check_branch
        %7630 = sbr.rel (%p7628) target = $region72
      $region71: #{dcn_forward.1} parent=67 // pred_region
        %p7631 = scmp.lt.s32.totalorder %s27, 1
        %s7632 = scalar_select %p7631, %s27, 1
        %s7633 = smul.addr %s7632, 4
        %s7634 = smul.addr %s7633, 8
        %s7635 = scalar_lea.vmem %s9, %s7634
      $region72: #{dcn_forward.1} parent=67 // pred_fallthru
        _
      // Predicated region
      $region73: #{dcn_forward.1} parent=67 // pred_check
        %p7636 = pneg %p270
      $region74: #{dcn_forward.1} parent=67 // pred_check_branch
        %7638 = sbr.rel (%p7636) target = $region76
      $region75: #{dcn_forward.1} parent=67 // pred_region
        %p7639 = scmp.lt.s32.totalorder %s27, 1
        %s7640 = scalar_select %p7639, %s27, 1
        %s7641 = smul.addr %s7640, 4
        %s7642 = smul.addr %s7641, 8
        %s7643 = scalar_lea.vmem %s10, %s7642
      $region76: #{dcn_forward.1} parent=67 // pred_fallthru
        _
    $region68: #{dcn_forward.1} parent=5 // pred_fallthru
      _
  $region6: #{dcn_forward.1} parent=0 // loop_footer
    %s25 = sadd.s32 1, %s21
  $region7: #{dcn_forward.1} parent=0 // loop_footer_branch
    %20 = sbr.rel target = $region3
  $region8: #{dcn_forward.1} parent=0 // loop_exit
    _

</llo_original>
